<compile_context>
chip_gen: v6e
topology: v6e:2x2x1
jax: 0.10.0
libtpu: 0.0.40
codegen_flags: <defaults>
</compile_context>

<pallas_src>
import functools
import math
import numpy as np
import jax
import jax.numpy as jnp
from jax import lax
from jax.experimental import pallas as pl
from jax.experimental.pallas import tpu as pltpu

# --- ANI-2x-like radial AEV parameters (radial terms only) -------------------
RADIAL_CUTOFF = 5.1
RADIAL_ETA = 19.7
NUM_RADIAL_SHIFTS = 16
RADIAL_SHIFT_START = 0.8
RADIAL_SHIFT_STEP = (RADIAL_CUTOFF - RADIAL_SHIFT_START) / NUM_RADIAL_SHIFTS
ANCHOR_EVERY = 4                 # re-anchor the exp recurrence every 4 shifts
NUM_SPECIES = 5
AEV_FEATS = NUM_SPECIES * NUM_RADIAL_SHIFTS   # 80 radial features
FEAT_PAD = 128                                # lane-aligned MLP input width
RES_FEATURE_LANE = AEV_FEATS                  # residue-index feature = input 80
VMEM_LIMIT = 32 * 1024 * 1024


def _round_up(x, m):
    return ((x + m - 1) // m) * m


def _pick_tile(total, cap, quantum=128):
    """Largest divisor of `total` that is a multiple of `quantum` and <= cap."""
    best = quantum
    d = quantum
    while d <= min(cap, total):
        if total % d == 0:
            best = d
        d += quantum
    return best


# -----------------------------------------------------------------------------
# Kernel 1: radial AEV for a gathered set of query atoms.
# grid = (frame, query tile, neighbor tile);  neighbor axis accumulated.
# -----------------------------------------------------------------------------
def aev_kernel(qc_ref, qi_ref, nt_ref, oh_ref, aev_ref, acc_ref, *,
               rc, eta, shift_start, shift_step, num_shifts, anchor_every):
    nk = pl.program_id(2)

    @pl.when(nk == 0)
    def _init():
        acc_ref[...] = jnp.zeros_like(acc_ref)

    cq = qc_ref[...]                       # (TQ, 3)   f32 query coords
    cnT = nt_ref[...]                      # (3, TNA)  f32 neighbors (pre-transposed, lane-dense)
    TQ = cq.shape[0]
    TNA = cnT.shape[1]

    # r^2 from coordinate differences (no |q|^2+|n|^2-2q.n cancellation).
    dx = cq[:, 0:1] - cnT[0:1, :]
    dy = cq[:, 1:2] - cnT[1:2, :]
    dz = cq[:, 2:3] - cnT[2:3, :]
    r2 = dx * dx + dy * dy + dz * dz
    r = jnp.sqrt(r2 + 1e-12)

    # Cutoff + self-pair mask.  Queries are a gathered subset, so the self test
    # uses the global atom id carried in qi_ref (padded query rows carry -1).
    col = nk * TNA + lax.broadcasted_iota(jnp.int32, (TQ, TNA), 1)
    valid = jnp.logical_and(qi_ref[...] != col, r < rc)
    # 0.25 * cutoff fn, hoisted out of the shift loop (masked -> 0 so the
    # recurrence below can never contribute NaN/inf to the features).
    fc4 = jnp.where(valid, 0.125 * (jnp.cos((jnp.pi / rc) * r) + 1.0), 0.0)

    # Radial gaussians via an anchored exp recurrence:
    #   G_k = exp(-eta*(r-mu_k)^2),  G_k = G_{k-1} * C * c_k,
    #   C   = exp(2*eta*step*min(r, rc))      (clamped -> finite, <= ~3e23)
    #   c_k = exp(-eta*step*(mu_k + mu_{k-1}))   static python constants.
    # A fresh exp anchor every `anchor_every` shifts keeps the multiplicative
    # chain short enough that f32 underflow of an anchor only drops terms
    # below ~1e-14 (a full 16-step chain would be numerically wrong).
    # EUP work per pair: 4 + 1 exps instead of 16.
    oh = oh_ref[...]                                   # (TNA, S) one-hot species
    C = jnp.exp((2.0 * eta * shift_step) * jnp.minimum(r, rc))
    parts = []
    g = None
    for k in range(num_shifts):                        # static unroll, K = 16
        mu_k = shift_start + shift_step * k
        if k % anchor_every == 0:
            d = r - mu_k
            g = jnp.exp(-eta * d * d)                  # anchor (EUP)
        else:
            c_k = math.exp(-eta * shift_step * (2.0 * mu_k - shift_step))
            g = g * C * c_k                            # 2 VALU muls, no EUP
        # per-species neighbor reduction on the MXU: (TQ,TNA)@(TNA,S)
        parts.append(jnp.dot(g * fc4, oh, preferred_element_type=jnp.float32))
    feats = jnp.concatenate(parts, axis=-1)            # (TQ, S*K), shift-major
    pad = acc_ref.shape[-1] - feats.shape[-1]
    if pad > 0:
        feats = jnp.concatenate([feats, jnp.zeros((TQ, pad), jnp.float32)], axis=-1)
    acc_ref[...] += feats

    @pl.when(nk == pl.num_programs(2) - 1)
    def _store():
        aev_ref[...] = acc_ref[...].astype(aev_ref.dtype)   # unmasked 128-lane store


def compute_aevs(q_coords, q_gidx, neigh_t, onehot, *, tile_q=128, tile_nbr=2048,
                 out_dtype=jnp.bfloat16):
    """q_coords: (F, n, 3); q_gidx: (n,) global atom ids; neigh_t: (F, 3, A_pad);
    onehot: (A_pad, S).  Returns ((F, n_pad, FEAT_PAD) AEVs, n_pad)."""
    F, n, _ = q_coords.shape
    A_pad = neigh_t.shape[2]
    S = onehot.shape[1]

    n_pad = max(_round_up(n, 128), 128)
    if n_pad != n:
        q_coords = jnp.pad(q_coords, ((0, 0), (0, n_pad - n), (0, 0)))
        q_gidx = jnp.pad(q_gidx, (0, n_pad - n), constant_values=-1)
    q_gidx2 = q_gidx.astype(jnp.int32).reshape(n_pad, 1)

    TQ = _pick_tile(n_pad, tile_q)
    if F * (n_pad // TQ) < 2 and n_pad >= 16:
        TQ = n_pad // 2                 # keep >= 2 parallel steps (v7x: 2 TCs)
    TNA = _pick_tile(A_pad, tile_nbr)   # bound intermediates at (TQ, TNA)

    kernel = functools.partial(
        aev_kernel, rc=RADIAL_CUTOFF, eta=RADIAL_ETA,
        shift_start=RADIAL_SHIFT_START, shift_step=RADIAL_SHIFT_STEP,
        num_shifts=NUM_RADIAL_SHIFTS, anchor_every=ANCHOR_EVERY)
    aevs = pl.pallas_call(
        kernel,
        out_shape=jax.ShapeDtypeStruct((F, n_pad, FEAT_PAD), out_dtype),
        grid_spec=pltpu.PrefetchScalarGridSpec(
            num_scalar_prefetch=0,
            grid=(F, n_pad // TQ, A_pad // TNA),
            in_specs=[
                pl.BlockSpec((None, TQ, 3), lambda f, q, k: (f, q, 0)),   # query tile
                pl.BlockSpec((TQ, 1), lambda f, q, k: (q, 0)),            # query ids
                pl.BlockSpec((None, 3, TNA), lambda f, q, k: (f, 0, k)),  # neighbors^T
                pl.BlockSpec((TNA, S), lambda f, q, k: (k, 0)),           # one-hot
            ],
            out_specs=pl.BlockSpec((None, TQ, FEAT_PAD), lambda f, q, k: (f, q, 0)),
            scratch_shapes=[pltpu.VMEM((TQ, FEAT_PAD), jnp.float32)]),
        compiler_params=pltpu.CompilerParams(
            dimension_semantics=("parallel", "parallel", "arbitrary"),
            vmem_limit_bytes=VMEM_LIMIT),
    )(q_coords, q_gidx2, neigh_t, onehot)
    return aevs, n_pad


# -----------------------------------------------------------------------------
# Kernel 2: packed ensemble MLP + mean / unbiased-std / denormalization.
# x is read in its natural (rows, 128) layout; the flip to lane-dense rows
# happens inside the kernel via an NT matmul.  Outputs are lane-dense (1, TN).
# -----------------------------------------------------------------------------
def _celu(x):
    # CELU(alpha=1): x for x>0 else exp(x)-1 (arg clamped so exp never overflows)
    return jnp.where(x > 0, x, jnp.exp(jnp.minimum(x, 0.0)) - 1.0)


def ensemble_kernel(x_ref, res_ref, scale_ref, shift_ref,
                    w1_ref, w1r_ref, b1_ref, w2_ref, b2_ref, w3_ref, b3_ref,
                    cs_ref, std_ref, *, num_models):
    x = x_ref[...]                                                  # (TN, 128) bf16
    # W1 @ x^T — in-kernel flip, no separate XLA transpose pass over HBM.
    h = lax.dot_general(w1_ref[...], x, (((1,), (1,)), ((), ())),
                        preferred_element_type=jnp.float32)         # (E*H1, TN)
    # Residue-index feature as an f32 rank-1 update (lane 80 of the AEV buffer
    # is zero), so residue ids never get bf16-quantized.
    h = h + w1r_ref[...] * res_ref[...]
    h = _celu(h + b1_ref[...])
    h = jnp.dot(w2_ref[...], h.astype(w2_ref.dtype),
                preferred_element_type=jnp.float32)                 # (E*H2, TN)
    h = _celu(h + b2_ref[...])
    out = jnp.dot(w3_ref[...], h.astype(w3_ref.dtype),
                  preferred_element_type=jnp.float32) + b3_ref[...]  # (E, TN)

    mean = jnp.mean(out, axis=0, keepdims=True)                     # (1, TN)
    if num_models > 1:    # unbiased (ddof=1) std, matching torch.Tensor.std
        c = out - mean
        var = jnp.sum(c * c, axis=0, keepdims=True) * (1.0 / (num_models - 1))
        std = jnp.sqrt(jnp.maximum(var, 0.0))
    else:
        std = jnp.zeros_like(mean)
    scale = scale_ref[...]
    cs_ref[...] = mean * scale + shift_ref[...]                     # lane-dense stores
    std_ref[...] = std * scale


def pack_ensemble_params(p, compute_dtype=jnp.bfloat16):
    """Pack per-model weights into lane-dense, 128-padded MXU operands."""
    W1, b1 = p["W1"], p["b1"]          # (E, D_IN, H1), (E, 1, H1); D_IN = S*K + 1
    W2, b2 = p["W2"], p["b2"]          # (E, H1, H2),  (E, 1, H2)
    W3, b3 = p["W3"], p["b3"]          # (E, H2, 1),   (E, 1, 1)
    E, d_in, H1 = W1.shape
    H2 = W2.shape[2]
    S, K = NUM_SPECIES, NUM_RADIAL_SHIFTS
    assert d_in == S * K + 1

    # AEV kernel emits shift-major features (f = k*S + s); conventional ANI
    # weights are species-major (c = s*K + k).  Permute once at pack time.
    f = np.arange(S * K)
    conv = (f % S) * K + (f // S)
    W1aev = jnp.take(W1[:, :S * K, :], jnp.asarray(conv), axis=1)    # (E, S*K, H1)
    W1p = jnp.zeros((E, FEAT_PAD, H1), W1.dtype).at[:, :S * K, :].set(W1aev)
    w1 = jnp.transpose(W1p, (0, 2, 1)).reshape(E * H1, FEAT_PAD)     # stacked W1^T
    # residue-index weight column kept separately, in f32
    w1_res = jnp.transpose(W1[:, S * K:S * K + 1, :], (0, 2, 1)).reshape(E * H1, 1)

    b1p = jnp.transpose(b1, (0, 2, 1)).reshape(E * H1, 1)
    w2 = jnp.zeros((E * H2, E * H1), W2.dtype)                       # block-diag W2^T
    w3 = jnp.zeros((E, E * H2), W3.dtype)                            # packed W3^T
    for e in range(E):
        w2 = w2.at[e * H2:(e + 1) * H2, e * H1:(e + 1) * H1].set(W2[e].T)
        w3 = w3.at[e, e * H2:(e + 1) * H2].set(W3[e, :, 0])
    b2p = jnp.transpose(b2, (0, 2, 1)).reshape(E * H2, 1)
    b3p = b3.reshape(E, 1)
    return {"w1": w1.astype(compute_dtype), "w1_res": w1_res.astype(jnp.float32),
            "b1": b1p.astype(jnp.float32),
            "w2": w2.astype(compute_dtype), "b2": b2p.astype(jnp.float32),
            "w3": w3.astype(compute_dtype), "b3": b3p.astype(jnp.float32),
            "E": E, "H1": H1, "H2": H2}


def run_ensemble(x_flat, res_row, scale_row, shift_row, packed, *, tile_n=2048):
    """x_flat: (N, FEAT_PAD) AEV rows; res/scale/shift: (1, N) f32 per-row data."""
    N = x_flat.shape[0]
    E, H1, H2 = packed["E"], packed["H1"], packed["H2"]
    TN = _pick_tile(N, tile_n)
    if N // TN < 2 and N >= 256:
        TN = _pick_tile(N, TN // 2)      # keep both v7x TensorCores busy

    cs, std = pl.pallas_call(
        functools.partial(ensemble_kernel, num_models=E),
        out_shape=(jax.ShapeDtypeStruct((1, N), jnp.float32),
                   jax.ShapeDtypeStruct((1, N), jnp.float32)),
        grid_spec=pltpu.PrefetchScalarGridSpec(
            num_scalar_prefetch=0,
            grid=(N // TN,),
            in_specs=[
                pl.BlockSpec((TN, FEAT_PAD), lambda i: (i, 0)),      # AEV rows
                pl.BlockSpec((1, TN), lambda i: (0, i)),             # residue ids (f32)
                pl.BlockSpec((1, TN), lambda i: (0, i)),             # denorm scale
                pl.BlockSpec((1, TN), lambda i: (0, i)),             # denorm shift
                pl.BlockSpec((E * H1, FEAT_PAD), lambda i: (0, 0)),  # stacked W1^T
                pl.BlockSpec((E * H1, 1), lambda i: (0, 0)),         # W1 residue column
                pl.BlockSpec((E * H1, 1), lambda i: (0, 0)),
                pl.BlockSpec((E * H2, E * H1), lambda i: (0, 0)),    # block-diag W2^T
                pl.BlockSpec((E * H2, 1), lambda i: (0, 0)),
                pl.BlockSpec((E, E * H2), lambda i: (0, 0)),         # packed W3^T
                pl.BlockSpec((E, 1), lambda i: (0, 0)),
            ],
            out_specs=[pl.BlockSpec((1, TN), lambda i: (0, i)),
                       pl.BlockSpec((1, TN), lambda i: (0, i))]),
        compiler_params=pltpu.CompilerParams(
            dimension_semantics=("parallel",),
            vmem_limit_bytes=VMEM_LIMIT),
    )(x_flat, res_row, scale_row, shift_row,
      packed["w1"], packed["w1_res"], packed["b1"], packed["w2"], packed["b2"],
      packed["w3"], packed["b3"])
    return cs[0], std[0]


# -----------------------------------------------------------------------------
# Plain-JAX glue mirroring ChemicalShiftPredictor.forward
# -----------------------------------------------------------------------------
def run_models(coords_b, neigh_t, onehot, res_idx, indices, packed_params,
               ens_means, ens_stdevs, interested_atypes, *,
               tile_q=128, tile_nbr=2048, tile_n=2048):
    cs_all = {}
    F = coords_b.shape[0]
    for atype in interested_atypes:
        idx = indices[atype]
        n = int(idx.shape[0])
        # Tiny per-atype gathers on coords / residue ids (not the big activation).
        q_coords = jnp.take(coords_b, idx, axis=1)                   # (F, n, 3)
        aevs, n_pad = compute_aevs(q_coords, idx, neigh_t, onehot,
                                   tile_q=tile_q, tile_nbr=tile_nbr)
        x_flat = aevs.reshape(F * n_pad, FEAT_PAD)                   # free reshape

        ridx = jnp.take(res_idx, idx, axis=0)                        # (n,)
        res_vals = jnp.pad(ridx.astype(jnp.float32), (0, n_pad - n))
        scale_vals = jnp.pad(ens_stdevs[atype][ridx].astype(jnp.float32),
                             (0, n_pad - n), constant_values=1.0)
        shift_vals = jnp.pad(ens_means[atype][ridx].astype(jnp.float32),
                             (0, n_pad - n))
        res_row = jnp.tile(res_vals, F).reshape(1, F * n_pad)
        scale_row = jnp.tile(scale_vals, F).reshape(1, F * n_pad)
        shift_row = jnp.tile(shift_vals, F).reshape(1, F * n_pad)

        cs, std = run_ensemble(x_flat, res_row, scale_row, shift_row,
                               packed_params[atype], tile_n=tile_n)
        cs_all[atype] = cs.reshape(F, n_pad)[:, :n]
        cs_all[atype + "_std"] = std.reshape(F, n_pad)[:, :n]
    # TODO(synk): MoE-style fusion of all atom types into one pallas_call
    # (stacked W1, block-diag W2/W3, scalar-prefetched group offsets) would
    # further fill v6e/v7x's 256-wide MXU; kept per-type here.
    return cs_all


def combine_all_frames(cs_all_batches, num_frames, res_idx, indices,
                       interested_atypes):
    all_cs, all_std, atom_types, residue_ids = [], [], [], []
    for atype in interested_atypes:
        cs = jnp.concatenate([b[atype] for b in cs_all_batches], axis=0)
        std = jnp.concatenate([b[atype + "_std"] for b in cs_all_batches], axis=0)
        ridx = jnp.take(res_idx, indices[atype], axis=0)
        if num_frames == 1:
            cs = cs.reshape(-1)
            std = std.reshape(-1)
        else:
            cs = cs.T
            std = std.T
        all_cs.append(cs)
        all_std.append(std)
        atom_types.extend([atype] * int(ridx.shape[0]))
        residue_ids.extend(np.asarray(ridx).reshape(-1).tolist())
    combined = {"CHEMICAL_SHIFT": jnp.concatenate(all_cs, axis=0),
                "CHEMICAL_SHIFT_STD": jnp.concatenate(all_std, axis=0)}
    # TODO(synk): pandas DataFrame output replaced with a plain Python dict.
    type_table = {"ATOM_TYPE": atom_types, "RESIDUE_ID": residue_ids}
    return type_table, combined


def chemical_shift_predictor_forward(species, coordinates, res_idx, indices,
                                     params, ens_means, ens_stdevs,
                                     interested_atypes, batch_size=100):
    assert species.ndim == 1, "Species should be only for a single frame."
    num_frames = coordinates.shape[0]
    A = coordinates.shape[1]
    A_pad = max(_round_up(A, 128), 128)
    onehot = jax.nn.one_hot(species, NUM_SPECIES, dtype=jnp.float32)
    onehot = jnp.pad(onehot, ((0, A_pad - A), (0, 0)))   # padded neighbors -> zero rows
    packed = {a: pack_ensemble_params(params[a]) for a in interested_atypes}

    cs_all_batches = []
    num_batches = int(np.ceil(num_frames / batch_size))
    for i in range(num_batches):
        start = i * batch_size
        end = min((i + 1) * batch_size, num_frames)
        coords_b = coordinates[start:end].astype(jnp.float32)
        neigh = jnp.pad(coords_b, ((0, 0), (0, A_pad - A), (0, 0)))
        neigh_t = jnp.transpose(neigh, (0, 2, 1))        # (F, 3, A_pad), lane-dense
        cs_all_batches.append(
            run_models(coords_b, neigh_t, onehot, res_idx, indices, packed,
                       ens_means, ens_stdevs, interested_atypes))
    return combine_all_frames(cs_all_batches, num_frames, res_idx, indices,
                              interested_atypes)


# -----------------------------------------------------------------------------
if __name__ == "__main__":
    key = jax.random.PRNGKey(0)
    F, A = 2, 16                    # frames, atoms
    H1, H2, E = 64, 32, 3           # MLP hidden sizes, ensemble size
    NUM_RES = 8
    D_IN = AEV_FEATS + 1            # AEV + residue-index feature (conventional layout)
    interested_atypes = ["H", "CA"]

    species = jnp.array([0, 1, 2, 3, 4] * 3 + [0], dtype=jnp.int32)   # (16,)
    res_idx = jnp.arange(A, dtype=jnp.int32) // 2                     # residues 0..7
    indices = {"H": jnp.array([0, 5, 10, 15], dtype=jnp.int32),
               "CA": jnp.array([1, 6, 11], dtype=jnp.int32)}

    key, ck = jax.random.split(key)
    coordinates = jax.random.uniform(ck, (F, A, 3), jnp.float32, 0.0, 6.0)

    params, ens_means, ens_stdevs = {}, {}, {}
    base_mean = {"H": 8.3, "CA": 56.0}
    for ti, atype in enumerate(interested_atypes):
        keys = jax.random.split(jax.random.fold_in(key, ti), 8)
        params[atype] = {
            "W1": jax.random.normal(keys[0], (E, D_IN, H1), jnp.float32) / np.sqrt(D_IN),
            "b1": jax.random.normal(keys[1], (E, 1, H1), jnp.float32) * 0.01,
            "W2": jax.random.normal(keys[2], (E, H1, H2), jnp.float32) / np.sqrt(H1),
            "b2": jax.random.normal(keys[3], (E, 1, H2), jnp.float32) * 0.01,
            "W3": jax.random.normal(keys[4], (E, H2, 1), jnp.float32) / np.sqrt(H2),
            "b3": jax.random.normal(keys[5], (E, 1, 1), jnp.float32) * 0.01,
        }
        ens_means[atype] = base_mean[atype] + jax.random.normal(
            keys[6], (NUM_RES,), jnp.float32)
        ens_stdevs[atype] = 0.5 + 0.2 * jax.random.uniform(
            keys[7], (NUM_RES,), jnp.float32)

    type_table, combined = chemical_shift_predictor_forward(
        species, coordinates, res_idx, indices, params, ens_means, ens_stdevs,
        interested_atypes, batch_size=100)

    cs = jax.block_until_ready(combined["CHEMICAL_SHIFT"])
    std = jax.block_until_ready(combined["CHEMICAL_SHIFT_STD"])
    assert bool(jnp.all(jnp.isfinite(cs))) and bool(jnp.all(jnp.isfinite(std)))
    print("KERNEL_OK")
</pallas_src>

<mosaic_0001>
module attributes {stable_mosaic.version = 11 : i64} {
  func.func @aev_kernel(%arg0: i32, %arg1: i32, %arg2: i32, %arg3: memref<1x128x3xf32, #tpu.memory_space<vmem>>, %arg4: memref<128x1xi32, #tpu.memory_space<vmem>>, %arg5: memref<1x3x128xf32, #tpu.memory_space<vmem>>, %arg6: memref<128x5xf32, #tpu.memory_space<vmem>>, %arg7: memref<1x128x128xbf16, #tpu.memory_space<vmem>>, %arg8: memref<128x128xf32, #tpu.memory_space<vmem>>) attributes {dimension_semantics = [#tpu.dimension_semantics<parallel>, #tpu.dimension_semantics<parallel>, #tpu.dimension_semantics<arbitrary>], iteration_bounds = array<i64: 2, 1, 1>, scalar_prefetch = 0 : i64, scratch_operands = 1 : i64, tpu.core_type = #tpu.core_type<tc>, window_params = [{transform_indices = @transform_0, window_bounds = array<i64: 1, 128, 3>}, {transform_indices = @transform_1, window_bounds = array<i64: 128, 1>}, {transform_indices = @transform_2, window_bounds = array<i64: 1, 3, 128>}, {transform_indices = @transform_3, window_bounds = array<i64: 128, 5>}, {transform_indices = @transform_4, window_bounds = array<i64: 1, 128, 128>}]} {
    %c0_i32 = arith.constant 0 : i32
    %0 = arith.cmpi eq, %arg2, %c0_i32 : i32
    %1 = arith.extui %0 : i1 to i32
    %c0_i32_0 = arith.constant 0 : i32
    %2 = arith.cmpi ne, %1, %c0_i32_0 : i32
    scf.if %2 {
      %cst_60 = arith.constant 0.000000e+00 : f32
      %156 = vector.broadcast %cst_60 : f32 to vector<128x128xf32>
      %c0_61 = arith.constant 0 : index
      %c0_62 = arith.constant 0 : index
      %157 = vector.load %arg8[%c0_61, %c0_62] : memref<128x128xf32, #tpu.memory_space<vmem>>, vector<128x128xf32>
      tpu.vector_store %arg8[%c0_61, %c0_62], %156 {strides = array<i32>} : memref<128x128xf32, #tpu.memory_space<vmem>>, vector<128x128xf32>,
    } else {
    }
    %c0 = arith.constant 0 : index
    %c0_1 = arith.constant 0 : index
    %c0_2 = arith.constant 0 : index
    %3 = vector.load %arg3[%c0, %c0_1, %c0_2] : memref<1x128x3xf32, #tpu.memory_space<vmem>>, vector<1x128x3xf32>
    %4 = vector.shape_cast %3 : vector<1x128x3xf32> to vector<128x3xf32>
    %c0_3 = arith.constant 0 : index
    %c0_4 = arith.constant 0 : index
    %c0_5 = arith.constant 0 : index
    %5 = vector.load %arg5[%c0_3, %c0_4, %c0_5] : memref<1x3x128xf32, #tpu.memory_space<vmem>>, vector<1x3x128xf32>
    %6 = vector.shape_cast %5 : vector<1x3x128xf32> to vector<3x128xf32>
    %7 = vector.extract_strided_slice %4 {offsets = [0, 0], sizes = [128, 1], strides = [1, 1]} : vector<128x3xf32> to vector<128x1xf32>
    %8 = vector.extract_strided_slice %6 {offsets = [0, 0], sizes = [1, 128], strides = [1, 1]} : vector<3x128xf32> to vector<1x128xf32>
    %9 = vector.broadcast %7 : vector<128x1xf32> to vector<128x128xf32>
    %10 = vector.broadcast %8 : vector<1x128xf32> to vector<128x128xf32>
    %11 = arith.subf %9, %10 : vector<128x128xf32>
    %12 = vector.extract_strided_slice %4 {offsets = [0, 1], sizes = [128, 1], strides = [1, 1]} : vector<128x3xf32> to vector<128x1xf32>
    %13 = vector.extract_strided_slice %6 {offsets = [1, 0], sizes = [1, 128], strides = [1, 1]} : vector<3x128xf32> to vector<1x128xf32>
    %14 = vector.broadcast %12 : vector<128x1xf32> to vector<128x128xf32>
    %15 = vector.broadcast %13 : vector<1x128xf32> to vector<128x128xf32>
    %16 = arith.subf %14, %15 : vector<128x128xf32>
    %17 = vector.extract_strided_slice %4 {offsets = [0, 2], sizes = [128, 1], strides = [1, 1]} : vector<128x3xf32> to vector<128x1xf32>
    %18 = vector.extract_strided_slice %6 {offsets = [2, 0], sizes = [1, 128], strides = [1, 1]} : vector<3x128xf32> to vector<1x128xf32>
    %19 = vector.broadcast %17 : vector<128x1xf32> to vector<128x128xf32>
    %20 = vector.broadcast %18 : vector<1x128xf32> to vector<128x128xf32>
    %21 = arith.subf %19, %20 : vector<128x128xf32>
    %22 = arith.mulf %11, %11 : vector<128x128xf32>
    %23 = arith.mulf %16, %16 : vector<128x128xf32>
    %24 = arith.addf %22, %23 : vector<128x128xf32>
    %25 = arith.mulf %21, %21 : vector<128x128xf32>
    %26 = arith.addf %24, %25 : vector<128x128xf32>
    %cst = arith.constant 9.99999996E-13 : f32
    %27 = vector.broadcast %cst : f32 to vector<128x128xf32>
    %28 = arith.addf %26, %27 : vector<128x128xf32>
    %29 = math.sqrt %28 : vector<128x128xf32>
    %c128_i32 = arith.constant 128 : i32
    %30 = arith.muli %arg2, %c128_i32 : i32
    %31 = tpu.iota {dimensions = array<i32: 1>} : vector<128x128xi32>
    %32 = vector.broadcast %30 : i32 to vector<128x128xi32>
    %33 = arith.addi %32, %31 : vector<128x128xi32>
    %c0_6 = arith.constant 0 : index
    %c0_7 = arith.constant 0 : index
    %34 = vector.load %arg4[%c0_6, %c0_7] : memref<128x1xi32, #tpu.memory_space<vmem>>, vector<128x1xi32>
    %35 = vector.broadcast %34 : vector<128x1xi32> to vector<128x128xi32>
    %36 = arith.cmpi ne, %35, %33 : vector<128x128xi32>
    %cst_8 = arith.constant 5.100000e+00 : f32
    %37 = vector.broadcast %cst_8 : f32 to vector<128x128xf32>
    %38 = arith.cmpf olt, %29, %37 : vector<128x128xf32>
    %39 = arith.andi %36, %38 : vector<128x128xi1>
    %cst_9 = arith.constant 0.615998566 : f32
    %40 = vector.broadcast %cst_9 : f32 to vector<128x128xf32>
    %41 = arith.mulf %40, %29 : vector<128x128xf32>
    %42 = math.cos %41 : vector<128x128xf32>
    %cst_10 = arith.constant 1.000000e+00 : f32
    %43 = vector.broadcast %cst_10 : f32 to vector<128x128xf32>
    %44 = arith.addf %42, %43 : vector<128x128xf32>
    %cst_11 = arith.constant 1.250000e-01 : f32
    %45 = vector.broadcast %cst_11 : f32 to vector<128x128xf32>
    %46 = arith.mulf %45, %44 : vector<128x128xf32>
    %cst_12 = arith.constant 0.000000e+00 : f32
    %47 = vector.broadcast %cst_12 : f32 to vector<128x128xf32>
    %48 = arith.select %39, %46, %47 : vector<128x128xi1>, vector<128x128xf32>
    %c0_13 = arith.constant 0 : index
    %c0_14 = arith.constant 0 : index
    %49 = vector.load %arg6[%c0_13, %c0_14] : memref<128x5xf32, #tpu.memory_space<vmem>>, vector<128x5xf32>
    %cst_15 = arith.constant 5.100000e+00 : f32
    %50 = vector.broadcast %cst_15 : f32 to vector<128x128xf32>
    %51 = arith.minimumf %29, %50 : vector<128x128xf32>
    %cst_16 = arith.constant 10.5887499 : f32
    %52 = vector.broadcast %cst_16 : f32 to vector<128x128xf32>
    %53 = arith.mulf %52, %51 : vector<128x128xf32>
    %54 = math.exp %53 : vector<128x128xf32>
    %cst_17 = arith.constant 8.000000e-01 : f32
    %55 = vector.broadcast %cst_17 : f32 to vector<128x128xf32>
    %56 = arith.subf %29, %55 : vector<128x128xf32>
    %cst_18 = arith.constant -1.970000e+01 : f32
    %57 = vector.broadcast %cst_18 : f32 to vector<128x128xf32>
    %58 = arith.mulf %57, %56 : vector<128x128xf32>
    %59 = arith.mulf %58, %56 : vector<128x128xf32>
    %60 = math.exp %59 : vector<128x128xf32>
    %61 = arith.mulf %60, %48 : vector<128x128xf32>
    %cst_19 = arith.constant dense<0.000000e+00> : vector<128x5xf32>
    %62 = tpu.matmul %61, %49, %cst_19 {dimension_numbers = #tpu.dot_dimension_numbers<[1], [0], [0], [1], [0, 0, 1, 1], [], []>} : vector<128x128xf32>, vector<128x5xf32>, vector<128x5xf32> -> vector<128x5xf32>
    %63 = arith.mulf %60, %54 : vector<128x128xf32>
    %cst_20 = arith.constant 5.04835371E-5 : f32
    %64 = vector.broadcast %cst_20 : f32 to vector<128x128xf32>
    %65 = arith.mulf %63, %64 : vector<128x128xf32>
    %66 = arith.mulf %65, %48 : vector<128x128xf32>
    %cst_21 = arith.constant dense<0.000000e+00> : vector<128x5xf32>
    %67 = tpu.matmul %66, %49, %cst_21 {dimension_numbers = #tpu.dot_dimension_numbers<[1], [0], [0], [1], [0, 0, 1, 1], [], []>} : vector<128x128xf32>, vector<128x5xf32>, vector<128x5xf32> -> vector<128x5xf32>
    %68 = arith.mulf %65, %54 : vector<128x128xf32>
    %cst_22 = arith.constant 2.93269181E-6 : f32
    %69 = vector.broadcast %cst_22 : f32 to vector<128x128xf32>
    %70 = arith.mulf %68, %69 : vector<128x128xf32>
    %71 = arith.mulf %70, %48 : vector<128x128xf32>
    %cst_23 = arith.constant dense<0.000000e+00> : vector<128x5xf32>
    %72 = tpu.matmul %71, %49, %cst_23 {dimension_numbers = #tpu.dot_dimension_numbers<[1], [0], [0], [1], [0, 0, 1, 1], [], []>} : vector<128x128xf32>, vector<128x5xf32>, vector<128x5xf32> -> vector<128x5xf32>
    %73 = arith.mulf %70, %54 : vector<128x128xf32>
    %cst_24 = arith.constant 1.70366064E-7 : f32
    %74 = vector.broadcast %cst_24 : f32 to vector<128x128xf32>
    %75 = arith.mulf %73, %74 : vector<128x128xf32>
    %76 = arith.mulf %75, %48 : vector<128x128xf32>
    %cst_25 = arith.constant dense<0.000000e+00> : vector<128x5xf32>
    %77 = tpu.matmul %76, %49, %cst_25 {dimension_numbers = #tpu.dot_dimension_numbers<[1], [0], [0], [1], [0, 0, 1, 1], [], []>} : vector<128x128xf32>, vector<128x5xf32>, vector<128x5xf32> -> vector<128x5xf32>
    %cst_26 = arith.constant 1.875000e+00 : f32
    %78 = vector.broadcast %cst_26 : f32 to vector<128x128xf32>
    %79 = arith.subf %29, %78 : vector<128x128xf32>
    %cst_27 = arith.constant -1.970000e+01 : f32
    %80 = vector.broadcast %cst_27 : f32 to vector<128x128xf32>
    %81 = arith.mulf %80, %79 : vector<128x128xf32>
    %82 = arith.mulf %81, %79 : vector<128x128xf32>
    %83 = math.exp %82 : vector<128x128xf32>
    %84 = arith.mulf %83, %48 : vector<128x128xf32>
    %cst_28 = arith.constant dense<0.000000e+00> : vector<128x5xf32>
    %85 = tpu.matmul %84, %49, %cst_28 {dimension_numbers = #tpu.dot_dimension_numbers<[1], [0], [0], [1], [0, 0, 1, 1], [], []>} : vector<128x128xf32>, vector<128x5xf32>, vector<128x5xf32> -> vector<128x5xf32>
    %86 = arith.mulf %83, %54 : vector<128x128xf32>
    %cst_29 = arith.constant 5.74931879E-10 : f32
    %87 = vector.broadcast %cst_29 : f32 to vector<128x128xf32>
    %88 = arith.mulf %86, %87 : vector<128x128xf32>
    %89 = arith.mulf %88, %48 : vector<128x128xf32>
    %cst_30 = arith.constant dense<0.000000e+00> : vector<128x5xf32>
    %90 = tpu.matmul %89, %49, %cst_30 {dimension_numbers = #tpu.dot_dimension_numbers<[1], [0], [0], [1], [0, 0, 1, 1], [], []>} : vector<128x128xf32>, vector<128x5xf32>, vector<128x5xf32> -> vector<128x5xf32>
    %91 = arith.mulf %88, %54 : vector<128x128xf32>
    %cst_31 = arith.constant 3.33989676E-11 : f32
    %92 = vector.broadcast %cst_31 : f32 to vector<128x128xf32>
    %93 = arith.mulf %91, %92 : vector<128x128xf32>
    %94 = arith.mulf %93, %48 : vector<128x128xf32>
    %cst_32 = arith.constant dense<0.000000e+00> : vector<128x5xf32>
    %95 = tpu.matmul %94, %49, %cst_32 {dimension_numbers = #tpu.dot_dimension_numbers<[1], [0], [0], [1], [0, 0, 1, 1], [], []>} : vector<128x128xf32>, vector<128x5xf32>, vector<128x5xf32> -> vector<128x5xf32>
    %96 = arith.mulf %93, %54 : vector<128x128xf32>
    %cst_33 = arith.constant 1.94021427E-12 : f32
    %97 = vector.broadcast %cst_33 : f32 to vector<128x128xf32>
    %98 = arith.mulf %96, %97 : vector<128x128xf32>
    %99 = arith.mulf %98, %48 : vector<128x128xf32>
    %cst_34 = arith.constant dense<0.000000e+00> : vector<128x5xf32>
    %100 = tpu.matmul %99, %49, %cst_34 {dimension_numbers = #tpu.dot_dimension_numbers<[1], [0], [0], [1], [0, 0, 1, 1], [], []>} : vector<128x128xf32>, vector<128x5xf32>, vector<128x5xf32> -> vector<128x5xf32>
    %cst_35 = arith.constant 2.950000e+00 : f32
    %101 = vector.broadcast %cst_35 : f32 to vector<128x128xf32>
    %102 = arith.subf %29, %101 : vector<128x128xf32>
    %cst_36 = arith.constant -1.970000e+01 : f32
    %103 = vector.broadcast %cst_36 : f32 to vector<128x128xf32>
    %104 = arith.mulf %103, %102 : vector<128x128xf32>
    %105 = arith.mulf %104, %102 : vector<128x128xf32>
    %106 = math.exp %105 : vector<128x128xf32>
    %107 = arith.mulf %106, %48 : vector<128x128xf32>
    %cst_37 = arith.constant dense<0.000000e+00> : vector<128x5xf32>
    %108 = tpu.matmul %107, %49, %cst_37 {dimension_numbers = #tpu.dot_dimension_numbers<[1], [0], [0], [1], [0, 0, 1, 1], [], []>} : vector<128x128xf32>, vector<128x5xf32>, vector<128x5xf32> -> vector<128x5xf32>
    %109 = arith.mulf %106, %54 : vector<128x128xf32>
    %cst_38 = arith.constant 6.54761339E-15 : f32
    %110 = vector.broadcast %cst_38 : f32 to vector<128x128xf32>
    %111 = arith.mulf %109, %110 : vector<128x128xf32>
    %112 = arith.mulf %111, %48 : vector<128x128xf32>
    %cst_39 = arith.constant dense<0.000000e+00> : vector<128x5xf32>
    %113 = tpu.matmul %112, %49, %cst_39 {dimension_numbers = #tpu.dot_dimension_numbers<[1], [0], [0], [1], [0, 0, 1, 1], [], []>} : vector<128x128xf32>, vector<128x5xf32>, vector<128x5xf32> -> vector<128x5xf32>
    %114 = arith.mulf %111, %54 : vector<128x128xf32>
    %cst_40 = arith.constant 3.80364248E-16 : f32
    %115 = vector.broadcast %cst_40 : f32 to vector<128x128xf32>
    %116 = arith.mulf %114, %115 : vector<128x128xf32>
    %117 = arith.mulf %116, %48 : vector<128x128xf32>
    %cst_41 = arith.constant dense<0.000000e+00> : vector<128x5xf32>
    %118 = tpu.matmul %117, %49, %cst_41 {dimension_numbers = #tpu.dot_dimension_numbers<[1], [0], [0], [1], [0, 0, 1, 1], [], []>} : vector<128x128xf32>, vector<128x5xf32>, vector<128x5xf32> -> vector<128x5xf32>
    %119 = arith.mulf %116, %54 : vector<128x128xf32>
    %cst_42 = arith.constant 2.20961366E-17 : f32
    %120 = vector.broadcast %cst_42 : f32 to vector<128x128xf32>
    %121 = arith.mulf %119, %120 : vector<128x128xf32>
    %122 = arith.mulf %121, %48 : vector<128x128xf32>
    %cst_43 = arith.constant dense<0.000000e+00> : vector<128x5xf32>
    %123 = tpu.matmul %122, %49, %cst_43 {dimension_numbers = #tpu.dot_dimension_numbers<[1], [0], [0], [1], [0, 0, 1, 1], [], []>} : vector<128x128xf32>, vector<128x5xf32>, vector<128x5xf32> -> vector<128x5xf32>
    %cst_44 = arith.constant 4.025000e+00 : f32
    %124 = vector.broadcast %cst_44 : f32 to vector<128x128xf32>
    %125 = arith.subf %29, %124 : vector<128x128xf32>
    %cst_45 = arith.constant -1.970000e+01 : f32
    %126 = vector.broadcast %cst_45 : f32 to vector<128x128xf32>
    %127 = arith.mulf %126, %125 : vector<128x128xf32>
    %128 = arith.mulf %127, %125 : vector<128x128xf32>
    %129 = math.exp %128 : vector<128x128xf32>
    %130 = arith.mulf %129, %48 : vector<128x128xf32>
    %cst_46 = arith.constant dense<0.000000e+00> : vector<128x5xf32>
    %131 = tpu.matmul %130, %49, %cst_46 {dimension_numbers = #tpu.dot_dimension_numbers<[1], [0], [0], [1], [0, 0, 1, 1], [], []>} : vector<128x128xf32>, vector<128x5xf32>, vector<128x5xf32> -> vector<128x5xf32>
    %132 = arith.mulf %129, %54 : vector<128x128xf32>
    %cst_47 = arith.constant 7.45675146E-20 : f32
    %133 = vector.broadcast %cst_47 : f32 to vector<128x128xf32>
    %134 = arith.mulf %132, %133 : vector<128x128xf32>
    %135 = arith.mulf %134, %48 : vector<128x128xf32>
    %cst_48 = arith.constant dense<0.000000e+00> : vector<128x5xf32>
    %136 = tpu.matmul %135, %49, %cst_48 {dimension_numbers = #tpu.dot_dimension_numbers<[1], [0], [0], [1], [0, 0, 1, 1], [], []>} : vector<128x128xf32>, vector<128x5xf32>, vector<128x5xf32> -> vector<128x5xf32>
    %137 = arith.mulf %134, %54 : vector<128x128xf32>
    %cst_49 = arith.constant 4.33177927E-21 : f32
    %138 = vector.broadcast %cst_49 : f32 to vector<128x128xf32>
    %139 = arith.mulf %137, %138 : vector<128x128xf32>
    %140 = arith.mulf %139, %48 : vector<128x128xf32>
    %cst_50 = arith.constant dense<0.000000e+00> : vector<128x5xf32>
    %141 = tpu.matmul %140, %49, %cst_50 {dimension_numbers = #tpu.dot_dimension_numbers<[1], [0], [0], [1], [0, 0, 1, 1], [], []>} : vector<128x128xf32>, vector<128x5xf32>, vector<128x5xf32> -> vector<128x5xf32>
    %142 = arith.mulf %139, %54 : vector<128x128xf32>
    %cst_51 = arith.constant 2.51641908E-22 : f32
    %143 = vector.broadcast %cst_51 : f32 to vector<128x128xf32>
    %144 = arith.mulf %142, %143 : vector<128x128xf32>
    %145 = arith.mulf %144, %48 : vector<128x128xf32>
    %cst_52 = arith.constant dense<0.000000e+00> : vector<128x5xf32>
    %146 = tpu.matmul %145, %49, %cst_52 {dimension_numbers = #tpu.dot_dimension_numbers<[1], [0], [0], [1], [0, 0, 1, 1], [], []>} : vector<128x128xf32>, vector<128x5xf32>, vector<128x5xf32> -> vector<128x5xf32>
    %147 = tpu.concatenate %62, %67, %72, %77, %85, %90, %95, %100, %108, %113, %118, %123, %131, %136, %141, %146 in 1 : vector<128x5xf32>, vector<128x5xf32>, vector<128x5xf32>, vector<128x5xf32>, vector<128x5xf32>, vector<128x5xf32>, vector<128x5xf32>, vector<128x5xf32>, vector<128x5xf32>, vector<128x5xf32>, vector<128x5xf32>, vector<128x5xf32>, vector<128x5xf32>, vector<128x5xf32>, vector<128x5xf32>, vector<128x5xf32> -> vector<128x80xf32>
    %cst_53 = arith.constant 0.000000e+00 : f32
    %148 = vector.broadcast %cst_53 : f32 to vector<128x48xf32>
    %149 = tpu.concatenate %147, %148 in 1 : vector<128x80xf32>, vector<128x48xf32> -> vector<128x128xf32>
    %c0_54 = arith.constant 0 : index
    %c0_55 = arith.constant 0 : index
    %150 = vector.load %arg8[%c0_54, %c0_55] : memref<128x128xf32, #tpu.memory_space<vmem>>, vector<128x128xf32>
    %151 = arith.addf %150, %149 : vector<128x128xf32>
    %c0_56 = arith.constant 0 : index
    %c0_57 = arith.constant 0 : index
    %152 = vector.load %arg8[%c0_56, %c0_57] : memref<128x128xf32, #tpu.memory_space<vmem>>, vector<128x128xf32>
    tpu.vector_store %arg8[%c0_56, %c0_57], %151 {strides = array<i32>} : memref<128x128xf32, #tpu.memory_space<vmem>>, vector<128x128xf32>,
    %c0_i32_58 = arith.constant 0 : i32
    %153 = arith.cmpi eq, %arg2, %c0_i32_58 : i32
    %154 = arith.extui %153 : i1 to i32
    %c0_i32_59 = arith.constant 0 : i32
    %155 = arith.cmpi ne, %154, %c0_i32_59 : i32
    scf.if %155 {
      %c0_60 = arith.constant 0 : index
      %c0_61 = arith.constant 0 : index
      %156 = vector.load %arg8[%c0_60, %c0_61] : memref<128x128xf32, #tpu.memory_space<vmem>>, vector<128x128xf32>
      %157 = arith.truncf %156 : vector<128x128xf32> to vector<128x128xbf16>
      %c0_62 = arith.constant 0 : index
      %c0_63 = arith.constant 0 : index
      %c0_64 = arith.constant 0 : index
      %158 = vector.load %arg7[%c0_62, %c0_63, %c0_64] : memref<1x128x128xbf16, #tpu.memory_space<vmem>>, vector<1x128x128xbf16>
      %159 = vector.shape_cast %158 : vector<1x128x128xbf16> to vector<128x128xbf16>
      %160 = vector.shape_cast %157 : vector<128x128xbf16> to vector<1x128x128xbf16>
      tpu.vector_store %arg7[%c0_62, %c0_63, %c0_64], %160 {strides = array<i32>} : memref<1x128x128xbf16, #tpu.memory_space<vmem>>, vector<1x128x128xbf16>,
    } else {
    }
    return
  }
  func.func @transform_0(%arg0: i32, %arg1: i32, %arg2: i32) -> (i32, i32, i32) {
    %c0_i32 = arith.constant 0 : i32
    %c0_i32_0 = arith.constant 0 : i32
    return %arg0, %arg1, %c0_i32 : i32, i32, i32
  }
  func.func @transform_1(%arg0: i32, %arg1: i32, %arg2: i32) -> (i32, i32) {
    %c0_i32 = arith.constant 0 : i32
    %c0_i32_0 = arith.constant 0 : i32
    return %arg1, %c0_i32 : i32, i32
  }
  func.func @transform_2(%arg0: i32, %arg1: i32, %arg2: i32) -> (i32, i32, i32) {
    %c0_i32 = arith.constant 0 : i32
    %c0_i32_0 = arith.constant 0 : i32
    return %arg0, %c0_i32, %arg2 : i32, i32, i32
  }
  func.func @transform_3(%arg0: i32, %arg1: i32, %arg2: i32) -> (i32, i32) {
    %c0_i32 = arith.constant 0 : i32
    %c0_i32_0 = arith.constant 0 : i32
    return %arg2, %c0_i32 : i32, i32
  }
  func.func @transform_4(%arg0: i32, %arg1: i32, %arg2: i32) -> (i32, i32, i32) {
    %c0_i32 = arith.constant 0 : i32
    %c0_i32_0 = arith.constant 0 : i32
    return %arg0, %arg1, %c0_i32 : i32, i32, i32
  }
}

</mosaic_0001>

<llo_original>
// kernel: tpu_custom_call.1
$region0: #{tpu_custom_call.1}
  #allocation0 [shape = 'u32[]', space=smem, size = 0x4, offset = 0x4, fixed_abs, tag = 'smem constant byte address 0x4 - core index']
  #allocation1 [shape = 'u32[144,128]{1,0:T(1,128)}', space=vmem, size = 0x12000, scoped, tag = 'internal scratch']
  #allocation2 [shape = 'f32[128,128]{1,0:T(8,128)}', space=vmem, size = 0x10000, scoped, tag = 'scratch operand']
  %s0 = inlined_call_operand.vmem [shape: f32[2,128,3], index: 0, kind: input, shape index: {}]
  %s1 = inlined_call_operand.vmem [shape: s32[128,1], index: 1, kind: input, shape index: {}]
  %s2 = inlined_call_operand.vmem [shape: f32[2,3,128], index: 2, kind: input, shape index: {}]
  %s3 = inlined_call_operand.vmem [shape: f32[128,5], index: 3, kind: input, shape index: {}]
  %s4 = inlined_call_operand.hbm [shape: bf16[2,128,128], index: 4, kind: output, shape index: {}]
  %s5 = sld [smem:[#allocation0]]
  $region57: #{tpu_custom_call.1} parent=0
    _
  %s7 = ssub.s32 1, %s5
  %s8 = scalar_select 0, %s7, %s5
  $region1: #{tpu_custom_call.1} parent=0
    #allocation3 [shape = 'u8[65536]{0}', space=vmem, size = 0x10000, scoped, tag = 'output window, operand 0']
    #allocation4 [shape = 's32[2]{0}', space=sflag, size = 0x8, scoped, tag = 'scoped memory for tpu_custom_call.1']
    %9 = vsyncpa [#allocation4], 0
    %s10 = scalar_lea.sflag [#allocation4], 1
    %11 = vsyncpa %s10, 0
    loop: start=0, step=1, limit=4
    $region2: #{tpu_custom_call.1} parent=1 // loop_pre_header
      _
    $region3: #{tpu_custom_call.1} parent=1 // loop_header
      %s13 = sphi 0, %s17
      %p14 = scmp.ge.s32.totalorder %s13, 4
      %s20 = sphi 0, %s39
      %s21 = sphi 0, %s35
      %s22 = sphi 0, %s31
      %s23 = sphi 0, %s20
      %s24 = sphi 0, %s21
      %s25 = sphi 0, %s22
      %s26 = sphi 0, %s23
      %s27 = sphi 0, %s24
      %s28 = sphi 0, %s25
      %s44 = sphi 0, %s46
      %s47 = sphi 0, %s44
      %s48 = sphi 0, %s47
      %s64 = sphi 0, %s48
      %s70 = sphi 0, %s72
      %s73 = sphi 0, %s70
      %s74 = sphi 0, %s73
      %s90 = sphi 0, %s74
      %s98 = sphi 0, %s100
      %s101 = sphi 0, %s98
      %s102 = sphi 0, %s101
      %s118 = sphi 0, %s102
      %s124 = sphi 0, %s126
      %s127 = sphi 0, %s124
      %s128 = sphi 0, %s127
      %s144 = sphi 0, %s128
      %s152 = sphi 0, %s154
      %s155 = sphi 0, %s152
      %s156 = sphi 0, %s155
      %s172 = sphi 0, %s156
    $region4: #{tpu_custom_call.1} parent=1 // loop_header_branch
      %16 = sbr.rel (%p14) target = $region8
    $region5: #{tpu_custom_call.1} parent=1 // loop_body
      %s18 = ssub.s32 %s13, 1
      %s19 = ssub.s32 %s13, 2
      %s29 = sadd.s32 1, %s22
      %p30 = scmp.ge.s32.totalorder %s29, 1
      %s31 = scalar_select %p30, 0, %s29
      %s32 = sadd.s32 1, %s21
      %s33 = scalar_select %p30, %s32, %s21
      %p34 = scmp.ge.s32.totalorder %s33, 1
      %s35 = scalar_select %p34, 0, %s33
      %s36 = sadd.s32 1, %s20
      %s37 = scalar_select %p34, %s36, %s20
      %p38 = scmp.ge.s32.totalorder %s37, 2
      %s39 = scalar_select %p38, 0, %s37
      %s40 = ssub.s32 %s20, %s39
      %s41 = ssub.s32 %s21, %s35
      %s42 = sor.u32 %s40, %s41
      %p43 = scmp.eq.s32.totalorder %s42, 0
      %s45 = sadd.s32 %s44, 1
      %s46 = scalar_select %p43, %s44, %s45
      %p49 = pneg %p43
      %p50 = scmp.eq.s32.totalorder %s13, 1
      %p51 = por %p49, %p50
      %p52 = scmp.ne.s32.totalorder %s44, %s47
      %p53 = scmp.eq.s32.totalorder %s13, 0
      %p54 = por %p52, %p53
      %p55 = scmp.ne.s32.totalorder %s44, %s47
      %p56 = scmp.eq.s32.totalorder %s18, 1
      %p57 = por %p55, %p56
      %p58 = scmp.ne.s32.totalorder %s47, %s48
      %p59 = scmp.eq.s32.totalorder %s18, 0
      %p60 = por %p58, %p59
      %p61 = scmp.ne.s32.totalorder %s47, %s48
      %p62 = scmp.eq.s32.totalorder %s19, 1
      %p63 = por %p61, %p62
      %p65 = scmp.ne.s32.totalorder %s48, %s64
      %p66 = scmp.eq.s32.totalorder %s19, 0
      %p67 = por %p65, %p66
      %s68 = ssub.s32 %s21, %s35
      %p69 = scmp.eq.s32.totalorder %s68, 0
      %s71 = sadd.s32 %s70, 1
      %s72 = scalar_select %p69, %s70, %s71
      %p75 = pneg %p69
      %p76 = scmp.eq.s32.totalorder %s13, 1
      %p77 = por %p75, %p76
      %p78 = scmp.ne.s32.totalorder %s70, %s73
      %p79 = scmp.eq.s32.totalorder %s13, 0
      %p80 = por %p78, %p79
      %p81 = scmp.ne.s32.totalorder %s70, %s73
      %p82 = scmp.eq.s32.totalorder %s18, 1
      %p83 = por %p81, %p82
      %p84 = scmp.ne.s32.totalorder %s73, %s74
      %p85 = scmp.eq.s32.totalorder %s18, 0
      %p86 = por %p84, %p85
      %p87 = scmp.ne.s32.totalorder %s73, %s74
      %p88 = scmp.eq.s32.totalorder %s19, 1
      %p89 = por %p87, %p88
      %p91 = scmp.ne.s32.totalorder %s74, %s90
      %p92 = scmp.eq.s32.totalorder %s19, 0
      %p93 = por %p91, %p92
      %s94 = ssub.s32 %s20, %s39
      %s95 = ssub.s32 %s22, %s31
      %s96 = sor.u32 %s94, %s95
      %p97 = scmp.eq.s32.totalorder %s96, 0
      %s99 = sadd.s32 %s98, 1
      %s100 = scalar_select %p97, %s98, %s99
      %p103 = pneg %p97
      %p104 = scmp.eq.s32.totalorder %s13, 1
      %p105 = por %p103, %p104
      %p106 = scmp.ne.s32.totalorder %s98, %s101
      %p107 = scmp.eq.s32.totalorder %s13, 0
      %p108 = por %p106, %p107
      %p109 = scmp.ne.s32.totalorder %s98, %s101
      %p110 = scmp.eq.s32.totalorder %s18, 1
      %p111 = por %p109, %p110
      %p112 = scmp.ne.s32.totalorder %s101, %s102
      %p113 = scmp.eq.s32.totalorder %s18, 0
      %p114 = por %p112, %p113
      %p115 = scmp.ne.s32.totalorder %s101, %s102
      %p116 = scmp.eq.s32.totalorder %s19, 1
      %p117 = por %p115, %p116
      %p119 = scmp.ne.s32.totalorder %s102, %s118
      %p120 = scmp.eq.s32.totalorder %s19, 0
      %p121 = por %p119, %p120
      %s122 = ssub.s32 %s22, %s31
      %p123 = scmp.eq.s32.totalorder %s122, 0
      %s125 = sadd.s32 %s124, 1
      %s126 = scalar_select %p123, %s124, %s125
      %p129 = pneg %p123
      %p130 = scmp.eq.s32.totalorder %s13, 1
      %p131 = por %p129, %p130
      %p132 = scmp.ne.s32.totalorder %s124, %s127
      %p133 = scmp.eq.s32.totalorder %s13, 0
      %p134 = por %p132, %p133
      %p135 = scmp.ne.s32.totalorder %s124, %s127
      %p136 = scmp.eq.s32.totalorder %s18, 1
      %p137 = por %p135, %p136
      %p138 = scmp.ne.s32.totalorder %s127, %s128
      %p139 = scmp.eq.s32.totalorder %s18, 0
      %p140 = por %p138, %p139
      %p141 = scmp.ne.s32.totalorder %s127, %s128
      %p142 = scmp.eq.s32.totalorder %s19, 1
      %p143 = por %p141, %p142
      %p145 = scmp.ne.s32.totalorder %s128, %s144
      %p146 = scmp.eq.s32.totalorder %s19, 0
      %p147 = por %p145, %p146
      %s148 = ssub.s32 %s20, %s39
      %s149 = ssub.s32 %s21, %s35
      %s150 = sor.u32 %s148, %s149
      %p151 = scmp.eq.s32.totalorder %s150, 0
      %s153 = sadd.s32 %s152, 1
      %s154 = scalar_select %p151, %s152, %s153
      %p157 = pneg %p151
      %p158 = scmp.eq.s32.totalorder %s13, 1
      %p159 = por %p157, %p158
      %p160 = scmp.ne.s32.totalorder %s152, %s155
      %p161 = scmp.eq.s32.totalorder %s13, 0
      %p162 = por %p160, %p161
      %p163 = scmp.ne.s32.totalorder %s152, %s155
      %p164 = scmp.eq.s32.totalorder %s18, 1
      %p165 = por %p163, %p164
      %p166 = scmp.ne.s32.totalorder %s155, %s156
      %p167 = scmp.eq.s32.totalorder %s18, 0
      %p168 = por %p166, %p167
      %p169 = scmp.ne.s32.totalorder %s155, %s156
      %p170 = scmp.eq.s32.totalorder %s19, 1
      %p171 = por %p169, %p170
      %p173 = scmp.ne.s32.totalorder %s156, %s172
      %p174 = scmp.eq.s32.totalorder %s19, 0
      %p175 = por %p173, %p174
      %p176 = scmp.le.s32.totalorder 1, %s13
      %p177 = scmp.lt.s32.totalorder %s13, 3
      %p178 = pnand %p176, %p177
      %p179 = pneg %p178
      // Predicated region
      $region9: #{tpu_custom_call.1} parent=5 // pred_check
        _
      $region10: #{tpu_custom_call.1} parent=5 // pred_check_branch
        %181 = sbr.rel (%p178) target = $region12
      $region11: #{tpu_custom_call.1} parent=5 // pred_region
        %s182 = ssub.s32 %s13, 1
        // Predicated region
        $region13: #{tpu_custom_call.1} parent=11 // pred_check
          %p183 = pneg %p86
        $region14: #{tpu_custom_call.1} parent=11 // pred_check_branch
          %185 = sbr.rel (%p183) target = $region16
        $region15: #{tpu_custom_call.1} parent=11 // pred_region
          %s186 = smul.u32 16, %s24
          %p187 = scmp.lt.s32.totalorder %s186, 15
          %s188 = scalar_select %p187, %s186, 15
          %s189 = smul.addr %s188, 8
          %s190 = scalar_lea.vmem %s1, %s189
          %s191 = smul.u32 16, %s24
        $region16: #{tpu_custom_call.1} parent=11 // pred_fallthru
          _
        // Predicated region
        $region17: #{tpu_custom_call.1} parent=11 // pred_check
          %p192 = pneg %p140
        $region18: #{tpu_custom_call.1} parent=11 // pred_check_branch
          %194 = sbr.rel (%p192) target = $region20
        $region19: #{tpu_custom_call.1} parent=11 // pred_region
          %s195 = smul.u32 16, %s25
          %p196 = scmp.lt.s32.totalorder %s195, 15
          %s197 = scalar_select %p196, %s195, 15
          %s198 = smul.addr %s197, 8
          %s199 = scalar_lea.vmem %s3, %s198
          %s200 = smul.u32 16, %s25
        $region20: #{tpu_custom_call.1} parent=11 // pred_fallthru
          _
      $region12: #{tpu_custom_call.1} parent=5 // pred_fallthru
        _
      %p201 = scmp.lt.s32.totalorder %s13, 2
      // Predicated region
      $region21: #{tpu_custom_call.1} parent=5 // pred_check
        %p202 = pneg %p201
      $region22: #{tpu_custom_call.1} parent=5 // pred_check_branch
        %204 = sbr.rel (%p202) target = $region24
      $region23: #{tpu_custom_call.1} parent=5 // pred_region
        // Predicated region
        $region25: #{tpu_custom_call.1} parent=23 // pred_check
          %p205 = pneg %p54
        $region26: #{tpu_custom_call.1} parent=23 // pred_check_branch
          %207 = sbr.rel (%p205) target = $region28
        $region27: #{tpu_custom_call.1} parent=23 // pred_region
          %s208 = smul.u32 16, %s21
          %p209 = scmp.lt.s32.totalorder %s20, 1
          %s210 = scalar_select %p209, %s20, 1
          %p211 = scmp.lt.s32.totalorder %s208, 15
          %s212 = scalar_select %p211, %s208, 15
          %s213 = smul.addr %s210, 16
          %s214 = sadd.s32 %s212, %s213
          %s215 = smul.addr %s214, 8
          %s216 = scalar_lea.vmem %s0, %s215
          %s217 = smul.u32 16, %s21
        $region28: #{tpu_custom_call.1} parent=23 // pred_fallthru
          _
        // Predicated region
        $region29: #{tpu_custom_call.1} parent=23 // pred_check
          %p218 = pneg %p108
        $region30: #{tpu_custom_call.1} parent=23 // pred_check_branch
          %220 = sbr.rel (%p218) target = $region32
        $region31: #{tpu_custom_call.1} parent=23 // pred_region
          %p221 = scmp.lt.s32.totalorder %s20, 1
          %s222 = scalar_select %p221, %s20, 1
          %p223 = scmp.lt.s32.totalorder %s22, 0
          %s224 = scalar_select %p223, %s22, 0
          %s225 = sadd.s32 %s224, %s222
          %s226 = smul.addr %s225, 4
          %s227 = scalar_lea.vmem %s2, %s226
        $region32: #{tpu_custom_call.1} parent=23 // pred_fallthru
          _
      $region24: #{tpu_custom_call.1} parent=5 // pred_fallthru
        _
      %p228 = scmp.le.s32.totalorder 1, %s13
      %p229 = scmp.lt.s32.totalorder %s13, 3
      %p230 = pnand %p228, %p229
      %p231 = pneg %p230
      // Predicated region
      $region33: #{tpu_custom_call.1} parent=5 // pred_check
        _
      $region34: #{tpu_custom_call.1} parent=5 // pred_check_branch
        %233 = sbr.rel (%p230) target = $region36
      $region35: #{tpu_custom_call.1} parent=5 // pred_region
        %s234 = ssub.s32 %s13, 1
        %s235 = smul.u32 16, %s24
        %p236 = scmp.lt.s32.totalorder %s23, 1
        %s237 = scalar_select %p236, %s23, 1
        %p238 = scmp.lt.s32.totalorder %s235, 15
        %s239 = scalar_select %p238, %s235, 15
        %s240 = smul.addr %s237, 16
        %s241 = sadd.s32 %s239, %s240
        %s242 = smul.addr %s241, 8
        %s243 = scalar_lea.vmem %s0, %s242
        %p244 = pneg %p60
        %p245 = pneg %p57
        %s246 = smul.u32 16, %s24
        %p247 = scmp.lt.s32.totalorder %s246, 15
        %s248 = scalar_select %p247, %s246, 15
        %s249 = smul.addr %s248, 8
        %s250 = scalar_lea.vmem %s1, %s249
        %p251 = pneg %p86
        %p252 = pneg %p83
        %p253 = scmp.lt.s32.totalorder %s23, 1
        %s254 = scalar_select %p253, %s23, 1
        %p255 = scmp.lt.s32.totalorder %s25, 0
        %s256 = scalar_select %p255, %s25, 0
        %s257 = sadd.s32 %s256, %s254
        %s258 = smul.addr %s257, 4
        %s259 = scalar_lea.vmem %s2, %s258
        %p260 = pneg %p114
        %p261 = pneg %p111
        %s262 = smul.u32 16, %s25
        %p263 = scmp.lt.s32.totalorder %s262, 15
        %s264 = scalar_select %p263, %s262, 15
        %s265 = smul.addr %s264, 8
        %s266 = scalar_lea.vmem %s3, %s265
        %p267 = pneg %p140
        %p268 = pneg %p137
        %p269 = pneg %p168
        %p270 = pneg %p165
        %s271 = sand.u32 %s155, 1
        %s272 = scalar_lea.sflag [#allocation4], %s271
        %s273 = sand.u32 %s155, 1
        %s274 = smul.addr %s273, 64
        %s275 = scalar_lea.vmem [#allocation3], %s274
        %s276 = smul.u32 16, %s24
        %p277 = scmp.lt.s32.totalorder %s23, 1
        %s278 = scalar_select %p277, %s23, 1
        %p279 = scmp.lt.s32.totalorder %s276, 15
        %s280 = scalar_select %p279, %s276, 15
        %s281 = smul.addr %s278, 16
        %s282 = sadd.s32 %s280, %s281
        %s283 = smul.addr %s282, 8
        %s284 = scalar_lea.vmem %s0, %s283
        %s285 = smul.u32 16, %s24
        %s286 = smul.u32 16, %s24
        %p287 = scmp.lt.s32.totalorder %s286, 15
        %s288 = scalar_select %p287, %s286, 15
        %s289 = smul.addr %s288, 8
        %s290 = scalar_lea.vmem %s1, %s289
        %s291 = smul.u32 16, %s24
        %p292 = scmp.lt.s32.totalorder %s23, 1
        %s293 = scalar_select %p292, %s23, 1
        %p294 = scmp.lt.s32.totalorder %s25, 0
        %s295 = scalar_select %p294, %s25, 0
        %s296 = sadd.s32 %s295, %s293
        %s297 = smul.addr %s296, 4
        %s298 = scalar_lea.vmem %s2, %s297
        %s299 = smul.u32 16, %s25
        %p300 = scmp.lt.s32.totalorder %s299, 15
        %s301 = scalar_select %p300, %s299, 15
        %s302 = smul.addr %s301, 8
        %s303 = scalar_lea.vmem %s3, %s302
        %s304 = smul.u32 16, %s25
        %s305 = smul.u32 16, %s24
        %p306 = scmp.eq.s32.totalorder %s25, 0
        // Predicated region
        $region37: #{tpu_custom_call.1} parent=35 // pred_check
          %p307 = pneg %p306
        $region38: #{tpu_custom_call.1} parent=35 // pred_check_branch
          %309 = sbr.rel (%p307) target = $region40
        $region39: #{tpu_custom_call.1} parent=35 // pred_region
          %310 = vst [vmem:[#allocation2] sm:$0xff] 0.0
          %311 = vst [vmem:[#allocation2 + $0x8] sm:$0xff] 0.0
          %312 = vst [vmem:[#allocation2 + $0x10] sm:$0xff] 0.0
          %313 = vst [vmem:[#allocation2 + $0x18] sm:$0xff] 0.0
          %314 = vst [vmem:[#allocation2 + $0x20] sm:$0xff] 0.0
          %315 = vst [vmem:[#allocation2 + $0x28] sm:$0xff] 0.0
          %316 = vst [vmem:[#allocation2 + $0x30] sm:$0xff] 0.0
          %317 = vst [vmem:[#allocation2 + $0x38] sm:$0xff] 0.0
          %318 = vst [vmem:[#allocation2 + $0x40] sm:$0xff] 0.0
          %319 = vst [vmem:[#allocation2 + $0x48] sm:$0xff] 0.0
          %320 = vst [vmem:[#allocation2 + $0x50] sm:$0xff] 0.0
          %321 = vst [vmem:[#allocation2 + $0x58] sm:$0xff] 0.0
          %322 = vst [vmem:[#allocation2 + $0x60] sm:$0xff] 0.0
          %323 = vst [vmem:[#allocation2 + $0x68] sm:$0xff] 0.0
          %324 = vst [vmem:[#allocation2 + $0x70] sm:$0xff] 0.0
          %325 = vst [vmem:[#allocation2 + $0x78] sm:$0xff] 0.0
        $region40: #{tpu_custom_call.1} parent=35 // pred_fallthru
          _
        %v326 = vld [vmem:[%s284] sm:$0xff]
        %v327 = vld [vmem:[%s284 + $0x8] sm:$0xff]
        %v328 = vld [vmem:[%s284 + $0x10] sm:$0xff]
        %v329 = vld [vmem:[%s284 + $0x18] sm:$0xff]
        %v330 = vld [vmem:[%s284 + $0x20] sm:$0xff]
        %v331 = vld [vmem:[%s284 + $0x28] sm:$0xff]
        %v332 = vld [vmem:[%s284 + $0x30] sm:$0xff]
        %v333 = vld [vmem:[%s284 + $0x38] sm:$0xff]
        %v334 = vld [vmem:[%s284 + $0x40] sm:$0xff]
        %v335 = vld [vmem:[%s284 + $0x48] sm:$0xff]
        %v336 = vld [vmem:[%s284 + $0x50] sm:$0xff]
        %v337 = vld [vmem:[%s284 + $0x58] sm:$0xff]
        %v338 = vld [vmem:[%s284 + $0x60] sm:$0xff]
        %v339 = vld [vmem:[%s284 + $0x68] sm:$0xff]
        %v340 = vld [vmem:[%s284 + $0x70] sm:$0xff]
        %v341 = vld [vmem:[%s284 + $0x78] sm:$0xff]
        %v342 = vld [vmem:[%s298] sm:$0x7]
        %344 = vset.pattern.permute.xlu0 0
        %345 = vperm.xlu0 %344, %v326
        %v346 = vpop.permute.xlu0 %345
        %349 = vset.pattern.permute.xlu0 0
        %350 = vperm.xlu0 %349, %v327
        %v351 = vpop.permute.xlu0 %350
        %354 = vset.pattern.permute.xlu0 0
        %355 = vperm.xlu0 %354, %v328
        %v356 = vpop.permute.xlu0 %355
        %359 = vset.pattern.permute.xlu0 0
        %360 = vperm.xlu0 %359, %v329
        %v361 = vpop.permute.xlu0 %360
        %364 = vset.pattern.permute.xlu0 0
        %365 = vperm.xlu0 %364, %v330
        %v366 = vpop.permute.xlu0 %365
        %369 = vset.pattern.permute.xlu0 0
        %370 = vperm.xlu0 %369, %v331
        %v371 = vpop.permute.xlu0 %370
        %374 = vset.pattern.permute.xlu0 0
        %375 = vperm.xlu0 %374, %v332
        %v376 = vpop.permute.xlu0 %375
        %379 = vset.pattern.permute.xlu0 0
        %380 = vperm.xlu0 %379, %v333
        %v381 = vpop.permute.xlu0 %380
        %384 = vset.pattern.permute.xlu0 0
        %385 = vperm.xlu0 %384, %v334
        %v386 = vpop.permute.xlu0 %385
        %389 = vset.pattern.permute.xlu0 0
        %390 = vperm.xlu0 %389, %v335
        %v391 = vpop.permute.xlu0 %390
        %394 = vset.pattern.permute.xlu0 0
        %395 = vperm.xlu0 %394, %v336
        %v396 = vpop.permute.xlu0 %395
        %399 = vset.pattern.permute.xlu0 0
        %400 = vperm.xlu0 %399, %v337
        %v401 = vpop.permute.xlu0 %400
        %404 = vset.pattern.permute.xlu0 0
        %405 = vperm.xlu0 %404, %v338
        %v406 = vpop.permute.xlu0 %405
        %409 = vset.pattern.permute.xlu0 0
        %410 = vperm.xlu0 %409, %v339
        %v411 = vpop.permute.xlu0 %410
        %414 = vset.pattern.permute.xlu0 0
        %415 = vperm.xlu0 %414, %v340
        %v416 = vpop.permute.xlu0 %415
        %419 = vset.pattern.permute.xlu0 0
        %420 = vperm.xlu0 %419, %v341
        %v421 = vpop.permute.xlu0 %420
        %v423 = vlaneseq
        %v424 = vshrl.u32 %v423, 7
        %v425 = vsub.s32 0, %v424
        %v426 = vrot.slane %v342, %v425
        %v427 = vsub.f32 %v346, %v426
        %v428 = vsub.f32 %v351, %v426
        %v429 = vsub.f32 %v356, %v426
        %v430 = vsub.f32 %v361, %v426
        %v431 = vsub.f32 %v366, %v426
        %v432 = vsub.f32 %v371, %v426
        %v433 = vsub.f32 %v376, %v426
        %v434 = vsub.f32 %v381, %v426
        %v435 = vsub.f32 %v386, %v426
        %v436 = vsub.f32 %v391, %v426
        %v437 = vsub.f32 %v396, %v426
        %v438 = vsub.f32 %v401, %v426
        %v439 = vsub.f32 %v406, %v426
        %v440 = vsub.f32 %v411, %v426
        %v441 = vsub.f32 %v416, %v426
        %v442 = vsub.f32 %v421, %v426
        %443 = vset.pattern.permute.xlu0 1
        %444 = vperm.xlu0 %443, %v326
        %v445 = vpop.permute.xlu0 %444
        %447 = vset.pattern.permute.xlu0 1
        %448 = vperm.xlu0 %447, %v327
        %v449 = vpop.permute.xlu0 %448
        %451 = vset.pattern.permute.xlu0 1
        %452 = vperm.xlu0 %451, %v328
        %v453 = vpop.permute.xlu0 %452
        %455 = vset.pattern.permute.xlu0 1
        %456 = vperm.xlu0 %455, %v329
        %v457 = vpop.permute.xlu0 %456
        %459 = vset.pattern.permute.xlu0 1
        %460 = vperm.xlu0 %459, %v330
        %v461 = vpop.permute.xlu0 %460
        %463 = vset.pattern.permute.xlu0 1
        %464 = vperm.xlu0 %463, %v331
        %v465 = vpop.permute.xlu0 %464
        %467 = vset.pattern.permute.xlu0 1
        %468 = vperm.xlu0 %467, %v332
        %v469 = vpop.permute.xlu0 %468
        %471 = vset.pattern.permute.xlu0 1
        %472 = vperm.xlu0 %471, %v333
        %v473 = vpop.permute.xlu0 %472
        %475 = vset.pattern.permute.xlu0 1
        %476 = vperm.xlu0 %475, %v334
        %v477 = vpop.permute.xlu0 %476
        %479 = vset.pattern.permute.xlu0 1
        %480 = vperm.xlu0 %479, %v335
        %v481 = vpop.permute.xlu0 %480
        %483 = vset.pattern.permute.xlu0 1
        %484 = vperm.xlu0 %483, %v336
        %v485 = vpop.permute.xlu0 %484
        %487 = vset.pattern.permute.xlu0 1
        %488 = vperm.xlu0 %487, %v337
        %v489 = vpop.permute.xlu0 %488
        %491 = vset.pattern.permute.xlu0 1
        %492 = vperm.xlu0 %491, %v338
        %v493 = vpop.permute.xlu0 %492
        %495 = vset.pattern.permute.xlu0 1
        %496 = vperm.xlu0 %495, %v339
        %v497 = vpop.permute.xlu0 %496
        %499 = vset.pattern.permute.xlu0 1
        %500 = vperm.xlu0 %499, %v340
        %v501 = vpop.permute.xlu0 %500
        %503 = vset.pattern.permute.xlu0 1
        %504 = vperm.xlu0 %503, %v341
        %v505 = vpop.permute.xlu0 %504
        %v507 = vlaneseq
        %v508 = vshrl.u32 %v507, 7
        %v509 = vsub.s32 1, %v508
        %v510 = vrot.slane %v342, %v509
        %v511 = vsub.f32 %v445, %v510
        %v512 = vsub.f32 %v449, %v510
        %v513 = vsub.f32 %v453, %v510
        %v514 = vsub.f32 %v457, %v510
        %v515 = vsub.f32 %v461, %v510
        %v516 = vsub.f32 %v465, %v510
        %v517 = vsub.f32 %v469, %v510
        %v518 = vsub.f32 %v473, %v510
        %v519 = vsub.f32 %v477, %v510
        %v520 = vsub.f32 %v481, %v510
        %v521 = vsub.f32 %v485, %v510
        %v522 = vsub.f32 %v489, %v510
        %v523 = vsub.f32 %v493, %v510
        %v524 = vsub.f32 %v497, %v510
        %v525 = vsub.f32 %v501, %v510
        %v526 = vsub.f32 %v505, %v510
        %527 = vset.pattern.permute.xlu0 2
        %528 = vperm.xlu0 %527, %v326
        %v529 = vpop.permute.xlu0 %528
        %531 = vset.pattern.permute.xlu0 2
        %532 = vperm.xlu0 %531, %v327
        %v533 = vpop.permute.xlu0 %532
        %535 = vset.pattern.permute.xlu0 2
        %536 = vperm.xlu0 %535, %v328
        %v537 = vpop.permute.xlu0 %536
        %539 = vset.pattern.permute.xlu0 2
        %540 = vperm.xlu0 %539, %v329
        %v541 = vpop.permute.xlu0 %540
        %543 = vset.pattern.permute.xlu0 2
        %544 = vperm.xlu0 %543, %v330
        %v545 = vpop.permute.xlu0 %544
        %547 = vset.pattern.permute.xlu0 2
        %548 = vperm.xlu0 %547, %v331
        %v549 = vpop.permute.xlu0 %548
        %551 = vset.pattern.permute.xlu0 2
        %552 = vperm.xlu0 %551, %v332
        %v553 = vpop.permute.xlu0 %552
        %555 = vset.pattern.permute.xlu0 2
        %556 = vperm.xlu0 %555, %v333
        %v557 = vpop.permute.xlu0 %556
        %559 = vset.pattern.permute.xlu0 2
        %560 = vperm.xlu0 %559, %v334
        %v561 = vpop.permute.xlu0 %560
        %563 = vset.pattern.permute.xlu0 2
        %564 = vperm.xlu0 %563, %v335
        %v565 = vpop.permute.xlu0 %564
        %567 = vset.pattern.permute.xlu0 2
        %568 = vperm.xlu0 %567, %v336
        %v569 = vpop.permute.xlu0 %568
        %571 = vset.pattern.permute.xlu0 2
        %572 = vperm.xlu0 %571, %v337
        %v573 = vpop.permute.xlu0 %572
        %575 = vset.pattern.permute.xlu0 2
        %576 = vperm.xlu0 %575, %v338
        %v577 = vpop.permute.xlu0 %576
        %579 = vset.pattern.permute.xlu0 2
        %580 = vperm.xlu0 %579, %v339
        %v581 = vpop.permute.xlu0 %580
        %583 = vset.pattern.permute.xlu0 2
        %584 = vperm.xlu0 %583, %v340
        %v585 = vpop.permute.xlu0 %584
        %587 = vset.pattern.permute.xlu0 2
        %588 = vperm.xlu0 %587, %v341
        %v589 = vpop.permute.xlu0 %588
        %v591 = vlaneseq
        %v592 = vshrl.u32 %v591, 7
        %v593 = vsub.s32 2, %v592
        %v594 = vrot.slane %v342, %v593
        %v595 = vsub.f32 %v529, %v594
        %v596 = vsub.f32 %v533, %v594
        %v597 = vsub.f32 %v537, %v594
        %v598 = vsub.f32 %v541, %v594
        %v599 = vsub.f32 %v545, %v594
        %v600 = vsub.f32 %v549, %v594
        %v601 = vsub.f32 %v553, %v594
        %v602 = vsub.f32 %v557, %v594
        %v603 = vsub.f32 %v561, %v594
        %v604 = vsub.f32 %v565, %v594
        %v605 = vsub.f32 %v569, %v594
        %v606 = vsub.f32 %v573, %v594
        %v607 = vsub.f32 %v577, %v594
        %v608 = vsub.f32 %v581, %v594
        %v609 = vsub.f32 %v585, %v594
        %v610 = vsub.f32 %v589, %v594
        %v611 = vmul.f32 %v427, %v427
        %v612 = vmul.f32 %v428, %v428
        %v613 = vmul.f32 %v429, %v429
        %v614 = vmul.f32 %v430, %v430
        %v615 = vmul.f32 %v431, %v431
        %v616 = vmul.f32 %v432, %v432
        %v617 = vmul.f32 %v433, %v433
        %v618 = vmul.f32 %v434, %v434
        %v619 = vmul.f32 %v435, %v435
        %v620 = vmul.f32 %v436, %v436
        %v621 = vmul.f32 %v437, %v437
        %v622 = vmul.f32 %v438, %v438
        %v623 = vmul.f32 %v439, %v439
        %v624 = vmul.f32 %v440, %v440
        %v625 = vmul.f32 %v441, %v441
        %v626 = vmul.f32 %v442, %v442
        %v627 = vmul.f32 %v511, %v511
        %v628 = vmul.f32 %v512, %v512
        %v629 = vmul.f32 %v513, %v513
        %v630 = vmul.f32 %v514, %v514
        %v631 = vmul.f32 %v515, %v515
        %v632 = vmul.f32 %v516, %v516
        %v633 = vmul.f32 %v517, %v517
        %v634 = vmul.f32 %v518, %v518
        %v635 = vmul.f32 %v519, %v519
        %v636 = vmul.f32 %v520, %v520
        %v637 = vmul.f32 %v521, %v521
        %v638 = vmul.f32 %v522, %v522
        %v639 = vmul.f32 %v523, %v523
        %v640 = vmul.f32 %v524, %v524
        %v641 = vmul.f32 %v525, %v525
        %v642 = vmul.f32 %v526, %v526
        %v643 = vadd.f32 %v611, %v627
        %v644 = vadd.f32 %v612, %v628
        %v645 = vadd.f32 %v613, %v629
        %v646 = vadd.f32 %v614, %v630
        %v647 = vadd.f32 %v615, %v631
        %v648 = vadd.f32 %v616, %v632
        %v649 = vadd.f32 %v617, %v633
        %v650 = vadd.f32 %v618, %v634
        %v651 = vadd.f32 %v619, %v635
        %v652 = vadd.f32 %v620, %v636
        %v653 = vadd.f32 %v621, %v637
        %v654 = vadd.f32 %v622, %v638
        %v655 = vadd.f32 %v623, %v639
        %v656 = vadd.f32 %v624, %v640
        %v657 = vadd.f32 %v625, %v641
        %v658 = vadd.f32 %v626, %v642
        %v659 = vmul.f32 %v595, %v595
        %v660 = vmul.f32 %v596, %v596
        %v661 = vmul.f32 %v597, %v597
        %v662 = vmul.f32 %v598, %v598
        %v663 = vmul.f32 %v599, %v599
        %v664 = vmul.f32 %v600, %v600
        %v665 = vmul.f32 %v601, %v601
        %v666 = vmul.f32 %v602, %v602
        %v667 = vmul.f32 %v603, %v603
        %v668 = vmul.f32 %v604, %v604
        %v669 = vmul.f32 %v605, %v605
        %v670 = vmul.f32 %v606, %v606
        %v671 = vmul.f32 %v607, %v607
        %v672 = vmul.f32 %v608, %v608
        %v673 = vmul.f32 %v609, %v609
        %v674 = vmul.f32 %v610, %v610
        %v675 = vadd.f32 %v643, %v659
        %v676 = vadd.f32 %v644, %v660
        %v677 = vadd.f32 %v645, %v661
        %v678 = vadd.f32 %v646, %v662
        %v679 = vadd.f32 %v647, %v663
        %v680 = vadd.f32 %v648, %v664
        %v681 = vadd.f32 %v649, %v665
        %v682 = vadd.f32 %v650, %v666
        %v683 = vadd.f32 %v651, %v667
        %v684 = vadd.f32 %v652, %v668
        %v685 = vadd.f32 %v653, %v669
        %v686 = vadd.f32 %v654, %v670
        %v687 = vadd.f32 %v655, %v671
        %v688 = vadd.f32 %v656, %v672
        %v689 = vadd.f32 %v657, %v673
        %v690 = vadd.f32 %v658, %v674
        %v691 = vadd.f32 %v675, 1e-12
        %v692 = vadd.f32 %v676, 1e-12
        %v693 = vadd.f32 %v677, 1e-12
        %v694 = vadd.f32 %v678, 1e-12
        %v695 = vadd.f32 %v679, 1e-12
        %v696 = vadd.f32 %v680, 1e-12
        %v697 = vadd.f32 %v681, 1e-12
        %v698 = vadd.f32 %v682, 1e-12
        %v699 = vadd.f32 %v683, 1e-12
        %v700 = vadd.f32 %v684, 1e-12
        %v701 = vadd.f32 %v685, 1e-12
        %v702 = vadd.f32 %v686, 1e-12
        %v703 = vadd.f32 %v687, 1e-12
        %v704 = vadd.f32 %v688, 1e-12
        %v705 = vadd.f32 %v689, 1e-12
        %v706 = vadd.f32 %v690, 1e-12
        %v707 = vrsqrt.pop %v691
        %v708 = vmul.f32 %v691, %v707
        %vm709 = vcmp.eq.f32.partialorder %v691, inf
        %v710 = vsel %vm709, %v691, %v708
        %vm711 = vcmp.eq.f32.partialorder %v691, 0.0
        %v712 = vand.u32 %v691, 2147483648
        %v713 = vsel %vm711, %v712, %v710
        %v714 = vrsqrt.pop %v692
        %v715 = vmul.f32 %v692, %v714
        %vm716 = vcmp.eq.f32.partialorder %v692, inf
        %v717 = vsel %vm716, %v692, %v715
        %vm718 = vcmp.eq.f32.partialorder %v692, 0.0
        %v719 = vand.u32 %v692, 2147483648
        %v720 = vsel %vm718, %v719, %v717
        %v721 = vrsqrt.pop %v693
        %v722 = vmul.f32 %v693, %v721
        %vm723 = vcmp.eq.f32.partialorder %v693, inf
        %v724 = vsel %vm723, %v693, %v722
        %vm725 = vcmp.eq.f32.partialorder %v693, 0.0
        %v726 = vand.u32 %v693, 2147483648
        %v727 = vsel %vm725, %v726, %v724
        %v728 = vrsqrt.pop %v694
        %v729 = vmul.f32 %v694, %v728
        %vm730 = vcmp.eq.f32.partialorder %v694, inf
        %v731 = vsel %vm730, %v694, %v729
        %vm732 = vcmp.eq.f32.partialorder %v694, 0.0
        %v733 = vand.u32 %v694, 2147483648
        %v734 = vsel %vm732, %v733, %v731
        %v735 = vrsqrt.pop %v695
        %v736 = vmul.f32 %v695, %v735
        %vm737 = vcmp.eq.f32.partialorder %v695, inf
        %v738 = vsel %vm737, %v695, %v736
        %vm739 = vcmp.eq.f32.partialorder %v695, 0.0
        %v740 = vand.u32 %v695, 2147483648
        %v741 = vsel %vm739, %v740, %v738
        %v742 = vrsqrt.pop %v696
        %v743 = vmul.f32 %v696, %v742
        %vm744 = vcmp.eq.f32.partialorder %v696, inf
        %v745 = vsel %vm744, %v696, %v743
        %vm746 = vcmp.eq.f32.partialorder %v696, 0.0
        %v747 = vand.u32 %v696, 2147483648
        %v748 = vsel %vm746, %v747, %v745
        %v749 = vrsqrt.pop %v697
        %v750 = vmul.f32 %v697, %v749
        %vm751 = vcmp.eq.f32.partialorder %v697, inf
        %v752 = vsel %vm751, %v697, %v750
        %vm753 = vcmp.eq.f32.partialorder %v697, 0.0
        %v754 = vand.u32 %v697, 2147483648
        %v755 = vsel %vm753, %v754, %v752
        %v756 = vrsqrt.pop %v698
        %v757 = vmul.f32 %v698, %v756
        %vm758 = vcmp.eq.f32.partialorder %v698, inf
        %v759 = vsel %vm758, %v698, %v757
        %vm760 = vcmp.eq.f32.partialorder %v698, 0.0
        %v761 = vand.u32 %v698, 2147483648
        %v762 = vsel %vm760, %v761, %v759
        %v763 = vrsqrt.pop %v699
        %v764 = vmul.f32 %v699, %v763
        %vm765 = vcmp.eq.f32.partialorder %v699, inf
        %v766 = vsel %vm765, %v699, %v764
        %vm767 = vcmp.eq.f32.partialorder %v699, 0.0
        %v768 = vand.u32 %v699, 2147483648
        %v769 = vsel %vm767, %v768, %v766
        %v770 = vrsqrt.pop %v700
        %v771 = vmul.f32 %v700, %v770
        %vm772 = vcmp.eq.f32.partialorder %v700, inf
        %v773 = vsel %vm772, %v700, %v771
        %vm774 = vcmp.eq.f32.partialorder %v700, 0.0
        %v775 = vand.u32 %v700, 2147483648
        %v776 = vsel %vm774, %v775, %v773
        %v777 = vrsqrt.pop %v701
        %v778 = vmul.f32 %v701, %v777
        %vm779 = vcmp.eq.f32.partialorder %v701, inf
        %v780 = vsel %vm779, %v701, %v778
        %vm781 = vcmp.eq.f32.partialorder %v701, 0.0
        %v782 = vand.u32 %v701, 2147483648
        %v783 = vsel %vm781, %v782, %v780
        %v784 = vrsqrt.pop %v702
        %v785 = vmul.f32 %v702, %v784
        %vm786 = vcmp.eq.f32.partialorder %v702, inf
        %v787 = vsel %vm786, %v702, %v785
        %vm788 = vcmp.eq.f32.partialorder %v702, 0.0
        %v789 = vand.u32 %v702, 2147483648
        %v790 = vsel %vm788, %v789, %v787
        %v791 = vrsqrt.pop %v703
        %v792 = vmul.f32 %v703, %v791
        %vm793 = vcmp.eq.f32.partialorder %v703, inf
        %v794 = vsel %vm793, %v703, %v792
        %vm795 = vcmp.eq.f32.partialorder %v703, 0.0
        %v796 = vand.u32 %v703, 2147483648
        %v797 = vsel %vm795, %v796, %v794
        %v798 = vrsqrt.pop %v704
        %v799 = vmul.f32 %v704, %v798
        %vm800 = vcmp.eq.f32.partialorder %v704, inf
        %v801 = vsel %vm800, %v704, %v799
        %vm802 = vcmp.eq.f32.partialorder %v704, 0.0
        %v803 = vand.u32 %v704, 2147483648
        %v804 = vsel %vm802, %v803, %v801
        %v805 = vrsqrt.pop %v705
        %v806 = vmul.f32 %v705, %v805
        %vm807 = vcmp.eq.f32.partialorder %v705, inf
        %v808 = vsel %vm807, %v705, %v806
        %vm809 = vcmp.eq.f32.partialorder %v705, 0.0
        %v810 = vand.u32 %v705, 2147483648
        %v811 = vsel %vm809, %v810, %v808
        %v812 = vrsqrt.pop %v706
        %v813 = vmul.f32 %v706, %v812
        %vm814 = vcmp.eq.f32.partialorder %v706, inf
        %v815 = vsel %vm814, %v706, %v813
        %vm816 = vcmp.eq.f32.partialorder %v706, 0.0
        %v817 = vand.u32 %v706, 2147483648
        %v818 = vsel %vm816, %v817, %v815
        %s819 = smul.u32 %s25, 128
        %v820 = vlaneseq
        %v821 = vand.u32 %v820, 127
        %v822 = vstv %s819
        %v823 = vadd.s32 %v822, %v821
        %v824 = vld [vmem:[%s290] sm:$0xff]
        %v825 = vld [vmem:[%s290 + $0x8] sm:$0xff]
        %v826 = vld [vmem:[%s290 + $0x10] sm:$0xff]
        %v827 = vld [vmem:[%s290 + $0x18] sm:$0xff]
        %v828 = vld [vmem:[%s290 + $0x20] sm:$0xff]
        %v829 = vld [vmem:[%s290 + $0x28] sm:$0xff]
        %v830 = vld [vmem:[%s290 + $0x30] sm:$0xff]
        %v831 = vld [vmem:[%s290 + $0x38] sm:$0xff]
        %v832 = vld [vmem:[%s290 + $0x40] sm:$0xff]
        %v833 = vld [vmem:[%s290 + $0x48] sm:$0xff]
        %v834 = vld [vmem:[%s290 + $0x50] sm:$0xff]
        %v835 = vld [vmem:[%s290 + $0x58] sm:$0xff]
        %v836 = vld [vmem:[%s290 + $0x60] sm:$0xff]
        %v837 = vld [vmem:[%s290 + $0x68] sm:$0xff]
        %v838 = vld [vmem:[%s290 + $0x70] sm:$0xff]
        %v839 = vld [vmem:[%s290 + $0x78] sm:$0xff]
        %840 = vset.pattern.permute.xlu0 0
        %841 = vperm.xlu0 %840, %v824
        %v842 = vpop.permute.xlu0 %841
        %843 = vset.pattern.permute.xlu0 0
        %844 = vperm.xlu0 %843, %v825
        %v845 = vpop.permute.xlu0 %844
        %846 = vset.pattern.permute.xlu0 0
        %847 = vperm.xlu0 %846, %v826
        %v848 = vpop.permute.xlu0 %847
        %849 = vset.pattern.permute.xlu0 0
        %850 = vperm.xlu0 %849, %v827
        %v851 = vpop.permute.xlu0 %850
        %852 = vset.pattern.permute.xlu0 0
        %853 = vperm.xlu0 %852, %v828
        %v854 = vpop.permute.xlu0 %853
        %855 = vset.pattern.permute.xlu0 0
        %856 = vperm.xlu0 %855, %v829
        %v857 = vpop.permute.xlu0 %856
        %858 = vset.pattern.permute.xlu0 0
        %859 = vperm.xlu0 %858, %v830
        %v860 = vpop.permute.xlu0 %859
        %861 = vset.pattern.permute.xlu0 0
        %862 = vperm.xlu0 %861, %v831
        %v863 = vpop.permute.xlu0 %862
        %864 = vset.pattern.permute.xlu0 0
        %865 = vperm.xlu0 %864, %v832
        %v866 = vpop.permute.xlu0 %865
        %867 = vset.pattern.permute.xlu0 0
        %868 = vperm.xlu0 %867, %v833
        %v869 = vpop.permute.xlu0 %868
        %870 = vset.pattern.permute.xlu0 0
        %871 = vperm.xlu0 %870, %v834
        %v872 = vpop.permute.xlu0 %871
        %873 = vset.pattern.permute.xlu0 0
        %874 = vperm.xlu0 %873, %v835
        %v875 = vpop.permute.xlu0 %874
        %876 = vset.pattern.permute.xlu0 0
        %877 = vperm.xlu0 %876, %v836
        %v878 = vpop.permute.xlu0 %877
        %879 = vset.pattern.permute.xlu0 0
        %880 = vperm.xlu0 %879, %v837
        %v881 = vpop.permute.xlu0 %880
        %882 = vset.pattern.permute.xlu0 0
        %883 = vperm.xlu0 %882, %v838
        %v884 = vpop.permute.xlu0 %883
        %885 = vset.pattern.permute.xlu0 0
        %886 = vperm.xlu0 %885, %v839
        %v887 = vpop.permute.xlu0 %886
        %vm888 = vcmp.ne.s32.totalorder %v842, %v823
        %vm889 = vcmp.ne.s32.totalorder %v845, %v823
        %vm890 = vcmp.ne.s32.totalorder %v848, %v823
        %vm891 = vcmp.ne.s32.totalorder %v851, %v823
        %vm892 = vcmp.ne.s32.totalorder %v854, %v823
        %vm893 = vcmp.ne.s32.totalorder %v857, %v823
        %vm894 = vcmp.ne.s32.totalorder %v860, %v823
        %vm895 = vcmp.ne.s32.totalorder %v863, %v823
        %vm896 = vcmp.ne.s32.totalorder %v866, %v823
        %vm897 = vcmp.ne.s32.totalorder %v869, %v823
        %vm898 = vcmp.ne.s32.totalorder %v872, %v823
        %vm899 = vcmp.ne.s32.totalorder %v875, %v823
        %vm900 = vcmp.ne.s32.totalorder %v878, %v823
        %vm901 = vcmp.ne.s32.totalorder %v881, %v823
        %vm902 = vcmp.ne.s32.totalorder %v884, %v823
        %vm903 = vcmp.ne.s32.totalorder %v887, %v823
        %vm904 = vcmp.lt.f32.partialorder %v713, 5.1
        %vm905 = vcmp.lt.f32.partialorder %v720, 5.1
        %vm906 = vcmp.lt.f32.partialorder %v727, 5.1
        %vm907 = vcmp.lt.f32.partialorder %v734, 5.1
        %vm908 = vcmp.lt.f32.partialorder %v741, 5.1
        %vm909 = vcmp.lt.f32.partialorder %v748, 5.1
        %vm910 = vcmp.lt.f32.partialorder %v755, 5.1
        %vm911 = vcmp.lt.f32.partialorder %v762, 5.1
        %vm912 = vcmp.lt.f32.partialorder %v769, 5.1
        %vm913 = vcmp.lt.f32.partialorder %v776, 5.1
        %vm914 = vcmp.lt.f32.partialorder %v783, 5.1
        %vm915 = vcmp.lt.f32.partialorder %v790, 5.1
        %vm916 = vcmp.lt.f32.partialorder %v797, 5.1
        %vm917 = vcmp.lt.f32.partialorder %v804, 5.1
        %vm918 = vcmp.lt.f32.partialorder %v811, 5.1
        %vm919 = vcmp.lt.f32.partialorder %v818, 5.1
        %vm920 = vmand %vm888, %vm904
        %vm921 = vmand %vm889, %vm905
        %vm922 = vmand %vm890, %vm906
        %vm923 = vmand %vm891, %vm907
        %vm924 = vmand %vm892, %vm908
        %vm925 = vmand %vm893, %vm909
        %vm926 = vmand %vm894, %vm910
        %vm927 = vmand %vm895, %vm911
        %vm928 = vmand %vm896, %vm912
        %vm929 = vmand %vm897, %vm913
        %vm930 = vmand %vm898, %vm914
        %vm931 = vmand %vm899, %vm915
        %vm932 = vmand %vm900, %vm916
        %vm933 = vmand %vm901, %vm917
        %vm934 = vmand %vm902, %vm918
        %vm935 = vmand %vm903, %vm919
        %v936 = vmul.f32 %v713, 0.61599857
        %v937 = vmul.f32 %v720, 0.61599857
        %v938 = vmul.f32 %v727, 0.61599857
        %v939 = vmul.f32 %v734, 0.61599857
        %v940 = vmul.f32 %v741, 0.61599857
        %v941 = vmul.f32 %v748, 0.61599857
        %v942 = vmul.f32 %v755, 0.61599857
        %v943 = vmul.f32 %v762, 0.61599857
        %v944 = vmul.f32 %v769, 0.61599857
        %v945 = vmul.f32 %v776, 0.61599857
        %v946 = vmul.f32 %v783, 0.61599857
        %v947 = vmul.f32 %v790, 0.61599857
        %v948 = vmul.f32 %v797, 0.61599857
        %v949 = vmul.f32 %v804, 0.61599857
        %v950 = vmul.f32 %v811, 0.61599857
        %v951 = vmul.f32 %v818, 0.61599857
        %v952 = vand.u32 2147483647, %v936
        %vm953 = vcmp.le.f32.partialorder %v952, 0.7853982
        %vm954 = vcmp.lt.s32.totalorder %v936, 0
        %v955 = vand.u32 %v936, 2139095040
        %v956 = vshrl.u32 %v955, 23
        %v957 = vsub.s32 %v956, 127
        %v958 = vand.u32 2147483647, %v936
        %v959 = vand.u32 %v958, 8388607
        %v960 = vor.u32 %v959, 8388608
        %v961 = vsub.s32 0, %v960
        %v962 = vadd.s32 %v957, 1
        %vm963 = vcmp.gt.s32.totalorder %v962, 0
        %v964 = vsel %vm963, %v962, 0
        %v965 = vshrl.u32 %v964, 5
        %v966 = vand.u32 %v964, 31
        %v967 = vsub.s32 32, %v966
        %v968 = vshrl.u32 683565275, %v967
        %v969 = vshll.u32 683565275, %v966
        %v970 = vshrl.u32 2475754826, %v967
        %v971 = vor.u32 %v969, %v970
        %v972 = vshll.u32 2475754826, %v966
        %v973 = vshrl.u32 2131351028, %v967
        %v974 = vor.u32 %v972, %v973
        %v975 = vshll.u32 2131351028, %v966
        %v976 = vshrl.u32 2102212464, %v967
        %v977 = vor.u32 %v975, %v976
        %v978 = vshll.u32 2102212464, %v966
        %v979 = vshrl.u32 920167782, %v967
        %v980 = vor.u32 %v978, %v979
        %v981 = vshll.u32 920167782, %v966
        %v982 = vshrl.u32 1326507024, %v967
        %v983 = vor.u32 %v981, %v982
        %vm984 = vcmp.lt.s32.totalorder %v965, 1
        %vm985 = vcmp.lt.s32.totalorder %v965, 2
        %vm986 = vcmp.lt.s32.totalorder %v965, 3
        %vm987 = vcmp.lt.s32.totalorder %v965, 4
        %v988 = vsel %vm984, %v968, %v971
        %v989 = vsel %vm987, %v977, 2102212464
        %v990 = vsel %vm986, %v974, %v989
        %v991 = vsel %vm985, %v988, %v990
        %v992 = vsel %vm984, %v971, %v974
        %v993 = vsel %vm987, %v980, 920167782
        %v994 = vsel %vm986, %v977, %v993
        %v995 = vsel %vm985, %v992, %v994
        %v996 = vsel %vm984, %v974, %v977
        %v997 = vsel %vm987, %v983, 1326507024
        %v998 = vsel %vm986, %v980, %v997
        %v999 = vsel %vm985, %v996, %v998
        %v1000 = vshll.u32 %v960, 8
        %v1001 = vmul.u32.u64.compose %v1000, %v999
        %v1002 = vextract.low.u32 %v1001
        %v1003 = vextract.high.u32 %v1001
        %v1004 = vmul.u32.u64.compose %v1000, %v995
        %v1005 = vextract.low.u32 %v1004
        %v1006 = vextract.high.u32 %v1004
        %v1007 = vmul.u32 %v1000, %v991
        %v1008 = vadd.s32 %v1003, %v1005
        %vm1009 = vc.u32 %v1003, %v1005
        %v1010 = vadd.s32 %v1006, 1
        %v1011 = vsel %vm1009, %v1010, %v1006
        %v1012 = vadd.s32 %v1007, %v1011
        %v1013 = vadd.s32 %v1012, 536870912
        %v1014 = vshrl.u32 %v1013, 30
        %v1015 = vshll.u32 %v1014, 30
        %v1016 = vsub.s32 %v1012, %v1015
        %vm1017 = vcmp.lt.s32.totalorder %v1016, 0
        %v1018 = vsub.s32 0, %v1016
        %v1019 = vsel %vm1017, %v1018, %v1016
        %v1020 = vclz %v1019
        %v1021 = vsub.s32 %v1020, 2
        %vm1022 = vcmp.gt.s32.totalorder 0, %v1021
        %v1023 = vsel %vm1022, 0, %v1021
        %v1024 = vsub.s32 32, %v1023
        %v1025 = vshll.u32 %v1016, %v1023
        %v1026 = vshrl.u32 %v1008, %v1024
        %v1027 = vor.u32 %v1025, %v1026
        %v1028 = vsub.s32 4294967266, %v1023
        %v1029 = vadd.s32 %v1028, 127
        %v1030 = vshll.u32 %v1029, 23
        %v1031 = vor.u32 4788187, %v1030
        %v1032 = vand.u32 2147483647, %v1031
        %v1034 = vcvt.s32.f32 %v1027
        %v1035 = vmul.f32 %v1034, %v1032
        %v1036 = vxor.u32 %v1035, 2147483648
        %v1037 = vsel %vm954, %v1036, %v1035
        %v1038 = vsub.s32 4, %v1014
        %v1039 = vsel %vm954, %v1038, %v1014
        %v1040 = vsel %vm953, %v936, %v1037
        %v1041 = vsel %vm953, 0, %v1039
        %v1042 = vcosq.f32.pop %v1040
        %v1043 = vsinq.f32.pop %v1040
        %vm1044 = vweird.f32 %v936
        %v1045 = vand.u32 %v1041, 3
        %vm1046 = vcmp.lt.s32.totalorder %v1045, 2
        %vm1047 = vcmp.eq.s32.totalorder %v1045, 0
        %v1048 = vxor.u32 %v1043, 2147483648
        %v1049 = vsel %vm1047, %v1042, %v1048
        %vm1050 = vcmp.eq.s32.totalorder %v1045, 2
        %v1051 = vxor.u32 %v1042, 2147483648
        %v1052 = vsel %vm1050, %v1051, %v1043
        %v1053 = vsel %vm1046, %v1049, %v1052
        %v1054 = vsel %vm1044, nan, %v1053
        %v1055 = vand.u32 2147483647, %v937
        %vm1056 = vcmp.le.f32.partialorder %v1055, 0.7853982
        %vm1057 = vcmp.lt.s32.totalorder %v937, 0
        %v1058 = vand.u32 %v937, 2139095040
        %v1059 = vshrl.u32 %v1058, 23
        %v1060 = vsub.s32 %v1059, 127
        %v1061 = vand.u32 2147483647, %v937
        %v1062 = vand.u32 %v1061, 8388607
        %v1063 = vor.u32 %v1062, 8388608
        %v1064 = vsub.s32 0, %v1063
        %v1065 = vadd.s32 %v1060, 1
        %vm1066 = vcmp.gt.s32.totalorder %v1065, 0
        %v1067 = vsel %vm1066, %v1065, 0
        %v1068 = vshrl.u32 %v1067, 5
        %v1069 = vand.u32 %v1067, 31
        %v1070 = vsub.s32 32, %v1069
        %v1071 = vshrl.u32 683565275, %v1070
        %v1072 = vshll.u32 683565275, %v1069
        %v1073 = vshrl.u32 2475754826, %v1070
        %v1074 = vor.u32 %v1072, %v1073
        %v1075 = vshll.u32 2475754826, %v1069
        %v1076 = vshrl.u32 2131351028, %v1070
        %v1077 = vor.u32 %v1075, %v1076
        %v1078 = vshll.u32 2131351028, %v1069
        %v1079 = vshrl.u32 2102212464, %v1070
        %v1080 = vor.u32 %v1078, %v1079
        %v1081 = vshll.u32 2102212464, %v1069
        %v1082 = vshrl.u32 920167782, %v1070
        %v1083 = vor.u32 %v1081, %v1082
        %v1084 = vshll.u32 920167782, %v1069
        %v1085 = vshrl.u32 1326507024, %v1070
        %v1086 = vor.u32 %v1084, %v1085
        %vm1087 = vcmp.lt.s32.totalorder %v1068, 1
        %vm1088 = vcmp.lt.s32.totalorder %v1068, 2
        %vm1089 = vcmp.lt.s32.totalorder %v1068, 3
        %vm1090 = vcmp.lt.s32.totalorder %v1068, 4
        %v1091 = vsel %vm1087, %v1071, %v1074
        %v1092 = vsel %vm1090, %v1080, 2102212464
        %v1093 = vsel %vm1089, %v1077, %v1092
        %v1094 = vsel %vm1088, %v1091, %v1093
        %v1095 = vsel %vm1087, %v1074, %v1077
        %v1096 = vsel %vm1090, %v1083, 920167782
        %v1097 = vsel %vm1089, %v1080, %v1096
        %v1098 = vsel %vm1088, %v1095, %v1097
        %v1099 = vsel %vm1087, %v1077, %v1080
        %v1100 = vsel %vm1090, %v1086, 1326507024
        %v1101 = vsel %vm1089, %v1083, %v1100
        %v1102 = vsel %vm1088, %v1099, %v1101
        %v1103 = vshll.u32 %v1063, 8
        %v1104 = vmul.u32.u64.compose %v1103, %v1102
        %v1105 = vextract.low.u32 %v1104
        %v1106 = vextract.high.u32 %v1104
        %v1107 = vmul.u32.u64.compose %v1103, %v1098
        %v1108 = vextract.low.u32 %v1107
        %v1109 = vextract.high.u32 %v1107
        %v1110 = vmul.u32 %v1103, %v1094
        %v1111 = vadd.s32 %v1106, %v1108
        %vm1112 = vc.u32 %v1106, %v1108
        %v1113 = vadd.s32 %v1109, 1
        %v1114 = vsel %vm1112, %v1113, %v1109
        %v1115 = vadd.s32 %v1110, %v1114
        %v1116 = vadd.s32 %v1115, 536870912
        %v1117 = vshrl.u32 %v1116, 30
        %v1118 = vshll.u32 %v1117, 30
        %v1119 = vsub.s32 %v1115, %v1118
        %vm1120 = vcmp.lt.s32.totalorder %v1119, 0
        %v1121 = vsub.s32 0, %v1119
        %v1122 = vsel %vm1120, %v1121, %v1119
        %v1123 = vclz %v1122
        %v1124 = vsub.s32 %v1123, 2
        %vm1125 = vcmp.gt.s32.totalorder 0, %v1124
        %v1126 = vsel %vm1125, 0, %v1124
        %v1127 = vsub.s32 32, %v1126
        %v1128 = vshll.u32 %v1119, %v1126
        %v1129 = vshrl.u32 %v1111, %v1127
        %v1130 = vor.u32 %v1128, %v1129
        %v1131 = vsub.s32 4294967266, %v1126
        %v1132 = vadd.s32 %v1131, 127
        %v1133 = vshll.u32 %v1132, 23
        %v1134 = vor.u32 4788187, %v1133
        %v1135 = vand.u32 2147483647, %v1134
        %v1137 = vcvt.s32.f32 %v1130
        %v1138 = vmul.f32 %v1137, %v1135
        %v1139 = vxor.u32 %v1138, 2147483648
        %v1140 = vsel %vm1057, %v1139, %v1138
        %v1141 = vsub.s32 4, %v1117
        %v1142 = vsel %vm1057, %v1141, %v1117
        %v1143 = vsel %vm1056, %v937, %v1140
        %v1144 = vsel %vm1056, 0, %v1142
        %v1145 = vcosq.f32.pop %v1143
        %v1146 = vsinq.f32.pop %v1143
        %vm1147 = vweird.f32 %v937
        %v1148 = vand.u32 %v1144, 3
        %vm1149 = vcmp.lt.s32.totalorder %v1148, 2
        %vm1150 = vcmp.eq.s32.totalorder %v1148, 0
        %v1151 = vxor.u32 %v1146, 2147483648
        %v1152 = vsel %vm1150, %v1145, %v1151
        %vm1153 = vcmp.eq.s32.totalorder %v1148, 2
        %v1154 = vxor.u32 %v1145, 2147483648
        %v1155 = vsel %vm1153, %v1154, %v1146
        %v1156 = vsel %vm1149, %v1152, %v1155
        %v1157 = vsel %vm1147, nan, %v1156
        %v1158 = vand.u32 2147483647, %v938
        %vm1159 = vcmp.le.f32.partialorder %v1158, 0.7853982
        %vm1160 = vcmp.lt.s32.totalorder %v938, 0
        %v1161 = vand.u32 %v938, 2139095040
        %v1162 = vshrl.u32 %v1161, 23
        %v1163 = vsub.s32 %v1162, 127
        %v1164 = vand.u32 2147483647, %v938
        %v1165 = vand.u32 %v1164, 8388607
        %v1166 = vor.u32 %v1165, 8388608
        %v1167 = vsub.s32 0, %v1166
        %v1168 = vadd.s32 %v1163, 1
        %vm1169 = vcmp.gt.s32.totalorder %v1168, 0
        %v1170 = vsel %vm1169, %v1168, 0
        %v1171 = vshrl.u32 %v1170, 5
        %v1172 = vand.u32 %v1170, 31
        %v1173 = vsub.s32 32, %v1172
        %v1174 = vshrl.u32 683565275, %v1173
        %v1175 = vshll.u32 683565275, %v1172
        %v1176 = vshrl.u32 2475754826, %v1173
        %v1177 = vor.u32 %v1175, %v1176
        %v1178 = vshll.u32 2475754826, %v1172
        %v1179 = vshrl.u32 2131351028, %v1173
        %v1180 = vor.u32 %v1178, %v1179
        %v1181 = vshll.u32 2131351028, %v1172
        %v1182 = vshrl.u32 2102212464, %v1173
        %v1183 = vor.u32 %v1181, %v1182
        %v1184 = vshll.u32 2102212464, %v1172
        %v1185 = vshrl.u32 920167782, %v1173
        %v1186 = vor.u32 %v1184, %v1185
        %v1187 = vshll.u32 920167782, %v1172
        %v1188 = vshrl.u32 1326507024, %v1173
        %v1189 = vor.u32 %v1187, %v1188
        %vm1190 = vcmp.lt.s32.totalorder %v1171, 1
        %vm1191 = vcmp.lt.s32.totalorder %v1171, 2
        %vm1192 = vcmp.lt.s32.totalorder %v1171, 3
        %vm1193 = vcmp.lt.s32.totalorder %v1171, 4
        %v1194 = vsel %vm1190, %v1174, %v1177
        %v1195 = vsel %vm1193, %v1183, 2102212464
        %v1196 = vsel %vm1192, %v1180, %v1195
        %v1197 = vsel %vm1191, %v1194, %v1196
        %v1198 = vsel %vm1190, %v1177, %v1180
        %v1199 = vsel %vm1193, %v1186, 920167782
        %v1200 = vsel %vm1192, %v1183, %v1199
        %v1201 = vsel %vm1191, %v1198, %v1200
        %v1202 = vsel %vm1190, %v1180, %v1183
        %v1203 = vsel %vm1193, %v1189, 1326507024
        %v1204 = vsel %vm1192, %v1186, %v1203
        %v1205 = vsel %vm1191, %v1202, %v1204
        %v1206 = vshll.u32 %v1166, 8
        %v1207 = vmul.u32.u64.compose %v1206, %v1205
        %v1208 = vextract.low.u32 %v1207
        %v1209 = vextract.high.u32 %v1207
        %v1210 = vmul.u32.u64.compose %v1206, %v1201
        %v1211 = vextract.low.u32 %v1210
        %v1212 = vextract.high.u32 %v1210
        %v1213 = vmul.u32 %v1206, %v1197
        %v1214 = vadd.s32 %v1209, %v1211
        %vm1215 = vc.u32 %v1209, %v1211
        %v1216 = vadd.s32 %v1212, 1
        %v1217 = vsel %vm1215, %v1216, %v1212
        %v1218 = vadd.s32 %v1213, %v1217
        %v1219 = vadd.s32 %v1218, 536870912
        %v1220 = vshrl.u32 %v1219, 30
        %v1221 = vshll.u32 %v1220, 30
        %v1222 = vsub.s32 %v1218, %v1221
        %vm1223 = vcmp.lt.s32.totalorder %v1222, 0
        %v1224 = vsub.s32 0, %v1222
        %v1225 = vsel %vm1223, %v1224, %v1222
        %v1226 = vclz %v1225
        %v1227 = vsub.s32 %v1226, 2
        %vm1228 = vcmp.gt.s32.totalorder 0, %v1227
        %v1229 = vsel %vm1228, 0, %v1227
        %v1230 = vsub.s32 32, %v1229
        %v1231 = vshll.u32 %v1222, %v1229
        %v1232 = vshrl.u32 %v1214, %v1230
        %v1233 = vor.u32 %v1231, %v1232
        %v1234 = vsub.s32 4294967266, %v1229
        %v1235 = vadd.s32 %v1234, 127
        %v1236 = vshll.u32 %v1235, 23
        %v1237 = vor.u32 4788187, %v1236
        %v1238 = vand.u32 2147483647, %v1237
        %v1240 = vcvt.s32.f32 %v1233
        %v1241 = vmul.f32 %v1240, %v1238
        %v1242 = vxor.u32 %v1241, 2147483648
        %v1243 = vsel %vm1160, %v1242, %v1241
        %v1244 = vsub.s32 4, %v1220
        %v1245 = vsel %vm1160, %v1244, %v1220
        %v1246 = vsel %vm1159, %v938, %v1243
        %v1247 = vsel %vm1159, 0, %v1245
        %v1248 = vcosq.f32.pop %v1246
        %v1249 = vsinq.f32.pop %v1246
        %vm1250 = vweird.f32 %v938
        %v1251 = vand.u32 %v1247, 3
        %vm1252 = vcmp.lt.s32.totalorder %v1251, 2
        %vm1253 = vcmp.eq.s32.totalorder %v1251, 0
        %v1254 = vxor.u32 %v1249, 2147483648
        %v1255 = vsel %vm1253, %v1248, %v1254
        %vm1256 = vcmp.eq.s32.totalorder %v1251, 2
        %v1257 = vxor.u32 %v1248, 2147483648
        %v1258 = vsel %vm1256, %v1257, %v1249
        %v1259 = vsel %vm1252, %v1255, %v1258
        %v1260 = vsel %vm1250, nan, %v1259
        %v1261 = vand.u32 2147483647, %v939
        %vm1262 = vcmp.le.f32.partialorder %v1261, 0.7853982
        %vm1263 = vcmp.lt.s32.totalorder %v939, 0
        %v1264 = vand.u32 %v939, 2139095040
        %v1265 = vshrl.u32 %v1264, 23
        %v1266 = vsub.s32 %v1265, 127
        %v1267 = vand.u32 2147483647, %v939
        %v1268 = vand.u32 %v1267, 8388607
        %v1269 = vor.u32 %v1268, 8388608
        %v1270 = vsub.s32 0, %v1269
        %v1271 = vadd.s32 %v1266, 1
        %vm1272 = vcmp.gt.s32.totalorder %v1271, 0
        %v1273 = vsel %vm1272, %v1271, 0
        %v1274 = vshrl.u32 %v1273, 5
        %v1275 = vand.u32 %v1273, 31
        %v1276 = vsub.s32 32, %v1275
        %v1277 = vshrl.u32 683565275, %v1276
        %v1278 = vshll.u32 683565275, %v1275
        %v1279 = vshrl.u32 2475754826, %v1276
        %v1280 = vor.u32 %v1278, %v1279
        %v1281 = vshll.u32 2475754826, %v1275
        %v1282 = vshrl.u32 2131351028, %v1276
        %v1283 = vor.u32 %v1281, %v1282
        %v1284 = vshll.u32 2131351028, %v1275
        %v1285 = vshrl.u32 2102212464, %v1276
        %v1286 = vor.u32 %v1284, %v1285
        %v1287 = vshll.u32 2102212464, %v1275
        %v1288 = vshrl.u32 920167782, %v1276
        %v1289 = vor.u32 %v1287, %v1288
        %v1290 = vshll.u32 920167782, %v1275
        %v1291 = vshrl.u32 1326507024, %v1276
        %v1292 = vor.u32 %v1290, %v1291
        %vm1293 = vcmp.lt.s32.totalorder %v1274, 1
        %vm1294 = vcmp.lt.s32.totalorder %v1274, 2
        %vm1295 = vcmp.lt.s32.totalorder %v1274, 3
        %vm1296 = vcmp.lt.s32.totalorder %v1274, 4
        %v1297 = vsel %vm1293, %v1277, %v1280
        %v1298 = vsel %vm1296, %v1286, 2102212464
        %v1299 = vsel %vm1295, %v1283, %v1298
        %v1300 = vsel %vm1294, %v1297, %v1299
        %v1301 = vsel %vm1293, %v1280, %v1283
        %v1302 = vsel %vm1296, %v1289, 920167782
        %v1303 = vsel %vm1295, %v1286, %v1302
        %v1304 = vsel %vm1294, %v1301, %v1303
        %v1305 = vsel %vm1293, %v1283, %v1286
        %v1306 = vsel %vm1296, %v1292, 1326507024
        %v1307 = vsel %vm1295, %v1289, %v1306
        %v1308 = vsel %vm1294, %v1305, %v1307
        %v1309 = vshll.u32 %v1269, 8
        %v1310 = vmul.u32.u64.compose %v1309, %v1308
        %v1311 = vextract.low.u32 %v1310
        %v1312 = vextract.high.u32 %v1310
        %v1313 = vmul.u32.u64.compose %v1309, %v1304
        %v1314 = vextract.low.u32 %v1313
        %v1315 = vextract.high.u32 %v1313
        %v1316 = vmul.u32 %v1309, %v1300
        %v1317 = vadd.s32 %v1312, %v1314
        %vm1318 = vc.u32 %v1312, %v1314
        %v1319 = vadd.s32 %v1315, 1
        %v1320 = vsel %vm1318, %v1319, %v1315
        %v1321 = vadd.s32 %v1316, %v1320
        %v1322 = vadd.s32 %v1321, 536870912
        %v1323 = vshrl.u32 %v1322, 30
        %v1324 = vshll.u32 %v1323, 30
        %v1325 = vsub.s32 %v1321, %v1324
        %vm1326 = vcmp.lt.s32.totalorder %v1325, 0
        %v1327 = vsub.s32 0, %v1325
        %v1328 = vsel %vm1326, %v1327, %v1325
        %v1329 = vclz %v1328
        %v1330 = vsub.s32 %v1329, 2
        %vm1331 = vcmp.gt.s32.totalorder 0, %v1330
        %v1332 = vsel %vm1331, 0, %v1330
        %v1333 = vsub.s32 32, %v1332
        %v1334 = vshll.u32 %v1325, %v1332
        %v1335 = vshrl.u32 %v1317, %v1333
        %v1336 = vor.u32 %v1334, %v1335
        %v1337 = vsub.s32 4294967266, %v1332
        %v1338 = vadd.s32 %v1337, 127
        %v1339 = vshll.u32 %v1338, 23
        %v1340 = vor.u32 4788187, %v1339
        %v1341 = vand.u32 2147483647, %v1340
        %v1343 = vcvt.s32.f32 %v1336
        %v1344 = vmul.f32 %v1343, %v1341
        %v1345 = vxor.u32 %v1344, 2147483648
        %v1346 = vsel %vm1263, %v1345, %v1344
        %v1347 = vsub.s32 4, %v1323
        %v1348 = vsel %vm1263, %v1347, %v1323
        %v1349 = vsel %vm1262, %v939, %v1346
        %v1350 = vsel %vm1262, 0, %v1348
        %v1351 = vcosq.f32.pop %v1349
        %v1352 = vsinq.f32.pop %v1349
        %vm1353 = vweird.f32 %v939
        %v1354 = vand.u32 %v1350, 3
        %vm1355 = vcmp.lt.s32.totalorder %v1354, 2
        %vm1356 = vcmp.eq.s32.totalorder %v1354, 0
        %v1357 = vxor.u32 %v1352, 2147483648
        %v1358 = vsel %vm1356, %v1351, %v1357
        %vm1359 = vcmp.eq.s32.totalorder %v1354, 2
        %v1360 = vxor.u32 %v1351, 2147483648
        %v1361 = vsel %vm1359, %v1360, %v1352
        %v1362 = vsel %vm1355, %v1358, %v1361
        %v1363 = vsel %vm1353, nan, %v1362
        %v1364 = vand.u32 2147483647, %v940
        %vm1365 = vcmp.le.f32.partialorder %v1364, 0.7853982
        %vm1366 = vcmp.lt.s32.totalorder %v940, 0
        %v1367 = vand.u32 %v940, 2139095040
        %v1368 = vshrl.u32 %v1367, 23
        %v1369 = vsub.s32 %v1368, 127
        %v1370 = vand.u32 2147483647, %v940
        %v1371 = vand.u32 %v1370, 8388607
        %v1372 = vor.u32 %v1371, 8388608
        %v1373 = vsub.s32 0, %v1372
        %v1374 = vadd.s32 %v1369, 1
        %vm1375 = vcmp.gt.s32.totalorder %v1374, 0
        %v1376 = vsel %vm1375, %v1374, 0
        %v1377 = vshrl.u32 %v1376, 5
        %v1378 = vand.u32 %v1376, 31
        %v1379 = vsub.s32 32, %v1378
        %v1380 = vshrl.u32 683565275, %v1379
        %v1381 = vshll.u32 683565275, %v1378
        %v1382 = vshrl.u32 2475754826, %v1379
        %v1383 = vor.u32 %v1381, %v1382
        %v1384 = vshll.u32 2475754826, %v1378
        %v1385 = vshrl.u32 2131351028, %v1379
        %v1386 = vor.u32 %v1384, %v1385
        %v1387 = vshll.u32 2131351028, %v1378
        %v1388 = vshrl.u32 2102212464, %v1379
        %v1389 = vor.u32 %v1387, %v1388
        %v1390 = vshll.u32 2102212464, %v1378
        %v1391 = vshrl.u32 920167782, %v1379
        %v1392 = vor.u32 %v1390, %v1391
        %v1393 = vshll.u32 920167782, %v1378
        %v1394 = vshrl.u32 1326507024, %v1379
        %v1395 = vor.u32 %v1393, %v1394
        %vm1396 = vcmp.lt.s32.totalorder %v1377, 1
        %vm1397 = vcmp.lt.s32.totalorder %v1377, 2
        %vm1398 = vcmp.lt.s32.totalorder %v1377, 3
        %vm1399 = vcmp.lt.s32.totalorder %v1377, 4
        %v1400 = vsel %vm1396, %v1380, %v1383
        %v1401 = vsel %vm1399, %v1389, 2102212464
        %v1402 = vsel %vm1398, %v1386, %v1401
        %v1403 = vsel %vm1397, %v1400, %v1402
        %v1404 = vsel %vm1396, %v1383, %v1386
        %v1405 = vsel %vm1399, %v1392, 920167782
        %v1406 = vsel %vm1398, %v1389, %v1405
        %v1407 = vsel %vm1397, %v1404, %v1406
        %v1408 = vsel %vm1396, %v1386, %v1389
        %v1409 = vsel %vm1399, %v1395, 1326507024
        %v1410 = vsel %vm1398, %v1392, %v1409
        %v1411 = vsel %vm1397, %v1408, %v1410
        %v1412 = vshll.u32 %v1372, 8
        %v1413 = vmul.u32.u64.compose %v1412, %v1411
        %v1414 = vextract.low.u32 %v1413
        %v1415 = vextract.high.u32 %v1413
        %v1416 = vmul.u32.u64.compose %v1412, %v1407
        %v1417 = vextract.low.u32 %v1416
        %v1418 = vextract.high.u32 %v1416
        %v1419 = vmul.u32 %v1412, %v1403
        %v1420 = vadd.s32 %v1415, %v1417
        %vm1421 = vc.u32 %v1415, %v1417
        %v1422 = vadd.s32 %v1418, 1
        %v1423 = vsel %vm1421, %v1422, %v1418
        %v1424 = vadd.s32 %v1419, %v1423
        %v1425 = vadd.s32 %v1424, 536870912
        %v1426 = vshrl.u32 %v1425, 30
        %v1427 = vshll.u32 %v1426, 30
        %v1428 = vsub.s32 %v1424, %v1427
        %vm1429 = vcmp.lt.s32.totalorder %v1428, 0
        %v1430 = vsub.s32 0, %v1428
        %v1431 = vsel %vm1429, %v1430, %v1428
        %v1432 = vclz %v1431
        %v1433 = vsub.s32 %v1432, 2
        %vm1434 = vcmp.gt.s32.totalorder 0, %v1433
        %v1435 = vsel %vm1434, 0, %v1433
        %v1436 = vsub.s32 32, %v1435
        %v1437 = vshll.u32 %v1428, %v1435
        %v1438 = vshrl.u32 %v1420, %v1436
        %v1439 = vor.u32 %v1437, %v1438
        %v1440 = vsub.s32 4294967266, %v1435
        %v1441 = vadd.s32 %v1440, 127
        %v1442 = vshll.u32 %v1441, 23
        %v1443 = vor.u32 4788187, %v1442
        %v1444 = vand.u32 2147483647, %v1443
        %v1446 = vcvt.s32.f32 %v1439
        %v1447 = vmul.f32 %v1446, %v1444
        %v1448 = vxor.u32 %v1447, 2147483648
        %v1449 = vsel %vm1366, %v1448, %v1447
        %v1450 = vsub.s32 4, %v1426
        %v1451 = vsel %vm1366, %v1450, %v1426
        %v1452 = vsel %vm1365, %v940, %v1449
        %v1453 = vsel %vm1365, 0, %v1451
        %v1454 = vcosq.f32.pop %v1452
        %v1455 = vsinq.f32.pop %v1452
        %vm1456 = vweird.f32 %v940
        %v1457 = vand.u32 %v1453, 3
        %vm1458 = vcmp.lt.s32.totalorder %v1457, 2
        %vm1459 = vcmp.eq.s32.totalorder %v1457, 0
        %v1460 = vxor.u32 %v1455, 2147483648
        %v1461 = vsel %vm1459, %v1454, %v1460
        %vm1462 = vcmp.eq.s32.totalorder %v1457, 2
        %v1463 = vxor.u32 %v1454, 2147483648
        %v1464 = vsel %vm1462, %v1463, %v1455
        %v1465 = vsel %vm1458, %v1461, %v1464
        %v1466 = vsel %vm1456, nan, %v1465
        %v1467 = vand.u32 2147483647, %v941
        %vm1468 = vcmp.le.f32.partialorder %v1467, 0.7853982
        %vm1469 = vcmp.lt.s32.totalorder %v941, 0
        %v1470 = vand.u32 %v941, 2139095040
        %v1471 = vshrl.u32 %v1470, 23
        %v1472 = vsub.s32 %v1471, 127
        %v1473 = vand.u32 2147483647, %v941
        %v1474 = vand.u32 %v1473, 8388607
        %v1475 = vor.u32 %v1474, 8388608
        %v1476 = vsub.s32 0, %v1475
        %v1477 = vadd.s32 %v1472, 1
        %vm1478 = vcmp.gt.s32.totalorder %v1477, 0
        %v1479 = vsel %vm1478, %v1477, 0
        %v1480 = vshrl.u32 %v1479, 5
        %v1481 = vand.u32 %v1479, 31
        %v1482 = vsub.s32 32, %v1481
        %v1483 = vshrl.u32 683565275, %v1482
        %v1484 = vshll.u32 683565275, %v1481
        %v1485 = vshrl.u32 2475754826, %v1482
        %v1486 = vor.u32 %v1484, %v1485
        %v1487 = vshll.u32 2475754826, %v1481
        %v1488 = vshrl.u32 2131351028, %v1482
        %v1489 = vor.u32 %v1487, %v1488
        %v1490 = vshll.u32 2131351028, %v1481
        %v1491 = vshrl.u32 2102212464, %v1482
        %v1492 = vor.u32 %v1490, %v1491
        %v1493 = vshll.u32 2102212464, %v1481
        %v1494 = vshrl.u32 920167782, %v1482
        %v1495 = vor.u32 %v1493, %v1494
        %v1496 = vshll.u32 920167782, %v1481
        %v1497 = vshrl.u32 1326507024, %v1482
        %v1498 = vor.u32 %v1496, %v1497
        %vm1499 = vcmp.lt.s32.totalorder %v1480, 1
        %vm1500 = vcmp.lt.s32.totalorder %v1480, 2
        %vm1501 = vcmp.lt.s32.totalorder %v1480, 3
        %vm1502 = vcmp.lt.s32.totalorder %v1480, 4
        %v1503 = vsel %vm1499, %v1483, %v1486
        %v1504 = vsel %vm1502, %v1492, 2102212464
        %v1505 = vsel %vm1501, %v1489, %v1504
        %v1506 = vsel %vm1500, %v1503, %v1505
        %v1507 = vsel %vm1499, %v1486, %v1489
        %v1508 = vsel %vm1502, %v1495, 920167782
        %v1509 = vsel %vm1501, %v1492, %v1508
        %v1510 = vsel %vm1500, %v1507, %v1509
        %v1511 = vsel %vm1499, %v1489, %v1492
        %v1512 = vsel %vm1502, %v1498, 1326507024
        %v1513 = vsel %vm1501, %v1495, %v1512
        %v1514 = vsel %vm1500, %v1511, %v1513
        %v1515 = vshll.u32 %v1475, 8
        %v1516 = vmul.u32.u64.compose %v1515, %v1514
        %v1517 = vextract.low.u32 %v1516
        %v1518 = vextract.high.u32 %v1516
        %v1519 = vmul.u32.u64.compose %v1515, %v1510
        %v1520 = vextract.low.u32 %v1519
        %v1521 = vextract.high.u32 %v1519
        %v1522 = vmul.u32 %v1515, %v1506
        %v1523 = vadd.s32 %v1518, %v1520
        %vm1524 = vc.u32 %v1518, %v1520
        %v1525 = vadd.s32 %v1521, 1
        %v1526 = vsel %vm1524, %v1525, %v1521
        %v1527 = vadd.s32 %v1522, %v1526
        %v1528 = vadd.s32 %v1527, 536870912
        %v1529 = vshrl.u32 %v1528, 30
        %v1530 = vshll.u32 %v1529, 30
        %v1531 = vsub.s32 %v1527, %v1530
        %vm1532 = vcmp.lt.s32.totalorder %v1531, 0
        %v1533 = vsub.s32 0, %v1531
        %v1534 = vsel %vm1532, %v1533, %v1531
        %v1535 = vclz %v1534
        %v1536 = vsub.s32 %v1535, 2
        %vm1537 = vcmp.gt.s32.totalorder 0, %v1536
        %v1538 = vsel %vm1537, 0, %v1536
        %v1539 = vsub.s32 32, %v1538
        %v1540 = vshll.u32 %v1531, %v1538
        %v1541 = vshrl.u32 %v1523, %v1539
        %v1542 = vor.u32 %v1540, %v1541
        %v1543 = vsub.s32 4294967266, %v1538
        %v1544 = vadd.s32 %v1543, 127
        %v1545 = vshll.u32 %v1544, 23
        %v1546 = vor.u32 4788187, %v1545
        %v1547 = vand.u32 2147483647, %v1546
        %v1549 = vcvt.s32.f32 %v1542
        %v1550 = vmul.f32 %v1549, %v1547
        %v1551 = vxor.u32 %v1550, 2147483648
        %v1552 = vsel %vm1469, %v1551, %v1550
        %v1553 = vsub.s32 4, %v1529
        %v1554 = vsel %vm1469, %v1553, %v1529
        %v1555 = vsel %vm1468, %v941, %v1552
        %v1556 = vsel %vm1468, 0, %v1554
        %v1557 = vcosq.f32.pop %v1555
        %v1558 = vsinq.f32.pop %v1555
        %vm1559 = vweird.f32 %v941
        %v1560 = vand.u32 %v1556, 3
        %vm1561 = vcmp.lt.s32.totalorder %v1560, 2
        %vm1562 = vcmp.eq.s32.totalorder %v1560, 0
        %v1563 = vxor.u32 %v1558, 2147483648
        %v1564 = vsel %vm1562, %v1557, %v1563
        %vm1565 = vcmp.eq.s32.totalorder %v1560, 2
        %v1566 = vxor.u32 %v1557, 2147483648
        %v1567 = vsel %vm1565, %v1566, %v1558
        %v1568 = vsel %vm1561, %v1564, %v1567
        %v1569 = vsel %vm1559, nan, %v1568
        %v1570 = vand.u32 2147483647, %v942
        %vm1571 = vcmp.le.f32.partialorder %v1570, 0.7853982
        %vm1572 = vcmp.lt.s32.totalorder %v942, 0
        %v1573 = vand.u32 %v942, 2139095040
        %v1574 = vshrl.u32 %v1573, 23
        %v1575 = vsub.s32 %v1574, 127
        %v1576 = vand.u32 2147483647, %v942
        %v1577 = vand.u32 %v1576, 8388607
        %v1578 = vor.u32 %v1577, 8388608
        %v1579 = vsub.s32 0, %v1578
        %v1580 = vadd.s32 %v1575, 1
        %vm1581 = vcmp.gt.s32.totalorder %v1580, 0
        %v1582 = vsel %vm1581, %v1580, 0
        %v1583 = vshrl.u32 %v1582, 5
        %v1584 = vand.u32 %v1582, 31
        %v1585 = vsub.s32 32, %v1584
        %v1586 = vshrl.u32 683565275, %v1585
        %v1587 = vshll.u32 683565275, %v1584
        %v1588 = vshrl.u32 2475754826, %v1585
        %v1589 = vor.u32 %v1587, %v1588
        %v1590 = vshll.u32 2475754826, %v1584
        %v1591 = vshrl.u32 2131351028, %v1585
        %v1592 = vor.u32 %v1590, %v1591
        %v1593 = vshll.u32 2131351028, %v1584
        %v1594 = vshrl.u32 2102212464, %v1585
        %v1595 = vor.u32 %v1593, %v1594
        %v1596 = vshll.u32 2102212464, %v1584
        %v1597 = vshrl.u32 920167782, %v1585
        %v1598 = vor.u32 %v1596, %v1597
        %v1599 = vshll.u32 920167782, %v1584
        %v1600 = vshrl.u32 1326507024, %v1585
        %v1601 = vor.u32 %v1599, %v1600
        %vm1602 = vcmp.lt.s32.totalorder %v1583, 1
        %vm1603 = vcmp.lt.s32.totalorder %v1583, 2
        %vm1604 = vcmp.lt.s32.totalorder %v1583, 3
        %vm1605 = vcmp.lt.s32.totalorder %v1583, 4
        %v1606 = vsel %vm1602, %v1586, %v1589
        %v1607 = vsel %vm1605, %v1595, 2102212464
        %v1608 = vsel %vm1604, %v1592, %v1607
        %v1609 = vsel %vm1603, %v1606, %v1608
        %v1610 = vsel %vm1602, %v1589, %v1592
        %v1611 = vsel %vm1605, %v1598, 920167782
        %v1612 = vsel %vm1604, %v1595, %v1611
        %v1613 = vsel %vm1603, %v1610, %v1612
        %v1614 = vsel %vm1602, %v1592, %v1595
        %v1615 = vsel %vm1605, %v1601, 1326507024
        %v1616 = vsel %vm1604, %v1598, %v1615
        %v1617 = vsel %vm1603, %v1614, %v1616
        %v1618 = vshll.u32 %v1578, 8
        %v1619 = vmul.u32.u64.compose %v1618, %v1617
        %v1620 = vextract.low.u32 %v1619
        %v1621 = vextract.high.u32 %v1619
        %v1622 = vmul.u32.u64.compose %v1618, %v1613
        %v1623 = vextract.low.u32 %v1622
        %v1624 = vextract.high.u32 %v1622
        %v1625 = vmul.u32 %v1618, %v1609
        %v1626 = vadd.s32 %v1621, %v1623
        %vm1627 = vc.u32 %v1621, %v1623
        %v1628 = vadd.s32 %v1624, 1
        %v1629 = vsel %vm1627, %v1628, %v1624
        %v1630 = vadd.s32 %v1625, %v1629
        %v1631 = vadd.s32 %v1630, 536870912
        %v1632 = vshrl.u32 %v1631, 30
        %v1633 = vshll.u32 %v1632, 30
        %v1634 = vsub.s32 %v1630, %v1633
        %vm1635 = vcmp.lt.s32.totalorder %v1634, 0
        %v1636 = vsub.s32 0, %v1634
        %v1637 = vsel %vm1635, %v1636, %v1634
        %v1638 = vclz %v1637
        %v1639 = vsub.s32 %v1638, 2
        %vm1640 = vcmp.gt.s32.totalorder 0, %v1639
        %v1641 = vsel %vm1640, 0, %v1639
        %v1642 = vsub.s32 32, %v1641
        %v1643 = vshll.u32 %v1634, %v1641
        %v1644 = vshrl.u32 %v1626, %v1642
        %v1645 = vor.u32 %v1643, %v1644
        %v1646 = vsub.s32 4294967266, %v1641
        %v1647 = vadd.s32 %v1646, 127
        %v1648 = vshll.u32 %v1647, 23
        %v1649 = vor.u32 4788187, %v1648
        %v1650 = vand.u32 2147483647, %v1649
        %v1652 = vcvt.s32.f32 %v1645
        %v1653 = vmul.f32 %v1652, %v1650
        %v1654 = vxor.u32 %v1653, 2147483648
        %v1655 = vsel %vm1572, %v1654, %v1653
        %v1656 = vsub.s32 4, %v1632
        %v1657 = vsel %vm1572, %v1656, %v1632
        %v1658 = vsel %vm1571, %v942, %v1655
        %v1659 = vsel %vm1571, 0, %v1657
        %v1660 = vcosq.f32.pop %v1658
        %v1661 = vsinq.f32.pop %v1658
        %vm1662 = vweird.f32 %v942
        %v1663 = vand.u32 %v1659, 3
        %vm1664 = vcmp.lt.s32.totalorder %v1663, 2
        %vm1665 = vcmp.eq.s32.totalorder %v1663, 0
        %v1666 = vxor.u32 %v1661, 2147483648
        %v1667 = vsel %vm1665, %v1660, %v1666
        %vm1668 = vcmp.eq.s32.totalorder %v1663, 2
        %v1669 = vxor.u32 %v1660, 2147483648
        %v1670 = vsel %vm1668, %v1669, %v1661
        %v1671 = vsel %vm1664, %v1667, %v1670
        %v1672 = vsel %vm1662, nan, %v1671
        %v1673 = vand.u32 2147483647, %v943
        %vm1674 = vcmp.le.f32.partialorder %v1673, 0.7853982
        %vm1675 = vcmp.lt.s32.totalorder %v943, 0
        %v1676 = vand.u32 %v943, 2139095040
        %v1677 = vshrl.u32 %v1676, 23
        %v1678 = vsub.s32 %v1677, 127
        %v1679 = vand.u32 2147483647, %v943
        %v1680 = vand.u32 %v1679, 8388607
        %v1681 = vor.u32 %v1680, 8388608
        %v1682 = vsub.s32 0, %v1681
        %v1683 = vadd.s32 %v1678, 1
        %vm1684 = vcmp.gt.s32.totalorder %v1683, 0
        %v1685 = vsel %vm1684, %v1683, 0
        %v1686 = vshrl.u32 %v1685, 5
        %v1687 = vand.u32 %v1685, 31
        %v1688 = vsub.s32 32, %v1687
        %v1689 = vshrl.u32 683565275, %v1688
        %v1690 = vshll.u32 683565275, %v1687
        %v1691 = vshrl.u32 2475754826, %v1688
        %v1692 = vor.u32 %v1690, %v1691
        %v1693 = vshll.u32 2475754826, %v1687
        %v1694 = vshrl.u32 2131351028, %v1688
        %v1695 = vor.u32 %v1693, %v1694
        %v1696 = vshll.u32 2131351028, %v1687
        %v1697 = vshrl.u32 2102212464, %v1688
        %v1698 = vor.u32 %v1696, %v1697
        %v1699 = vshll.u32 2102212464, %v1687
        %v1700 = vshrl.u32 920167782, %v1688
        %v1701 = vor.u32 %v1699, %v1700
        %v1702 = vshll.u32 920167782, %v1687
        %v1703 = vshrl.u32 1326507024, %v1688
        %v1704 = vor.u32 %v1702, %v1703
        %vm1705 = vcmp.lt.s32.totalorder %v1686, 1
        %vm1706 = vcmp.lt.s32.totalorder %v1686, 2
        %vm1707 = vcmp.lt.s32.totalorder %v1686, 3
        %vm1708 = vcmp.lt.s32.totalorder %v1686, 4
        %v1709 = vsel %vm1705, %v1689, %v1692
        %v1710 = vsel %vm1708, %v1698, 2102212464
        %v1711 = vsel %vm1707, %v1695, %v1710
        %v1712 = vsel %vm1706, %v1709, %v1711
        %v1713 = vsel %vm1705, %v1692, %v1695
        %v1714 = vsel %vm1708, %v1701, 920167782
        %v1715 = vsel %vm1707, %v1698, %v1714
        %v1716 = vsel %vm1706, %v1713, %v1715
        %v1717 = vsel %vm1705, %v1695, %v1698
        %v1718 = vsel %vm1708, %v1704, 1326507024
        %v1719 = vsel %vm1707, %v1701, %v1718
        %v1720 = vsel %vm1706, %v1717, %v1719
        %v1721 = vshll.u32 %v1681, 8
        %v1722 = vmul.u32.u64.compose %v1721, %v1720
        %v1723 = vextract.low.u32 %v1722
        %v1724 = vextract.high.u32 %v1722
        %v1725 = vmul.u32.u64.compose %v1721, %v1716
        %v1726 = vextract.low.u32 %v1725
        %v1727 = vextract.high.u32 %v1725
        %v1728 = vmul.u32 %v1721, %v1712
        %v1729 = vadd.s32 %v1724, %v1726
        %vm1730 = vc.u32 %v1724, %v1726
        %v1731 = vadd.s32 %v1727, 1
        %v1732 = vsel %vm1730, %v1731, %v1727
        %v1733 = vadd.s32 %v1728, %v1732
        %v1734 = vadd.s32 %v1733, 536870912
        %v1735 = vshrl.u32 %v1734, 30
        %v1736 = vshll.u32 %v1735, 30
        %v1737 = vsub.s32 %v1733, %v1736
        %vm1738 = vcmp.lt.s32.totalorder %v1737, 0
        %v1739 = vsub.s32 0, %v1737
        %v1740 = vsel %vm1738, %v1739, %v1737
        %v1741 = vclz %v1740
        %v1742 = vsub.s32 %v1741, 2
        %vm1743 = vcmp.gt.s32.totalorder 0, %v1742
        %v1744 = vsel %vm1743, 0, %v1742
        %v1745 = vsub.s32 32, %v1744
        %v1746 = vshll.u32 %v1737, %v1744
        %v1747 = vshrl.u32 %v1729, %v1745
        %v1748 = vor.u32 %v1746, %v1747
        %v1749 = vsub.s32 4294967266, %v1744
        %v1750 = vadd.s32 %v1749, 127
        %v1751 = vshll.u32 %v1750, 23
        %v1752 = vor.u32 4788187, %v1751
        %v1753 = vand.u32 2147483647, %v1752
        %v1755 = vcvt.s32.f32 %v1748
        %v1756 = vmul.f32 %v1755, %v1753
        %v1757 = vxor.u32 %v1756, 2147483648
        %v1758 = vsel %vm1675, %v1757, %v1756
        %v1759 = vsub.s32 4, %v1735
        %v1760 = vsel %vm1675, %v1759, %v1735
        %v1761 = vsel %vm1674, %v943, %v1758
        %v1762 = vsel %vm1674, 0, %v1760
        %v1763 = vcosq.f32.pop %v1761
        %v1764 = vsinq.f32.pop %v1761
        %vm1765 = vweird.f32 %v943
        %v1766 = vand.u32 %v1762, 3
        %vm1767 = vcmp.lt.s32.totalorder %v1766, 2
        %vm1768 = vcmp.eq.s32.totalorder %v1766, 0
        %v1769 = vxor.u32 %v1764, 2147483648
        %v1770 = vsel %vm1768, %v1763, %v1769
        %vm1771 = vcmp.eq.s32.totalorder %v1766, 2
        %v1772 = vxor.u32 %v1763, 2147483648
        %v1773 = vsel %vm1771, %v1772, %v1764
        %v1774 = vsel %vm1767, %v1770, %v1773
        %v1775 = vsel %vm1765, nan, %v1774
        %v1776 = vand.u32 2147483647, %v944
        %vm1777 = vcmp.le.f32.partialorder %v1776, 0.7853982
        %vm1778 = vcmp.lt.s32.totalorder %v944, 0
        %v1779 = vand.u32 %v944, 2139095040
        %v1780 = vshrl.u32 %v1779, 23
        %v1781 = vsub.s32 %v1780, 127
        %v1782 = vand.u32 2147483647, %v944
        %v1783 = vand.u32 %v1782, 8388607
        %v1784 = vor.u32 %v1783, 8388608
        %v1785 = vsub.s32 0, %v1784
        %v1786 = vadd.s32 %v1781, 1
        %vm1787 = vcmp.gt.s32.totalorder %v1786, 0
        %v1788 = vsel %vm1787, %v1786, 0
        %v1789 = vshrl.u32 %v1788, 5
        %v1790 = vand.u32 %v1788, 31
        %v1791 = vsub.s32 32, %v1790
        %v1792 = vshrl.u32 683565275, %v1791
        %v1793 = vshll.u32 683565275, %v1790
        %v1794 = vshrl.u32 2475754826, %v1791
        %v1795 = vor.u32 %v1793, %v1794
        %v1796 = vshll.u32 2475754826, %v1790
        %v1797 = vshrl.u32 2131351028, %v1791
        %v1798 = vor.u32 %v1796, %v1797
        %v1799 = vshll.u32 2131351028, %v1790
        %v1800 = vshrl.u32 2102212464, %v1791
        %v1801 = vor.u32 %v1799, %v1800
        %v1802 = vshll.u32 2102212464, %v1790
        %v1803 = vshrl.u32 920167782, %v1791
        %v1804 = vor.u32 %v1802, %v1803
        %v1805 = vshll.u32 920167782, %v1790
        %v1806 = vshrl.u32 1326507024, %v1791
        %v1807 = vor.u32 %v1805, %v1806
        %vm1808 = vcmp.lt.s32.totalorder %v1789, 1
        %vm1809 = vcmp.lt.s32.totalorder %v1789, 2
        %vm1810 = vcmp.lt.s32.totalorder %v1789, 3
        %vm1811 = vcmp.lt.s32.totalorder %v1789, 4
        %v1812 = vsel %vm1808, %v1792, %v1795
        %v1813 = vsel %vm1811, %v1801, 2102212464
        %v1814 = vsel %vm1810, %v1798, %v1813
        %v1815 = vsel %vm1809, %v1812, %v1814
        %v1816 = vsel %vm1808, %v1795, %v1798
        %v1817 = vsel %vm1811, %v1804, 920167782
        %v1818 = vsel %vm1810, %v1801, %v1817
        %v1819 = vsel %vm1809, %v1816, %v1818
        %v1820 = vsel %vm1808, %v1798, %v1801
        %v1821 = vsel %vm1811, %v1807, 1326507024
        %v1822 = vsel %vm1810, %v1804, %v1821
        %v1823 = vsel %vm1809, %v1820, %v1822
        %v1824 = vshll.u32 %v1784, 8
        %v1825 = vmul.u32.u64.compose %v1824, %v1823
        %v1826 = vextract.low.u32 %v1825
        %v1827 = vextract.high.u32 %v1825
        %v1828 = vmul.u32.u64.compose %v1824, %v1819
        %v1829 = vextract.low.u32 %v1828
        %v1830 = vextract.high.u32 %v1828
        %v1831 = vmul.u32 %v1824, %v1815
        %v1832 = vadd.s32 %v1827, %v1829
        %vm1833 = vc.u32 %v1827, %v1829
        %v1834 = vadd.s32 %v1830, 1
        %v1835 = vsel %vm1833, %v1834, %v1830
        %v1836 = vadd.s32 %v1831, %v1835
        %v1837 = vadd.s32 %v1836, 536870912
        %v1838 = vshrl.u32 %v1837, 30
        %v1839 = vshll.u32 %v1838, 30
        %v1840 = vsub.s32 %v1836, %v1839
        %vm1841 = vcmp.lt.s32.totalorder %v1840, 0
        %v1842 = vsub.s32 0, %v1840
        %v1843 = vsel %vm1841, %v1842, %v1840
        %v1844 = vclz %v1843
        %v1845 = vsub.s32 %v1844, 2
        %vm1846 = vcmp.gt.s32.totalorder 0, %v1845
        %v1847 = vsel %vm1846, 0, %v1845
        %v1848 = vsub.s32 32, %v1847
        %v1849 = vshll.u32 %v1840, %v1847
        %v1850 = vshrl.u32 %v1832, %v1848
        %v1851 = vor.u32 %v1849, %v1850
        %v1852 = vsub.s32 4294967266, %v1847
        %v1853 = vadd.s32 %v1852, 127
        %v1854 = vshll.u32 %v1853, 23
        %v1855 = vor.u32 4788187, %v1854
        %v1856 = vand.u32 2147483647, %v1855
        %v1858 = vcvt.s32.f32 %v1851
        %v1859 = vmul.f32 %v1858, %v1856
        %v1860 = vxor.u32 %v1859, 2147483648
        %v1861 = vsel %vm1778, %v1860, %v1859
        %v1862 = vsub.s32 4, %v1838
        %v1863 = vsel %vm1778, %v1862, %v1838
        %v1864 = vsel %vm1777, %v944, %v1861
        %v1865 = vsel %vm1777, 0, %v1863
        %v1866 = vcosq.f32.pop %v1864
        %v1867 = vsinq.f32.pop %v1864
        %vm1868 = vweird.f32 %v944
        %v1869 = vand.u32 %v1865, 3
        %vm1870 = vcmp.lt.s32.totalorder %v1869, 2
        %vm1871 = vcmp.eq.s32.totalorder %v1869, 0
        %v1872 = vxor.u32 %v1867, 2147483648
        %v1873 = vsel %vm1871, %v1866, %v1872
        %vm1874 = vcmp.eq.s32.totalorder %v1869, 2
        %v1875 = vxor.u32 %v1866, 2147483648
        %v1876 = vsel %vm1874, %v1875, %v1867
        %v1877 = vsel %vm1870, %v1873, %v1876
        %v1878 = vsel %vm1868, nan, %v1877
        %v1879 = vand.u32 2147483647, %v945
        %vm1880 = vcmp.le.f32.partialorder %v1879, 0.7853982
        %vm1881 = vcmp.lt.s32.totalorder %v945, 0
        %v1882 = vand.u32 %v945, 2139095040
        %v1883 = vshrl.u32 %v1882, 23
        %v1884 = vsub.s32 %v1883, 127
        %v1885 = vand.u32 2147483647, %v945
        %v1886 = vand.u32 %v1885, 8388607
        %v1887 = vor.u32 %v1886, 8388608
        %v1888 = vsub.s32 0, %v1887
        %v1889 = vadd.s32 %v1884, 1
        %vm1890 = vcmp.gt.s32.totalorder %v1889, 0
        %v1891 = vsel %vm1890, %v1889, 0
        %v1892 = vshrl.u32 %v1891, 5
        %v1893 = vand.u32 %v1891, 31
        %v1894 = vsub.s32 32, %v1893
        %v1895 = vshrl.u32 683565275, %v1894
        %v1896 = vshll.u32 683565275, %v1893
        %v1897 = vshrl.u32 2475754826, %v1894
        %v1898 = vor.u32 %v1896, %v1897
        %v1899 = vshll.u32 2475754826, %v1893
        %v1900 = vshrl.u32 2131351028, %v1894
        %v1901 = vor.u32 %v1899, %v1900
        %v1902 = vshll.u32 2131351028, %v1893
        %v1903 = vshrl.u32 2102212464, %v1894
        %v1904 = vor.u32 %v1902, %v1903
        %v1905 = vshll.u32 2102212464, %v1893
        %v1906 = vshrl.u32 920167782, %v1894
        %v1907 = vor.u32 %v1905, %v1906
        %v1908 = vshll.u32 920167782, %v1893
        %v1909 = vshrl.u32 1326507024, %v1894
        %v1910 = vor.u32 %v1908, %v1909
        %vm1911 = vcmp.lt.s32.totalorder %v1892, 1
        %vm1912 = vcmp.lt.s32.totalorder %v1892, 2
        %vm1913 = vcmp.lt.s32.totalorder %v1892, 3
        %vm1914 = vcmp.lt.s32.totalorder %v1892, 4
        %v1915 = vsel %vm1911, %v1895, %v1898
        %v1916 = vsel %vm1914, %v1904, 2102212464
        %v1917 = vsel %vm1913, %v1901, %v1916
        %v1918 = vsel %vm1912, %v1915, %v1917
        %v1919 = vsel %vm1911, %v1898, %v1901
        %v1920 = vsel %vm1914, %v1907, 920167782
        %v1921 = vsel %vm1913, %v1904, %v1920
        %v1922 = vsel %vm1912, %v1919, %v1921
        %v1923 = vsel %vm1911, %v1901, %v1904
        %v1924 = vsel %vm1914, %v1910, 1326507024
        %v1925 = vsel %vm1913, %v1907, %v1924
        %v1926 = vsel %vm1912, %v1923, %v1925
        %v1927 = vshll.u32 %v1887, 8
        %v1928 = vmul.u32.u64.compose %v1927, %v1926
        %v1929 = vextract.low.u32 %v1928
        %v1930 = vextract.high.u32 %v1928
        %v1931 = vmul.u32.u64.compose %v1927, %v1922
        %v1932 = vextract.low.u32 %v1931
        %v1933 = vextract.high.u32 %v1931
        %v1934 = vmul.u32 %v1927, %v1918
        %v1935 = vadd.s32 %v1930, %v1932
        %vm1936 = vc.u32 %v1930, %v1932
        %v1937 = vadd.s32 %v1933, 1
        %v1938 = vsel %vm1936, %v1937, %v1933
        %v1939 = vadd.s32 %v1934, %v1938
        %v1940 = vadd.s32 %v1939, 536870912
        %v1941 = vshrl.u32 %v1940, 30
        %v1942 = vshll.u32 %v1941, 30
        %v1943 = vsub.s32 %v1939, %v1942
        %vm1944 = vcmp.lt.s32.totalorder %v1943, 0
        %v1945 = vsub.s32 0, %v1943
        %v1946 = vsel %vm1944, %v1945, %v1943
        %v1947 = vclz %v1946
        %v1948 = vsub.s32 %v1947, 2
        %vm1949 = vcmp.gt.s32.totalorder 0, %v1948
        %v1950 = vsel %vm1949, 0, %v1948
        %v1951 = vsub.s32 32, %v1950
        %v1952 = vshll.u32 %v1943, %v1950
        %v1953 = vshrl.u32 %v1935, %v1951
        %v1954 = vor.u32 %v1952, %v1953
        %v1955 = vsub.s32 4294967266, %v1950
        %v1956 = vadd.s32 %v1955, 127
        %v1957 = vshll.u32 %v1956, 23
        %v1958 = vor.u32 4788187, %v1957
        %v1959 = vand.u32 2147483647, %v1958
        %v1961 = vcvt.s32.f32 %v1954
        %v1962 = vmul.f32 %v1961, %v1959
        %v1963 = vxor.u32 %v1962, 2147483648
        %v1964 = vsel %vm1881, %v1963, %v1962
        %v1965 = vsub.s32 4, %v1941
        %v1966 = vsel %vm1881, %v1965, %v1941
        %v1967 = vsel %vm1880, %v945, %v1964
        %v1968 = vsel %vm1880, 0, %v1966
        %v1969 = vcosq.f32.pop %v1967
        %v1970 = vsinq.f32.pop %v1967
        %vm1971 = vweird.f32 %v945
        %v1972 = vand.u32 %v1968, 3
        %vm1973 = vcmp.lt.s32.totalorder %v1972, 2
        %vm1974 = vcmp.eq.s32.totalorder %v1972, 0
        %v1975 = vxor.u32 %v1970, 2147483648
        %v1976 = vsel %vm1974, %v1969, %v1975
        %vm1977 = vcmp.eq.s32.totalorder %v1972, 2
        %v1978 = vxor.u32 %v1969, 2147483648
        %v1979 = vsel %vm1977, %v1978, %v1970
        %v1980 = vsel %vm1973, %v1976, %v1979
        %v1981 = vsel %vm1971, nan, %v1980
        %v1982 = vand.u32 2147483647, %v946
        %vm1983 = vcmp.le.f32.partialorder %v1982, 0.7853982
        %vm1984 = vcmp.lt.s32.totalorder %v946, 0
        %v1985 = vand.u32 %v946, 2139095040
        %v1986 = vshrl.u32 %v1985, 23
        %v1987 = vsub.s32 %v1986, 127
        %v1988 = vand.u32 2147483647, %v946
        %v1989 = vand.u32 %v1988, 8388607
        %v1990 = vor.u32 %v1989, 8388608
        %v1991 = vsub.s32 0, %v1990
        %v1992 = vadd.s32 %v1987, 1
        %vm1993 = vcmp.gt.s32.totalorder %v1992, 0
        %v1994 = vsel %vm1993, %v1992, 0
        %v1995 = vshrl.u32 %v1994, 5
        %v1996 = vand.u32 %v1994, 31
        %v1997 = vsub.s32 32, %v1996
        %v1998 = vshrl.u32 683565275, %v1997
        %v1999 = vshll.u32 683565275, %v1996
        %v2000 = vshrl.u32 2475754826, %v1997
        %v2001 = vor.u32 %v1999, %v2000
        %v2002 = vshll.u32 2475754826, %v1996
        %v2003 = vshrl.u32 2131351028, %v1997
        %v2004 = vor.u32 %v2002, %v2003
        %v2005 = vshll.u32 2131351028, %v1996
        %v2006 = vshrl.u32 2102212464, %v1997
        %v2007 = vor.u32 %v2005, %v2006
        %v2008 = vshll.u32 2102212464, %v1996
        %v2009 = vshrl.u32 920167782, %v1997
        %v2010 = vor.u32 %v2008, %v2009
        %v2011 = vshll.u32 920167782, %v1996
        %v2012 = vshrl.u32 1326507024, %v1997
        %v2013 = vor.u32 %v2011, %v2012
        %vm2014 = vcmp.lt.s32.totalorder %v1995, 1
        %vm2015 = vcmp.lt.s32.totalorder %v1995, 2
        %vm2016 = vcmp.lt.s32.totalorder %v1995, 3
        %vm2017 = vcmp.lt.s32.totalorder %v1995, 4
        %v2018 = vsel %vm2014, %v1998, %v2001
        %v2019 = vsel %vm2017, %v2007, 2102212464
        %v2020 = vsel %vm2016, %v2004, %v2019
        %v2021 = vsel %vm2015, %v2018, %v2020
        %v2022 = vsel %vm2014, %v2001, %v2004
        %v2023 = vsel %vm2017, %v2010, 920167782
        %v2024 = vsel %vm2016, %v2007, %v2023
        %v2025 = vsel %vm2015, %v2022, %v2024
        %v2026 = vsel %vm2014, %v2004, %v2007
        %v2027 = vsel %vm2017, %v2013, 1326507024
        %v2028 = vsel %vm2016, %v2010, %v2027
        %v2029 = vsel %vm2015, %v2026, %v2028
        %v2030 = vshll.u32 %v1990, 8
        %v2031 = vmul.u32.u64.compose %v2030, %v2029
        %v2032 = vextract.low.u32 %v2031
        %v2033 = vextract.high.u32 %v2031
        %v2034 = vmul.u32.u64.compose %v2030, %v2025
        %v2035 = vextract.low.u32 %v2034
        %v2036 = vextract.high.u32 %v2034
        %v2037 = vmul.u32 %v2030, %v2021
        %v2038 = vadd.s32 %v2033, %v2035
        %vm2039 = vc.u32 %v2033, %v2035
        %v2040 = vadd.s32 %v2036, 1
        %v2041 = vsel %vm2039, %v2040, %v2036
        %v2042 = vadd.s32 %v2037, %v2041
        %v2043 = vadd.s32 %v2042, 536870912
        %v2044 = vshrl.u32 %v2043, 30
        %v2045 = vshll.u32 %v2044, 30
        %v2046 = vsub.s32 %v2042, %v2045
        %vm2047 = vcmp.lt.s32.totalorder %v2046, 0
        %v2048 = vsub.s32 0, %v2046
        %v2049 = vsel %vm2047, %v2048, %v2046
        %v2050 = vclz %v2049
        %v2051 = vsub.s32 %v2050, 2
        %vm2052 = vcmp.gt.s32.totalorder 0, %v2051
        %v2053 = vsel %vm2052, 0, %v2051
        %v2054 = vsub.s32 32, %v2053
        %v2055 = vshll.u32 %v2046, %v2053
        %v2056 = vshrl.u32 %v2038, %v2054
        %v2057 = vor.u32 %v2055, %v2056
        %v2058 = vsub.s32 4294967266, %v2053
        %v2059 = vadd.s32 %v2058, 127
        %v2060 = vshll.u32 %v2059, 23
        %v2061 = vor.u32 4788187, %v2060
        %v2062 = vand.u32 2147483647, %v2061
        %v2064 = vcvt.s32.f32 %v2057
        %v2065 = vmul.f32 %v2064, %v2062
        %v2066 = vxor.u32 %v2065, 2147483648
        %v2067 = vsel %vm1984, %v2066, %v2065
        %v2068 = vsub.s32 4, %v2044
        %v2069 = vsel %vm1984, %v2068, %v2044
        %v2070 = vsel %vm1983, %v946, %v2067
        %v2071 = vsel %vm1983, 0, %v2069
        %v2072 = vcosq.f32.pop %v2070
        %v2073 = vsinq.f32.pop %v2070
        %vm2074 = vweird.f32 %v946
        %v2075 = vand.u32 %v2071, 3
        %vm2076 = vcmp.lt.s32.totalorder %v2075, 2
        %vm2077 = vcmp.eq.s32.totalorder %v2075, 0
        %v2078 = vxor.u32 %v2073, 2147483648
        %v2079 = vsel %vm2077, %v2072, %v2078
        %vm2080 = vcmp.eq.s32.totalorder %v2075, 2
        %v2081 = vxor.u32 %v2072, 2147483648
        %v2082 = vsel %vm2080, %v2081, %v2073
        %v2083 = vsel %vm2076, %v2079, %v2082
        %v2084 = vsel %vm2074, nan, %v2083
        %v2085 = vand.u32 2147483647, %v947
        %vm2086 = vcmp.le.f32.partialorder %v2085, 0.7853982
        %vm2087 = vcmp.lt.s32.totalorder %v947, 0
        %v2088 = vand.u32 %v947, 2139095040
        %v2089 = vshrl.u32 %v2088, 23
        %v2090 = vsub.s32 %v2089, 127
        %v2091 = vand.u32 2147483647, %v947
        %v2092 = vand.u32 %v2091, 8388607
        %v2093 = vor.u32 %v2092, 8388608
        %v2094 = vsub.s32 0, %v2093
        %v2095 = vadd.s32 %v2090, 1
        %vm2096 = vcmp.gt.s32.totalorder %v2095, 0
        %v2097 = vsel %vm2096, %v2095, 0
        %v2098 = vshrl.u32 %v2097, 5
        %v2099 = vand.u32 %v2097, 31
        %v2100 = vsub.s32 32, %v2099
        %v2101 = vshrl.u32 683565275, %v2100
        %v2102 = vshll.u32 683565275, %v2099
        %v2103 = vshrl.u32 2475754826, %v2100
        %v2104 = vor.u32 %v2102, %v2103
        %v2105 = vshll.u32 2475754826, %v2099
        %v2106 = vshrl.u32 2131351028, %v2100
        %v2107 = vor.u32 %v2105, %v2106
        %v2108 = vshll.u32 2131351028, %v2099
        %v2109 = vshrl.u32 2102212464, %v2100
        %v2110 = vor.u32 %v2108, %v2109
        %v2111 = vshll.u32 2102212464, %v2099
        %v2112 = vshrl.u32 920167782, %v2100
        %v2113 = vor.u32 %v2111, %v2112
        %v2114 = vshll.u32 920167782, %v2099
        %v2115 = vshrl.u32 1326507024, %v2100
        %v2116 = vor.u32 %v2114, %v2115
        %vm2117 = vcmp.lt.s32.totalorder %v2098, 1
        %vm2118 = vcmp.lt.s32.totalorder %v2098, 2
        %vm2119 = vcmp.lt.s32.totalorder %v2098, 3
        %vm2120 = vcmp.lt.s32.totalorder %v2098, 4
        %v2121 = vsel %vm2117, %v2101, %v2104
        %v2122 = vsel %vm2120, %v2110, 2102212464
        %v2123 = vsel %vm2119, %v2107, %v2122
        %v2124 = vsel %vm2118, %v2121, %v2123
        %v2125 = vsel %vm2117, %v2104, %v2107
        %v2126 = vsel %vm2120, %v2113, 920167782
        %v2127 = vsel %vm2119, %v2110, %v2126
        %v2128 = vsel %vm2118, %v2125, %v2127
        %v2129 = vsel %vm2117, %v2107, %v2110
        %v2130 = vsel %vm2120, %v2116, 1326507024
        %v2131 = vsel %vm2119, %v2113, %v2130
        %v2132 = vsel %vm2118, %v2129, %v2131
        %v2133 = vshll.u32 %v2093, 8
        %v2134 = vmul.u32.u64.compose %v2133, %v2132
        %v2135 = vextract.low.u32 %v2134
        %v2136 = vextract.high.u32 %v2134
        %v2137 = vmul.u32.u64.compose %v2133, %v2128
        %v2138 = vextract.low.u32 %v2137
        %v2139 = vextract.high.u32 %v2137
        %v2140 = vmul.u32 %v2133, %v2124
        %v2141 = vadd.s32 %v2136, %v2138
        %vm2142 = vc.u32 %v2136, %v2138
        %v2143 = vadd.s32 %v2139, 1
        %v2144 = vsel %vm2142, %v2143, %v2139
        %v2145 = vadd.s32 %v2140, %v2144
        %v2146 = vadd.s32 %v2145, 536870912
        %v2147 = vshrl.u32 %v2146, 30
        %v2148 = vshll.u32 %v2147, 30
        %v2149 = vsub.s32 %v2145, %v2148
        %vm2150 = vcmp.lt.s32.totalorder %v2149, 0
        %v2151 = vsub.s32 0, %v2149
        %v2152 = vsel %vm2150, %v2151, %v2149
        %v2153 = vclz %v2152
        %v2154 = vsub.s32 %v2153, 2
        %vm2155 = vcmp.gt.s32.totalorder 0, %v2154
        %v2156 = vsel %vm2155, 0, %v2154
        %v2157 = vsub.s32 32, %v2156
        %v2158 = vshll.u32 %v2149, %v2156
        %v2159 = vshrl.u32 %v2141, %v2157
        %v2160 = vor.u32 %v2158, %v2159
        %v2161 = vsub.s32 4294967266, %v2156
        %v2162 = vadd.s32 %v2161, 127
        %v2163 = vshll.u32 %v2162, 23
        %v2164 = vor.u32 4788187, %v2163
        %v2165 = vand.u32 2147483647, %v2164
        %v2167 = vcvt.s32.f32 %v2160
        %v2168 = vmul.f32 %v2167, %v2165
        %v2169 = vxor.u32 %v2168, 2147483648
        %v2170 = vsel %vm2087, %v2169, %v2168
        %v2171 = vsub.s32 4, %v2147
        %v2172 = vsel %vm2087, %v2171, %v2147
        %v2173 = vsel %vm2086, %v947, %v2170
        %v2174 = vsel %vm2086, 0, %v2172
        %v2175 = vcosq.f32.pop %v2173
        %v2176 = vsinq.f32.pop %v2173
        %vm2177 = vweird.f32 %v947
        %v2178 = vand.u32 %v2174, 3
        %vm2179 = vcmp.lt.s32.totalorder %v2178, 2
        %vm2180 = vcmp.eq.s32.totalorder %v2178, 0
        %v2181 = vxor.u32 %v2176, 2147483648
        %v2182 = vsel %vm2180, %v2175, %v2181
        %vm2183 = vcmp.eq.s32.totalorder %v2178, 2
        %v2184 = vxor.u32 %v2175, 2147483648
        %v2185 = vsel %vm2183, %v2184, %v2176
        %v2186 = vsel %vm2179, %v2182, %v2185
        %v2187 = vsel %vm2177, nan, %v2186
        %v2188 = vand.u32 2147483647, %v948
        %vm2189 = vcmp.le.f32.partialorder %v2188, 0.7853982
        %vm2190 = vcmp.lt.s32.totalorder %v948, 0
        %v2191 = vand.u32 %v948, 2139095040
        %v2192 = vshrl.u32 %v2191, 23
        %v2193 = vsub.s32 %v2192, 127
        %v2194 = vand.u32 2147483647, %v948
        %v2195 = vand.u32 %v2194, 8388607
        %v2196 = vor.u32 %v2195, 8388608
        %v2197 = vsub.s32 0, %v2196
        %v2198 = vadd.s32 %v2193, 1
        %vm2199 = vcmp.gt.s32.totalorder %v2198, 0
        %v2200 = vsel %vm2199, %v2198, 0
        %v2201 = vshrl.u32 %v2200, 5
        %v2202 = vand.u32 %v2200, 31
        %v2203 = vsub.s32 32, %v2202
        %v2204 = vshrl.u32 683565275, %v2203
        %v2205 = vshll.u32 683565275, %v2202
        %v2206 = vshrl.u32 2475754826, %v2203
        %v2207 = vor.u32 %v2205, %v2206
        %v2208 = vshll.u32 2475754826, %v2202
        %v2209 = vshrl.u32 2131351028, %v2203
        %v2210 = vor.u32 %v2208, %v2209
        %v2211 = vshll.u32 2131351028, %v2202
        %v2212 = vshrl.u32 2102212464, %v2203
        %v2213 = vor.u32 %v2211, %v2212
        %v2214 = vshll.u32 2102212464, %v2202
        %v2215 = vshrl.u32 920167782, %v2203
        %v2216 = vor.u32 %v2214, %v2215
        %v2217 = vshll.u32 920167782, %v2202
        %v2218 = vshrl.u32 1326507024, %v2203
        %v2219 = vor.u32 %v2217, %v2218
        %vm2220 = vcmp.lt.s32.totalorder %v2201, 1
        %vm2221 = vcmp.lt.s32.totalorder %v2201, 2
        %vm2222 = vcmp.lt.s32.totalorder %v2201, 3
        %vm2223 = vcmp.lt.s32.totalorder %v2201, 4
        %v2224 = vsel %vm2220, %v2204, %v2207
        %v2225 = vsel %vm2223, %v2213, 2102212464
        %v2226 = vsel %vm2222, %v2210, %v2225
        %v2227 = vsel %vm2221, %v2224, %v2226
        %v2228 = vsel %vm2220, %v2207, %v2210
        %v2229 = vsel %vm2223, %v2216, 920167782
        %v2230 = vsel %vm2222, %v2213, %v2229
        %v2231 = vsel %vm2221, %v2228, %v2230
        %v2232 = vsel %vm2220, %v2210, %v2213
        %v2233 = vsel %vm2223, %v2219, 1326507024
        %v2234 = vsel %vm2222, %v2216, %v2233
        %v2235 = vsel %vm2221, %v2232, %v2234
        %v2236 = vshll.u32 %v2196, 8
        %v2237 = vmul.u32.u64.compose %v2236, %v2235
        %v2238 = vextract.low.u32 %v2237
        %v2239 = vextract.high.u32 %v2237
        %v2240 = vmul.u32.u64.compose %v2236, %v2231
        %v2241 = vextract.low.u32 %v2240
        %v2242 = vextract.high.u32 %v2240
        %v2243 = vmul.u32 %v2236, %v2227
        %v2244 = vadd.s32 %v2239, %v2241
        %vm2245 = vc.u32 %v2239, %v2241
        %v2246 = vadd.s32 %v2242, 1
        %v2247 = vsel %vm2245, %v2246, %v2242
        %v2248 = vadd.s32 %v2243, %v2247
        %v2249 = vadd.s32 %v2248, 536870912
        %v2250 = vshrl.u32 %v2249, 30
        %v2251 = vshll.u32 %v2250, 30
        %v2252 = vsub.s32 %v2248, %v2251
        %vm2253 = vcmp.lt.s32.totalorder %v2252, 0
        %v2254 = vsub.s32 0, %v2252
        %v2255 = vsel %vm2253, %v2254, %v2252
        %v2256 = vclz %v2255
        %v2257 = vsub.s32 %v2256, 2
        %vm2258 = vcmp.gt.s32.totalorder 0, %v2257
        %v2259 = vsel %vm2258, 0, %v2257
        %v2260 = vsub.s32 32, %v2259
        %v2261 = vshll.u32 %v2252, %v2259
        %v2262 = vshrl.u32 %v2244, %v2260
        %v2263 = vor.u32 %v2261, %v2262
        %v2264 = vsub.s32 4294967266, %v2259
        %v2265 = vadd.s32 %v2264, 127
        %v2266 = vshll.u32 %v2265, 23
        %v2267 = vor.u32 4788187, %v2266
        %v2268 = vand.u32 2147483647, %v2267
        %v2270 = vcvt.s32.f32 %v2263
        %v2271 = vmul.f32 %v2270, %v2268
        %v2272 = vxor.u32 %v2271, 2147483648
        %v2273 = vsel %vm2190, %v2272, %v2271
        %v2274 = vsub.s32 4, %v2250
        %v2275 = vsel %vm2190, %v2274, %v2250
        %v2276 = vsel %vm2189, %v948, %v2273
        %v2277 = vsel %vm2189, 0, %v2275
        %v2278 = vcosq.f32.pop %v2276
        %v2279 = vsinq.f32.pop %v2276
        %vm2280 = vweird.f32 %v948
        %v2281 = vand.u32 %v2277, 3
        %vm2282 = vcmp.lt.s32.totalorder %v2281, 2
        %vm2283 = vcmp.eq.s32.totalorder %v2281, 0
        %v2284 = vxor.u32 %v2279, 2147483648
        %v2285 = vsel %vm2283, %v2278, %v2284
        %vm2286 = vcmp.eq.s32.totalorder %v2281, 2
        %v2287 = vxor.u32 %v2278, 2147483648
        %v2288 = vsel %vm2286, %v2287, %v2279
        %v2289 = vsel %vm2282, %v2285, %v2288
        %v2290 = vsel %vm2280, nan, %v2289
        %v2291 = vand.u32 2147483647, %v949
        %vm2292 = vcmp.le.f32.partialorder %v2291, 0.7853982
        %vm2293 = vcmp.lt.s32.totalorder %v949, 0
        %v2294 = vand.u32 %v949, 2139095040
        %v2295 = vshrl.u32 %v2294, 23
        %v2296 = vsub.s32 %v2295, 127
        %v2297 = vand.u32 2147483647, %v949
        %v2298 = vand.u32 %v2297, 8388607
        %v2299 = vor.u32 %v2298, 8388608
        %v2300 = vsub.s32 0, %v2299
        %v2301 = vadd.s32 %v2296, 1
        %vm2302 = vcmp.gt.s32.totalorder %v2301, 0
        %v2303 = vsel %vm2302, %v2301, 0
        %v2304 = vshrl.u32 %v2303, 5
        %v2305 = vand.u32 %v2303, 31
        %v2306 = vsub.s32 32, %v2305
        %v2307 = vshrl.u32 683565275, %v2306
        %v2308 = vshll.u32 683565275, %v2305
        %v2309 = vshrl.u32 2475754826, %v2306
        %v2310 = vor.u32 %v2308, %v2309
        %v2311 = vshll.u32 2475754826, %v2305
        %v2312 = vshrl.u32 2131351028, %v2306
        %v2313 = vor.u32 %v2311, %v2312
        %v2314 = vshll.u32 2131351028, %v2305
        %v2315 = vshrl.u32 2102212464, %v2306
        %v2316 = vor.u32 %v2314, %v2315
        %v2317 = vshll.u32 2102212464, %v2305
        %v2318 = vshrl.u32 920167782, %v2306
        %v2319 = vor.u32 %v2317, %v2318
        %v2320 = vshll.u32 920167782, %v2305
        %v2321 = vshrl.u32 1326507024, %v2306
        %v2322 = vor.u32 %v2320, %v2321
        %vm2323 = vcmp.lt.s32.totalorder %v2304, 1
        %vm2324 = vcmp.lt.s32.totalorder %v2304, 2
        %vm2325 = vcmp.lt.s32.totalorder %v2304, 3
        %vm2326 = vcmp.lt.s32.totalorder %v2304, 4
        %v2327 = vsel %vm2323, %v2307, %v2310
        %v2328 = vsel %vm2326, %v2316, 2102212464
        %v2329 = vsel %vm2325, %v2313, %v2328
        %v2330 = vsel %vm2324, %v2327, %v2329
        %v2331 = vsel %vm2323, %v2310, %v2313
        %v2332 = vsel %vm2326, %v2319, 920167782
        %v2333 = vsel %vm2325, %v2316, %v2332
        %v2334 = vsel %vm2324, %v2331, %v2333
        %v2335 = vsel %vm2323, %v2313, %v2316
        %v2336 = vsel %vm2326, %v2322, 1326507024
        %v2337 = vsel %vm2325, %v2319, %v2336
        %v2338 = vsel %vm2324, %v2335, %v2337
        %v2339 = vshll.u32 %v2299, 8
        %v2340 = vmul.u32.u64.compose %v2339, %v2338
        %v2341 = vextract.low.u32 %v2340
        %v2342 = vextract.high.u32 %v2340
        %v2343 = vmul.u32.u64.compose %v2339, %v2334
        %v2344 = vextract.low.u32 %v2343
        %v2345 = vextract.high.u32 %v2343
        %v2346 = vmul.u32 %v2339, %v2330
        %v2347 = vadd.s32 %v2342, %v2344
        %vm2348 = vc.u32 %v2342, %v2344
        %v2349 = vadd.s32 %v2345, 1
        %v2350 = vsel %vm2348, %v2349, %v2345
        %v2351 = vadd.s32 %v2346, %v2350
        %v2352 = vadd.s32 %v2351, 536870912
        %v2353 = vshrl.u32 %v2352, 30
        %v2354 = vshll.u32 %v2353, 30
        %v2355 = vsub.s32 %v2351, %v2354
        %vm2356 = vcmp.lt.s32.totalorder %v2355, 0
        %v2357 = vsub.s32 0, %v2355
        %v2358 = vsel %vm2356, %v2357, %v2355
        %v2359 = vclz %v2358
        %v2360 = vsub.s32 %v2359, 2
        %vm2361 = vcmp.gt.s32.totalorder 0, %v2360
        %v2362 = vsel %vm2361, 0, %v2360
        %v2363 = vsub.s32 32, %v2362
        %v2364 = vshll.u32 %v2355, %v2362
        %v2365 = vshrl.u32 %v2347, %v2363
        %v2366 = vor.u32 %v2364, %v2365
        %v2367 = vsub.s32 4294967266, %v2362
        %v2368 = vadd.s32 %v2367, 127
        %v2369 = vshll.u32 %v2368, 23
        %v2370 = vor.u32 4788187, %v2369
        %v2371 = vand.u32 2147483647, %v2370
        %v2373 = vcvt.s32.f32 %v2366
        %v2374 = vmul.f32 %v2373, %v2371
        %v2375 = vxor.u32 %v2374, 2147483648
        %v2376 = vsel %vm2293, %v2375, %v2374
        %v2377 = vsub.s32 4, %v2353
        %v2378 = vsel %vm2293, %v2377, %v2353
        %v2379 = vsel %vm2292, %v949, %v2376
        %v2380 = vsel %vm2292, 0, %v2378
        %v2381 = vcosq.f32.pop %v2379
        %v2382 = vsinq.f32.pop %v2379
        %vm2383 = vweird.f32 %v949
        %v2384 = vand.u32 %v2380, 3
        %vm2385 = vcmp.lt.s32.totalorder %v2384, 2
        %vm2386 = vcmp.eq.s32.totalorder %v2384, 0
        %v2387 = vxor.u32 %v2382, 2147483648
        %v2388 = vsel %vm2386, %v2381, %v2387
        %vm2389 = vcmp.eq.s32.totalorder %v2384, 2
        %v2390 = vxor.u32 %v2381, 2147483648
        %v2391 = vsel %vm2389, %v2390, %v2382
        %v2392 = vsel %vm2385, %v2388, %v2391
        %v2393 = vsel %vm2383, nan, %v2392
        %v2394 = vand.u32 2147483647, %v950
        %vm2395 = vcmp.le.f32.partialorder %v2394, 0.7853982
        %vm2396 = vcmp.lt.s32.totalorder %v950, 0
        %v2397 = vand.u32 %v950, 2139095040
        %v2398 = vshrl.u32 %v2397, 23
        %v2399 = vsub.s32 %v2398, 127
        %v2400 = vand.u32 2147483647, %v950
        %v2401 = vand.u32 %v2400, 8388607
        %v2402 = vor.u32 %v2401, 8388608
        %v2403 = vsub.s32 0, %v2402
        %v2404 = vadd.s32 %v2399, 1
        %vm2405 = vcmp.gt.s32.totalorder %v2404, 0
        %v2406 = vsel %vm2405, %v2404, 0
        %v2407 = vshrl.u32 %v2406, 5
        %v2408 = vand.u32 %v2406, 31
        %v2409 = vsub.s32 32, %v2408
        %v2410 = vshrl.u32 683565275, %v2409
        %v2411 = vshll.u32 683565275, %v2408
        %v2412 = vshrl.u32 2475754826, %v2409
        %v2413 = vor.u32 %v2411, %v2412
        %v2414 = vshll.u32 2475754826, %v2408
        %v2415 = vshrl.u32 2131351028, %v2409
        %v2416 = vor.u32 %v2414, %v2415
        %v2417 = vshll.u32 2131351028, %v2408
        %v2418 = vshrl.u32 2102212464, %v2409
        %v2419 = vor.u32 %v2417, %v2418
        %v2420 = vshll.u32 2102212464, %v2408
        %v2421 = vshrl.u32 920167782, %v2409
        %v2422 = vor.u32 %v2420, %v2421
        %v2423 = vshll.u32 920167782, %v2408
        %v2424 = vshrl.u32 1326507024, %v2409
        %v2425 = vor.u32 %v2423, %v2424
        %vm2426 = vcmp.lt.s32.totalorder %v2407, 1
        %vm2427 = vcmp.lt.s32.totalorder %v2407, 2
        %vm2428 = vcmp.lt.s32.totalorder %v2407, 3
        %vm2429 = vcmp.lt.s32.totalorder %v2407, 4
        %v2430 = vsel %vm2426, %v2410, %v2413
        %v2431 = vsel %vm2429, %v2419, 2102212464
        %v2432 = vsel %vm2428, %v2416, %v2431
        %v2433 = vsel %vm2427, %v2430, %v2432
        %v2434 = vsel %vm2426, %v2413, %v2416
        %v2435 = vsel %vm2429, %v2422, 920167782
        %v2436 = vsel %vm2428, %v2419, %v2435
        %v2437 = vsel %vm2427, %v2434, %v2436
        %v2438 = vsel %vm2426, %v2416, %v2419
        %v2439 = vsel %vm2429, %v2425, 1326507024
        %v2440 = vsel %vm2428, %v2422, %v2439
        %v2441 = vsel %vm2427, %v2438, %v2440
        %v2442 = vshll.u32 %v2402, 8
        %v2443 = vmul.u32.u64.compose %v2442, %v2441
        %v2444 = vextract.low.u32 %v2443
        %v2445 = vextract.high.u32 %v2443
        %v2446 = vmul.u32.u64.compose %v2442, %v2437
        %v2447 = vextract.low.u32 %v2446
        %v2448 = vextract.high.u32 %v2446
        %v2449 = vmul.u32 %v2442, %v2433
        %v2450 = vadd.s32 %v2445, %v2447
        %vm2451 = vc.u32 %v2445, %v2447
        %v2452 = vadd.s32 %v2448, 1
        %v2453 = vsel %vm2451, %v2452, %v2448
        %v2454 = vadd.s32 %v2449, %v2453
        %v2455 = vadd.s32 %v2454, 536870912
        %v2456 = vshrl.u32 %v2455, 30
        %v2457 = vshll.u32 %v2456, 30
        %v2458 = vsub.s32 %v2454, %v2457
        %vm2459 = vcmp.lt.s32.totalorder %v2458, 0
        %v2460 = vsub.s32 0, %v2458
        %v2461 = vsel %vm2459, %v2460, %v2458
        %v2462 = vclz %v2461
        %v2463 = vsub.s32 %v2462, 2
        %vm2464 = vcmp.gt.s32.totalorder 0, %v2463
        %v2465 = vsel %vm2464, 0, %v2463
        %v2466 = vsub.s32 32, %v2465
        %v2467 = vshll.u32 %v2458, %v2465
        %v2468 = vshrl.u32 %v2450, %v2466
        %v2469 = vor.u32 %v2467, %v2468
        %v2470 = vsub.s32 4294967266, %v2465
        %v2471 = vadd.s32 %v2470, 127
        %v2472 = vshll.u32 %v2471, 23
        %v2473 = vor.u32 4788187, %v2472
        %v2474 = vand.u32 2147483647, %v2473
        %v2476 = vcvt.s32.f32 %v2469
        %v2477 = vmul.f32 %v2476, %v2474
        %v2478 = vxor.u32 %v2477, 2147483648
        %v2479 = vsel %vm2396, %v2478, %v2477
        %v2480 = vsub.s32 4, %v2456
        %v2481 = vsel %vm2396, %v2480, %v2456
        %v2482 = vsel %vm2395, %v950, %v2479
        %v2483 = vsel %vm2395, 0, %v2481
        %v2484 = vcosq.f32.pop %v2482
        %v2485 = vsinq.f32.pop %v2482
        %vm2486 = vweird.f32 %v950
        %v2487 = vand.u32 %v2483, 3
        %vm2488 = vcmp.lt.s32.totalorder %v2487, 2
        %vm2489 = vcmp.eq.s32.totalorder %v2487, 0
        %v2490 = vxor.u32 %v2485, 2147483648
        %v2491 = vsel %vm2489, %v2484, %v2490
        %vm2492 = vcmp.eq.s32.totalorder %v2487, 2
        %v2493 = vxor.u32 %v2484, 2147483648
        %v2494 = vsel %vm2492, %v2493, %v2485
        %v2495 = vsel %vm2488, %v2491, %v2494
        %v2496 = vsel %vm2486, nan, %v2495
        %v2497 = vand.u32 2147483647, %v951
        %vm2498 = vcmp.le.f32.partialorder %v2497, 0.7853982
        %vm2499 = vcmp.lt.s32.totalorder %v951, 0
        %v2500 = vand.u32 %v951, 2139095040
        %v2501 = vshrl.u32 %v2500, 23
        %v2502 = vsub.s32 %v2501, 127
        %v2503 = vand.u32 2147483647, %v951
        %v2504 = vand.u32 %v2503, 8388607
        %v2505 = vor.u32 %v2504, 8388608
        %v2506 = vsub.s32 0, %v2505
        %v2507 = vadd.s32 %v2502, 1
        %vm2508 = vcmp.gt.s32.totalorder %v2507, 0
        %v2509 = vsel %vm2508, %v2507, 0
        %v2510 = vshrl.u32 %v2509, 5
        %v2511 = vand.u32 %v2509, 31
        %v2512 = vsub.s32 32, %v2511
        %v2513 = vshrl.u32 683565275, %v2512
        %v2514 = vshll.u32 683565275, %v2511
        %v2515 = vshrl.u32 2475754826, %v2512
        %v2516 = vor.u32 %v2514, %v2515
        %v2517 = vshll.u32 2475754826, %v2511
        %v2518 = vshrl.u32 2131351028, %v2512
        %v2519 = vor.u32 %v2517, %v2518
        %v2520 = vshll.u32 2131351028, %v2511
        %v2521 = vshrl.u32 2102212464, %v2512
        %v2522 = vor.u32 %v2520, %v2521
        %v2523 = vshll.u32 2102212464, %v2511
        %v2524 = vshrl.u32 920167782, %v2512
        %v2525 = vor.u32 %v2523, %v2524
        %v2526 = vshll.u32 920167782, %v2511
        %v2527 = vshrl.u32 1326507024, %v2512
        %v2528 = vor.u32 %v2526, %v2527
        %vm2529 = vcmp.lt.s32.totalorder %v2510, 1
        %vm2530 = vcmp.lt.s32.totalorder %v2510, 2
        %vm2531 = vcmp.lt.s32.totalorder %v2510, 3
        %vm2532 = vcmp.lt.s32.totalorder %v2510, 4
        %v2533 = vsel %vm2529, %v2513, %v2516
        %v2534 = vsel %vm2532, %v2522, 2102212464
        %v2535 = vsel %vm2531, %v2519, %v2534
        %v2536 = vsel %vm2530, %v2533, %v2535
        %v2537 = vsel %vm2529, %v2516, %v2519
        %v2538 = vsel %vm2532, %v2525, 920167782
        %v2539 = vsel %vm2531, %v2522, %v2538
        %v2540 = vsel %vm2530, %v2537, %v2539
        %v2541 = vsel %vm2529, %v2519, %v2522
        %v2542 = vsel %vm2532, %v2528, 1326507024
        %v2543 = vsel %vm2531, %v2525, %v2542
        %v2544 = vsel %vm2530, %v2541, %v2543
        %v2545 = vshll.u32 %v2505, 8
        %v2546 = vmul.u32.u64.compose %v2545, %v2544
        %v2547 = vextract.low.u32 %v2546
        %v2548 = vextract.high.u32 %v2546
        %v2549 = vmul.u32.u64.compose %v2545, %v2540
        %v2550 = vextract.low.u32 %v2549
        %v2551 = vextract.high.u32 %v2549
        %v2552 = vmul.u32 %v2545, %v2536
        %v2553 = vadd.s32 %v2548, %v2550
        %vm2554 = vc.u32 %v2548, %v2550
        %v2555 = vadd.s32 %v2551, 1
        %v2556 = vsel %vm2554, %v2555, %v2551
        %v2557 = vadd.s32 %v2552, %v2556
        %v2558 = vadd.s32 %v2557, 536870912
        %v2559 = vshrl.u32 %v2558, 30
        %v2560 = vshll.u32 %v2559, 30
        %v2561 = vsub.s32 %v2557, %v2560
        %vm2562 = vcmp.lt.s32.totalorder %v2561, 0
        %v2563 = vsub.s32 0, %v2561
        %v2564 = vsel %vm2562, %v2563, %v2561
        %v2565 = vclz %v2564
        %v2566 = vsub.s32 %v2565, 2
        %vm2567 = vcmp.gt.s32.totalorder 0, %v2566
        %v2568 = vsel %vm2567, 0, %v2566
        %v2569 = vsub.s32 32, %v2568
        %v2570 = vshll.u32 %v2561, %v2568
        %v2571 = vshrl.u32 %v2553, %v2569
        %v2572 = vor.u32 %v2570, %v2571
        %v2573 = vsub.s32 4294967266, %v2568
        %v2574 = vadd.s32 %v2573, 127
        %v2575 = vshll.u32 %v2574, 23
        %v2576 = vor.u32 4788187, %v2575
        %v2577 = vand.u32 2147483647, %v2576
        %v2579 = vcvt.s32.f32 %v2572
        %v2580 = vmul.f32 %v2579, %v2577
        %v2581 = vxor.u32 %v2580, 2147483648
        %v2582 = vsel %vm2499, %v2581, %v2580
        %v2583 = vsub.s32 4, %v2559
        %v2584 = vsel %vm2499, %v2583, %v2559
        %v2585 = vsel %vm2498, %v951, %v2582
        %v2586 = vsel %vm2498, 0, %v2584
        %v2587 = vcosq.f32.pop %v2585
        %v2588 = vsinq.f32.pop %v2585
        %vm2589 = vweird.f32 %v951
        %v2590 = vand.u32 %v2586, 3
        %vm2591 = vcmp.lt.s32.totalorder %v2590, 2
        %vm2592 = vcmp.eq.s32.totalorder %v2590, 0
        %v2593 = vxor.u32 %v2588, 2147483648
        %v2594 = vsel %vm2592, %v2587, %v2593
        %vm2595 = vcmp.eq.s32.totalorder %v2590, 2
        %v2596 = vxor.u32 %v2587, 2147483648
        %v2597 = vsel %vm2595, %v2596, %v2588
        %v2598 = vsel %vm2591, %v2594, %v2597
        %v2599 = vsel %vm2589, nan, %v2598
        %v2600 = vadd.f32 %v1054, 1.0
        %v2601 = vadd.f32 %v1157, 1.0
        %v2602 = vadd.f32 %v1260, 1.0
        %v2603 = vadd.f32 %v1363, 1.0
        %v2604 = vadd.f32 %v1466, 1.0
        %v2605 = vadd.f32 %v1569, 1.0
        %v2606 = vadd.f32 %v1672, 1.0
        %v2607 = vadd.f32 %v1775, 1.0
        %v2608 = vadd.f32 %v1878, 1.0
        %v2609 = vadd.f32 %v1981, 1.0
        %v2610 = vadd.f32 %v2084, 1.0
        %v2611 = vadd.f32 %v2187, 1.0
        %v2612 = vadd.f32 %v2290, 1.0
        %v2613 = vadd.f32 %v2393, 1.0
        %v2614 = vadd.f32 %v2496, 1.0
        %v2615 = vadd.f32 %v2599, 1.0
        %v2616 = vmul.f32 %v2600, 0.125
        %v2617 = vmul.f32 %v2601, 0.125
        %v2618 = vmul.f32 %v2602, 0.125
        %v2619 = vmul.f32 %v2603, 0.125
        %v2620 = vmul.f32 %v2604, 0.125
        %v2621 = vmul.f32 %v2605, 0.125
        %v2622 = vmul.f32 %v2606, 0.125
        %v2623 = vmul.f32 %v2607, 0.125
        %v2624 = vmul.f32 %v2608, 0.125
        %v2625 = vmul.f32 %v2609, 0.125
        %v2626 = vmul.f32 %v2610, 0.125
        %v2627 = vmul.f32 %v2611, 0.125
        %v2628 = vmul.f32 %v2612, 0.125
        %v2629 = vmul.f32 %v2613, 0.125
        %v2630 = vmul.f32 %v2614, 0.125
        %v2631 = vmul.f32 %v2615, 0.125
        %v2632 = vsel %vm920, %v2616, 0.0
        %v2633 = vsel %vm921, %v2617, 0.0
        %v2634 = vsel %vm922, %v2618, 0.0
        %v2635 = vsel %vm923, %v2619, 0.0
        %v2636 = vsel %vm924, %v2620, 0.0
        %v2637 = vsel %vm925, %v2621, 0.0
        %v2638 = vsel %vm926, %v2622, 0.0
        %v2639 = vsel %vm927, %v2623, 0.0
        %v2640 = vsel %vm928, %v2624, 0.0
        %v2641 = vsel %vm929, %v2625, 0.0
        %v2642 = vsel %vm930, %v2626, 0.0
        %v2643 = vsel %vm931, %v2627, 0.0
        %v2644 = vsel %vm932, %v2628, 0.0
        %v2645 = vsel %vm933, %v2629, 0.0
        %v2646 = vsel %vm934, %v2630, 0.0
        %v2647 = vsel %vm935, %v2631, 0.0
        %v2648 = vld [vmem:[%s303] sm:$0xff]
        %v2649 = vld [vmem:[%s303 + $0x8] sm:$0xff]
        %v2650 = vld [vmem:[%s303 + $0x10] sm:$0xff]
        %v2651 = vld [vmem:[%s303 + $0x18] sm:$0xff]
        %v2652 = vld [vmem:[%s303 + $0x20] sm:$0xff]
        %v2653 = vld [vmem:[%s303 + $0x28] sm:$0xff]
        %v2654 = vld [vmem:[%s303 + $0x30] sm:$0xff]
        %v2655 = vld [vmem:[%s303 + $0x38] sm:$0xff]
        %v2656 = vld [vmem:[%s303 + $0x40] sm:$0xff]
        %v2657 = vld [vmem:[%s303 + $0x48] sm:$0xff]
        %v2658 = vld [vmem:[%s303 + $0x50] sm:$0xff]
        %v2659 = vld [vmem:[%s303 + $0x58] sm:$0xff]
        %v2660 = vld [vmem:[%s303 + $0x60] sm:$0xff]
        %v2661 = vld [vmem:[%s303 + $0x68] sm:$0xff]
        %v2662 = vld [vmem:[%s303 + $0x70] sm:$0xff]
        %v2663 = vld [vmem:[%s303 + $0x78] sm:$0xff]
        %v2664 = vmin.f32 %v713, 5.1
        %v2665 = vmin.f32 %v720, 5.1
        %v2666 = vmin.f32 %v727, 5.1
        %v2667 = vmin.f32 %v734, 5.1
        %v2668 = vmin.f32 %v741, 5.1
        %v2669 = vmin.f32 %v748, 5.1
        %v2670 = vmin.f32 %v755, 5.1
        %v2671 = vmin.f32 %v762, 5.1
        %v2672 = vmin.f32 %v769, 5.1
        %v2673 = vmin.f32 %v776, 5.1
        %v2674 = vmin.f32 %v783, 5.1
        %v2675 = vmin.f32 %v790, 5.1
        %v2676 = vmin.f32 %v797, 5.1
        %v2677 = vmin.f32 %v804, 5.1
        %v2678 = vmin.f32 %v811, 5.1
        %v2679 = vmin.f32 %v818, 5.1
        %v2680 = vmul.f32 %v2664, 10.58875
        %v2681 = vmul.f32 %v2665, 10.58875
        %v2682 = vmul.f32 %v2666, 10.58875
        %v2683 = vmul.f32 %v2667, 10.58875
        %v2684 = vmul.f32 %v2668, 10.58875
        %v2685 = vmul.f32 %v2669, 10.58875
        %v2686 = vmul.f32 %v2670, 10.58875
        %v2687 = vmul.f32 %v2671, 10.58875
        %v2688 = vmul.f32 %v2672, 10.58875
        %v2689 = vmul.f32 %v2673, 10.58875
        %v2690 = vmul.f32 %v2674, 10.58875
        %v2691 = vmul.f32 %v2675, 10.58875
        %v2692 = vmul.f32 %v2676, 10.58875
        %v2693 = vmul.f32 %v2677, 10.58875
        %v2694 = vmul.f32 %v2678, 10.58875
        %v2695 = vmul.f32 %v2679, 10.58875
        %v2696 = vmul.f32 %v2680, 1.442695
        %v2697 = vpow.pop %v2696
        %v2698 = vmul.f32 %v2681, 1.442695
        %v2699 = vpow.pop %v2698
        %v2700 = vmul.f32 %v2682, 1.442695
        %v2701 = vpow.pop %v2700
        %v2702 = vmul.f32 %v2683, 1.442695
        %v2703 = vpow.pop %v2702
        %v2704 = vmul.f32 %v2684, 1.442695
        %v2705 = vpow.pop %v2704
        %v2706 = vmul.f32 %v2685, 1.442695
        %v2707 = vpow.pop %v2706
        %v2708 = vmul.f32 %v2686, 1.442695
        %v2709 = vpow.pop %v2708
        %v2710 = vmul.f32 %v2687, 1.442695
        %v2711 = vpow.pop %v2710
        %v2712 = vmul.f32 %v2688, 1.442695
        %v2713 = vpow.pop %v2712
        %v2714 = vmul.f32 %v2689, 1.442695
        %v2715 = vpow.pop %v2714
        %v2716 = vmul.f32 %v2690, 1.442695
        %v2717 = vpow.pop %v2716
        %v2718 = vmul.f32 %v2691, 1.442695
        %v2719 = vpow.pop %v2718
        %v2720 = vmul.f32 %v2692, 1.442695
        %v2721 = vpow.pop %v2720
        %v2722 = vmul.f32 %v2693, 1.442695
        %v2723 = vpow.pop %v2722
        %v2724 = vmul.f32 %v2694, 1.442695
        %v2725 = vpow.pop %v2724
        %v2726 = vmul.f32 %v2695, 1.442695
        %v2727 = vpow.pop %v2726
        %v2728 = vsub.f32 %v713, 0.8
        %v2729 = vsub.f32 %v720, 0.8
        %v2730 = vsub.f32 %v727, 0.8
        %v2731 = vsub.f32 %v734, 0.8
        %v2732 = vsub.f32 %v741, 0.8
        %v2733 = vsub.f32 %v748, 0.8
        %v2734 = vsub.f32 %v755, 0.8
        %v2735 = vsub.f32 %v762, 0.8
        %v2736 = vsub.f32 %v769, 0.8
        %v2737 = vsub.f32 %v776, 0.8
        %v2738 = vsub.f32 %v783, 0.8
        %v2739 = vsub.f32 %v790, 0.8
        %v2740 = vsub.f32 %v797, 0.8
        %v2741 = vsub.f32 %v804, 0.8
        %v2742 = vsub.f32 %v811, 0.8
        %v2743 = vsub.f32 %v818, 0.8
        %v2744 = vmul.f32 %v2728, -19.7
        %v2745 = vmul.f32 %v2729, -19.7
        %v2746 = vmul.f32 %v2730, -19.7
        %v2747 = vmul.f32 %v2731, -19.7
        %v2748 = vmul.f32 %v2732, -19.7
        %v2749 = vmul.f32 %v2733, -19.7
        %v2750 = vmul.f32 %v2734, -19.7
        %v2751 = vmul.f32 %v2735, -19.7
        %v2752 = vmul.f32 %v2736, -19.7
        %v2753 = vmul.f32 %v2737, -19.7
        %v2754 = vmul.f32 %v2738, -19.7
        %v2755 = vmul.f32 %v2739, -19.7
        %v2756 = vmul.f32 %v2740, -19.7
        %v2757 = vmul.f32 %v2741, -19.7
        %v2758 = vmul.f32 %v2742, -19.7
        %v2759 = vmul.f32 %v2743, -19.7
        %v2760 = vmul.f32 %v2744, %v2728
        %v2761 = vmul.f32 %v2745, %v2729
        %v2762 = vmul.f32 %v2746, %v2730
        %v2763 = vmul.f32 %v2747, %v2731
        %v2764 = vmul.f32 %v2748, %v2732
        %v2765 = vmul.f32 %v2749, %v2733
        %v2766 = vmul.f32 %v2750, %v2734
        %v2767 = vmul.f32 %v2751, %v2735
        %v2768 = vmul.f32 %v2752, %v2736
        %v2769 = vmul.f32 %v2753, %v2737
        %v2770 = vmul.f32 %v2754, %v2738
        %v2771 = vmul.f32 %v2755, %v2739
        %v2772 = vmul.f32 %v2756, %v2740
        %v2773 = vmul.f32 %v2757, %v2741
        %v2774 = vmul.f32 %v2758, %v2742
        %v2775 = vmul.f32 %v2759, %v2743
        %v2776 = vmul.f32 %v2760, 1.442695
        %v2777 = vpow.pop %v2776
        %v2778 = vmul.f32 %v2761, 1.442695
        %v2779 = vpow.pop %v2778
        %v2780 = vmul.f32 %v2762, 1.442695
        %v2781 = vpow.pop %v2780
        %v2782 = vmul.f32 %v2763, 1.442695
        %v2783 = vpow.pop %v2782
        %v2784 = vmul.f32 %v2764, 1.442695
        %v2785 = vpow.pop %v2784
        %v2786 = vmul.f32 %v2765, 1.442695
        %v2787 = vpow.pop %v2786
        %v2788 = vmul.f32 %v2766, 1.442695
        %v2789 = vpow.pop %v2788
        %v2790 = vmul.f32 %v2767, 1.442695
        %v2791 = vpow.pop %v2790
        %v2792 = vmul.f32 %v2768, 1.442695
        %v2793 = vpow.pop %v2792
        %v2794 = vmul.f32 %v2769, 1.442695
        %v2795 = vpow.pop %v2794
        %v2796 = vmul.f32 %v2770, 1.442695
        %v2797 = vpow.pop %v2796
        %v2798 = vmul.f32 %v2771, 1.442695
        %v2799 = vpow.pop %v2798
        %v2800 = vmul.f32 %v2772, 1.442695
        %v2801 = vpow.pop %v2800
        %v2802 = vmul.f32 %v2773, 1.442695
        %v2803 = vpow.pop %v2802
        %v2804 = vmul.f32 %v2774, 1.442695
        %v2805 = vpow.pop %v2804
        %v2806 = vmul.f32 %v2775, 1.442695
        %v2807 = vpow.pop %v2806
        %v2808 = vmul.f32 %v2777, %v2632
        %v2809 = vmul.f32 %v2779, %v2633
        %v2810 = vmul.f32 %v2781, %v2634
        %v2811 = vmul.f32 %v2783, %v2635
        %v2812 = vmul.f32 %v2785, %v2636
        %v2813 = vmul.f32 %v2787, %v2637
        %v2814 = vmul.f32 %v2789, %v2638
        %v2815 = vmul.f32 %v2791, %v2639
        %v2816 = vmul.f32 %v2793, %v2640
        %v2817 = vmul.f32 %v2795, %v2641
        %v2818 = vmul.f32 %v2797, %v2642
        %v2819 = vmul.f32 %v2799, %v2643
        %v2820 = vmul.f32 %v2801, %v2644
        %v2821 = vmul.f32 %v2803, %v2645
        %v2822 = vmul.f32 %v2805, %v2646
        %v2823 = vmul.f32 %v2807, %v2647
        %2824 = vmatprep.subr.mxu0 0.0
        %2825 = vmatpush1.msra.mxu0 %v2663
        %2826 = vmatprep.subr.mxu0 0.0
        %2827 = vmatpush1.msra.mxu0 %v2662
        %2828 = vmatprep.subr.mxu0 0.0
        %2829 = vmatpush1.msra.mxu0 %v2661
        %2830 = vmatprep.subr.mxu0 0.0
        %2831 = vmatpush1.msra.mxu0 %v2660
        %2832 = vmatprep.subr.mxu0 0.0
        %2833 = vmatpush1.msra.mxu0 %v2659
        %2834 = vmatprep.subr.mxu0 0.0
        %2835 = vmatpush1.msra.mxu0 %v2658
        %2836 = vmatprep.subr.mxu0 0.0
        %2837 = vmatpush1.msra.mxu0 %v2657
        %2838 = vmatprep.subr.mxu0 0.0
        %2839 = vmatpush1.msra.mxu0 %v2656
        %2840 = vmatprep.subr.mxu0 0.0
        %2841 = vmatpush1.msra.mxu0 %v2655
        %2842 = vmatprep.subr.mxu0 0.0
        %2843 = vmatpush1.msra.mxu0 %v2654
        %2844 = vmatprep.subr.mxu0 0.0
        %2845 = vmatpush1.msra.mxu0 %v2653
        %2846 = vmatprep.subr.mxu0 0.0
        %2847 = vmatpush1.msra.mxu0 %v2652
        %2848 = vmatprep.subr.mxu0 0.0
        %2849 = vmatpush1.msra.mxu0 %v2651
        %2850 = vmatprep.subr.mxu0 0.0
        %2851 = vmatpush1.msra.mxu0 %v2650
        %2852 = vmatprep.subr.mxu0 0.0
        %2853 = vmatpush1.msra.mxu0 %v2649
        %2854 = vmatprep.subr.mxu0 0.0
        %2855 = vmatpush1.msra.mxu0 %v2648
        %2856 = vmatprep.subr.mxu0 0.0
        %2857 = vmatpush2.msra.mxu0 0.0
        %2858 = vmatprep.subr.mxu0 0.0
        %2859 = vmatpush2.msra.mxu0 0.0
        %2860 = vmatprep.subr.mxu0 0.0
        %2861 = vmatpush2.msra.mxu0 0.0
        %2862 = vmatprep.subr.mxu0 0.0
        %2863 = vmatpush2.msra.mxu0 0.0
        %2864 = vmatprep.subr.mxu0 0.0
        %2865 = vmatpush2.msra.mxu0 0.0
        %2866 = vmatprep.subr.mxu0 0.0
        %2867 = vmatpush2.msra.mxu0 0.0
        %2868 = vmatprep.subr.mxu0 0.0
        %2869 = vmatpush2.msra.mxu0 0.0
        %2870 = vmatprep.subr.mxu0 0.0
        %2871 = vmatpush2.msra.mxu0 0.0
        %2872 = vmatprep.subr.mxu0 0.0
        %2873 = vmatpush2.msra.mxu0 0.0
        %2874 = vmatprep.subr.mxu0 0.0
        %2875 = vmatpush2.msra.mxu0 0.0
        %2876 = vmatprep.subr.mxu0 0.0
        %2877 = vmatpush2.msra.mxu0 0.0
        %2878 = vmatprep.subr.mxu0 0.0
        %2879 = vmatpush2.msra.mxu0 0.0
        %2880 = vmatprep.subr.mxu0 0.0
        %2881 = vmatpush2.msra.mxu0 0.0
        %2882 = vmatprep.subr.mxu0 0.0
        %2883 = vmatpush2.msra.mxu0 0.0
        %2884 = vmatprep.subr.mxu0 0.0
        %2885 = vmatpush2.msra.mxu0 0.0
        %2886 = vmatprep.subr.mxu0 0.0
        %2887 = vmatpush2.msra.mxu0 0.0
        %2888 = vmatprep.mubr.f32.mxu0 0.0
        %2889 = vmatmul.mubr.f32.gmra.mxu0 %v2808
        %v2890 = vpop.f32.mrf.mxu0
        %v2891 = vadd.f32 0.0, %v2890
        %v2892 = vpop.f32.mrf.mxu0
        %2893 = vmatprep.mubr.f32.mxu0 0.0
        %2894 = vmatmul.mubr.f32.gmra.mxu0 %v2809
        %v2895 = vpop.f32.mrf.mxu0
        %v2896 = vadd.f32 0.0, %v2895
        %v2897 = vpop.f32.mrf.mxu0
        %2898 = vmatprep.mubr.f32.mxu0 0.0
        %2899 = vmatmul.mubr.f32.gmra.mxu0 %v2810
        %v2900 = vpop.f32.mrf.mxu0
        %v2901 = vadd.f32 0.0, %v2900
        %v2902 = vpop.f32.mrf.mxu0
        %2903 = vmatprep.mubr.f32.mxu0 0.0
        %2904 = vmatmul.mubr.f32.gmra.mxu0 %v2811
        %v2905 = vpop.f32.mrf.mxu0
        %v2906 = vadd.f32 0.0, %v2905
        %v2907 = vpop.f32.mrf.mxu0
        %2908 = vmatprep.mubr.f32.mxu0 0.0
        %2909 = vmatmul.mubr.f32.gmra.mxu0 %v2812
        %v2910 = vpop.f32.mrf.mxu0
        %v2911 = vadd.f32 0.0, %v2910
        %v2912 = vpop.f32.mrf.mxu0
        %2913 = vmatprep.mubr.f32.mxu0 0.0
        %2914 = vmatmul.mubr.f32.gmra.mxu0 %v2813
        %v2915 = vpop.f32.mrf.mxu0
        %v2916 = vadd.f32 0.0, %v2915
        %v2917 = vpop.f32.mrf.mxu0
        %2918 = vmatprep.mubr.f32.mxu0 0.0
        %2919 = vmatmul.mubr.f32.gmra.mxu0 %v2814
        %v2920 = vpop.f32.mrf.mxu0
        %v2921 = vadd.f32 0.0, %v2920
        %v2922 = vpop.f32.mrf.mxu0
        %2923 = vmatprep.mubr.f32.mxu0 0.0
        %2924 = vmatmul.mubr.f32.gmra.mxu0 %v2815
        %v2925 = vpop.f32.mrf.mxu0
        %v2926 = vadd.f32 0.0, %v2925
        %v2927 = vpop.f32.mrf.mxu0
        %2928 = vmatprep.mubr.f32.mxu0 0.0
        %2929 = vmatmul.mubr.f32.gmra.mxu0 %v2816
        %v2930 = vpop.f32.mrf.mxu0
        %v2931 = vadd.f32 0.0, %v2930
        %v2932 = vpop.f32.mrf.mxu0
        %2933 = vmatprep.mubr.f32.mxu0 0.0
        %2934 = vmatmul.mubr.f32.gmra.mxu0 %v2817
        %v2935 = vpop.f32.mrf.mxu0
        %v2936 = vadd.f32 0.0, %v2935
        %v2937 = vpop.f32.mrf.mxu0
        %2938 = vmatprep.mubr.f32.mxu0 0.0
        %2939 = vmatmul.mubr.f32.gmra.mxu0 %v2818
        %v2940 = vpop.f32.mrf.mxu0
        %v2941 = vadd.f32 0.0, %v2940
        %v2942 = vpop.f32.mrf.mxu0
        %2943 = vmatprep.mubr.f32.mxu0 0.0
        %2944 = vmatmul.mubr.f32.gmra.mxu0 %v2819
        %v2945 = vpop.f32.mrf.mxu0
        %v2946 = vadd.f32 0.0, %v2945
        %v2947 = vpop.f32.mrf.mxu0
        %2948 = vmatprep.mubr.f32.mxu0 0.0
        %2949 = vmatmul.mubr.f32.gmra.mxu0 %v2820
        %v2950 = vpop.f32.mrf.mxu0
        %v2951 = vadd.f32 0.0, %v2950
        %v2952 = vpop.f32.mrf.mxu0
        %2953 = vmatprep.mubr.f32.mxu0 0.0
        %2954 = vmatmul.mubr.f32.gmra.mxu0 %v2821
        %v2955 = vpop.f32.mrf.mxu0
        %v2956 = vadd.f32 0.0, %v2955
        %v2957 = vpop.f32.mrf.mxu0
        %2958 = vmatprep.mubr.f32.mxu0 0.0
        %2959 = vmatmul.mubr.f32.gmra.mxu0 %v2822
        %v2960 = vpop.f32.mrf.mxu0
        %v2961 = vadd.f32 0.0, %v2960
        %v2962 = vpop.f32.mrf.mxu0
        %2963 = vmatprep.mubr.f32.mxu0 0.0
        %2964 = vmatmul.mubr.f32.gmra.mxu0 %v2823
        %v2965 = vpop.f32.mrf.mxu0
        %v2966 = vadd.f32 0.0, %v2965
        %v2967 = vpop.f32.mrf.mxu0
        %2968 = vdwg.mxu0
        %v2969 = vmul.f32 %v2777, %v2697
        %v2970 = vmul.f32 %v2779, %v2699
        %v2971 = vmul.f32 %v2781, %v2701
        %v2972 = vmul.f32 %v2783, %v2703
        %v2973 = vmul.f32 %v2785, %v2705
        %v2974 = vmul.f32 %v2787, %v2707
        %v2975 = vmul.f32 %v2789, %v2709
        %v2976 = vmul.f32 %v2791, %v2711
        %v2977 = vmul.f32 %v2793, %v2713
        %v2978 = vmul.f32 %v2795, %v2715
        %v2979 = vmul.f32 %v2797, %v2717
        %v2980 = vmul.f32 %v2799, %v2719
        %v2981 = vmul.f32 %v2801, %v2721
        %v2982 = vmul.f32 %v2803, %v2723
        %v2983 = vmul.f32 %v2805, %v2725
        %v2984 = vmul.f32 %v2807, %v2727
        %v2985 = vmul.f32 %v2969, 5.0483537e-05
        %v2986 = vmul.f32 %v2970, 5.0483537e-05
        %v2987 = vmul.f32 %v2971, 5.0483537e-05
        %v2988 = vmul.f32 %v2972, 5.0483537e-05
        %v2989 = vmul.f32 %v2973, 5.0483537e-05
        %v2990 = vmul.f32 %v2974, 5.0483537e-05
        %v2991 = vmul.f32 %v2975, 5.0483537e-05
        %v2992 = vmul.f32 %v2976, 5.0483537e-05
        %v2993 = vmul.f32 %v2977, 5.0483537e-05
        %v2994 = vmul.f32 %v2978, 5.0483537e-05
        %v2995 = vmul.f32 %v2979, 5.0483537e-05
        %v2996 = vmul.f32 %v2980, 5.0483537e-05
        %v2997 = vmul.f32 %v2981, 5.0483537e-05
        %v2998 = vmul.f32 %v2982, 5.0483537e-05
        %v2999 = vmul.f32 %v2983, 5.0483537e-05
        %v3000 = vmul.f32 %v2984, 5.0483537e-05
        %v3001 = vmul.f32 %v2985, %v2632
        %v3002 = vmul.f32 %v2986, %v2633
        %v3003 = vmul.f32 %v2987, %v2634
        %v3004 = vmul.f32 %v2988, %v2635
        %v3005 = vmul.f32 %v2989, %v2636
        %v3006 = vmul.f32 %v2990, %v2637
        %v3007 = vmul.f32 %v2991, %v2638
        %v3008 = vmul.f32 %v2992, %v2639
        %v3009 = vmul.f32 %v2993, %v2640
        %v3010 = vmul.f32 %v2994, %v2641
        %v3011 = vmul.f32 %v2995, %v2642
        %v3012 = vmul.f32 %v2996, %v2643
        %v3013 = vmul.f32 %v2997, %v2644
        %v3014 = vmul.f32 %v2998, %v2645
        %v3015 = vmul.f32 %v2999, %v2646
        %v3016 = vmul.f32 %v3000, %v2647
        %3017 = vmatprep.subr.mxu0 0.0
        %3018 = vmatpush1.msra.mxu0 %v2663
        %3019 = vmatprep.subr.mxu0 0.0
        %3020 = vmatpush1.msra.mxu0 %v2662
        %3021 = vmatprep.subr.mxu0 0.0
        %3022 = vmatpush1.msra.mxu0 %v2661
        %3023 = vmatprep.subr.mxu0 0.0
        %3024 = vmatpush1.msra.mxu0 %v2660
        %3025 = vmatprep.subr.mxu0 0.0
        %3026 = vmatpush1.msra.mxu0 %v2659
        %3027 = vmatprep.subr.mxu0 0.0
        %3028 = vmatpush1.msra.mxu0 %v2658
        %3029 = vmatprep.subr.mxu0 0.0
        %3030 = vmatpush1.msra.mxu0 %v2657
        %3031 = vmatprep.subr.mxu0 0.0
        %3032 = vmatpush1.msra.mxu0 %v2656
        %3033 = vmatprep.subr.mxu0 0.0
        %3034 = vmatpush1.msra.mxu0 %v2655
        %3035 = vmatprep.subr.mxu0 0.0
        %3036 = vmatpush1.msra.mxu0 %v2654
        %3037 = vmatprep.subr.mxu0 0.0
        %3038 = vmatpush1.msra.mxu0 %v2653
        %3039 = vmatprep.subr.mxu0 0.0
        %3040 = vmatpush1.msra.mxu0 %v2652
        %3041 = vmatprep.subr.mxu0 0.0
        %3042 = vmatpush1.msra.mxu0 %v2651
        %3043 = vmatprep.subr.mxu0 0.0
        %3044 = vmatpush1.msra.mxu0 %v2650
        %3045 = vmatprep.subr.mxu0 0.0
        %3046 = vmatpush1.msra.mxu0 %v2649
        %3047 = vmatprep.subr.mxu0 0.0
        %3048 = vmatpush1.msra.mxu0 %v2648
        %3049 = vmatprep.subr.mxu0 0.0
        %3050 = vmatpush2.msra.mxu0 0.0
        %3051 = vmatprep.subr.mxu0 0.0
        %3052 = vmatpush2.msra.mxu0 0.0
        %3053 = vmatprep.subr.mxu0 0.0
        %3054 = vmatpush2.msra.mxu0 0.0
        %3055 = vmatprep.subr.mxu0 0.0
        %3056 = vmatpush2.msra.mxu0 0.0
        %3057 = vmatprep.subr.mxu0 0.0
        %3058 = vmatpush2.msra.mxu0 0.0
        %3059 = vmatprep.subr.mxu0 0.0
        %3060 = vmatpush2.msra.mxu0 0.0
        %3061 = vmatprep.subr.mxu0 0.0
        %3062 = vmatpush2.msra.mxu0 0.0
        %3063 = vmatprep.subr.mxu0 0.0
        %3064 = vmatpush2.msra.mxu0 0.0
        %3065 = vmatprep.subr.mxu0 0.0
        %3066 = vmatpush2.msra.mxu0 0.0
        %3067 = vmatprep.subr.mxu0 0.0
        %3068 = vmatpush2.msra.mxu0 0.0
        %3069 = vmatprep.subr.mxu0 0.0
        %3070 = vmatpush2.msra.mxu0 0.0
        %3071 = vmatprep.subr.mxu0 0.0
        %3072 = vmatpush2.msra.mxu0 0.0
        %3073 = vmatprep.subr.mxu0 0.0
        %3074 = vmatpush2.msra.mxu0 0.0
        %3075 = vmatprep.subr.mxu0 0.0
        %3076 = vmatpush2.msra.mxu0 0.0
        %3077 = vmatprep.subr.mxu0 0.0
        %3078 = vmatpush2.msra.mxu0 0.0
        %3079 = vmatprep.subr.mxu0 0.0
        %3080 = vmatpush2.msra.mxu0 0.0
        %3081 = vmatprep.mubr.f32.mxu0 0.0
        %3082 = vmatmul.mubr.f32.gmra.mxu0 %v3001
        %v3083 = vpop.f32.mrf.mxu0
        %v3084 = vadd.f32 0.0, %v3083
        %v3085 = vpop.f32.mrf.mxu0
        %3086 = vmatprep.mubr.f32.mxu0 0.0
        %3087 = vmatmul.mubr.f32.gmra.mxu0 %v3002
        %v3088 = vpop.f32.mrf.mxu0
        %v3089 = vadd.f32 0.0, %v3088
        %v3090 = vpop.f32.mrf.mxu0
        %3091 = vmatprep.mubr.f32.mxu0 0.0
        %3092 = vmatmul.mubr.f32.gmra.mxu0 %v3003
        %v3093 = vpop.f32.mrf.mxu0
        %v3094 = vadd.f32 0.0, %v3093
        %v3095 = vpop.f32.mrf.mxu0
        %3096 = vmatprep.mubr.f32.mxu0 0.0
        %3097 = vmatmul.mubr.f32.gmra.mxu0 %v3004
        %v3098 = vpop.f32.mrf.mxu0
        %v3099 = vadd.f32 0.0, %v3098
        %v3100 = vpop.f32.mrf.mxu0
        %3101 = vmatprep.mubr.f32.mxu0 0.0
        %3102 = vmatmul.mubr.f32.gmra.mxu0 %v3005
        %v3103 = vpop.f32.mrf.mxu0
        %v3104 = vadd.f32 0.0, %v3103
        %v3105 = vpop.f32.mrf.mxu0
        %3106 = vmatprep.mubr.f32.mxu0 0.0
        %3107 = vmatmul.mubr.f32.gmra.mxu0 %v3006
        %v3108 = vpop.f32.mrf.mxu0
        %v3109 = vadd.f32 0.0, %v3108
        %v3110 = vpop.f32.mrf.mxu0
        %3111 = vmatprep.mubr.f32.mxu0 0.0
        %3112 = vmatmul.mubr.f32.gmra.mxu0 %v3007
        %v3113 = vpop.f32.mrf.mxu0
        %v3114 = vadd.f32 0.0, %v3113
        %v3115 = vpop.f32.mrf.mxu0
        %3116 = vmatprep.mubr.f32.mxu0 0.0
        %3117 = vmatmul.mubr.f32.gmra.mxu0 %v3008
        %v3118 = vpop.f32.mrf.mxu0
        %v3119 = vadd.f32 0.0, %v3118
        %v3120 = vpop.f32.mrf.mxu0
        %3121 = vmatprep.mubr.f32.mxu0 0.0
        %3122 = vmatmul.mubr.f32.gmra.mxu0 %v3009
        %v3123 = vpop.f32.mrf.mxu0
        %v3124 = vadd.f32 0.0, %v3123
        %v3125 = vpop.f32.mrf.mxu0
        %3126 = vmatprep.mubr.f32.mxu0 0.0
        %3127 = vmatmul.mubr.f32.gmra.mxu0 %v3010
        %v3128 = vpop.f32.mrf.mxu0
        %v3129 = vadd.f32 0.0, %v3128
        %v3130 = vpop.f32.mrf.mxu0
        %3131 = vmatprep.mubr.f32.mxu0 0.0
        %3132 = vmatmul.mubr.f32.gmra.mxu0 %v3011
        %v3133 = vpop.f32.mrf.mxu0
        %v3134 = vadd.f32 0.0, %v3133
        %v3135 = vpop.f32.mrf.mxu0
        %3136 = vmatprep.mubr.f32.mxu0 0.0
        %3137 = vmatmul.mubr.f32.gmra.mxu0 %v3012
        %v3138 = vpop.f32.mrf.mxu0
        %v3139 = vadd.f32 0.0, %v3138
        %v3140 = vpop.f32.mrf.mxu0
        %3141 = vmatprep.mubr.f32.mxu0 0.0
        %3142 = vmatmul.mubr.f32.gmra.mxu0 %v3013
        %v3143 = vpop.f32.mrf.mxu0
        %v3144 = vadd.f32 0.0, %v3143
        %v3145 = vpop.f32.mrf.mxu0
        %3146 = vmatprep.mubr.f32.mxu0 0.0
        %3147 = vmatmul.mubr.f32.gmra.mxu0 %v3014
        %v3148 = vpop.f32.mrf.mxu0
        %v3149 = vadd.f32 0.0, %v3148
        %v3150 = vpop.f32.mrf.mxu0
        %3151 = vmatprep.mubr.f32.mxu0 0.0
        %3152 = vmatmul.mubr.f32.gmra.mxu0 %v3015
        %v3153 = vpop.f32.mrf.mxu0
        %v3154 = vadd.f32 0.0, %v3153
        %v3155 = vpop.f32.mrf.mxu0
        %3156 = vmatprep.mubr.f32.mxu0 0.0
        %3157 = vmatmul.mubr.f32.gmra.mxu0 %v3016
        %v3158 = vpop.f32.mrf.mxu0
        %v3159 = vadd.f32 0.0, %v3158
        %v3160 = vpop.f32.mrf.mxu0
        %3161 = vdwg.mxu0
        %v3162 = vmul.f32 %v2985, %v2697
        %v3163 = vmul.f32 %v2986, %v2699
        %v3164 = vmul.f32 %v2987, %v2701
        %v3165 = vmul.f32 %v2988, %v2703
        %v3166 = vmul.f32 %v2989, %v2705
        %v3167 = vmul.f32 %v2990, %v2707
        %v3168 = vmul.f32 %v2991, %v2709
        %v3169 = vmul.f32 %v2992, %v2711
        %v3170 = vmul.f32 %v2993, %v2713
        %v3171 = vmul.f32 %v2994, %v2715
        %v3172 = vmul.f32 %v2995, %v2717
        %v3173 = vmul.f32 %v2996, %v2719
        %v3174 = vmul.f32 %v2997, %v2721
        %v3175 = vmul.f32 %v2998, %v2723
        %v3176 = vmul.f32 %v2999, %v2725
        %v3177 = vmul.f32 %v3000, %v2727
        %v3178 = vmul.f32 %v3162, 2.9326918e-06
        %v3179 = vmul.f32 %v3163, 2.9326918e-06
        %v3180 = vmul.f32 %v3164, 2.9326918e-06
        %v3181 = vmul.f32 %v3165, 2.9326918e-06
        %v3182 = vmul.f32 %v3166, 2.9326918e-06
        %v3183 = vmul.f32 %v3167, 2.9326918e-06
        %v3184 = vmul.f32 %v3168, 2.9326918e-06
        %v3185 = vmul.f32 %v3169, 2.9326918e-06
        %v3186 = vmul.f32 %v3170, 2.9326918e-06
        %v3187 = vmul.f32 %v3171, 2.9326918e-06
        %v3188 = vmul.f32 %v3172, 2.9326918e-06
        %v3189 = vmul.f32 %v3173, 2.9326918e-06
        %v3190 = vmul.f32 %v3174, 2.9326918e-06
        %v3191 = vmul.f32 %v3175, 2.9326918e-06
        %v3192 = vmul.f32 %v3176, 2.9326918e-06
        %v3193 = vmul.f32 %v3177, 2.9326918e-06
        %v3194 = vmul.f32 %v3178, %v2632
        %v3195 = vmul.f32 %v3179, %v2633
        %v3196 = vmul.f32 %v3180, %v2634
        %v3197 = vmul.f32 %v3181, %v2635
        %v3198 = vmul.f32 %v3182, %v2636
        %v3199 = vmul.f32 %v3183, %v2637
        %v3200 = vmul.f32 %v3184, %v2638
        %v3201 = vmul.f32 %v3185, %v2639
        %v3202 = vmul.f32 %v3186, %v2640
        %v3203 = vmul.f32 %v3187, %v2641
        %v3204 = vmul.f32 %v3188, %v2642
        %v3205 = vmul.f32 %v3189, %v2643
        %v3206 = vmul.f32 %v3190, %v2644
        %v3207 = vmul.f32 %v3191, %v2645
        %v3208 = vmul.f32 %v3192, %v2646
        %v3209 = vmul.f32 %v3193, %v2647
        %3210 = vmatprep.subr.mxu0 0.0
        %3211 = vmatpush1.msra.mxu0 %v2663
        %3212 = vmatprep.subr.mxu0 0.0
        %3213 = vmatpush1.msra.mxu0 %v2662
        %3214 = vmatprep.subr.mxu0 0.0
        %3215 = vmatpush1.msra.mxu0 %v2661
        %3216 = vmatprep.subr.mxu0 0.0
        %3217 = vmatpush1.msra.mxu0 %v2660
        %3218 = vmatprep.subr.mxu0 0.0
        %3219 = vmatpush1.msra.mxu0 %v2659
        %3220 = vmatprep.subr.mxu0 0.0
        %3221 = vmatpush1.msra.mxu0 %v2658
        %3222 = vmatprep.subr.mxu0 0.0
        %3223 = vmatpush1.msra.mxu0 %v2657
        %3224 = vmatprep.subr.mxu0 0.0
        %3225 = vmatpush1.msra.mxu0 %v2656
        %3226 = vmatprep.subr.mxu0 0.0
        %3227 = vmatpush1.msra.mxu0 %v2655
        %3228 = vmatprep.subr.mxu0 0.0
        %3229 = vmatpush1.msra.mxu0 %v2654
        %3230 = vmatprep.subr.mxu0 0.0
        %3231 = vmatpush1.msra.mxu0 %v2653
        %3232 = vmatprep.subr.mxu0 0.0
        %3233 = vmatpush1.msra.mxu0 %v2652
        %3234 = vmatprep.subr.mxu0 0.0
        %3235 = vmatpush1.msra.mxu0 %v2651
        %3236 = vmatprep.subr.mxu0 0.0
        %3237 = vmatpush1.msra.mxu0 %v2650
        %3238 = vmatprep.subr.mxu0 0.0
        %3239 = vmatpush1.msra.mxu0 %v2649
        %3240 = vmatprep.subr.mxu0 0.0
        %3241 = vmatpush1.msra.mxu0 %v2648
        %3242 = vmatprep.subr.mxu0 0.0
        %3243 = vmatpush2.msra.mxu0 0.0
        %3244 = vmatprep.subr.mxu0 0.0
        %3245 = vmatpush2.msra.mxu0 0.0
        %3246 = vmatprep.subr.mxu0 0.0
        %3247 = vmatpush2.msra.mxu0 0.0
        %3248 = vmatprep.subr.mxu0 0.0
        %3249 = vmatpush2.msra.mxu0 0.0
        %3250 = vmatprep.subr.mxu0 0.0
        %3251 = vmatpush2.msra.mxu0 0.0
        %3252 = vmatprep.subr.mxu0 0.0
        %3253 = vmatpush2.msra.mxu0 0.0
        %3254 = vmatprep.subr.mxu0 0.0
        %3255 = vmatpush2.msra.mxu0 0.0
        %3256 = vmatprep.subr.mxu0 0.0
        %3257 = vmatpush2.msra.mxu0 0.0
        %3258 = vmatprep.subr.mxu0 0.0
        %3259 = vmatpush2.msra.mxu0 0.0
        %3260 = vmatprep.subr.mxu0 0.0
        %3261 = vmatpush2.msra.mxu0 0.0
        %3262 = vmatprep.subr.mxu0 0.0
        %3263 = vmatpush2.msra.mxu0 0.0
        %3264 = vmatprep.subr.mxu0 0.0
        %3265 = vmatpush2.msra.mxu0 0.0
        %3266 = vmatprep.subr.mxu0 0.0
        %3267 = vmatpush2.msra.mxu0 0.0
        %3268 = vmatprep.subr.mxu0 0.0
        %3269 = vmatpush2.msra.mxu0 0.0
        %3270 = vmatprep.subr.mxu0 0.0
        %3271 = vmatpush2.msra.mxu0 0.0
        %3272 = vmatprep.subr.mxu0 0.0
        %3273 = vmatpush2.msra.mxu0 0.0
        %3274 = vmatprep.mubr.f32.mxu0 0.0
        %3275 = vmatmul.mubr.f32.gmra.mxu0 %v3194
        %v3276 = vpop.f32.mrf.mxu0
        %v3277 = vadd.f32 0.0, %v3276
        %v3278 = vpop.f32.mrf.mxu0
        %3279 = vmatprep.mubr.f32.mxu0 0.0
        %3280 = vmatmul.mubr.f32.gmra.mxu0 %v3195
        %v3281 = vpop.f32.mrf.mxu0
        %v3282 = vadd.f32 0.0, %v3281
        %v3283 = vpop.f32.mrf.mxu0
        %3284 = vmatprep.mubr.f32.mxu0 0.0
        %3285 = vmatmul.mubr.f32.gmra.mxu0 %v3196
        %v3286 = vpop.f32.mrf.mxu0
        %v3287 = vadd.f32 0.0, %v3286
        %v3288 = vpop.f32.mrf.mxu0
        %3289 = vmatprep.mubr.f32.mxu0 0.0
        %3290 = vmatmul.mubr.f32.gmra.mxu0 %v3197
        %v3291 = vpop.f32.mrf.mxu0
        %v3292 = vadd.f32 0.0, %v3291
        %v3293 = vpop.f32.mrf.mxu0
        %3294 = vmatprep.mubr.f32.mxu0 0.0
        %3295 = vmatmul.mubr.f32.gmra.mxu0 %v3198
        %v3296 = vpop.f32.mrf.mxu0
        %v3297 = vadd.f32 0.0, %v3296
        %v3298 = vpop.f32.mrf.mxu0
        %3299 = vmatprep.mubr.f32.mxu0 0.0
        %3300 = vmatmul.mubr.f32.gmra.mxu0 %v3199
        %v3301 = vpop.f32.mrf.mxu0
        %v3302 = vadd.f32 0.0, %v3301
        %v3303 = vpop.f32.mrf.mxu0
        %3304 = vmatprep.mubr.f32.mxu0 0.0
        %3305 = vmatmul.mubr.f32.gmra.mxu0 %v3200
        %v3306 = vpop.f32.mrf.mxu0
        %v3307 = vadd.f32 0.0, %v3306
        %v3308 = vpop.f32.mrf.mxu0
        %3309 = vmatprep.mubr.f32.mxu0 0.0
        %3310 = vmatmul.mubr.f32.gmra.mxu0 %v3201
        %v3311 = vpop.f32.mrf.mxu0
        %v3312 = vadd.f32 0.0, %v3311
        %v3313 = vpop.f32.mrf.mxu0
        %3314 = vmatprep.mubr.f32.mxu0 0.0
        %3315 = vmatmul.mubr.f32.gmra.mxu0 %v3202
        %v3316 = vpop.f32.mrf.mxu0
        %v3317 = vadd.f32 0.0, %v3316
        %v3318 = vpop.f32.mrf.mxu0
        %3319 = vmatprep.mubr.f32.mxu0 0.0
        %3320 = vmatmul.mubr.f32.gmra.mxu0 %v3203
        %v3321 = vpop.f32.mrf.mxu0
        %v3322 = vadd.f32 0.0, %v3321
        %v3323 = vpop.f32.mrf.mxu0
        %3324 = vmatprep.mubr.f32.mxu0 0.0
        %3325 = vmatmul.mubr.f32.gmra.mxu0 %v3204
        %v3326 = vpop.f32.mrf.mxu0
        %v3327 = vadd.f32 0.0, %v3326
        %v3328 = vpop.f32.mrf.mxu0
        %3329 = vmatprep.mubr.f32.mxu0 0.0
        %3330 = vmatmul.mubr.f32.gmra.mxu0 %v3205
        %v3331 = vpop.f32.mrf.mxu0
        %v3332 = vadd.f32 0.0, %v3331
        %v3333 = vpop.f32.mrf.mxu0
        %3334 = vmatprep.mubr.f32.mxu0 0.0
        %3335 = vmatmul.mubr.f32.gmra.mxu0 %v3206
        %v3336 = vpop.f32.mrf.mxu0
        %v3337 = vadd.f32 0.0, %v3336
        %v3338 = vpop.f32.mrf.mxu0
        %3339 = vmatprep.mubr.f32.mxu0 0.0
        %3340 = vmatmul.mubr.f32.gmra.mxu0 %v3207
        %v3341 = vpop.f32.mrf.mxu0
        %v3342 = vadd.f32 0.0, %v3341
        %v3343 = vpop.f32.mrf.mxu0
        %3344 = vmatprep.mubr.f32.mxu0 0.0
        %3345 = vmatmul.mubr.f32.gmra.mxu0 %v3208
        %v3346 = vpop.f32.mrf.mxu0
        %v3347 = vadd.f32 0.0, %v3346
        %v3348 = vpop.f32.mrf.mxu0
        %3349 = vmatprep.mubr.f32.mxu0 0.0
        %3350 = vmatmul.mubr.f32.gmra.mxu0 %v3209
        %v3351 = vpop.f32.mrf.mxu0
        %v3352 = vadd.f32 0.0, %v3351
        %v3353 = vpop.f32.mrf.mxu0
        %3354 = vdwg.mxu0
        %v3355 = vmul.f32 %v3178, %v2697
        %v3356 = vmul.f32 %v3179, %v2699
        %v3357 = vmul.f32 %v3180, %v2701
        %v3358 = vmul.f32 %v3181, %v2703
        %v3359 = vmul.f32 %v3182, %v2705
        %v3360 = vmul.f32 %v3183, %v2707
        %v3361 = vmul.f32 %v3184, %v2709
        %v3362 = vmul.f32 %v3185, %v2711
        %v3363 = vmul.f32 %v3186, %v2713
        %v3364 = vmul.f32 %v3187, %v2715
        %v3365 = vmul.f32 %v3188, %v2717
        %v3366 = vmul.f32 %v3189, %v2719
        %v3367 = vmul.f32 %v3190, %v2721
        %v3368 = vmul.f32 %v3191, %v2723
        %v3369 = vmul.f32 %v3192, %v2725
        %v3370 = vmul.f32 %v3193, %v2727
        %v3371 = vmul.f32 %v3355, 1.7036606e-07
        %v3372 = vmul.f32 %v3356, 1.7036606e-07
        %v3373 = vmul.f32 %v3357, 1.7036606e-07
        %v3374 = vmul.f32 %v3358, 1.7036606e-07
        %v3375 = vmul.f32 %v3359, 1.7036606e-07
        %v3376 = vmul.f32 %v3360, 1.7036606e-07
        %v3377 = vmul.f32 %v3361, 1.7036606e-07
        %v3378 = vmul.f32 %v3362, 1.7036606e-07
        %v3379 = vmul.f32 %v3363, 1.7036606e-07
        %v3380 = vmul.f32 %v3364, 1.7036606e-07
        %v3381 = vmul.f32 %v3365, 1.7036606e-07
        %v3382 = vmul.f32 %v3366, 1.7036606e-07
        %v3383 = vmul.f32 %v3367, 1.7036606e-07
        %v3384 = vmul.f32 %v3368, 1.7036606e-07
        %v3385 = vmul.f32 %v3369, 1.7036606e-07
        %v3386 = vmul.f32 %v3370, 1.7036606e-07
        %v3387 = vmul.f32 %v3371, %v2632
        %v3388 = vmul.f32 %v3372, %v2633
        %v3389 = vmul.f32 %v3373, %v2634
        %v3390 = vmul.f32 %v3374, %v2635
        %v3391 = vmul.f32 %v3375, %v2636
        %v3392 = vmul.f32 %v3376, %v2637
        %v3393 = vmul.f32 %v3377, %v2638
        %v3394 = vmul.f32 %v3378, %v2639
        %v3395 = vmul.f32 %v3379, %v2640
        %v3396 = vmul.f32 %v3380, %v2641
        %v3397 = vmul.f32 %v3381, %v2642
        %v3398 = vmul.f32 %v3382, %v2643
        %v3399 = vmul.f32 %v3383, %v2644
        %v3400 = vmul.f32 %v3384, %v2645
        %v3401 = vmul.f32 %v3385, %v2646
        %v3402 = vmul.f32 %v3386, %v2647
        %3403 = vmatprep.subr.mxu0 0.0
        %3404 = vmatpush1.msra.mxu0 %v2663
        %3405 = vmatprep.subr.mxu0 0.0
        %3406 = vmatpush1.msra.mxu0 %v2662
        %3407 = vmatprep.subr.mxu0 0.0
        %3408 = vmatpush1.msra.mxu0 %v2661
        %3409 = vmatprep.subr.mxu0 0.0
        %3410 = vmatpush1.msra.mxu0 %v2660
        %3411 = vmatprep.subr.mxu0 0.0
        %3412 = vmatpush1.msra.mxu0 %v2659
        %3413 = vmatprep.subr.mxu0 0.0
        %3414 = vmatpush1.msra.mxu0 %v2658
        %3415 = vmatprep.subr.mxu0 0.0
        %3416 = vmatpush1.msra.mxu0 %v2657
        %3417 = vmatprep.subr.mxu0 0.0
        %3418 = vmatpush1.msra.mxu0 %v2656
        %3419 = vmatprep.subr.mxu0 0.0
        %3420 = vmatpush1.msra.mxu0 %v2655
        %3421 = vmatprep.subr.mxu0 0.0
        %3422 = vmatpush1.msra.mxu0 %v2654
        %3423 = vmatprep.subr.mxu0 0.0
        %3424 = vmatpush1.msra.mxu0 %v2653
        %3425 = vmatprep.subr.mxu0 0.0
        %3426 = vmatpush1.msra.mxu0 %v2652
        %3427 = vmatprep.subr.mxu0 0.0
        %3428 = vmatpush1.msra.mxu0 %v2651
        %3429 = vmatprep.subr.mxu0 0.0
        %3430 = vmatpush1.msra.mxu0 %v2650
        %3431 = vmatprep.subr.mxu0 0.0
        %3432 = vmatpush1.msra.mxu0 %v2649
        %3433 = vmatprep.subr.mxu0 0.0
        %3434 = vmatpush1.msra.mxu0 %v2648
        %3435 = vmatprep.subr.mxu0 0.0
        %3436 = vmatpush2.msra.mxu0 0.0
        %3437 = vmatprep.subr.mxu0 0.0
        %3438 = vmatpush2.msra.mxu0 0.0
        %3439 = vmatprep.subr.mxu0 0.0
        %3440 = vmatpush2.msra.mxu0 0.0
        %3441 = vmatprep.subr.mxu0 0.0
        %3442 = vmatpush2.msra.mxu0 0.0
        %3443 = vmatprep.subr.mxu0 0.0
        %3444 = vmatpush2.msra.mxu0 0.0
        %3445 = vmatprep.subr.mxu0 0.0
        %3446 = vmatpush2.msra.mxu0 0.0
        %3447 = vmatprep.subr.mxu0 0.0
        %3448 = vmatpush2.msra.mxu0 0.0
        %3449 = vmatprep.subr.mxu0 0.0
        %3450 = vmatpush2.msra.mxu0 0.0
        %3451 = vmatprep.subr.mxu0 0.0
        %3452 = vmatpush2.msra.mxu0 0.0
        %3453 = vmatprep.subr.mxu0 0.0
        %3454 = vmatpush2.msra.mxu0 0.0
        %3455 = vmatprep.subr.mxu0 0.0
        %3456 = vmatpush2.msra.mxu0 0.0
        %3457 = vmatprep.subr.mxu0 0.0
        %3458 = vmatpush2.msra.mxu0 0.0
        %3459 = vmatprep.subr.mxu0 0.0
        %3460 = vmatpush2.msra.mxu0 0.0
        %3461 = vmatprep.subr.mxu0 0.0
        %3462 = vmatpush2.msra.mxu0 0.0
        %3463 = vmatprep.subr.mxu0 0.0
        %3464 = vmatpush2.msra.mxu0 0.0
        %3465 = vmatprep.subr.mxu0 0.0
        %3466 = vmatpush2.msra.mxu0 0.0
        %3467 = vmatprep.mubr.f32.mxu0 0.0
        %3468 = vmatmul.mubr.f32.gmra.mxu0 %v3387
        %v3469 = vpop.f32.mrf.mxu0
        %v3470 = vadd.f32 0.0, %v3469
        %v3471 = vpop.f32.mrf.mxu0
        %3472 = vmatprep.mubr.f32.mxu0 0.0
        %3473 = vmatmul.mubr.f32.gmra.mxu0 %v3388
        %v3474 = vpop.f32.mrf.mxu0
        %v3475 = vadd.f32 0.0, %v3474
        %v3476 = vpop.f32.mrf.mxu0
        %3477 = vmatprep.mubr.f32.mxu0 0.0
        %3478 = vmatmul.mubr.f32.gmra.mxu0 %v3389
        %v3479 = vpop.f32.mrf.mxu0
        %v3480 = vadd.f32 0.0, %v3479
        %v3481 = vpop.f32.mrf.mxu0
        %3482 = vmatprep.mubr.f32.mxu0 0.0
        %3483 = vmatmul.mubr.f32.gmra.mxu0 %v3390
        %v3484 = vpop.f32.mrf.mxu0
        %v3485 = vadd.f32 0.0, %v3484
        %v3486 = vpop.f32.mrf.mxu0
        %3487 = vmatprep.mubr.f32.mxu0 0.0
        %3488 = vmatmul.mubr.f32.gmra.mxu0 %v3391
        %v3489 = vpop.f32.mrf.mxu0
        %v3490 = vadd.f32 0.0, %v3489
        %v3491 = vpop.f32.mrf.mxu0
        %3492 = vmatprep.mubr.f32.mxu0 0.0
        %3493 = vmatmul.mubr.f32.gmra.mxu0 %v3392
        %v3494 = vpop.f32.mrf.mxu0
        %v3495 = vadd.f32 0.0, %v3494
        %v3496 = vpop.f32.mrf.mxu0
        %3497 = vmatprep.mubr.f32.mxu0 0.0
        %3498 = vmatmul.mubr.f32.gmra.mxu0 %v3393
        %v3499 = vpop.f32.mrf.mxu0
        %v3500 = vadd.f32 0.0, %v3499
        %v3501 = vpop.f32.mrf.mxu0
        %3502 = vmatprep.mubr.f32.mxu0 0.0
        %3503 = vmatmul.mubr.f32.gmra.mxu0 %v3394
        %v3504 = vpop.f32.mrf.mxu0
        %v3505 = vadd.f32 0.0, %v3504
        %v3506 = vpop.f32.mrf.mxu0
        %3507 = vmatprep.mubr.f32.mxu0 0.0
        %3508 = vmatmul.mubr.f32.gmra.mxu0 %v3395
        %v3509 = vpop.f32.mrf.mxu0
        %v3510 = vadd.f32 0.0, %v3509
        %v3511 = vpop.f32.mrf.mxu0
        %3512 = vmatprep.mubr.f32.mxu0 0.0
        %3513 = vmatmul.mubr.f32.gmra.mxu0 %v3396
        %v3514 = vpop.f32.mrf.mxu0
        %v3515 = vadd.f32 0.0, %v3514
        %v3516 = vpop.f32.mrf.mxu0
        %3517 = vmatprep.mubr.f32.mxu0 0.0
        %3518 = vmatmul.mubr.f32.gmra.mxu0 %v3397
        %v3519 = vpop.f32.mrf.mxu0
        %v3520 = vadd.f32 0.0, %v3519
        %v3521 = vpop.f32.mrf.mxu0
        %3522 = vmatprep.mubr.f32.mxu0 0.0
        %3523 = vmatmul.mubr.f32.gmra.mxu0 %v3398
        %v3524 = vpop.f32.mrf.mxu0
        %v3525 = vadd.f32 0.0, %v3524
        %v3526 = vpop.f32.mrf.mxu0
        %3527 = vmatprep.mubr.f32.mxu0 0.0
        %3528 = vmatmul.mubr.f32.gmra.mxu0 %v3399
        %v3529 = vpop.f32.mrf.mxu0
        %v3530 = vadd.f32 0.0, %v3529
        %v3531 = vpop.f32.mrf.mxu0
        %3532 = vmatprep.mubr.f32.mxu0 0.0
        %3533 = vmatmul.mubr.f32.gmra.mxu0 %v3400
        %v3534 = vpop.f32.mrf.mxu0
        %v3535 = vadd.f32 0.0, %v3534
        %v3536 = vpop.f32.mrf.mxu0
        %3537 = vmatprep.mubr.f32.mxu0 0.0
        %3538 = vmatmul.mubr.f32.gmra.mxu0 %v3401
        %v3539 = vpop.f32.mrf.mxu0
        %v3540 = vadd.f32 0.0, %v3539
        %v3541 = vpop.f32.mrf.mxu0
        %3542 = vmatprep.mubr.f32.mxu0 0.0
        %3543 = vmatmul.mubr.f32.gmra.mxu0 %v3402
        %v3544 = vpop.f32.mrf.mxu0
        %v3545 = vadd.f32 0.0, %v3544
        %v3546 = vpop.f32.mrf.mxu0
        %3547 = vdwg.mxu0
        %v3548 = vsub.f32 %v713, 1.875
        %v3549 = vsub.f32 %v720, 1.875
        %v3550 = vsub.f32 %v727, 1.875
        %v3551 = vsub.f32 %v734, 1.875
        %v3552 = vsub.f32 %v741, 1.875
        %v3553 = vsub.f32 %v748, 1.875
        %v3554 = vsub.f32 %v755, 1.875
        %v3555 = vsub.f32 %v762, 1.875
        %v3556 = vsub.f32 %v769, 1.875
        %v3557 = vsub.f32 %v776, 1.875
        %v3558 = vsub.f32 %v783, 1.875
        %v3559 = vsub.f32 %v790, 1.875
        %v3560 = vsub.f32 %v797, 1.875
        %v3561 = vsub.f32 %v804, 1.875
        %v3562 = vsub.f32 %v811, 1.875
        %v3563 = vsub.f32 %v818, 1.875
        %v3564 = vmul.f32 %v3548, -19.7
        %v3565 = vmul.f32 %v3549, -19.7
        %v3566 = vmul.f32 %v3550, -19.7
        %v3567 = vmul.f32 %v3551, -19.7
        %v3568 = vmul.f32 %v3552, -19.7
        %v3569 = vmul.f32 %v3553, -19.7
        %v3570 = vmul.f32 %v3554, -19.7
        %v3571 = vmul.f32 %v3555, -19.7
        %v3572 = vmul.f32 %v3556, -19.7
        %v3573 = vmul.f32 %v3557, -19.7
        %v3574 = vmul.f32 %v3558, -19.7
        %v3575 = vmul.f32 %v3559, -19.7
        %v3576 = vmul.f32 %v3560, -19.7
        %v3577 = vmul.f32 %v3561, -19.7
        %v3578 = vmul.f32 %v3562, -19.7
        %v3579 = vmul.f32 %v3563, -19.7
        %v3580 = vmul.f32 %v3564, %v3548
        %v3581 = vmul.f32 %v3565, %v3549
        %v3582 = vmul.f32 %v3566, %v3550
        %v3583 = vmul.f32 %v3567, %v3551
        %v3584 = vmul.f32 %v3568, %v3552
        %v3585 = vmul.f32 %v3569, %v3553
        %v3586 = vmul.f32 %v3570, %v3554
        %v3587 = vmul.f32 %v3571, %v3555
        %v3588 = vmul.f32 %v3572, %v3556
        %v3589 = vmul.f32 %v3573, %v3557
        %v3590 = vmul.f32 %v3574, %v3558
        %v3591 = vmul.f32 %v3575, %v3559
        %v3592 = vmul.f32 %v3576, %v3560
        %v3593 = vmul.f32 %v3577, %v3561
        %v3594 = vmul.f32 %v3578, %v3562
        %v3595 = vmul.f32 %v3579, %v3563
        %v3596 = vmul.f32 %v3580, 1.442695
        %v3597 = vpow.pop %v3596
        %v3598 = vmul.f32 %v3581, 1.442695
        %v3599 = vpow.pop %v3598
        %v3600 = vmul.f32 %v3582, 1.442695
        %v3601 = vpow.pop %v3600
        %v3602 = vmul.f32 %v3583, 1.442695
        %v3603 = vpow.pop %v3602
        %v3604 = vmul.f32 %v3584, 1.442695
        %v3605 = vpow.pop %v3604
        %v3606 = vmul.f32 %v3585, 1.442695
        %v3607 = vpow.pop %v3606
        %v3608 = vmul.f32 %v3586, 1.442695
        %v3609 = vpow.pop %v3608
        %v3610 = vmul.f32 %v3587, 1.442695
        %v3611 = vpow.pop %v3610
        %v3612 = vmul.f32 %v3588, 1.442695
        %v3613 = vpow.pop %v3612
        %v3614 = vmul.f32 %v3589, 1.442695
        %v3615 = vpow.pop %v3614
        %v3616 = vmul.f32 %v3590, 1.442695
        %v3617 = vpow.pop %v3616
        %v3618 = vmul.f32 %v3591, 1.442695
        %v3619 = vpow.pop %v3618
        %v3620 = vmul.f32 %v3592, 1.442695
        %v3621 = vpow.pop %v3620
        %v3622 = vmul.f32 %v3593, 1.442695
        %v3623 = vpow.pop %v3622
        %v3624 = vmul.f32 %v3594, 1.442695
        %v3625 = vpow.pop %v3624
        %v3626 = vmul.f32 %v3595, 1.442695
        %v3627 = vpow.pop %v3626
        %v3628 = vmul.f32 %v3597, %v2632
        %v3629 = vmul.f32 %v3599, %v2633
        %v3630 = vmul.f32 %v3601, %v2634
        %v3631 = vmul.f32 %v3603, %v2635
        %v3632 = vmul.f32 %v3605, %v2636
        %v3633 = vmul.f32 %v3607, %v2637
        %v3634 = vmul.f32 %v3609, %v2638
        %v3635 = vmul.f32 %v3611, %v2639
        %v3636 = vmul.f32 %v3613, %v2640
        %v3637 = vmul.f32 %v3615, %v2641
        %v3638 = vmul.f32 %v3617, %v2642
        %v3639 = vmul.f32 %v3619, %v2643
        %v3640 = vmul.f32 %v3621, %v2644
        %v3641 = vmul.f32 %v3623, %v2645
        %v3642 = vmul.f32 %v3625, %v2646
        %v3643 = vmul.f32 %v3627, %v2647
        %3644 = vmatprep.subr.mxu0 0.0
        %3645 = vmatpush1.msra.mxu0 %v2663
        %3646 = vmatprep.subr.mxu0 0.0
        %3647 = vmatpush1.msra.mxu0 %v2662
        %3648 = vmatprep.subr.mxu0 0.0
        %3649 = vmatpush1.msra.mxu0 %v2661
        %3650 = vmatprep.subr.mxu0 0.0
        %3651 = vmatpush1.msra.mxu0 %v2660
        %3652 = vmatprep.subr.mxu0 0.0
        %3653 = vmatpush1.msra.mxu0 %v2659
        %3654 = vmatprep.subr.mxu0 0.0
        %3655 = vmatpush1.msra.mxu0 %v2658
        %3656 = vmatprep.subr.mxu0 0.0
        %3657 = vmatpush1.msra.mxu0 %v2657
        %3658 = vmatprep.subr.mxu0 0.0
        %3659 = vmatpush1.msra.mxu0 %v2656
        %3660 = vmatprep.subr.mxu0 0.0
        %3661 = vmatpush1.msra.mxu0 %v2655
        %3662 = vmatprep.subr.mxu0 0.0
        %3663 = vmatpush1.msra.mxu0 %v2654
        %3664 = vmatprep.subr.mxu0 0.0
        %3665 = vmatpush1.msra.mxu0 %v2653
        %3666 = vmatprep.subr.mxu0 0.0
        %3667 = vmatpush1.msra.mxu0 %v2652
        %3668 = vmatprep.subr.mxu0 0.0
        %3669 = vmatpush1.msra.mxu0 %v2651
        %3670 = vmatprep.subr.mxu0 0.0
        %3671 = vmatpush1.msra.mxu0 %v2650
        %3672 = vmatprep.subr.mxu0 0.0
        %3673 = vmatpush1.msra.mxu0 %v2649
        %3674 = vmatprep.subr.mxu0 0.0
        %3675 = vmatpush1.msra.mxu0 %v2648
        %3676 = vmatprep.subr.mxu0 0.0
        %3677 = vmatpush2.msra.mxu0 0.0
        %3678 = vmatprep.subr.mxu0 0.0
        %3679 = vmatpush2.msra.mxu0 0.0
        %3680 = vmatprep.subr.mxu0 0.0
        %3681 = vmatpush2.msra.mxu0 0.0
        %3682 = vmatprep.subr.mxu0 0.0
        %3683 = vmatpush2.msra.mxu0 0.0
        %3684 = vmatprep.subr.mxu0 0.0
        %3685 = vmatpush2.msra.mxu0 0.0
        %3686 = vmatprep.subr.mxu0 0.0
        %3687 = vmatpush2.msra.mxu0 0.0
        %3688 = vmatprep.subr.mxu0 0.0
        %3689 = vmatpush2.msra.mxu0 0.0
        %3690 = vmatprep.subr.mxu0 0.0
        %3691 = vmatpush2.msra.mxu0 0.0
        %3692 = vmatprep.subr.mxu0 0.0
        %3693 = vmatpush2.msra.mxu0 0.0
        %3694 = vmatprep.subr.mxu0 0.0
        %3695 = vmatpush2.msra.mxu0 0.0
        %3696 = vmatprep.subr.mxu0 0.0
        %3697 = vmatpush2.msra.mxu0 0.0
        %3698 = vmatprep.subr.mxu0 0.0
        %3699 = vmatpush2.msra.mxu0 0.0
        %3700 = vmatprep.subr.mxu0 0.0
        %3701 = vmatpush2.msra.mxu0 0.0
        %3702 = vmatprep.subr.mxu0 0.0
        %3703 = vmatpush2.msra.mxu0 0.0
        %3704 = vmatprep.subr.mxu0 0.0
        %3705 = vmatpush2.msra.mxu0 0.0
        %3706 = vmatprep.subr.mxu0 0.0
        %3707 = vmatpush2.msra.mxu0 0.0
        %3708 = vmatprep.mubr.f32.mxu0 0.0
        %3709 = vmatmul.mubr.f32.gmra.mxu0 %v3628
        %v3710 = vpop.f32.mrf.mxu0
        %v3711 = vadd.f32 0.0, %v3710
        %v3712 = vpop.f32.mrf.mxu0
        %3713 = vmatprep.mubr.f32.mxu0 0.0
        %3714 = vmatmul.mubr.f32.gmra.mxu0 %v3629
        %v3715 = vpop.f32.mrf.mxu0
        %v3716 = vadd.f32 0.0, %v3715
        %v3717 = vpop.f32.mrf.mxu0
        %3718 = vmatprep.mubr.f32.mxu0 0.0
        %3719 = vmatmul.mubr.f32.gmra.mxu0 %v3630
        %v3720 = vpop.f32.mrf.mxu0
        %v3721 = vadd.f32 0.0, %v3720
        %v3722 = vpop.f32.mrf.mxu0
        %3723 = vmatprep.mubr.f32.mxu0 0.0
        %3724 = vmatmul.mubr.f32.gmra.mxu0 %v3631
        %v3725 = vpop.f32.mrf.mxu0
        %v3726 = vadd.f32 0.0, %v3725
        %v3727 = vpop.f32.mrf.mxu0
        %3728 = vmatprep.mubr.f32.mxu0 0.0
        %3729 = vmatmul.mubr.f32.gmra.mxu0 %v3632
        %v3730 = vpop.f32.mrf.mxu0
        %v3731 = vadd.f32 0.0, %v3730
        %v3732 = vpop.f32.mrf.mxu0
        %3733 = vmatprep.mubr.f32.mxu0 0.0
        %3734 = vmatmul.mubr.f32.gmra.mxu0 %v3633
        %v3735 = vpop.f32.mrf.mxu0
        %v3736 = vadd.f32 0.0, %v3735
        %v3737 = vpop.f32.mrf.mxu0
        %3738 = vmatprep.mubr.f32.mxu0 0.0
        %3739 = vmatmul.mubr.f32.gmra.mxu0 %v3634
        %v3740 = vpop.f32.mrf.mxu0
        %v3741 = vadd.f32 0.0, %v3740
        %v3742 = vpop.f32.mrf.mxu0
        %3743 = vmatprep.mubr.f32.mxu0 0.0
        %3744 = vmatmul.mubr.f32.gmra.mxu0 %v3635
        %v3745 = vpop.f32.mrf.mxu0
        %v3746 = vadd.f32 0.0, %v3745
        %v3747 = vpop.f32.mrf.mxu0
        %3748 = vmatprep.mubr.f32.mxu0 0.0
        %3749 = vmatmul.mubr.f32.gmra.mxu0 %v3636
        %v3750 = vpop.f32.mrf.mxu0
        %v3751 = vadd.f32 0.0, %v3750
        %v3752 = vpop.f32.mrf.mxu0
        %3753 = vmatprep.mubr.f32.mxu0 0.0
        %3754 = vmatmul.mubr.f32.gmra.mxu0 %v3637
        %v3755 = vpop.f32.mrf.mxu0
        %v3756 = vadd.f32 0.0, %v3755
        %v3757 = vpop.f32.mrf.mxu0
        %3758 = vmatprep.mubr.f32.mxu0 0.0
        %3759 = vmatmul.mubr.f32.gmra.mxu0 %v3638
        %v3760 = vpop.f32.mrf.mxu0
        %v3761 = vadd.f32 0.0, %v3760
        %v3762 = vpop.f32.mrf.mxu0
        %3763 = vmatprep.mubr.f32.mxu0 0.0
        %3764 = vmatmul.mubr.f32.gmra.mxu0 %v3639
        %v3765 = vpop.f32.mrf.mxu0
        %v3766 = vadd.f32 0.0, %v3765
        %v3767 = vpop.f32.mrf.mxu0
        %3768 = vmatprep.mubr.f32.mxu0 0.0
        %3769 = vmatmul.mubr.f32.gmra.mxu0 %v3640
        %v3770 = vpop.f32.mrf.mxu0
        %v3771 = vadd.f32 0.0, %v3770
        %v3772 = vpop.f32.mrf.mxu0
        %3773 = vmatprep.mubr.f32.mxu0 0.0
        %3774 = vmatmul.mubr.f32.gmra.mxu0 %v3641
        %v3775 = vpop.f32.mrf.mxu0
        %v3776 = vadd.f32 0.0, %v3775
        %v3777 = vpop.f32.mrf.mxu0
        %3778 = vmatprep.mubr.f32.mxu0 0.0
        %3779 = vmatmul.mubr.f32.gmra.mxu0 %v3642
        %v3780 = vpop.f32.mrf.mxu0
        %v3781 = vadd.f32 0.0, %v3780
        %v3782 = vpop.f32.mrf.mxu0
        %3783 = vmatprep.mubr.f32.mxu0 0.0
        %3784 = vmatmul.mubr.f32.gmra.mxu0 %v3643
        %v3785 = vpop.f32.mrf.mxu0
        %v3786 = vadd.f32 0.0, %v3785
        %v3787 = vpop.f32.mrf.mxu0
        %3788 = vdwg.mxu0
        %v3789 = vmul.f32 %v3597, %v2697
        %v3790 = vmul.f32 %v3599, %v2699
        %v3791 = vmul.f32 %v3601, %v2701
        %v3792 = vmul.f32 %v3603, %v2703
        %v3793 = vmul.f32 %v3605, %v2705
        %v3794 = vmul.f32 %v3607, %v2707
        %v3795 = vmul.f32 %v3609, %v2709
        %v3796 = vmul.f32 %v3611, %v2711
        %v3797 = vmul.f32 %v3613, %v2713
        %v3798 = vmul.f32 %v3615, %v2715
        %v3799 = vmul.f32 %v3617, %v2717
        %v3800 = vmul.f32 %v3619, %v2719
        %v3801 = vmul.f32 %v3621, %v2721
        %v3802 = vmul.f32 %v3623, %v2723
        %v3803 = vmul.f32 %v3625, %v2725
        %v3804 = vmul.f32 %v3627, %v2727
        %v3805 = vmul.f32 %v3789, 5.749319e-10
        %v3806 = vmul.f32 %v3790, 5.749319e-10
        %v3807 = vmul.f32 %v3791, 5.749319e-10
        %v3808 = vmul.f32 %v3792, 5.749319e-10
        %v3809 = vmul.f32 %v3793, 5.749319e-10
        %v3810 = vmul.f32 %v3794, 5.749319e-10
        %v3811 = vmul.f32 %v3795, 5.749319e-10
        %v3812 = vmul.f32 %v3796, 5.749319e-10
        %v3813 = vmul.f32 %v3797, 5.749319e-10
        %v3814 = vmul.f32 %v3798, 5.749319e-10
        %v3815 = vmul.f32 %v3799, 5.749319e-10
        %v3816 = vmul.f32 %v3800, 5.749319e-10
        %v3817 = vmul.f32 %v3801, 5.749319e-10
        %v3818 = vmul.f32 %v3802, 5.749319e-10
        %v3819 = vmul.f32 %v3803, 5.749319e-10
        %v3820 = vmul.f32 %v3804, 5.749319e-10
        %v3821 = vmul.f32 %v3805, %v2632
        %v3822 = vmul.f32 %v3806, %v2633
        %v3823 = vmul.f32 %v3807, %v2634
        %v3824 = vmul.f32 %v3808, %v2635
        %v3825 = vmul.f32 %v3809, %v2636
        %v3826 = vmul.f32 %v3810, %v2637
        %v3827 = vmul.f32 %v3811, %v2638
        %v3828 = vmul.f32 %v3812, %v2639
        %v3829 = vmul.f32 %v3813, %v2640
        %v3830 = vmul.f32 %v3814, %v2641
        %v3831 = vmul.f32 %v3815, %v2642
        %v3832 = vmul.f32 %v3816, %v2643
        %v3833 = vmul.f32 %v3817, %v2644
        %v3834 = vmul.f32 %v3818, %v2645
        %v3835 = vmul.f32 %v3819, %v2646
        %v3836 = vmul.f32 %v3820, %v2647
        %3837 = vmatprep.subr.mxu0 0.0
        %3838 = vmatpush1.msra.mxu0 %v2663
        %3839 = vmatprep.subr.mxu0 0.0
        %3840 = vmatpush1.msra.mxu0 %v2662
        %3841 = vmatprep.subr.mxu0 0.0
        %3842 = vmatpush1.msra.mxu0 %v2661
        %3843 = vmatprep.subr.mxu0 0.0
        %3844 = vmatpush1.msra.mxu0 %v2660
        %3845 = vmatprep.subr.mxu0 0.0
        %3846 = vmatpush1.msra.mxu0 %v2659
        %3847 = vmatprep.subr.mxu0 0.0
        %3848 = vmatpush1.msra.mxu0 %v2658
        %3849 = vmatprep.subr.mxu0 0.0
        %3850 = vmatpush1.msra.mxu0 %v2657
        %3851 = vmatprep.subr.mxu0 0.0
        %3852 = vmatpush1.msra.mxu0 %v2656
        %3853 = vmatprep.subr.mxu0 0.0
        %3854 = vmatpush1.msra.mxu0 %v2655
        %3855 = vmatprep.subr.mxu0 0.0
        %3856 = vmatpush1.msra.mxu0 %v2654
        %3857 = vmatprep.subr.mxu0 0.0
        %3858 = vmatpush1.msra.mxu0 %v2653
        %3859 = vmatprep.subr.mxu0 0.0
        %3860 = vmatpush1.msra.mxu0 %v2652
        %3861 = vmatprep.subr.mxu0 0.0
        %3862 = vmatpush1.msra.mxu0 %v2651
        %3863 = vmatprep.subr.mxu0 0.0
        %3864 = vmatpush1.msra.mxu0 %v2650
        %3865 = vmatprep.subr.mxu0 0.0
        %3866 = vmatpush1.msra.mxu0 %v2649
        %3867 = vmatprep.subr.mxu0 0.0
        %3868 = vmatpush1.msra.mxu0 %v2648
        %3869 = vmatprep.subr.mxu0 0.0
        %3870 = vmatpush2.msra.mxu0 0.0
        %3871 = vmatprep.subr.mxu0 0.0
        %3872 = vmatpush2.msra.mxu0 0.0
        %3873 = vmatprep.subr.mxu0 0.0
        %3874 = vmatpush2.msra.mxu0 0.0
        %3875 = vmatprep.subr.mxu0 0.0
        %3876 = vmatpush2.msra.mxu0 0.0
        %3877 = vmatprep.subr.mxu0 0.0
        %3878 = vmatpush2.msra.mxu0 0.0
        %3879 = vmatprep.subr.mxu0 0.0
        %3880 = vmatpush2.msra.mxu0 0.0
        %3881 = vmatprep.subr.mxu0 0.0
        %3882 = vmatpush2.msra.mxu0 0.0
        %3883 = vmatprep.subr.mxu0 0.0
        %3884 = vmatpush2.msra.mxu0 0.0
        %3885 = vmatprep.subr.mxu0 0.0
        %3886 = vmatpush2.msra.mxu0 0.0
        %3887 = vmatprep.subr.mxu0 0.0
        %3888 = vmatpush2.msra.mxu0 0.0
        %3889 = vmatprep.subr.mxu0 0.0
        %3890 = vmatpush2.msra.mxu0 0.0
        %3891 = vmatprep.subr.mxu0 0.0
        %3892 = vmatpush2.msra.mxu0 0.0
        %3893 = vmatprep.subr.mxu0 0.0
        %3894 = vmatpush2.msra.mxu0 0.0
        %3895 = vmatprep.subr.mxu0 0.0
        %3896 = vmatpush2.msra.mxu0 0.0
        %3897 = vmatprep.subr.mxu0 0.0
        %3898 = vmatpush2.msra.mxu0 0.0
        %3899 = vmatprep.subr.mxu0 0.0
        %3900 = vmatpush2.msra.mxu0 0.0
        %3901 = vmatprep.mubr.f32.mxu0 0.0
        %3902 = vmatmul.mubr.f32.gmra.mxu0 %v3821
        %v3903 = vpop.f32.mrf.mxu0
        %v3904 = vadd.f32 0.0, %v3903
        %v3905 = vpop.f32.mrf.mxu0
        %3906 = vmatprep.mubr.f32.mxu0 0.0
        %3907 = vmatmul.mubr.f32.gmra.mxu0 %v3822
        %v3908 = vpop.f32.mrf.mxu0
        %v3909 = vadd.f32 0.0, %v3908
        %v3910 = vpop.f32.mrf.mxu0
        %3911 = vmatprep.mubr.f32.mxu0 0.0
        %3912 = vmatmul.mubr.f32.gmra.mxu0 %v3823
        %v3913 = vpop.f32.mrf.mxu0
        %v3914 = vadd.f32 0.0, %v3913
        %v3915 = vpop.f32.mrf.mxu0
        %3916 = vmatprep.mubr.f32.mxu0 0.0
        %3917 = vmatmul.mubr.f32.gmra.mxu0 %v3824
        %v3918 = vpop.f32.mrf.mxu0
        %v3919 = vadd.f32 0.0, %v3918
        %v3920 = vpop.f32.mrf.mxu0
        %3921 = vmatprep.mubr.f32.mxu0 0.0
        %3922 = vmatmul.mubr.f32.gmra.mxu0 %v3825
        %v3923 = vpop.f32.mrf.mxu0
        %v3924 = vadd.f32 0.0, %v3923
        %v3925 = vpop.f32.mrf.mxu0
        %3926 = vmatprep.mubr.f32.mxu0 0.0
        %3927 = vmatmul.mubr.f32.gmra.mxu0 %v3826
        %v3928 = vpop.f32.mrf.mxu0
        %v3929 = vadd.f32 0.0, %v3928
        %v3930 = vpop.f32.mrf.mxu0
        %3931 = vmatprep.mubr.f32.mxu0 0.0
        %3932 = vmatmul.mubr.f32.gmra.mxu0 %v3827
        %v3933 = vpop.f32.mrf.mxu0
        %v3934 = vadd.f32 0.0, %v3933
        %v3935 = vpop.f32.mrf.mxu0
        %3936 = vmatprep.mubr.f32.mxu0 0.0
        %3937 = vmatmul.mubr.f32.gmra.mxu0 %v3828
        %v3938 = vpop.f32.mrf.mxu0
        %v3939 = vadd.f32 0.0, %v3938
        %v3940 = vpop.f32.mrf.mxu0
        %3941 = vmatprep.mubr.f32.mxu0 0.0
        %3942 = vmatmul.mubr.f32.gmra.mxu0 %v3829
        %v3943 = vpop.f32.mrf.mxu0
        %v3944 = vadd.f32 0.0, %v3943
        %v3945 = vpop.f32.mrf.mxu0
        %3946 = vmatprep.mubr.f32.mxu0 0.0
        %3947 = vmatmul.mubr.f32.gmra.mxu0 %v3830
        %v3948 = vpop.f32.mrf.mxu0
        %v3949 = vadd.f32 0.0, %v3948
        %v3950 = vpop.f32.mrf.mxu0
        %3951 = vmatprep.mubr.f32.mxu0 0.0
        %3952 = vmatmul.mubr.f32.gmra.mxu0 %v3831
        %v3953 = vpop.f32.mrf.mxu0
        %v3954 = vadd.f32 0.0, %v3953
        %v3955 = vpop.f32.mrf.mxu0
        %3956 = vmatprep.mubr.f32.mxu0 0.0
        %3957 = vmatmul.mubr.f32.gmra.mxu0 %v3832
        %v3958 = vpop.f32.mrf.mxu0
        %v3959 = vadd.f32 0.0, %v3958
        %v3960 = vpop.f32.mrf.mxu0
        %3961 = vmatprep.mubr.f32.mxu0 0.0
        %3962 = vmatmul.mubr.f32.gmra.mxu0 %v3833
        %v3963 = vpop.f32.mrf.mxu0
        %v3964 = vadd.f32 0.0, %v3963
        %v3965 = vpop.f32.mrf.mxu0
        %3966 = vmatprep.mubr.f32.mxu0 0.0
        %3967 = vmatmul.mubr.f32.gmra.mxu0 %v3834
        %v3968 = vpop.f32.mrf.mxu0
        %v3969 = vadd.f32 0.0, %v3968
        %v3970 = vpop.f32.mrf.mxu0
        %3971 = vmatprep.mubr.f32.mxu0 0.0
        %3972 = vmatmul.mubr.f32.gmra.mxu0 %v3835
        %v3973 = vpop.f32.mrf.mxu0
        %v3974 = vadd.f32 0.0, %v3973
        %v3975 = vpop.f32.mrf.mxu0
        %3976 = vmatprep.mubr.f32.mxu0 0.0
        %3977 = vmatmul.mubr.f32.gmra.mxu0 %v3836
        %v3978 = vpop.f32.mrf.mxu0
        %v3979 = vadd.f32 0.0, %v3978
        %v3980 = vpop.f32.mrf.mxu0
        %3981 = vdwg.mxu0
        %v3982 = vmul.f32 %v3805, %v2697
        %v3983 = vmul.f32 %v3806, %v2699
        %v3984 = vmul.f32 %v3807, %v2701
        %v3985 = vmul.f32 %v3808, %v2703
        %v3986 = vmul.f32 %v3809, %v2705
        %v3987 = vmul.f32 %v3810, %v2707
        %v3988 = vmul.f32 %v3811, %v2709
        %v3989 = vmul.f32 %v3812, %v2711
        %v3990 = vmul.f32 %v3813, %v2713
        %v3991 = vmul.f32 %v3814, %v2715
        %v3992 = vmul.f32 %v3815, %v2717
        %v3993 = vmul.f32 %v3816, %v2719
        %v3994 = vmul.f32 %v3817, %v2721
        %v3995 = vmul.f32 %v3818, %v2723
        %v3996 = vmul.f32 %v3819, %v2725
        %v3997 = vmul.f32 %v3820, %v2727
        %v3998 = vmul.f32 %v3982, 3.3398968e-11
        %v3999 = vmul.f32 %v3983, 3.3398968e-11
        %v4000 = vmul.f32 %v3984, 3.3398968e-11
        %v4001 = vmul.f32 %v3985, 3.3398968e-11
        %v4002 = vmul.f32 %v3986, 3.3398968e-11
        %v4003 = vmul.f32 %v3987, 3.3398968e-11
        %v4004 = vmul.f32 %v3988, 3.3398968e-11
        %v4005 = vmul.f32 %v3989, 3.3398968e-11
        %v4006 = vmul.f32 %v3990, 3.3398968e-11
        %v4007 = vmul.f32 %v3991, 3.3398968e-11
        %v4008 = vmul.f32 %v3992, 3.3398968e-11
        %v4009 = vmul.f32 %v3993, 3.3398968e-11
        %v4010 = vmul.f32 %v3994, 3.3398968e-11
        %v4011 = vmul.f32 %v3995, 3.3398968e-11
        %v4012 = vmul.f32 %v3996, 3.3398968e-11
        %v4013 = vmul.f32 %v3997, 3.3398968e-11
        %v4014 = vmul.f32 %v3998, %v2632
        %v4015 = vmul.f32 %v3999, %v2633
        %v4016 = vmul.f32 %v4000, %v2634
        %v4017 = vmul.f32 %v4001, %v2635
        %v4018 = vmul.f32 %v4002, %v2636
        %v4019 = vmul.f32 %v4003, %v2637
        %v4020 = vmul.f32 %v4004, %v2638
        %v4021 = vmul.f32 %v4005, %v2639
        %v4022 = vmul.f32 %v4006, %v2640
        %v4023 = vmul.f32 %v4007, %v2641
        %v4024 = vmul.f32 %v4008, %v2642
        %v4025 = vmul.f32 %v4009, %v2643
        %v4026 = vmul.f32 %v4010, %v2644
        %v4027 = vmul.f32 %v4011, %v2645
        %v4028 = vmul.f32 %v4012, %v2646
        %v4029 = vmul.f32 %v4013, %v2647
        %4030 = vmatprep.subr.mxu0 0.0
        %4031 = vmatpush1.msra.mxu0 %v2663
        %4032 = vmatprep.subr.mxu0 0.0
        %4033 = vmatpush1.msra.mxu0 %v2662
        %4034 = vmatprep.subr.mxu0 0.0
        %4035 = vmatpush1.msra.mxu0 %v2661
        %4036 = vmatprep.subr.mxu0 0.0
        %4037 = vmatpush1.msra.mxu0 %v2660
        %4038 = vmatprep.subr.mxu0 0.0
        %4039 = vmatpush1.msra.mxu0 %v2659
        %4040 = vmatprep.subr.mxu0 0.0
        %4041 = vmatpush1.msra.mxu0 %v2658
        %4042 = vmatprep.subr.mxu0 0.0
        %4043 = vmatpush1.msra.mxu0 %v2657
        %4044 = vmatprep.subr.mxu0 0.0
        %4045 = vmatpush1.msra.mxu0 %v2656
        %4046 = vmatprep.subr.mxu0 0.0
        %4047 = vmatpush1.msra.mxu0 %v2655
        %4048 = vmatprep.subr.mxu0 0.0
        %4049 = vmatpush1.msra.mxu0 %v2654
        %4050 = vmatprep.subr.mxu0 0.0
        %4051 = vmatpush1.msra.mxu0 %v2653
        %4052 = vmatprep.subr.mxu0 0.0
        %4053 = vmatpush1.msra.mxu0 %v2652
        %4054 = vmatprep.subr.mxu0 0.0
        %4055 = vmatpush1.msra.mxu0 %v2651
        %4056 = vmatprep.subr.mxu0 0.0
        %4057 = vmatpush1.msra.mxu0 %v2650
        %4058 = vmatprep.subr.mxu0 0.0
        %4059 = vmatpush1.msra.mxu0 %v2649
        %4060 = vmatprep.subr.mxu0 0.0
        %4061 = vmatpush1.msra.mxu0 %v2648
        %4062 = vmatprep.subr.mxu0 0.0
        %4063 = vmatpush2.msra.mxu0 0.0
        %4064 = vmatprep.subr.mxu0 0.0
        %4065 = vmatpush2.msra.mxu0 0.0
        %4066 = vmatprep.subr.mxu0 0.0
        %4067 = vmatpush2.msra.mxu0 0.0
        %4068 = vmatprep.subr.mxu0 0.0
        %4069 = vmatpush2.msra.mxu0 0.0
        %4070 = vmatprep.subr.mxu0 0.0
        %4071 = vmatpush2.msra.mxu0 0.0
        %4072 = vmatprep.subr.mxu0 0.0
        %4073 = vmatpush2.msra.mxu0 0.0
        %4074 = vmatprep.subr.mxu0 0.0
        %4075 = vmatpush2.msra.mxu0 0.0
        %4076 = vmatprep.subr.mxu0 0.0
        %4077 = vmatpush2.msra.mxu0 0.0
        %4078 = vmatprep.subr.mxu0 0.0
        %4079 = vmatpush2.msra.mxu0 0.0
        %4080 = vmatprep.subr.mxu0 0.0
        %4081 = vmatpush2.msra.mxu0 0.0
        %4082 = vmatprep.subr.mxu0 0.0
        %4083 = vmatpush2.msra.mxu0 0.0
        %4084 = vmatprep.subr.mxu0 0.0
        %4085 = vmatpush2.msra.mxu0 0.0
        %4086 = vmatprep.subr.mxu0 0.0
        %4087 = vmatpush2.msra.mxu0 0.0
        %4088 = vmatprep.subr.mxu0 0.0
        %4089 = vmatpush2.msra.mxu0 0.0
        %4090 = vmatprep.subr.mxu0 0.0
        %4091 = vmatpush2.msra.mxu0 0.0
        %4092 = vmatprep.subr.mxu0 0.0
        %4093 = vmatpush2.msra.mxu0 0.0
        %4094 = vmatprep.mubr.f32.mxu0 0.0
        %4095 = vmatmul.mubr.f32.gmra.mxu0 %v4014
        %v4096 = vpop.f32.mrf.mxu0
        %v4097 = vadd.f32 0.0, %v4096
        %v4098 = vpop.f32.mrf.mxu0
        %4099 = vmatprep.mubr.f32.mxu0 0.0
        %4100 = vmatmul.mubr.f32.gmra.mxu0 %v4015
        %v4101 = vpop.f32.mrf.mxu0
        %v4102 = vadd.f32 0.0, %v4101
        %v4103 = vpop.f32.mrf.mxu0
        %4104 = vmatprep.mubr.f32.mxu0 0.0
        %4105 = vmatmul.mubr.f32.gmra.mxu0 %v4016
        %v4106 = vpop.f32.mrf.mxu0
        %v4107 = vadd.f32 0.0, %v4106
        %v4108 = vpop.f32.mrf.mxu0
        %4109 = vmatprep.mubr.f32.mxu0 0.0
        %4110 = vmatmul.mubr.f32.gmra.mxu0 %v4017
        %v4111 = vpop.f32.mrf.mxu0
        %v4112 = vadd.f32 0.0, %v4111
        %v4113 = vpop.f32.mrf.mxu0
        %4114 = vmatprep.mubr.f32.mxu0 0.0
        %4115 = vmatmul.mubr.f32.gmra.mxu0 %v4018
        %v4116 = vpop.f32.mrf.mxu0
        %v4117 = vadd.f32 0.0, %v4116
        %v4118 = vpop.f32.mrf.mxu0
        %4119 = vmatprep.mubr.f32.mxu0 0.0
        %4120 = vmatmul.mubr.f32.gmra.mxu0 %v4019
        %v4121 = vpop.f32.mrf.mxu0
        %v4122 = vadd.f32 0.0, %v4121
        %v4123 = vpop.f32.mrf.mxu0
        %4124 = vmatprep.mubr.f32.mxu0 0.0
        %4125 = vmatmul.mubr.f32.gmra.mxu0 %v4020
        %v4126 = vpop.f32.mrf.mxu0
        %v4127 = vadd.f32 0.0, %v4126
        %v4128 = vpop.f32.mrf.mxu0
        %4129 = vmatprep.mubr.f32.mxu0 0.0
        %4130 = vmatmul.mubr.f32.gmra.mxu0 %v4021
        %v4131 = vpop.f32.mrf.mxu0
        %v4132 = vadd.f32 0.0, %v4131
        %v4133 = vpop.f32.mrf.mxu0
        %4134 = vmatprep.mubr.f32.mxu0 0.0
        %4135 = vmatmul.mubr.f32.gmra.mxu0 %v4022
        %v4136 = vpop.f32.mrf.mxu0
        %v4137 = vadd.f32 0.0, %v4136
        %v4138 = vpop.f32.mrf.mxu0
        %4139 = vmatprep.mubr.f32.mxu0 0.0
        %4140 = vmatmul.mubr.f32.gmra.mxu0 %v4023
        %v4141 = vpop.f32.mrf.mxu0
        %v4142 = vadd.f32 0.0, %v4141
        %v4143 = vpop.f32.mrf.mxu0
        %4144 = vmatprep.mubr.f32.mxu0 0.0
        %4145 = vmatmul.mubr.f32.gmra.mxu0 %v4024
        %v4146 = vpop.f32.mrf.mxu0
        %v4147 = vadd.f32 0.0, %v4146
        %v4148 = vpop.f32.mrf.mxu0
        %4149 = vmatprep.mubr.f32.mxu0 0.0
        %4150 = vmatmul.mubr.f32.gmra.mxu0 %v4025
        %v4151 = vpop.f32.mrf.mxu0
        %v4152 = vadd.f32 0.0, %v4151
        %v4153 = vpop.f32.mrf.mxu0
        %4154 = vmatprep.mubr.f32.mxu0 0.0
        %4155 = vmatmul.mubr.f32.gmra.mxu0 %v4026
        %v4156 = vpop.f32.mrf.mxu0
        %v4157 = vadd.f32 0.0, %v4156
        %v4158 = vpop.f32.mrf.mxu0
        %4159 = vmatprep.mubr.f32.mxu0 0.0
        %4160 = vmatmul.mubr.f32.gmra.mxu0 %v4027
        %v4161 = vpop.f32.mrf.mxu0
        %v4162 = vadd.f32 0.0, %v4161
        %v4163 = vpop.f32.mrf.mxu0
        %4164 = vmatprep.mubr.f32.mxu0 0.0
        %4165 = vmatmul.mubr.f32.gmra.mxu0 %v4028
        %v4166 = vpop.f32.mrf.mxu0
        %v4167 = vadd.f32 0.0, %v4166
        %v4168 = vpop.f32.mrf.mxu0
        %4169 = vmatprep.mubr.f32.mxu0 0.0
        %4170 = vmatmul.mubr.f32.gmra.mxu0 %v4029
        %v4171 = vpop.f32.mrf.mxu0
        %v4172 = vadd.f32 0.0, %v4171
        %v4173 = vpop.f32.mrf.mxu0
        %4174 = vdwg.mxu0
        %v4175 = vmul.f32 %v3998, %v2697
        %v4176 = vmul.f32 %v3999, %v2699
        %v4177 = vmul.f32 %v4000, %v2701
        %v4178 = vmul.f32 %v4001, %v2703
        %v4179 = vmul.f32 %v4002, %v2705
        %v4180 = vmul.f32 %v4003, %v2707
        %v4181 = vmul.f32 %v4004, %v2709
        %v4182 = vmul.f32 %v4005, %v2711
        %v4183 = vmul.f32 %v4006, %v2713
        %v4184 = vmul.f32 %v4007, %v2715
        %v4185 = vmul.f32 %v4008, %v2717
        %v4186 = vmul.f32 %v4009, %v2719
        %v4187 = vmul.f32 %v4010, %v2721
        %v4188 = vmul.f32 %v4011, %v2723
        %v4189 = vmul.f32 %v4012, %v2725
        %v4190 = vmul.f32 %v4013, %v2727
        %v4191 = vmul.f32 %v4175, 1.9402143e-12
        %v4192 = vmul.f32 %v4176, 1.9402143e-12
        %v4193 = vmul.f32 %v4177, 1.9402143e-12
        %v4194 = vmul.f32 %v4178, 1.9402143e-12
        %v4195 = vmul.f32 %v4179, 1.9402143e-12
        %v4196 = vmul.f32 %v4180, 1.9402143e-12
        %v4197 = vmul.f32 %v4181, 1.9402143e-12
        %v4198 = vmul.f32 %v4182, 1.9402143e-12
        %v4199 = vmul.f32 %v4183, 1.9402143e-12
        %v4200 = vmul.f32 %v4184, 1.9402143e-12
        %v4201 = vmul.f32 %v4185, 1.9402143e-12
        %v4202 = vmul.f32 %v4186, 1.9402143e-12
        %v4203 = vmul.f32 %v4187, 1.9402143e-12
        %v4204 = vmul.f32 %v4188, 1.9402143e-12
        %v4205 = vmul.f32 %v4189, 1.9402143e-12
        %v4206 = vmul.f32 %v4190, 1.9402143e-12
        %v4207 = vmul.f32 %v4191, %v2632
        %v4208 = vmul.f32 %v4192, %v2633
        %v4209 = vmul.f32 %v4193, %v2634
        %v4210 = vmul.f32 %v4194, %v2635
        %v4211 = vmul.f32 %v4195, %v2636
        %v4212 = vmul.f32 %v4196, %v2637
        %v4213 = vmul.f32 %v4197, %v2638
        %v4214 = vmul.f32 %v4198, %v2639
        %v4215 = vmul.f32 %v4199, %v2640
        %v4216 = vmul.f32 %v4200, %v2641
        %v4217 = vmul.f32 %v4201, %v2642
        %v4218 = vmul.f32 %v4202, %v2643
        %v4219 = vmul.f32 %v4203, %v2644
        %v4220 = vmul.f32 %v4204, %v2645
        %v4221 = vmul.f32 %v4205, %v2646
        %v4222 = vmul.f32 %v4206, %v2647
        %4223 = vmatprep.subr.mxu0 0.0
        %4224 = vmatpush1.msra.mxu0 %v2663
        %4225 = vmatprep.subr.mxu0 0.0
        %4226 = vmatpush1.msra.mxu0 %v2662
        %4227 = vmatprep.subr.mxu0 0.0
        %4228 = vmatpush1.msra.mxu0 %v2661
        %4229 = vmatprep.subr.mxu0 0.0
        %4230 = vmatpush1.msra.mxu0 %v2660
        %4231 = vmatprep.subr.mxu0 0.0
        %4232 = vmatpush1.msra.mxu0 %v2659
        %4233 = vmatprep.subr.mxu0 0.0
        %4234 = vmatpush1.msra.mxu0 %v2658
        %4235 = vmatprep.subr.mxu0 0.0
        %4236 = vmatpush1.msra.mxu0 %v2657
        %4237 = vmatprep.subr.mxu0 0.0
        %4238 = vmatpush1.msra.mxu0 %v2656
        %4239 = vmatprep.subr.mxu0 0.0
        %4240 = vmatpush1.msra.mxu0 %v2655
        %4241 = vmatprep.subr.mxu0 0.0
        %4242 = vmatpush1.msra.mxu0 %v2654
        %4243 = vmatprep.subr.mxu0 0.0
        %4244 = vmatpush1.msra.mxu0 %v2653
        %4245 = vmatprep.subr.mxu0 0.0
        %4246 = vmatpush1.msra.mxu0 %v2652
        %4247 = vmatprep.subr.mxu0 0.0
        %4248 = vmatpush1.msra.mxu0 %v2651
        %4249 = vmatprep.subr.mxu0 0.0
        %4250 = vmatpush1.msra.mxu0 %v2650
        %4251 = vmatprep.subr.mxu0 0.0
        %4252 = vmatpush1.msra.mxu0 %v2649
        %4253 = vmatprep.subr.mxu0 0.0
        %4254 = vmatpush1.msra.mxu0 %v2648
        %4255 = vmatprep.subr.mxu0 0.0
        %4256 = vmatpush2.msra.mxu0 0.0
        %4257 = vmatprep.subr.mxu0 0.0
        %4258 = vmatpush2.msra.mxu0 0.0
        %4259 = vmatprep.subr.mxu0 0.0
        %4260 = vmatpush2.msra.mxu0 0.0
        %4261 = vmatprep.subr.mxu0 0.0
        %4262 = vmatpush2.msra.mxu0 0.0
        %4263 = vmatprep.subr.mxu0 0.0
        %4264 = vmatpush2.msra.mxu0 0.0
        %4265 = vmatprep.subr.mxu0 0.0
        %4266 = vmatpush2.msra.mxu0 0.0
        %4267 = vmatprep.subr.mxu0 0.0
        %4268 = vmatpush2.msra.mxu0 0.0
        %4269 = vmatprep.subr.mxu0 0.0
        %4270 = vmatpush2.msra.mxu0 0.0
        %4271 = vmatprep.subr.mxu0 0.0
        %4272 = vmatpush2.msra.mxu0 0.0
        %4273 = vmatprep.subr.mxu0 0.0
        %4274 = vmatpush2.msra.mxu0 0.0
        %4275 = vmatprep.subr.mxu0 0.0
        %4276 = vmatpush2.msra.mxu0 0.0
        %4277 = vmatprep.subr.mxu0 0.0
        %4278 = vmatpush2.msra.mxu0 0.0
        %4279 = vmatprep.subr.mxu0 0.0
        %4280 = vmatpush2.msra.mxu0 0.0
        %4281 = vmatprep.subr.mxu0 0.0
        %4282 = vmatpush2.msra.mxu0 0.0
        %4283 = vmatprep.subr.mxu0 0.0
        %4284 = vmatpush2.msra.mxu0 0.0
        %4285 = vmatprep.subr.mxu0 0.0
        %4286 = vmatpush2.msra.mxu0 0.0
        %4287 = vmatprep.mubr.f32.mxu0 0.0
        %4288 = vmatmul.mubr.f32.gmra.mxu0 %v4207
        %v4289 = vpop.f32.mrf.mxu0
        %v4290 = vadd.f32 0.0, %v4289
        %v4291 = vpop.f32.mrf.mxu0
        %4292 = vmatprep.mubr.f32.mxu0 0.0
        %4293 = vmatmul.mubr.f32.gmra.mxu0 %v4208
        %v4294 = vpop.f32.mrf.mxu0
        %v4295 = vadd.f32 0.0, %v4294
        %v4296 = vpop.f32.mrf.mxu0
        %4297 = vmatprep.mubr.f32.mxu0 0.0
        %4298 = vmatmul.mubr.f32.gmra.mxu0 %v4209
        %v4299 = vpop.f32.mrf.mxu0
        %v4300 = vadd.f32 0.0, %v4299
        %v4301 = vpop.f32.mrf.mxu0
        %4302 = vmatprep.mubr.f32.mxu0 0.0
        %4303 = vmatmul.mubr.f32.gmra.mxu0 %v4210
        %v4304 = vpop.f32.mrf.mxu0
        %v4305 = vadd.f32 0.0, %v4304
        %v4306 = vpop.f32.mrf.mxu0
        %4307 = vmatprep.mubr.f32.mxu0 0.0
        %4308 = vmatmul.mubr.f32.gmra.mxu0 %v4211
        %v4309 = vpop.f32.mrf.mxu0
        %v4310 = vadd.f32 0.0, %v4309
        %v4311 = vpop.f32.mrf.mxu0
        %4312 = vmatprep.mubr.f32.mxu0 0.0
        %4313 = vmatmul.mubr.f32.gmra.mxu0 %v4212
        %v4314 = vpop.f32.mrf.mxu0
        %v4315 = vadd.f32 0.0, %v4314
        %v4316 = vpop.f32.mrf.mxu0
        %4317 = vmatprep.mubr.f32.mxu0 0.0
        %4318 = vmatmul.mubr.f32.gmra.mxu0 %v4213
        %v4319 = vpop.f32.mrf.mxu0
        %v4320 = vadd.f32 0.0, %v4319
        %v4321 = vpop.f32.mrf.mxu0
        %4322 = vmatprep.mubr.f32.mxu0 0.0
        %4323 = vmatmul.mubr.f32.gmra.mxu0 %v4214
        %v4324 = vpop.f32.mrf.mxu0
        %v4325 = vadd.f32 0.0, %v4324
        %v4326 = vpop.f32.mrf.mxu0
        %4327 = vmatprep.mubr.f32.mxu0 0.0
        %4328 = vmatmul.mubr.f32.gmra.mxu0 %v4215
        %v4329 = vpop.f32.mrf.mxu0
        %v4330 = vadd.f32 0.0, %v4329
        %v4331 = vpop.f32.mrf.mxu0
        %4332 = vmatprep.mubr.f32.mxu0 0.0
        %4333 = vmatmul.mubr.f32.gmra.mxu0 %v4216
        %v4334 = vpop.f32.mrf.mxu0
        %v4335 = vadd.f32 0.0, %v4334
        %v4336 = vpop.f32.mrf.mxu0
        %4337 = vmatprep.mubr.f32.mxu0 0.0
        %4338 = vmatmul.mubr.f32.gmra.mxu0 %v4217
        %v4339 = vpop.f32.mrf.mxu0
        %v4340 = vadd.f32 0.0, %v4339
        %v4341 = vpop.f32.mrf.mxu0
        %4342 = vmatprep.mubr.f32.mxu0 0.0
        %4343 = vmatmul.mubr.f32.gmra.mxu0 %v4218
        %v4344 = vpop.f32.mrf.mxu0
        %v4345 = vadd.f32 0.0, %v4344
        %v4346 = vpop.f32.mrf.mxu0
        %4347 = vmatprep.mubr.f32.mxu0 0.0
        %4348 = vmatmul.mubr.f32.gmra.mxu0 %v4219
        %v4349 = vpop.f32.mrf.mxu0
        %v4350 = vadd.f32 0.0, %v4349
        %v4351 = vpop.f32.mrf.mxu0
        %4352 = vmatprep.mubr.f32.mxu0 0.0
        %4353 = vmatmul.mubr.f32.gmra.mxu0 %v4220
        %v4354 = vpop.f32.mrf.mxu0
        %v4355 = vadd.f32 0.0, %v4354
        %v4356 = vpop.f32.mrf.mxu0
        %4357 = vmatprep.mubr.f32.mxu0 0.0
        %4358 = vmatmul.mubr.f32.gmra.mxu0 %v4221
        %v4359 = vpop.f32.mrf.mxu0
        %v4360 = vadd.f32 0.0, %v4359
        %v4361 = vpop.f32.mrf.mxu0
        %4362 = vmatprep.mubr.f32.mxu0 0.0
        %4363 = vmatmul.mubr.f32.gmra.mxu0 %v4222
        %v4364 = vpop.f32.mrf.mxu0
        %v4365 = vadd.f32 0.0, %v4364
        %v4366 = vpop.f32.mrf.mxu0
        %4367 = vdwg.mxu0
        %v4368 = vsub.f32 %v713, 2.95
        %v4369 = vsub.f32 %v720, 2.95
        %v4370 = vsub.f32 %v727, 2.95
        %v4371 = vsub.f32 %v734, 2.95
        %v4372 = vsub.f32 %v741, 2.95
        %v4373 = vsub.f32 %v748, 2.95
        %v4374 = vsub.f32 %v755, 2.95
        %v4375 = vsub.f32 %v762, 2.95
        %v4376 = vsub.f32 %v769, 2.95
        %v4377 = vsub.f32 %v776, 2.95
        %v4378 = vsub.f32 %v783, 2.95
        %v4379 = vsub.f32 %v790, 2.95
        %v4380 = vsub.f32 %v797, 2.95
        %v4381 = vsub.f32 %v804, 2.95
        %v4382 = vsub.f32 %v811, 2.95
        %v4383 = vsub.f32 %v818, 2.95
        %v4384 = vmul.f32 %v4368, -19.7
        %v4385 = vmul.f32 %v4369, -19.7
        %v4386 = vmul.f32 %v4370, -19.7
        %v4387 = vmul.f32 %v4371, -19.7
        %v4388 = vmul.f32 %v4372, -19.7
        %v4389 = vmul.f32 %v4373, -19.7
        %v4390 = vmul.f32 %v4374, -19.7
        %v4391 = vmul.f32 %v4375, -19.7
        %v4392 = vmul.f32 %v4376, -19.7
        %v4393 = vmul.f32 %v4377, -19.7
        %v4394 = vmul.f32 %v4378, -19.7
        %v4395 = vmul.f32 %v4379, -19.7
        %v4396 = vmul.f32 %v4380, -19.7
        %v4397 = vmul.f32 %v4381, -19.7
        %v4398 = vmul.f32 %v4382, -19.7
        %v4399 = vmul.f32 %v4383, -19.7
        %v4400 = vmul.f32 %v4384, %v4368
        %v4401 = vmul.f32 %v4385, %v4369
        %v4402 = vmul.f32 %v4386, %v4370
        %v4403 = vmul.f32 %v4387, %v4371
        %v4404 = vmul.f32 %v4388, %v4372
        %v4405 = vmul.f32 %v4389, %v4373
        %v4406 = vmul.f32 %v4390, %v4374
        %v4407 = vmul.f32 %v4391, %v4375
        %v4408 = vmul.f32 %v4392, %v4376
        %v4409 = vmul.f32 %v4393, %v4377
        %v4410 = vmul.f32 %v4394, %v4378
        %v4411 = vmul.f32 %v4395, %v4379
        %v4412 = vmul.f32 %v4396, %v4380
        %v4413 = vmul.f32 %v4397, %v4381
        %v4414 = vmul.f32 %v4398, %v4382
        %v4415 = vmul.f32 %v4399, %v4383
        %v4416 = vmul.f32 %v4400, 1.442695
        %v4417 = vpow.pop %v4416
        %v4418 = vmul.f32 %v4401, 1.442695
        %v4419 = vpow.pop %v4418
        %v4420 = vmul.f32 %v4402, 1.442695
        %v4421 = vpow.pop %v4420
        %v4422 = vmul.f32 %v4403, 1.442695
        %v4423 = vpow.pop %v4422
        %v4424 = vmul.f32 %v4404, 1.442695
        %v4425 = vpow.pop %v4424
        %v4426 = vmul.f32 %v4405, 1.442695
        %v4427 = vpow.pop %v4426
        %v4428 = vmul.f32 %v4406, 1.442695
        %v4429 = vpow.pop %v4428
        %v4430 = vmul.f32 %v4407, 1.442695
        %v4431 = vpow.pop %v4430
        %v4432 = vmul.f32 %v4408, 1.442695
        %v4433 = vpow.pop %v4432
        %v4434 = vmul.f32 %v4409, 1.442695
        %v4435 = vpow.pop %v4434
        %v4436 = vmul.f32 %v4410, 1.442695
        %v4437 = vpow.pop %v4436
        %v4438 = vmul.f32 %v4411, 1.442695
        %v4439 = vpow.pop %v4438
        %v4440 = vmul.f32 %v4412, 1.442695
        %v4441 = vpow.pop %v4440
        %v4442 = vmul.f32 %v4413, 1.442695
        %v4443 = vpow.pop %v4442
        %v4444 = vmul.f32 %v4414, 1.442695
        %v4445 = vpow.pop %v4444
        %v4446 = vmul.f32 %v4415, 1.442695
        %v4447 = vpow.pop %v4446
        %v4448 = vmul.f32 %v4417, %v2632
        %v4449 = vmul.f32 %v4419, %v2633
        %v4450 = vmul.f32 %v4421, %v2634
        %v4451 = vmul.f32 %v4423, %v2635
        %v4452 = vmul.f32 %v4425, %v2636
        %v4453 = vmul.f32 %v4427, %v2637
        %v4454 = vmul.f32 %v4429, %v2638
        %v4455 = vmul.f32 %v4431, %v2639
        %v4456 = vmul.f32 %v4433, %v2640
        %v4457 = vmul.f32 %v4435, %v2641
        %v4458 = vmul.f32 %v4437, %v2642
        %v4459 = vmul.f32 %v4439, %v2643
        %v4460 = vmul.f32 %v4441, %v2644
        %v4461 = vmul.f32 %v4443, %v2645
        %v4462 = vmul.f32 %v4445, %v2646
        %v4463 = vmul.f32 %v4447, %v2647
        %4464 = vmatprep.subr.mxu0 0.0
        %4465 = vmatpush1.msra.mxu0 %v2663
        %4466 = vmatprep.subr.mxu0 0.0
        %4467 = vmatpush1.msra.mxu0 %v2662
        %4468 = vmatprep.subr.mxu0 0.0
        %4469 = vmatpush1.msra.mxu0 %v2661
        %4470 = vmatprep.subr.mxu0 0.0
        %4471 = vmatpush1.msra.mxu0 %v2660
        %4472 = vmatprep.subr.mxu0 0.0
        %4473 = vmatpush1.msra.mxu0 %v2659
        %4474 = vmatprep.subr.mxu0 0.0
        %4475 = vmatpush1.msra.mxu0 %v2658
        %4476 = vmatprep.subr.mxu0 0.0
        %4477 = vmatpush1.msra.mxu0 %v2657
        %4478 = vmatprep.subr.mxu0 0.0
        %4479 = vmatpush1.msra.mxu0 %v2656
        %4480 = vmatprep.subr.mxu0 0.0
        %4481 = vmatpush1.msra.mxu0 %v2655
        %4482 = vmatprep.subr.mxu0 0.0
        %4483 = vmatpush1.msra.mxu0 %v2654
        %4484 = vmatprep.subr.mxu0 0.0
        %4485 = vmatpush1.msra.mxu0 %v2653
        %4486 = vmatprep.subr.mxu0 0.0
        %4487 = vmatpush1.msra.mxu0 %v2652
        %4488 = vmatprep.subr.mxu0 0.0
        %4489 = vmatpush1.msra.mxu0 %v2651
        %4490 = vmatprep.subr.mxu0 0.0
        %4491 = vmatpush1.msra.mxu0 %v2650
        %4492 = vmatprep.subr.mxu0 0.0
        %4493 = vmatpush1.msra.mxu0 %v2649
        %4494 = vmatprep.subr.mxu0 0.0
        %4495 = vmatpush1.msra.mxu0 %v2648
        %4496 = vmatprep.subr.mxu0 0.0
        %4497 = vmatpush2.msra.mxu0 0.0
        %4498 = vmatprep.subr.mxu0 0.0
        %4499 = vmatpush2.msra.mxu0 0.0
        %4500 = vmatprep.subr.mxu0 0.0
        %4501 = vmatpush2.msra.mxu0 0.0
        %4502 = vmatprep.subr.mxu0 0.0
        %4503 = vmatpush2.msra.mxu0 0.0
        %4504 = vmatprep.subr.mxu0 0.0
        %4505 = vmatpush2.msra.mxu0 0.0
        %4506 = vmatprep.subr.mxu0 0.0
        %4507 = vmatpush2.msra.mxu0 0.0
        %4508 = vmatprep.subr.mxu0 0.0
        %4509 = vmatpush2.msra.mxu0 0.0
        %4510 = vmatprep.subr.mxu0 0.0
        %4511 = vmatpush2.msra.mxu0 0.0
        %4512 = vmatprep.subr.mxu0 0.0
        %4513 = vmatpush2.msra.mxu0 0.0
        %4514 = vmatprep.subr.mxu0 0.0
        %4515 = vmatpush2.msra.mxu0 0.0
        %4516 = vmatprep.subr.mxu0 0.0
        %4517 = vmatpush2.msra.mxu0 0.0
        %4518 = vmatprep.subr.mxu0 0.0
        %4519 = vmatpush2.msra.mxu0 0.0
        %4520 = vmatprep.subr.mxu0 0.0
        %4521 = vmatpush2.msra.mxu0 0.0
        %4522 = vmatprep.subr.mxu0 0.0
        %4523 = vmatpush2.msra.mxu0 0.0
        %4524 = vmatprep.subr.mxu0 0.0
        %4525 = vmatpush2.msra.mxu0 0.0
        %4526 = vmatprep.subr.mxu0 0.0
        %4527 = vmatpush2.msra.mxu0 0.0
        %4528 = vmatprep.mubr.f32.mxu0 0.0
        %4529 = vmatmul.mubr.f32.gmra.mxu0 %v4448
        %v4530 = vpop.f32.mrf.mxu0
        %v4531 = vadd.f32 0.0, %v4530
        %v4532 = vpop.f32.mrf.mxu0
        %4533 = vmatprep.mubr.f32.mxu0 0.0
        %4534 = vmatmul.mubr.f32.gmra.mxu0 %v4449
        %v4535 = vpop.f32.mrf.mxu0
        %v4536 = vadd.f32 0.0, %v4535
        %v4537 = vpop.f32.mrf.mxu0
        %4538 = vmatprep.mubr.f32.mxu0 0.0
        %4539 = vmatmul.mubr.f32.gmra.mxu0 %v4450
        %v4540 = vpop.f32.mrf.mxu0
        %v4541 = vadd.f32 0.0, %v4540
        %v4542 = vpop.f32.mrf.mxu0
        %4543 = vmatprep.mubr.f32.mxu0 0.0
        %4544 = vmatmul.mubr.f32.gmra.mxu0 %v4451
        %v4545 = vpop.f32.mrf.mxu0
        %v4546 = vadd.f32 0.0, %v4545
        %v4547 = vpop.f32.mrf.mxu0
        %4548 = vmatprep.mubr.f32.mxu0 0.0
        %4549 = vmatmul.mubr.f32.gmra.mxu0 %v4452
        %v4550 = vpop.f32.mrf.mxu0
        %v4551 = vadd.f32 0.0, %v4550
        %v4552 = vpop.f32.mrf.mxu0
        %4553 = vmatprep.mubr.f32.mxu0 0.0
        %4554 = vmatmul.mubr.f32.gmra.mxu0 %v4453
        %v4555 = vpop.f32.mrf.mxu0
        %v4556 = vadd.f32 0.0, %v4555
        %v4557 = vpop.f32.mrf.mxu0
        %4558 = vmatprep.mubr.f32.mxu0 0.0
        %4559 = vmatmul.mubr.f32.gmra.mxu0 %v4454
        %v4560 = vpop.f32.mrf.mxu0
        %v4561 = vadd.f32 0.0, %v4560
        %v4562 = vpop.f32.mrf.mxu0
        %4563 = vmatprep.mubr.f32.mxu0 0.0
        %4564 = vmatmul.mubr.f32.gmra.mxu0 %v4455
        %v4565 = vpop.f32.mrf.mxu0
        %v4566 = vadd.f32 0.0, %v4565
        %v4567 = vpop.f32.mrf.mxu0
        %4568 = vmatprep.mubr.f32.mxu0 0.0
        %4569 = vmatmul.mubr.f32.gmra.mxu0 %v4456
        %v4570 = vpop.f32.mrf.mxu0
        %v4571 = vadd.f32 0.0, %v4570
        %v4572 = vpop.f32.mrf.mxu0
        %4573 = vmatprep.mubr.f32.mxu0 0.0
        %4574 = vmatmul.mubr.f32.gmra.mxu0 %v4457
        %v4575 = vpop.f32.mrf.mxu0
        %v4576 = vadd.f32 0.0, %v4575
        %v4577 = vpop.f32.mrf.mxu0
        %4578 = vmatprep.mubr.f32.mxu0 0.0
        %4579 = vmatmul.mubr.f32.gmra.mxu0 %v4458
        %v4580 = vpop.f32.mrf.mxu0
        %v4581 = vadd.f32 0.0, %v4580
        %v4582 = vpop.f32.mrf.mxu0
        %4583 = vmatprep.mubr.f32.mxu0 0.0
        %4584 = vmatmul.mubr.f32.gmra.mxu0 %v4459
        %v4585 = vpop.f32.mrf.mxu0
        %v4586 = vadd.f32 0.0, %v4585
        %v4587 = vpop.f32.mrf.mxu0
        %4588 = vmatprep.mubr.f32.mxu0 0.0
        %4589 = vmatmul.mubr.f32.gmra.mxu0 %v4460
        %v4590 = vpop.f32.mrf.mxu0
        %v4591 = vadd.f32 0.0, %v4590
        %v4592 = vpop.f32.mrf.mxu0
        %4593 = vmatprep.mubr.f32.mxu0 0.0
        %4594 = vmatmul.mubr.f32.gmra.mxu0 %v4461
        %v4595 = vpop.f32.mrf.mxu0
        %v4596 = vadd.f32 0.0, %v4595
        %v4597 = vpop.f32.mrf.mxu0
        %4598 = vmatprep.mubr.f32.mxu0 0.0
        %4599 = vmatmul.mubr.f32.gmra.mxu0 %v4462
        %v4600 = vpop.f32.mrf.mxu0
        %v4601 = vadd.f32 0.0, %v4600
        %v4602 = vpop.f32.mrf.mxu0
        %4603 = vmatprep.mubr.f32.mxu0 0.0
        %4604 = vmatmul.mubr.f32.gmra.mxu0 %v4463
        %v4605 = vpop.f32.mrf.mxu0
        %v4606 = vadd.f32 0.0, %v4605
        %v4607 = vpop.f32.mrf.mxu0
        %4608 = vdwg.mxu0
        %v4609 = vmul.f32 %v4417, %v2697
        %v4610 = vmul.f32 %v4419, %v2699
        %v4611 = vmul.f32 %v4421, %v2701
        %v4612 = vmul.f32 %v4423, %v2703
        %v4613 = vmul.f32 %v4425, %v2705
        %v4614 = vmul.f32 %v4427, %v2707
        %v4615 = vmul.f32 %v4429, %v2709
        %v4616 = vmul.f32 %v4431, %v2711
        %v4617 = vmul.f32 %v4433, %v2713
        %v4618 = vmul.f32 %v4435, %v2715
        %v4619 = vmul.f32 %v4437, %v2717
        %v4620 = vmul.f32 %v4439, %v2719
        %v4621 = vmul.f32 %v4441, %v2721
        %v4622 = vmul.f32 %v4443, %v2723
        %v4623 = vmul.f32 %v4445, %v2725
        %v4624 = vmul.f32 %v4447, %v2727
        %v4625 = vmul.f32 %v4609, 6.5476134e-15
        %v4626 = vmul.f32 %v4610, 6.5476134e-15
        %v4627 = vmul.f32 %v4611, 6.5476134e-15
        %v4628 = vmul.f32 %v4612, 6.5476134e-15
        %v4629 = vmul.f32 %v4613, 6.5476134e-15
        %v4630 = vmul.f32 %v4614, 6.5476134e-15
        %v4631 = vmul.f32 %v4615, 6.5476134e-15
        %v4632 = vmul.f32 %v4616, 6.5476134e-15
        %v4633 = vmul.f32 %v4617, 6.5476134e-15
        %v4634 = vmul.f32 %v4618, 6.5476134e-15
        %v4635 = vmul.f32 %v4619, 6.5476134e-15
        %v4636 = vmul.f32 %v4620, 6.5476134e-15
        %v4637 = vmul.f32 %v4621, 6.5476134e-15
        %v4638 = vmul.f32 %v4622, 6.5476134e-15
        %v4639 = vmul.f32 %v4623, 6.5476134e-15
        %v4640 = vmul.f32 %v4624, 6.5476134e-15
        %v4641 = vmul.f32 %v4625, %v2632
        %v4642 = vmul.f32 %v4626, %v2633
        %v4643 = vmul.f32 %v4627, %v2634
        %v4644 = vmul.f32 %v4628, %v2635
        %v4645 = vmul.f32 %v4629, %v2636
        %v4646 = vmul.f32 %v4630, %v2637
        %v4647 = vmul.f32 %v4631, %v2638
        %v4648 = vmul.f32 %v4632, %v2639
        %v4649 = vmul.f32 %v4633, %v2640
        %v4650 = vmul.f32 %v4634, %v2641
        %v4651 = vmul.f32 %v4635, %v2642
        %v4652 = vmul.f32 %v4636, %v2643
        %v4653 = vmul.f32 %v4637, %v2644
        %v4654 = vmul.f32 %v4638, %v2645
        %v4655 = vmul.f32 %v4639, %v2646
        %v4656 = vmul.f32 %v4640, %v2647
        %4657 = vmatprep.subr.mxu0 0.0
        %4658 = vmatpush1.msra.mxu0 %v2663
        %4659 = vmatprep.subr.mxu0 0.0
        %4660 = vmatpush1.msra.mxu0 %v2662
        %4661 = vmatprep.subr.mxu0 0.0
        %4662 = vmatpush1.msra.mxu0 %v2661
        %4663 = vmatprep.subr.mxu0 0.0
        %4664 = vmatpush1.msra.mxu0 %v2660
        %4665 = vmatprep.subr.mxu0 0.0
        %4666 = vmatpush1.msra.mxu0 %v2659
        %4667 = vmatprep.subr.mxu0 0.0
        %4668 = vmatpush1.msra.mxu0 %v2658
        %4669 = vmatprep.subr.mxu0 0.0
        %4670 = vmatpush1.msra.mxu0 %v2657
        %4671 = vmatprep.subr.mxu0 0.0
        %4672 = vmatpush1.msra.mxu0 %v2656
        %4673 = vmatprep.subr.mxu0 0.0
        %4674 = vmatpush1.msra.mxu0 %v2655
        %4675 = vmatprep.subr.mxu0 0.0
        %4676 = vmatpush1.msra.mxu0 %v2654
        %4677 = vmatprep.subr.mxu0 0.0
        %4678 = vmatpush1.msra.mxu0 %v2653
        %4679 = vmatprep.subr.mxu0 0.0
        %4680 = vmatpush1.msra.mxu0 %v2652
        %4681 = vmatprep.subr.mxu0 0.0
        %4682 = vmatpush1.msra.mxu0 %v2651
        %4683 = vmatprep.subr.mxu0 0.0
        %4684 = vmatpush1.msra.mxu0 %v2650
        %4685 = vmatprep.subr.mxu0 0.0
        %4686 = vmatpush1.msra.mxu0 %v2649
        %4687 = vmatprep.subr.mxu0 0.0
        %4688 = vmatpush1.msra.mxu0 %v2648
        %4689 = vmatprep.subr.mxu0 0.0
        %4690 = vmatpush2.msra.mxu0 0.0
        %4691 = vmatprep.subr.mxu0 0.0
        %4692 = vmatpush2.msra.mxu0 0.0
        %4693 = vmatprep.subr.mxu0 0.0
        %4694 = vmatpush2.msra.mxu0 0.0
        %4695 = vmatprep.subr.mxu0 0.0
        %4696 = vmatpush2.msra.mxu0 0.0
        %4697 = vmatprep.subr.mxu0 0.0
        %4698 = vmatpush2.msra.mxu0 0.0
        %4699 = vmatprep.subr.mxu0 0.0
        %4700 = vmatpush2.msra.mxu0 0.0
        %4701 = vmatprep.subr.mxu0 0.0
        %4702 = vmatpush2.msra.mxu0 0.0
        %4703 = vmatprep.subr.mxu0 0.0
        %4704 = vmatpush2.msra.mxu0 0.0
        %4705 = vmatprep.subr.mxu0 0.0
        %4706 = vmatpush2.msra.mxu0 0.0
        %4707 = vmatprep.subr.mxu0 0.0
        %4708 = vmatpush2.msra.mxu0 0.0
        %4709 = vmatprep.subr.mxu0 0.0
        %4710 = vmatpush2.msra.mxu0 0.0
        %4711 = vmatprep.subr.mxu0 0.0
        %4712 = vmatpush2.msra.mxu0 0.0
        %4713 = vmatprep.subr.mxu0 0.0
        %4714 = vmatpush2.msra.mxu0 0.0
        %4715 = vmatprep.subr.mxu0 0.0
        %4716 = vmatpush2.msra.mxu0 0.0
        %4717 = vmatprep.subr.mxu0 0.0
        %4718 = vmatpush2.msra.mxu0 0.0
        %4719 = vmatprep.subr.mxu0 0.0
        %4720 = vmatpush2.msra.mxu0 0.0
        %4721 = vmatprep.mubr.f32.mxu0 0.0
        %4722 = vmatmul.mubr.f32.gmra.mxu0 %v4641
        %v4723 = vpop.f32.mrf.mxu0
        %v4724 = vadd.f32 0.0, %v4723
        %v4725 = vpop.f32.mrf.mxu0
        %4726 = vmatprep.mubr.f32.mxu0 0.0
        %4727 = vmatmul.mubr.f32.gmra.mxu0 %v4642
        %v4728 = vpop.f32.mrf.mxu0
        %v4729 = vadd.f32 0.0, %v4728
        %v4730 = vpop.f32.mrf.mxu0
        %4731 = vmatprep.mubr.f32.mxu0 0.0
        %4732 = vmatmul.mubr.f32.gmra.mxu0 %v4643
        %v4733 = vpop.f32.mrf.mxu0
        %v4734 = vadd.f32 0.0, %v4733
        %v4735 = vpop.f32.mrf.mxu0
        %4736 = vmatprep.mubr.f32.mxu0 0.0
        %4737 = vmatmul.mubr.f32.gmra.mxu0 %v4644
        %v4738 = vpop.f32.mrf.mxu0
        %v4739 = vadd.f32 0.0, %v4738
        %v4740 = vpop.f32.mrf.mxu0
        %4741 = vmatprep.mubr.f32.mxu0 0.0
        %4742 = vmatmul.mubr.f32.gmra.mxu0 %v4645
        %v4743 = vpop.f32.mrf.mxu0
        %v4744 = vadd.f32 0.0, %v4743
        %v4745 = vpop.f32.mrf.mxu0
        %4746 = vmatprep.mubr.f32.mxu0 0.0
        %4747 = vmatmul.mubr.f32.gmra.mxu0 %v4646
        %v4748 = vpop.f32.mrf.mxu0
        %v4749 = vadd.f32 0.0, %v4748
        %v4750 = vpop.f32.mrf.mxu0
        %4751 = vmatprep.mubr.f32.mxu0 0.0
        %4752 = vmatmul.mubr.f32.gmra.mxu0 %v4647
        %v4753 = vpop.f32.mrf.mxu0
        %v4754 = vadd.f32 0.0, %v4753
        %v4755 = vpop.f32.mrf.mxu0
        %4756 = vmatprep.mubr.f32.mxu0 0.0
        %4757 = vmatmul.mubr.f32.gmra.mxu0 %v4648
        %v4758 = vpop.f32.mrf.mxu0
        %v4759 = vadd.f32 0.0, %v4758
        %v4760 = vpop.f32.mrf.mxu0
        %4761 = vmatprep.mubr.f32.mxu0 0.0
        %4762 = vmatmul.mubr.f32.gmra.mxu0 %v4649
        %v4763 = vpop.f32.mrf.mxu0
        %v4764 = vadd.f32 0.0, %v4763
        %v4765 = vpop.f32.mrf.mxu0
        %4766 = vmatprep.mubr.f32.mxu0 0.0
        %4767 = vmatmul.mubr.f32.gmra.mxu0 %v4650
        %v4768 = vpop.f32.mrf.mxu0
        %v4769 = vadd.f32 0.0, %v4768
        %v4770 = vpop.f32.mrf.mxu0
        %4771 = vmatprep.mubr.f32.mxu0 0.0
        %4772 = vmatmul.mubr.f32.gmra.mxu0 %v4651
        %v4773 = vpop.f32.mrf.mxu0
        %v4774 = vadd.f32 0.0, %v4773
        %v4775 = vpop.f32.mrf.mxu0
        %4776 = vmatprep.mubr.f32.mxu0 0.0
        %4777 = vmatmul.mubr.f32.gmra.mxu0 %v4652
        %v4778 = vpop.f32.mrf.mxu0
        %v4779 = vadd.f32 0.0, %v4778
        %v4780 = vpop.f32.mrf.mxu0
        %4781 = vmatprep.mubr.f32.mxu0 0.0
        %4782 = vmatmul.mubr.f32.gmra.mxu0 %v4653
        %v4783 = vpop.f32.mrf.mxu0
        %v4784 = vadd.f32 0.0, %v4783
        %v4785 = vpop.f32.mrf.mxu0
        %4786 = vmatprep.mubr.f32.mxu0 0.0
        %4787 = vmatmul.mubr.f32.gmra.mxu0 %v4654
        %v4788 = vpop.f32.mrf.mxu0
        %v4789 = vadd.f32 0.0, %v4788
        %v4790 = vpop.f32.mrf.mxu0
        %4791 = vmatprep.mubr.f32.mxu0 0.0
        %4792 = vmatmul.mubr.f32.gmra.mxu0 %v4655
        %v4793 = vpop.f32.mrf.mxu0
        %v4794 = vadd.f32 0.0, %v4793
        %v4795 = vpop.f32.mrf.mxu0
        %4796 = vmatprep.mubr.f32.mxu0 0.0
        %4797 = vmatmul.mubr.f32.gmra.mxu0 %v4656
        %v4798 = vpop.f32.mrf.mxu0
        %v4799 = vadd.f32 0.0, %v4798
        %v4800 = vpop.f32.mrf.mxu0
        %4801 = vdwg.mxu0
        %v4802 = vmul.f32 %v4625, %v2697
        %v4803 = vmul.f32 %v4626, %v2699
        %v4804 = vmul.f32 %v4627, %v2701
        %v4805 = vmul.f32 %v4628, %v2703
        %v4806 = vmul.f32 %v4629, %v2705
        %v4807 = vmul.f32 %v4630, %v2707
        %v4808 = vmul.f32 %v4631, %v2709
        %v4809 = vmul.f32 %v4632, %v2711
        %v4810 = vmul.f32 %v4633, %v2713
        %v4811 = vmul.f32 %v4634, %v2715
        %v4812 = vmul.f32 %v4635, %v2717
        %v4813 = vmul.f32 %v4636, %v2719
        %v4814 = vmul.f32 %v4637, %v2721
        %v4815 = vmul.f32 %v4638, %v2723
        %v4816 = vmul.f32 %v4639, %v2725
        %v4817 = vmul.f32 %v4640, %v2727
        %v4818 = vmul.f32 %v4802, 3.8036425e-16
        %v4819 = vmul.f32 %v4803, 3.8036425e-16
        %v4820 = vmul.f32 %v4804, 3.8036425e-16
        %v4821 = vmul.f32 %v4805, 3.8036425e-16
        %v4822 = vmul.f32 %v4806, 3.8036425e-16
        %v4823 = vmul.f32 %v4807, 3.8036425e-16
        %v4824 = vmul.f32 %v4808, 3.8036425e-16
        %v4825 = vmul.f32 %v4809, 3.8036425e-16
        %v4826 = vmul.f32 %v4810, 3.8036425e-16
        %v4827 = vmul.f32 %v4811, 3.8036425e-16
        %v4828 = vmul.f32 %v4812, 3.8036425e-16
        %v4829 = vmul.f32 %v4813, 3.8036425e-16
        %v4830 = vmul.f32 %v4814, 3.8036425e-16
        %v4831 = vmul.f32 %v4815, 3.8036425e-16
        %v4832 = vmul.f32 %v4816, 3.8036425e-16
        %v4833 = vmul.f32 %v4817, 3.8036425e-16
        %v4834 = vmul.f32 %v4818, %v2632
        %v4835 = vmul.f32 %v4819, %v2633
        %v4836 = vmul.f32 %v4820, %v2634
        %v4837 = vmul.f32 %v4821, %v2635
        %v4838 = vmul.f32 %v4822, %v2636
        %v4839 = vmul.f32 %v4823, %v2637
        %v4840 = vmul.f32 %v4824, %v2638
        %v4841 = vmul.f32 %v4825, %v2639
        %v4842 = vmul.f32 %v4826, %v2640
        %v4843 = vmul.f32 %v4827, %v2641
        %v4844 = vmul.f32 %v4828, %v2642
        %v4845 = vmul.f32 %v4829, %v2643
        %v4846 = vmul.f32 %v4830, %v2644
        %v4847 = vmul.f32 %v4831, %v2645
        %v4848 = vmul.f32 %v4832, %v2646
        %v4849 = vmul.f32 %v4833, %v2647
        %4850 = vmatprep.subr.mxu0 0.0
        %4851 = vmatpush1.msra.mxu0 %v2663
        %4852 = vmatprep.subr.mxu0 0.0
        %4853 = vmatpush1.msra.mxu0 %v2662
        %4854 = vmatprep.subr.mxu0 0.0
        %4855 = vmatpush1.msra.mxu0 %v2661
        %4856 = vmatprep.subr.mxu0 0.0
        %4857 = vmatpush1.msra.mxu0 %v2660
        %4858 = vmatprep.subr.mxu0 0.0
        %4859 = vmatpush1.msra.mxu0 %v2659
        %4860 = vmatprep.subr.mxu0 0.0
        %4861 = vmatpush1.msra.mxu0 %v2658
        %4862 = vmatprep.subr.mxu0 0.0
        %4863 = vmatpush1.msra.mxu0 %v2657
        %4864 = vmatprep.subr.mxu0 0.0
        %4865 = vmatpush1.msra.mxu0 %v2656
        %4866 = vmatprep.subr.mxu0 0.0
        %4867 = vmatpush1.msra.mxu0 %v2655
        %4868 = vmatprep.subr.mxu0 0.0
        %4869 = vmatpush1.msra.mxu0 %v2654
        %4870 = vmatprep.subr.mxu0 0.0
        %4871 = vmatpush1.msra.mxu0 %v2653
        %4872 = vmatprep.subr.mxu0 0.0
        %4873 = vmatpush1.msra.mxu0 %v2652
        %4874 = vmatprep.subr.mxu0 0.0
        %4875 = vmatpush1.msra.mxu0 %v2651
        %4876 = vmatprep.subr.mxu0 0.0
        %4877 = vmatpush1.msra.mxu0 %v2650
        %4878 = vmatprep.subr.mxu0 0.0
        %4879 = vmatpush1.msra.mxu0 %v2649
        %4880 = vmatprep.subr.mxu0 0.0
        %4881 = vmatpush1.msra.mxu0 %v2648
        %4882 = vmatprep.subr.mxu0 0.0
        %4883 = vmatpush2.msra.mxu0 0.0
        %4884 = vmatprep.subr.mxu0 0.0
        %4885 = vmatpush2.msra.mxu0 0.0
        %4886 = vmatprep.subr.mxu0 0.0
        %4887 = vmatpush2.msra.mxu0 0.0
        %4888 = vmatprep.subr.mxu0 0.0
        %4889 = vmatpush2.msra.mxu0 0.0
        %4890 = vmatprep.subr.mxu0 0.0
        %4891 = vmatpush2.msra.mxu0 0.0
        %4892 = vmatprep.subr.mxu0 0.0
        %4893 = vmatpush2.msra.mxu0 0.0
        %4894 = vmatprep.subr.mxu0 0.0
        %4895 = vmatpush2.msra.mxu0 0.0
        %4896 = vmatprep.subr.mxu0 0.0
        %4897 = vmatpush2.msra.mxu0 0.0
        %4898 = vmatprep.subr.mxu0 0.0
        %4899 = vmatpush2.msra.mxu0 0.0
        %4900 = vmatprep.subr.mxu0 0.0
        %4901 = vmatpush2.msra.mxu0 0.0
        %4902 = vmatprep.subr.mxu0 0.0
        %4903 = vmatpush2.msra.mxu0 0.0
        %4904 = vmatprep.subr.mxu0 0.0
        %4905 = vmatpush2.msra.mxu0 0.0
        %4906 = vmatprep.subr.mxu0 0.0
        %4907 = vmatpush2.msra.mxu0 0.0
        %4908 = vmatprep.subr.mxu0 0.0
        %4909 = vmatpush2.msra.mxu0 0.0
        %4910 = vmatprep.subr.mxu0 0.0
        %4911 = vmatpush2.msra.mxu0 0.0
        %4912 = vmatprep.subr.mxu0 0.0
        %4913 = vmatpush2.msra.mxu0 0.0
        %4914 = vmatprep.mubr.f32.mxu0 0.0
        %4915 = vmatmul.mubr.f32.gmra.mxu0 %v4834
        %v4916 = vpop.f32.mrf.mxu0
        %v4917 = vadd.f32 0.0, %v4916
        %v4918 = vpop.f32.mrf.mxu0
        %4919 = vmatprep.mubr.f32.mxu0 0.0
        %4920 = vmatmul.mubr.f32.gmra.mxu0 %v4835
        %v4921 = vpop.f32.mrf.mxu0
        %v4922 = vadd.f32 0.0, %v4921
        %v4923 = vpop.f32.mrf.mxu0
        %4924 = vmatprep.mubr.f32.mxu0 0.0
        %4925 = vmatmul.mubr.f32.gmra.mxu0 %v4836
        %v4926 = vpop.f32.mrf.mxu0
        %v4927 = vadd.f32 0.0, %v4926
        %v4928 = vpop.f32.mrf.mxu0
        %4929 = vmatprep.mubr.f32.mxu0 0.0
        %4930 = vmatmul.mubr.f32.gmra.mxu0 %v4837
        %v4931 = vpop.f32.mrf.mxu0
        %v4932 = vadd.f32 0.0, %v4931
        %v4933 = vpop.f32.mrf.mxu0
        %4934 = vmatprep.mubr.f32.mxu0 0.0
        %4935 = vmatmul.mubr.f32.gmra.mxu0 %v4838
        %v4936 = vpop.f32.mrf.mxu0
        %v4937 = vadd.f32 0.0, %v4936
        %v4938 = vpop.f32.mrf.mxu0
        %4939 = vmatprep.mubr.f32.mxu0 0.0
        %4940 = vmatmul.mubr.f32.gmra.mxu0 %v4839
        %v4941 = vpop.f32.mrf.mxu0
        %v4942 = vadd.f32 0.0, %v4941
        %v4943 = vpop.f32.mrf.mxu0
        %4944 = vmatprep.mubr.f32.mxu0 0.0
        %4945 = vmatmul.mubr.f32.gmra.mxu0 %v4840
        %v4946 = vpop.f32.mrf.mxu0
        %v4947 = vadd.f32 0.0, %v4946
        %v4948 = vpop.f32.mrf.mxu0
        %4949 = vmatprep.mubr.f32.mxu0 0.0
        %4950 = vmatmul.mubr.f32.gmra.mxu0 %v4841
        %v4951 = vpop.f32.mrf.mxu0
        %v4952 = vadd.f32 0.0, %v4951
        %v4953 = vpop.f32.mrf.mxu0
        %4954 = vmatprep.mubr.f32.mxu0 0.0
        %4955 = vmatmul.mubr.f32.gmra.mxu0 %v4842
        %v4956 = vpop.f32.mrf.mxu0
        %v4957 = vadd.f32 0.0, %v4956
        %v4958 = vpop.f32.mrf.mxu0
        %4959 = vmatprep.mubr.f32.mxu0 0.0
        %4960 = vmatmul.mubr.f32.gmra.mxu0 %v4843
        %v4961 = vpop.f32.mrf.mxu0
        %v4962 = vadd.f32 0.0, %v4961
        %v4963 = vpop.f32.mrf.mxu0
        %4964 = vmatprep.mubr.f32.mxu0 0.0
        %4965 = vmatmul.mubr.f32.gmra.mxu0 %v4844
        %v4966 = vpop.f32.mrf.mxu0
        %v4967 = vadd.f32 0.0, %v4966
        %v4968 = vpop.f32.mrf.mxu0
        %4969 = vmatprep.mubr.f32.mxu0 0.0
        %4970 = vmatmul.mubr.f32.gmra.mxu0 %v4845
        %v4971 = vpop.f32.mrf.mxu0
        %v4972 = vadd.f32 0.0, %v4971
        %v4973 = vpop.f32.mrf.mxu0
        %4974 = vmatprep.mubr.f32.mxu0 0.0
        %4975 = vmatmul.mubr.f32.gmra.mxu0 %v4846
        %v4976 = vpop.f32.mrf.mxu0
        %v4977 = vadd.f32 0.0, %v4976
        %v4978 = vpop.f32.mrf.mxu0
        %4979 = vmatprep.mubr.f32.mxu0 0.0
        %4980 = vmatmul.mubr.f32.gmra.mxu0 %v4847
        %v4981 = vpop.f32.mrf.mxu0
        %v4982 = vadd.f32 0.0, %v4981
        %v4983 = vpop.f32.mrf.mxu0
        %4984 = vmatprep.mubr.f32.mxu0 0.0
        %4985 = vmatmul.mubr.f32.gmra.mxu0 %v4848
        %v4986 = vpop.f32.mrf.mxu0
        %v4987 = vadd.f32 0.0, %v4986
        %v4988 = vpop.f32.mrf.mxu0
        %4989 = vmatprep.mubr.f32.mxu0 0.0
        %4990 = vmatmul.mubr.f32.gmra.mxu0 %v4849
        %v4991 = vpop.f32.mrf.mxu0
        %v4992 = vadd.f32 0.0, %v4991
        %v4993 = vpop.f32.mrf.mxu0
        %4994 = vdwg.mxu0
        %v4995 = vmul.f32 %v4818, %v2697
        %v4996 = vmul.f32 %v4819, %v2699
        %v4997 = vmul.f32 %v4820, %v2701
        %v4998 = vmul.f32 %v4821, %v2703
        %v4999 = vmul.f32 %v4822, %v2705
        %v5000 = vmul.f32 %v4823, %v2707
        %v5001 = vmul.f32 %v4824, %v2709
        %v5002 = vmul.f32 %v4825, %v2711
        %v5003 = vmul.f32 %v4826, %v2713
        %v5004 = vmul.f32 %v4827, %v2715
        %v5005 = vmul.f32 %v4828, %v2717
        %v5006 = vmul.f32 %v4829, %v2719
        %v5007 = vmul.f32 %v4830, %v2721
        %v5008 = vmul.f32 %v4831, %v2723
        %v5009 = vmul.f32 %v4832, %v2725
        %v5010 = vmul.f32 %v4833, %v2727
        %v5011 = vmul.f32 %v4995, 2.2096137e-17
        %v5012 = vmul.f32 %v4996, 2.2096137e-17
        %v5013 = vmul.f32 %v4997, 2.2096137e-17
        %v5014 = vmul.f32 %v4998, 2.2096137e-17
        %v5015 = vmul.f32 %v4999, 2.2096137e-17
        %v5016 = vmul.f32 %v5000, 2.2096137e-17
        %v5017 = vmul.f32 %v5001, 2.2096137e-17
        %v5018 = vmul.f32 %v5002, 2.2096137e-17
        %v5019 = vmul.f32 %v5003, 2.2096137e-17
        %v5020 = vmul.f32 %v5004, 2.2096137e-17
        %v5021 = vmul.f32 %v5005, 2.2096137e-17
        %v5022 = vmul.f32 %v5006, 2.2096137e-17
        %v5023 = vmul.f32 %v5007, 2.2096137e-17
        %v5024 = vmul.f32 %v5008, 2.2096137e-17
        %v5025 = vmul.f32 %v5009, 2.2096137e-17
        %v5026 = vmul.f32 %v5010, 2.2096137e-17
        %v5027 = vmul.f32 %v5011, %v2632
        %v5028 = vmul.f32 %v5012, %v2633
        %v5029 = vmul.f32 %v5013, %v2634
        %v5030 = vmul.f32 %v5014, %v2635
        %v5031 = vmul.f32 %v5015, %v2636
        %v5032 = vmul.f32 %v5016, %v2637
        %v5033 = vmul.f32 %v5017, %v2638
        %v5034 = vmul.f32 %v5018, %v2639
        %v5035 = vmul.f32 %v5019, %v2640
        %v5036 = vmul.f32 %v5020, %v2641
        %v5037 = vmul.f32 %v5021, %v2642
        %v5038 = vmul.f32 %v5022, %v2643
        %v5039 = vmul.f32 %v5023, %v2644
        %v5040 = vmul.f32 %v5024, %v2645
        %v5041 = vmul.f32 %v5025, %v2646
        %v5042 = vmul.f32 %v5026, %v2647
        %5043 = vmatprep.subr.mxu0 0.0
        %5044 = vmatpush1.msra.mxu0 %v2663
        %5045 = vmatprep.subr.mxu0 0.0
        %5046 = vmatpush1.msra.mxu0 %v2662
        %5047 = vmatprep.subr.mxu0 0.0
        %5048 = vmatpush1.msra.mxu0 %v2661
        %5049 = vmatprep.subr.mxu0 0.0
        %5050 = vmatpush1.msra.mxu0 %v2660
        %5051 = vmatprep.subr.mxu0 0.0
        %5052 = vmatpush1.msra.mxu0 %v2659
        %5053 = vmatprep.subr.mxu0 0.0
        %5054 = vmatpush1.msra.mxu0 %v2658
        %5055 = vmatprep.subr.mxu0 0.0
        %5056 = vmatpush1.msra.mxu0 %v2657
        %5057 = vmatprep.subr.mxu0 0.0
        %5058 = vmatpush1.msra.mxu0 %v2656
        %5059 = vmatprep.subr.mxu0 0.0
        %5060 = vmatpush1.msra.mxu0 %v2655
        %5061 = vmatprep.subr.mxu0 0.0
        %5062 = vmatpush1.msra.mxu0 %v2654
        %5063 = vmatprep.subr.mxu0 0.0
        %5064 = vmatpush1.msra.mxu0 %v2653
        %5065 = vmatprep.subr.mxu0 0.0
        %5066 = vmatpush1.msra.mxu0 %v2652
        %5067 = vmatprep.subr.mxu0 0.0
        %5068 = vmatpush1.msra.mxu0 %v2651
        %5069 = vmatprep.subr.mxu0 0.0
        %5070 = vmatpush1.msra.mxu0 %v2650
        %5071 = vmatprep.subr.mxu0 0.0
        %5072 = vmatpush1.msra.mxu0 %v2649
        %5073 = vmatprep.subr.mxu0 0.0
        %5074 = vmatpush1.msra.mxu0 %v2648
        %5075 = vmatprep.subr.mxu0 0.0
        %5076 = vmatpush2.msra.mxu0 0.0
        %5077 = vmatprep.subr.mxu0 0.0
        %5078 = vmatpush2.msra.mxu0 0.0
        %5079 = vmatprep.subr.mxu0 0.0
        %5080 = vmatpush2.msra.mxu0 0.0
        %5081 = vmatprep.subr.mxu0 0.0
        %5082 = vmatpush2.msra.mxu0 0.0
        %5083 = vmatprep.subr.mxu0 0.0
        %5084 = vmatpush2.msra.mxu0 0.0
        %5085 = vmatprep.subr.mxu0 0.0
        %5086 = vmatpush2.msra.mxu0 0.0
        %5087 = vmatprep.subr.mxu0 0.0
        %5088 = vmatpush2.msra.mxu0 0.0
        %5089 = vmatprep.subr.mxu0 0.0
        %5090 = vmatpush2.msra.mxu0 0.0
        %5091 = vmatprep.subr.mxu0 0.0
        %5092 = vmatpush2.msra.mxu0 0.0
        %5093 = vmatprep.subr.mxu0 0.0
        %5094 = vmatpush2.msra.mxu0 0.0
        %5095 = vmatprep.subr.mxu0 0.0
        %5096 = vmatpush2.msra.mxu0 0.0
        %5097 = vmatprep.subr.mxu0 0.0
        %5098 = vmatpush2.msra.mxu0 0.0
        %5099 = vmatprep.subr.mxu0 0.0
        %5100 = vmatpush2.msra.mxu0 0.0
        %5101 = vmatprep.subr.mxu0 0.0
        %5102 = vmatpush2.msra.mxu0 0.0
        %5103 = vmatprep.subr.mxu0 0.0
        %5104 = vmatpush2.msra.mxu0 0.0
        %5105 = vmatprep.subr.mxu0 0.0
        %5106 = vmatpush2.msra.mxu0 0.0
        %5107 = vmatprep.mubr.f32.mxu0 0.0
        %5108 = vmatmul.mubr.f32.gmra.mxu0 %v5027
        %v5109 = vpop.f32.mrf.mxu0
        %v5110 = vadd.f32 0.0, %v5109
        %v5111 = vpop.f32.mrf.mxu0
        %5112 = vmatprep.mubr.f32.mxu0 0.0
        %5113 = vmatmul.mubr.f32.gmra.mxu0 %v5028
        %v5114 = vpop.f32.mrf.mxu0
        %v5115 = vadd.f32 0.0, %v5114
        %v5116 = vpop.f32.mrf.mxu0
        %5117 = vmatprep.mubr.f32.mxu0 0.0
        %5118 = vmatmul.mubr.f32.gmra.mxu0 %v5029
        %v5119 = vpop.f32.mrf.mxu0
        %v5120 = vadd.f32 0.0, %v5119
        %v5121 = vpop.f32.mrf.mxu0
        %5122 = vmatprep.mubr.f32.mxu0 0.0
        %5123 = vmatmul.mubr.f32.gmra.mxu0 %v5030
        %v5124 = vpop.f32.mrf.mxu0
        %v5125 = vadd.f32 0.0, %v5124
        %v5126 = vpop.f32.mrf.mxu0
        %5127 = vmatprep.mubr.f32.mxu0 0.0
        %5128 = vmatmul.mubr.f32.gmra.mxu0 %v5031
        %v5129 = vpop.f32.mrf.mxu0
        %v5130 = vadd.f32 0.0, %v5129
        %v5131 = vpop.f32.mrf.mxu0
        %5132 = vmatprep.mubr.f32.mxu0 0.0
        %5133 = vmatmul.mubr.f32.gmra.mxu0 %v5032
        %v5134 = vpop.f32.mrf.mxu0
        %v5135 = vadd.f32 0.0, %v5134
        %v5136 = vpop.f32.mrf.mxu0
        %5137 = vmatprep.mubr.f32.mxu0 0.0
        %5138 = vmatmul.mubr.f32.gmra.mxu0 %v5033
        %v5139 = vpop.f32.mrf.mxu0
        %v5140 = vadd.f32 0.0, %v5139
        %v5141 = vpop.f32.mrf.mxu0
        %5142 = vmatprep.mubr.f32.mxu0 0.0
        %5143 = vmatmul.mubr.f32.gmra.mxu0 %v5034
        %v5144 = vpop.f32.mrf.mxu0
        %v5145 = vadd.f32 0.0, %v5144
        %v5146 = vpop.f32.mrf.mxu0
        %5147 = vmatprep.mubr.f32.mxu0 0.0
        %5148 = vmatmul.mubr.f32.gmra.mxu0 %v5035
        %v5149 = vpop.f32.mrf.mxu0
        %v5150 = vadd.f32 0.0, %v5149
        %v5151 = vpop.f32.mrf.mxu0
        %5152 = vmatprep.mubr.f32.mxu0 0.0
        %5153 = vmatmul.mubr.f32.gmra.mxu0 %v5036
        %v5154 = vpop.f32.mrf.mxu0
        %v5155 = vadd.f32 0.0, %v5154
        %v5156 = vpop.f32.mrf.mxu0
        %5157 = vmatprep.mubr.f32.mxu0 0.0
        %5158 = vmatmul.mubr.f32.gmra.mxu0 %v5037
        %v5159 = vpop.f32.mrf.mxu0
        %v5160 = vadd.f32 0.0, %v5159
        %v5161 = vpop.f32.mrf.mxu0
        %5162 = vmatprep.mubr.f32.mxu0 0.0
        %5163 = vmatmul.mubr.f32.gmra.mxu0 %v5038
        %v5164 = vpop.f32.mrf.mxu0
        %v5165 = vadd.f32 0.0, %v5164
        %v5166 = vpop.f32.mrf.mxu0
        %5167 = vmatprep.mubr.f32.mxu0 0.0
        %5168 = vmatmul.mubr.f32.gmra.mxu0 %v5039
        %v5169 = vpop.f32.mrf.mxu0
        %v5170 = vadd.f32 0.0, %v5169
        %v5171 = vpop.f32.mrf.mxu0
        %5172 = vmatprep.mubr.f32.mxu0 0.0
        %5173 = vmatmul.mubr.f32.gmra.mxu0 %v5040
        %v5174 = vpop.f32.mrf.mxu0
        %v5175 = vadd.f32 0.0, %v5174
        %v5176 = vpop.f32.mrf.mxu0
        %5177 = vmatprep.mubr.f32.mxu0 0.0
        %5178 = vmatmul.mubr.f32.gmra.mxu0 %v5041
        %v5179 = vpop.f32.mrf.mxu0
        %v5180 = vadd.f32 0.0, %v5179
        %v5181 = vpop.f32.mrf.mxu0
        %5182 = vmatprep.mubr.f32.mxu0 0.0
        %5183 = vmatmul.mubr.f32.gmra.mxu0 %v5042
        %v5184 = vpop.f32.mrf.mxu0
        %v5185 = vadd.f32 0.0, %v5184
        %v5186 = vpop.f32.mrf.mxu0
        %5187 = vdwg.mxu0
        %v5188 = vsub.f32 %v713, 4.025
        %v5189 = vsub.f32 %v720, 4.025
        %v5190 = vsub.f32 %v727, 4.025
        %v5191 = vsub.f32 %v734, 4.025
        %v5192 = vsub.f32 %v741, 4.025
        %v5193 = vsub.f32 %v748, 4.025
        %v5194 = vsub.f32 %v755, 4.025
        %v5195 = vsub.f32 %v762, 4.025
        %v5196 = vsub.f32 %v769, 4.025
        %v5197 = vsub.f32 %v776, 4.025
        %v5198 = vsub.f32 %v783, 4.025
        %v5199 = vsub.f32 %v790, 4.025
        %v5200 = vsub.f32 %v797, 4.025
        %v5201 = vsub.f32 %v804, 4.025
        %v5202 = vsub.f32 %v811, 4.025
        %v5203 = vsub.f32 %v818, 4.025
        %v5204 = vmul.f32 %v5188, -19.7
        %v5205 = vmul.f32 %v5189, -19.7
        %v5206 = vmul.f32 %v5190, -19.7
        %v5207 = vmul.f32 %v5191, -19.7
        %v5208 = vmul.f32 %v5192, -19.7
        %v5209 = vmul.f32 %v5193, -19.7
        %v5210 = vmul.f32 %v5194, -19.7
        %v5211 = vmul.f32 %v5195, -19.7
        %v5212 = vmul.f32 %v5196, -19.7
        %v5213 = vmul.f32 %v5197, -19.7
        %v5214 = vmul.f32 %v5198, -19.7
        %v5215 = vmul.f32 %v5199, -19.7
        %v5216 = vmul.f32 %v5200, -19.7
        %v5217 = vmul.f32 %v5201, -19.7
        %v5218 = vmul.f32 %v5202, -19.7
        %v5219 = vmul.f32 %v5203, -19.7
        %v5220 = vmul.f32 %v5204, %v5188
        %v5221 = vmul.f32 %v5205, %v5189
        %v5222 = vmul.f32 %v5206, %v5190
        %v5223 = vmul.f32 %v5207, %v5191
        %v5224 = vmul.f32 %v5208, %v5192
        %v5225 = vmul.f32 %v5209, %v5193
        %v5226 = vmul.f32 %v5210, %v5194
        %v5227 = vmul.f32 %v5211, %v5195
        %v5228 = vmul.f32 %v5212, %v5196
        %v5229 = vmul.f32 %v5213, %v5197
        %v5230 = vmul.f32 %v5214, %v5198
        %v5231 = vmul.f32 %v5215, %v5199
        %v5232 = vmul.f32 %v5216, %v5200
        %v5233 = vmul.f32 %v5217, %v5201
        %v5234 = vmul.f32 %v5218, %v5202
        %v5235 = vmul.f32 %v5219, %v5203
        %v5236 = vmul.f32 %v5220, 1.442695
        %v5237 = vpow.pop %v5236
        %v5238 = vmul.f32 %v5221, 1.442695
        %v5239 = vpow.pop %v5238
        %v5240 = vmul.f32 %v5222, 1.442695
        %v5241 = vpow.pop %v5240
        %v5242 = vmul.f32 %v5223, 1.442695
        %v5243 = vpow.pop %v5242
        %v5244 = vmul.f32 %v5224, 1.442695
        %v5245 = vpow.pop %v5244
        %v5246 = vmul.f32 %v5225, 1.442695
        %v5247 = vpow.pop %v5246
        %v5248 = vmul.f32 %v5226, 1.442695
        %v5249 = vpow.pop %v5248
        %v5250 = vmul.f32 %v5227, 1.442695
        %v5251 = vpow.pop %v5250
        %v5252 = vmul.f32 %v5228, 1.442695
        %v5253 = vpow.pop %v5252
        %v5254 = vmul.f32 %v5229, 1.442695
        %v5255 = vpow.pop %v5254
        %v5256 = vmul.f32 %v5230, 1.442695
        %v5257 = vpow.pop %v5256
        %v5258 = vmul.f32 %v5231, 1.442695
        %v5259 = vpow.pop %v5258
        %v5260 = vmul.f32 %v5232, 1.442695
        %v5261 = vpow.pop %v5260
        %v5262 = vmul.f32 %v5233, 1.442695
        %v5263 = vpow.pop %v5262
        %v5264 = vmul.f32 %v5234, 1.442695
        %v5265 = vpow.pop %v5264
        %v5266 = vmul.f32 %v5235, 1.442695
        %v5267 = vpow.pop %v5266
        %v5268 = vmul.f32 %v5237, %v2632
        %v5269 = vmul.f32 %v5239, %v2633
        %v5270 = vmul.f32 %v5241, %v2634
        %v5271 = vmul.f32 %v5243, %v2635
        %v5272 = vmul.f32 %v5245, %v2636
        %v5273 = vmul.f32 %v5247, %v2637
        %v5274 = vmul.f32 %v5249, %v2638
        %v5275 = vmul.f32 %v5251, %v2639
        %v5276 = vmul.f32 %v5253, %v2640
        %v5277 = vmul.f32 %v5255, %v2641
        %v5278 = vmul.f32 %v5257, %v2642
        %v5279 = vmul.f32 %v5259, %v2643
        %v5280 = vmul.f32 %v5261, %v2644
        %v5281 = vmul.f32 %v5263, %v2645
        %v5282 = vmul.f32 %v5265, %v2646
        %v5283 = vmul.f32 %v5267, %v2647
        %5284 = vmatprep.subr.mxu0 0.0
        %5285 = vmatpush1.msra.mxu0 %v2663
        %5286 = vmatprep.subr.mxu0 0.0
        %5287 = vmatpush1.msra.mxu0 %v2662
        %5288 = vmatprep.subr.mxu0 0.0
        %5289 = vmatpush1.msra.mxu0 %v2661
        %5290 = vmatprep.subr.mxu0 0.0
        %5291 = vmatpush1.msra.mxu0 %v2660
        %5292 = vmatprep.subr.mxu0 0.0
        %5293 = vmatpush1.msra.mxu0 %v2659
        %5294 = vmatprep.subr.mxu0 0.0
        %5295 = vmatpush1.msra.mxu0 %v2658
        %5296 = vmatprep.subr.mxu0 0.0
        %5297 = vmatpush1.msra.mxu0 %v2657
        %5298 = vmatprep.subr.mxu0 0.0
        %5299 = vmatpush1.msra.mxu0 %v2656
        %5300 = vmatprep.subr.mxu0 0.0
        %5301 = vmatpush1.msra.mxu0 %v2655
        %5302 = vmatprep.subr.mxu0 0.0
        %5303 = vmatpush1.msra.mxu0 %v2654
        %5304 = vmatprep.subr.mxu0 0.0
        %5305 = vmatpush1.msra.mxu0 %v2653
        %5306 = vmatprep.subr.mxu0 0.0
        %5307 = vmatpush1.msra.mxu0 %v2652
        %5308 = vmatprep.subr.mxu0 0.0
        %5309 = vmatpush1.msra.mxu0 %v2651
        %5310 = vmatprep.subr.mxu0 0.0
        %5311 = vmatpush1.msra.mxu0 %v2650
        %5312 = vmatprep.subr.mxu0 0.0
        %5313 = vmatpush1.msra.mxu0 %v2649
        %5314 = vmatprep.subr.mxu0 0.0
        %5315 = vmatpush1.msra.mxu0 %v2648
        %5316 = vmatprep.subr.mxu0 0.0
        %5317 = vmatpush2.msra.mxu0 0.0
        %5318 = vmatprep.subr.mxu0 0.0
        %5319 = vmatpush2.msra.mxu0 0.0
        %5320 = vmatprep.subr.mxu0 0.0
        %5321 = vmatpush2.msra.mxu0 0.0
        %5322 = vmatprep.subr.mxu0 0.0
        %5323 = vmatpush2.msra.mxu0 0.0
        %5324 = vmatprep.subr.mxu0 0.0
        %5325 = vmatpush2.msra.mxu0 0.0
        %5326 = vmatprep.subr.mxu0 0.0
        %5327 = vmatpush2.msra.mxu0 0.0
        %5328 = vmatprep.subr.mxu0 0.0
        %5329 = vmatpush2.msra.mxu0 0.0
        %5330 = vmatprep.subr.mxu0 0.0
        %5331 = vmatpush2.msra.mxu0 0.0
        %5332 = vmatprep.subr.mxu0 0.0
        %5333 = vmatpush2.msra.mxu0 0.0
        %5334 = vmatprep.subr.mxu0 0.0
        %5335 = vmatpush2.msra.mxu0 0.0
        %5336 = vmatprep.subr.mxu0 0.0
        %5337 = vmatpush2.msra.mxu0 0.0
        %5338 = vmatprep.subr.mxu0 0.0
        %5339 = vmatpush2.msra.mxu0 0.0
        %5340 = vmatprep.subr.mxu0 0.0
        %5341 = vmatpush2.msra.mxu0 0.0
        %5342 = vmatprep.subr.mxu0 0.0
        %5343 = vmatpush2.msra.mxu0 0.0
        %5344 = vmatprep.subr.mxu0 0.0
        %5345 = vmatpush2.msra.mxu0 0.0
        %5346 = vmatprep.subr.mxu0 0.0
        %5347 = vmatpush2.msra.mxu0 0.0
        %5348 = vmatprep.mubr.f32.mxu0 0.0
        %5349 = vmatmul.mubr.f32.gmra.mxu0 %v5268
        %v5350 = vpop.f32.mrf.mxu0
        %v5351 = vadd.f32 0.0, %v5350
        %v5352 = vpop.f32.mrf.mxu0
        %5353 = vmatprep.mubr.f32.mxu0 0.0
        %5354 = vmatmul.mubr.f32.gmra.mxu0 %v5269
        %v5355 = vpop.f32.mrf.mxu0
        %v5356 = vadd.f32 0.0, %v5355
        %v5357 = vpop.f32.mrf.mxu0
        %5358 = vmatprep.mubr.f32.mxu0 0.0
        %5359 = vmatmul.mubr.f32.gmra.mxu0 %v5270
        %v5360 = vpop.f32.mrf.mxu0
        %v5361 = vadd.f32 0.0, %v5360
        %v5362 = vpop.f32.mrf.mxu0
        %5363 = vmatprep.mubr.f32.mxu0 0.0
        %5364 = vmatmul.mubr.f32.gmra.mxu0 %v5271
        %v5365 = vpop.f32.mrf.mxu0
        %v5366 = vadd.f32 0.0, %v5365
        %v5367 = vpop.f32.mrf.mxu0
        %5368 = vmatprep.mubr.f32.mxu0 0.0
        %5369 = vmatmul.mubr.f32.gmra.mxu0 %v5272
        %v5370 = vpop.f32.mrf.mxu0
        %v5371 = vadd.f32 0.0, %v5370
        %v5372 = vpop.f32.mrf.mxu0
        %5373 = vmatprep.mubr.f32.mxu0 0.0
        %5374 = vmatmul.mubr.f32.gmra.mxu0 %v5273
        %v5375 = vpop.f32.mrf.mxu0
        %v5376 = vadd.f32 0.0, %v5375
        %v5377 = vpop.f32.mrf.mxu0
        %5378 = vmatprep.mubr.f32.mxu0 0.0
        %5379 = vmatmul.mubr.f32.gmra.mxu0 %v5274
        %v5380 = vpop.f32.mrf.mxu0
        %v5381 = vadd.f32 0.0, %v5380
        %v5382 = vpop.f32.mrf.mxu0
        %5383 = vmatprep.mubr.f32.mxu0 0.0
        %5384 = vmatmul.mubr.f32.gmra.mxu0 %v5275
        %v5385 = vpop.f32.mrf.mxu0
        %v5386 = vadd.f32 0.0, %v5385
        %v5387 = vpop.f32.mrf.mxu0
        %5388 = vmatprep.mubr.f32.mxu0 0.0
        %5389 = vmatmul.mubr.f32.gmra.mxu0 %v5276
        %v5390 = vpop.f32.mrf.mxu0
        %v5391 = vadd.f32 0.0, %v5390
        %v5392 = vpop.f32.mrf.mxu0
        %5393 = vmatprep.mubr.f32.mxu0 0.0
        %5394 = vmatmul.mubr.f32.gmra.mxu0 %v5277
        %v5395 = vpop.f32.mrf.mxu0
        %v5396 = vadd.f32 0.0, %v5395
        %v5397 = vpop.f32.mrf.mxu0
        %5398 = vmatprep.mubr.f32.mxu0 0.0
        %5399 = vmatmul.mubr.f32.gmra.mxu0 %v5278
        %v5400 = vpop.f32.mrf.mxu0
        %v5401 = vadd.f32 0.0, %v5400
        %v5402 = vpop.f32.mrf.mxu0
        %5403 = vmatprep.mubr.f32.mxu0 0.0
        %5404 = vmatmul.mubr.f32.gmra.mxu0 %v5279
        %v5405 = vpop.f32.mrf.mxu0
        %v5406 = vadd.f32 0.0, %v5405
        %v5407 = vpop.f32.mrf.mxu0
        %5408 = vmatprep.mubr.f32.mxu0 0.0
        %5409 = vmatmul.mubr.f32.gmra.mxu0 %v5280
        %v5410 = vpop.f32.mrf.mxu0
        %v5411 = vadd.f32 0.0, %v5410
        %v5412 = vpop.f32.mrf.mxu0
        %5413 = vmatprep.mubr.f32.mxu0 0.0
        %5414 = vmatmul.mubr.f32.gmra.mxu0 %v5281
        %v5415 = vpop.f32.mrf.mxu0
        %v5416 = vadd.f32 0.0, %v5415
        %v5417 = vpop.f32.mrf.mxu0
        %5418 = vmatprep.mubr.f32.mxu0 0.0
        %5419 = vmatmul.mubr.f32.gmra.mxu0 %v5282
        %v5420 = vpop.f32.mrf.mxu0
        %v5421 = vadd.f32 0.0, %v5420
        %v5422 = vpop.f32.mrf.mxu0
        %5423 = vmatprep.mubr.f32.mxu0 0.0
        %5424 = vmatmul.mubr.f32.gmra.mxu0 %v5283
        %v5425 = vpop.f32.mrf.mxu0
        %v5426 = vadd.f32 0.0, %v5425
        %v5427 = vpop.f32.mrf.mxu0
        %5428 = vdwg.mxu0
        %v5429 = vmul.f32 %v5237, %v2697
        %v5430 = vmul.f32 %v5239, %v2699
        %v5431 = vmul.f32 %v5241, %v2701
        %v5432 = vmul.f32 %v5243, %v2703
        %v5433 = vmul.f32 %v5245, %v2705
        %v5434 = vmul.f32 %v5247, %v2707
        %v5435 = vmul.f32 %v5249, %v2709
        %v5436 = vmul.f32 %v5251, %v2711
        %v5437 = vmul.f32 %v5253, %v2713
        %v5438 = vmul.f32 %v5255, %v2715
        %v5439 = vmul.f32 %v5257, %v2717
        %v5440 = vmul.f32 %v5259, %v2719
        %v5441 = vmul.f32 %v5261, %v2721
        %v5442 = vmul.f32 %v5263, %v2723
        %v5443 = vmul.f32 %v5265, %v2725
        %v5444 = vmul.f32 %v5267, %v2727
        %v5445 = vmul.f32 %v5429, 7.4567515e-20
        %v5446 = vmul.f32 %v5430, 7.4567515e-20
        %v5447 = vmul.f32 %v5431, 7.4567515e-20
        %v5448 = vmul.f32 %v5432, 7.4567515e-20
        %v5449 = vmul.f32 %v5433, 7.4567515e-20
        %v5450 = vmul.f32 %v5434, 7.4567515e-20
        %v5451 = vmul.f32 %v5435, 7.4567515e-20
        %v5452 = vmul.f32 %v5436, 7.4567515e-20
        %v5453 = vmul.f32 %v5437, 7.4567515e-20
        %v5454 = vmul.f32 %v5438, 7.4567515e-20
        %v5455 = vmul.f32 %v5439, 7.4567515e-20
        %v5456 = vmul.f32 %v5440, 7.4567515e-20
        %v5457 = vmul.f32 %v5441, 7.4567515e-20
        %v5458 = vmul.f32 %v5442, 7.4567515e-20
        %v5459 = vmul.f32 %v5443, 7.4567515e-20
        %v5460 = vmul.f32 %v5444, 7.4567515e-20
        %v5461 = vmul.f32 %v5445, %v2632
        %v5462 = vmul.f32 %v5446, %v2633
        %v5463 = vmul.f32 %v5447, %v2634
        %v5464 = vmul.f32 %v5448, %v2635
        %v5465 = vmul.f32 %v5449, %v2636
        %v5466 = vmul.f32 %v5450, %v2637
        %v5467 = vmul.f32 %v5451, %v2638
        %v5468 = vmul.f32 %v5452, %v2639
        %v5469 = vmul.f32 %v5453, %v2640
        %v5470 = vmul.f32 %v5454, %v2641
        %v5471 = vmul.f32 %v5455, %v2642
        %v5472 = vmul.f32 %v5456, %v2643
        %v5473 = vmul.f32 %v5457, %v2644
        %v5474 = vmul.f32 %v5458, %v2645
        %v5475 = vmul.f32 %v5459, %v2646
        %v5476 = vmul.f32 %v5460, %v2647
        %5477 = vmatprep.subr.mxu0 0.0
        %5478 = vmatpush1.msra.mxu0 %v2663
        %5479 = vmatprep.subr.mxu0 0.0
        %5480 = vmatpush1.msra.mxu0 %v2662
        %5481 = vmatprep.subr.mxu0 0.0
        %5482 = vmatpush1.msra.mxu0 %v2661
        %5483 = vmatprep.subr.mxu0 0.0
        %5484 = vmatpush1.msra.mxu0 %v2660
        %5485 = vmatprep.subr.mxu0 0.0
        %5486 = vmatpush1.msra.mxu0 %v2659
        %5487 = vmatprep.subr.mxu0 0.0
        %5488 = vmatpush1.msra.mxu0 %v2658
        %5489 = vmatprep.subr.mxu0 0.0
        %5490 = vmatpush1.msra.mxu0 %v2657
        %5491 = vmatprep.subr.mxu0 0.0
        %5492 = vmatpush1.msra.mxu0 %v2656
        %5493 = vmatprep.subr.mxu0 0.0
        %5494 = vmatpush1.msra.mxu0 %v2655
        %5495 = vmatprep.subr.mxu0 0.0
        %5496 = vmatpush1.msra.mxu0 %v2654
        %5497 = vmatprep.subr.mxu0 0.0
        %5498 = vmatpush1.msra.mxu0 %v2653
        %5499 = vmatprep.subr.mxu0 0.0
        %5500 = vmatpush1.msra.mxu0 %v2652
        %5501 = vmatprep.subr.mxu0 0.0
        %5502 = vmatpush1.msra.mxu0 %v2651
        %5503 = vmatprep.subr.mxu0 0.0
        %5504 = vmatpush1.msra.mxu0 %v2650
        %5505 = vmatprep.subr.mxu0 0.0
        %5506 = vmatpush1.msra.mxu0 %v2649
        %5507 = vmatprep.subr.mxu0 0.0
        %5508 = vmatpush1.msra.mxu0 %v2648
        %5509 = vmatprep.subr.mxu0 0.0
        %5510 = vmatpush2.msra.mxu0 0.0
        %5511 = vmatprep.subr.mxu0 0.0
        %5512 = vmatpush2.msra.mxu0 0.0
        %5513 = vmatprep.subr.mxu0 0.0
        %5514 = vmatpush2.msra.mxu0 0.0
        %5515 = vmatprep.subr.mxu0 0.0
        %5516 = vmatpush2.msra.mxu0 0.0
        %5517 = vmatprep.subr.mxu0 0.0
        %5518 = vmatpush2.msra.mxu0 0.0
        %5519 = vmatprep.subr.mxu0 0.0
        %5520 = vmatpush2.msra.mxu0 0.0
        %5521 = vmatprep.subr.mxu0 0.0
        %5522 = vmatpush2.msra.mxu0 0.0
        %5523 = vmatprep.subr.mxu0 0.0
        %5524 = vmatpush2.msra.mxu0 0.0
        %5525 = vmatprep.subr.mxu0 0.0
        %5526 = vmatpush2.msra.mxu0 0.0
        %5527 = vmatprep.subr.mxu0 0.0
        %5528 = vmatpush2.msra.mxu0 0.0
        %5529 = vmatprep.subr.mxu0 0.0
        %5530 = vmatpush2.msra.mxu0 0.0
        %5531 = vmatprep.subr.mxu0 0.0
        %5532 = vmatpush2.msra.mxu0 0.0
        %5533 = vmatprep.subr.mxu0 0.0
        %5534 = vmatpush2.msra.mxu0 0.0
        %5535 = vmatprep.subr.mxu0 0.0
        %5536 = vmatpush2.msra.mxu0 0.0
        %5537 = vmatprep.subr.mxu0 0.0
        %5538 = vmatpush2.msra.mxu0 0.0
        %5539 = vmatprep.subr.mxu0 0.0
        %5540 = vmatpush2.msra.mxu0 0.0
        %5541 = vmatprep.mubr.f32.mxu0 0.0
        %5542 = vmatmul.mubr.f32.gmra.mxu0 %v5461
        %v5543 = vpop.f32.mrf.mxu0
        %v5544 = vadd.f32 0.0, %v5543
        %v5545 = vpop.f32.mrf.mxu0
        %5546 = vmatprep.mubr.f32.mxu0 0.0
        %5547 = vmatmul.mubr.f32.gmra.mxu0 %v5462
        %v5548 = vpop.f32.mrf.mxu0
        %v5549 = vadd.f32 0.0, %v5548
        %v5550 = vpop.f32.mrf.mxu0
        %5551 = vmatprep.mubr.f32.mxu0 0.0
        %5552 = vmatmul.mubr.f32.gmra.mxu0 %v5463
        %v5553 = vpop.f32.mrf.mxu0
        %v5554 = vadd.f32 0.0, %v5553
        %v5555 = vpop.f32.mrf.mxu0
        %5556 = vmatprep.mubr.f32.mxu0 0.0
        %5557 = vmatmul.mubr.f32.gmra.mxu0 %v5464
        %v5558 = vpop.f32.mrf.mxu0
        %v5559 = vadd.f32 0.0, %v5558
        %v5560 = vpop.f32.mrf.mxu0
        %5561 = vmatprep.mubr.f32.mxu0 0.0
        %5562 = vmatmul.mubr.f32.gmra.mxu0 %v5465
        %v5563 = vpop.f32.mrf.mxu0
        %v5564 = vadd.f32 0.0, %v5563
        %v5565 = vpop.f32.mrf.mxu0
        %5566 = vmatprep.mubr.f32.mxu0 0.0
        %5567 = vmatmul.mubr.f32.gmra.mxu0 %v5466
        %v5568 = vpop.f32.mrf.mxu0
        %v5569 = vadd.f32 0.0, %v5568
        %v5570 = vpop.f32.mrf.mxu0
        %5571 = vmatprep.mubr.f32.mxu0 0.0
        %5572 = vmatmul.mubr.f32.gmra.mxu0 %v5467
        %v5573 = vpop.f32.mrf.mxu0
        %v5574 = vadd.f32 0.0, %v5573
        %v5575 = vpop.f32.mrf.mxu0
        %5576 = vmatprep.mubr.f32.mxu0 0.0
        %5577 = vmatmul.mubr.f32.gmra.mxu0 %v5468
        %v5578 = vpop.f32.mrf.mxu0
        %v5579 = vadd.f32 0.0, %v5578
        %v5580 = vpop.f32.mrf.mxu0
        %5581 = vmatprep.mubr.f32.mxu0 0.0
        %5582 = vmatmul.mubr.f32.gmra.mxu0 %v5469
        %v5583 = vpop.f32.mrf.mxu0
        %v5584 = vadd.f32 0.0, %v5583
        %v5585 = vpop.f32.mrf.mxu0
        %5586 = vmatprep.mubr.f32.mxu0 0.0
        %5587 = vmatmul.mubr.f32.gmra.mxu0 %v5470
        %v5588 = vpop.f32.mrf.mxu0
        %v5589 = vadd.f32 0.0, %v5588
        %v5590 = vpop.f32.mrf.mxu0
        %5591 = vmatprep.mubr.f32.mxu0 0.0
        %5592 = vmatmul.mubr.f32.gmra.mxu0 %v5471
        %v5593 = vpop.f32.mrf.mxu0
        %v5594 = vadd.f32 0.0, %v5593
        %v5595 = vpop.f32.mrf.mxu0
        %5596 = vmatprep.mubr.f32.mxu0 0.0
        %5597 = vmatmul.mubr.f32.gmra.mxu0 %v5472
        %v5598 = vpop.f32.mrf.mxu0
        %v5599 = vadd.f32 0.0, %v5598
        %v5600 = vpop.f32.mrf.mxu0
        %5601 = vmatprep.mubr.f32.mxu0 0.0
        %5602 = vmatmul.mubr.f32.gmra.mxu0 %v5473
        %v5603 = vpop.f32.mrf.mxu0
        %v5604 = vadd.f32 0.0, %v5603
        %v5605 = vpop.f32.mrf.mxu0
        %5606 = vmatprep.mubr.f32.mxu0 0.0
        %5607 = vmatmul.mubr.f32.gmra.mxu0 %v5474
        %v5608 = vpop.f32.mrf.mxu0
        %v5609 = vadd.f32 0.0, %v5608
        %v5610 = vpop.f32.mrf.mxu0
        %5611 = vmatprep.mubr.f32.mxu0 0.0
        %5612 = vmatmul.mubr.f32.gmra.mxu0 %v5475
        %v5613 = vpop.f32.mrf.mxu0
        %v5614 = vadd.f32 0.0, %v5613
        %v5615 = vpop.f32.mrf.mxu0
        %5616 = vmatprep.mubr.f32.mxu0 0.0
        %5617 = vmatmul.mubr.f32.gmra.mxu0 %v5476
        %v5618 = vpop.f32.mrf.mxu0
        %v5619 = vadd.f32 0.0, %v5618
        %v5620 = vpop.f32.mrf.mxu0
        %5621 = vdwg.mxu0
        %v5622 = vmul.f32 %v5445, %v2697
        %v5623 = vmul.f32 %v5446, %v2699
        %v5624 = vmul.f32 %v5447, %v2701
        %v5625 = vmul.f32 %v5448, %v2703
        %v5626 = vmul.f32 %v5449, %v2705
        %v5627 = vmul.f32 %v5450, %v2707
        %v5628 = vmul.f32 %v5451, %v2709
        %v5629 = vmul.f32 %v5452, %v2711
        %v5630 = vmul.f32 %v5453, %v2713
        %v5631 = vmul.f32 %v5454, %v2715
        %v5632 = vmul.f32 %v5455, %v2717
        %v5633 = vmul.f32 %v5456, %v2719
        %v5634 = vmul.f32 %v5457, %v2721
        %v5635 = vmul.f32 %v5458, %v2723
        %v5636 = vmul.f32 %v5459, %v2725
        %v5637 = vmul.f32 %v5460, %v2727
        %v5638 = vmul.f32 %v5622, 4.3317793e-21
        %v5639 = vmul.f32 %v5623, 4.3317793e-21
        %v5640 = vmul.f32 %v5624, 4.3317793e-21
        %v5641 = vmul.f32 %v5625, 4.3317793e-21
        %v5642 = vmul.f32 %v5626, 4.3317793e-21
        %v5643 = vmul.f32 %v5627, 4.3317793e-21
        %v5644 = vmul.f32 %v5628, 4.3317793e-21
        %v5645 = vmul.f32 %v5629, 4.3317793e-21
        %v5646 = vmul.f32 %v5630, 4.3317793e-21
        %v5647 = vmul.f32 %v5631, 4.3317793e-21
        %v5648 = vmul.f32 %v5632, 4.3317793e-21
        %v5649 = vmul.f32 %v5633, 4.3317793e-21
        %v5650 = vmul.f32 %v5634, 4.3317793e-21
        %v5651 = vmul.f32 %v5635, 4.3317793e-21
        %v5652 = vmul.f32 %v5636, 4.3317793e-21
        %v5653 = vmul.f32 %v5637, 4.3317793e-21
        %v5654 = vmul.f32 %v5638, %v2632
        %v5655 = vmul.f32 %v5639, %v2633
        %v5656 = vmul.f32 %v5640, %v2634
        %v5657 = vmul.f32 %v5641, %v2635
        %v5658 = vmul.f32 %v5642, %v2636
        %v5659 = vmul.f32 %v5643, %v2637
        %v5660 = vmul.f32 %v5644, %v2638
        %v5661 = vmul.f32 %v5645, %v2639
        %v5662 = vmul.f32 %v5646, %v2640
        %v5663 = vmul.f32 %v5647, %v2641
        %v5664 = vmul.f32 %v5648, %v2642
        %v5665 = vmul.f32 %v5649, %v2643
        %v5666 = vmul.f32 %v5650, %v2644
        %v5667 = vmul.f32 %v5651, %v2645
        %v5668 = vmul.f32 %v5652, %v2646
        %v5669 = vmul.f32 %v5653, %v2647
        %5670 = vmatprep.subr.mxu0 0.0
        %5671 = vmatpush1.msra.mxu0 %v2663
        %5672 = vmatprep.subr.mxu0 0.0
        %5673 = vmatpush1.msra.mxu0 %v2662
        %5674 = vmatprep.subr.mxu0 0.0
        %5675 = vmatpush1.msra.mxu0 %v2661
        %5676 = vmatprep.subr.mxu0 0.0
        %5677 = vmatpush1.msra.mxu0 %v2660
        %5678 = vmatprep.subr.mxu0 0.0
        %5679 = vmatpush1.msra.mxu0 %v2659
        %5680 = vmatprep.subr.mxu0 0.0
        %5681 = vmatpush1.msra.mxu0 %v2658
        %5682 = vmatprep.subr.mxu0 0.0
        %5683 = vmatpush1.msra.mxu0 %v2657
        %5684 = vmatprep.subr.mxu0 0.0
        %5685 = vmatpush1.msra.mxu0 %v2656
        %5686 = vmatprep.subr.mxu0 0.0
        %5687 = vmatpush1.msra.mxu0 %v2655
        %5688 = vmatprep.subr.mxu0 0.0
        %5689 = vmatpush1.msra.mxu0 %v2654
        %5690 = vmatprep.subr.mxu0 0.0
        %5691 = vmatpush1.msra.mxu0 %v2653
        %5692 = vmatprep.subr.mxu0 0.0
        %5693 = vmatpush1.msra.mxu0 %v2652
        %5694 = vmatprep.subr.mxu0 0.0
        %5695 = vmatpush1.msra.mxu0 %v2651
        %5696 = vmatprep.subr.mxu0 0.0
        %5697 = vmatpush1.msra.mxu0 %v2650
        %5698 = vmatprep.subr.mxu0 0.0
        %5699 = vmatpush1.msra.mxu0 %v2649
        %5700 = vmatprep.subr.mxu0 0.0
        %5701 = vmatpush1.msra.mxu0 %v2648
        %5702 = vmatprep.subr.mxu0 0.0
        %5703 = vmatpush2.msra.mxu0 0.0
        %5704 = vmatprep.subr.mxu0 0.0
        %5705 = vmatpush2.msra.mxu0 0.0
        %5706 = vmatprep.subr.mxu0 0.0
        %5707 = vmatpush2.msra.mxu0 0.0
        %5708 = vmatprep.subr.mxu0 0.0
        %5709 = vmatpush2.msra.mxu0 0.0
        %5710 = vmatprep.subr.mxu0 0.0
        %5711 = vmatpush2.msra.mxu0 0.0
        %5712 = vmatprep.subr.mxu0 0.0
        %5713 = vmatpush2.msra.mxu0 0.0
        %5714 = vmatprep.subr.mxu0 0.0
        %5715 = vmatpush2.msra.mxu0 0.0
        %5716 = vmatprep.subr.mxu0 0.0
        %5717 = vmatpush2.msra.mxu0 0.0
        %5718 = vmatprep.subr.mxu0 0.0
        %5719 = vmatpush2.msra.mxu0 0.0
        %5720 = vmatprep.subr.mxu0 0.0
        %5721 = vmatpush2.msra.mxu0 0.0
        %5722 = vmatprep.subr.mxu0 0.0
        %5723 = vmatpush2.msra.mxu0 0.0
        %5724 = vmatprep.subr.mxu0 0.0
        %5725 = vmatpush2.msra.mxu0 0.0
        %5726 = vmatprep.subr.mxu0 0.0
        %5727 = vmatpush2.msra.mxu0 0.0
        %5728 = vmatprep.subr.mxu0 0.0
        %5729 = vmatpush2.msra.mxu0 0.0
        %5730 = vmatprep.subr.mxu0 0.0
        %5731 = vmatpush2.msra.mxu0 0.0
        %5732 = vmatprep.subr.mxu0 0.0
        %5733 = vmatpush2.msra.mxu0 0.0
        %5734 = vmatprep.mubr.f32.mxu0 0.0
        %5735 = vmatmul.mubr.f32.gmra.mxu0 %v5654
        %v5736 = vpop.f32.mrf.mxu0
        %v5737 = vadd.f32 0.0, %v5736
        %v5738 = vpop.f32.mrf.mxu0
        %5739 = vmatprep.mubr.f32.mxu0 0.0
        %5740 = vmatmul.mubr.f32.gmra.mxu0 %v5655
        %v5741 = vpop.f32.mrf.mxu0
        %v5742 = vadd.f32 0.0, %v5741
        %v5743 = vpop.f32.mrf.mxu0
        %5744 = vmatprep.mubr.f32.mxu0 0.0
        %5745 = vmatmul.mubr.f32.gmra.mxu0 %v5656
        %v5746 = vpop.f32.mrf.mxu0
        %v5747 = vadd.f32 0.0, %v5746
        %v5748 = vpop.f32.mrf.mxu0
        %5749 = vmatprep.mubr.f32.mxu0 0.0
        %5750 = vmatmul.mubr.f32.gmra.mxu0 %v5657
        %v5751 = vpop.f32.mrf.mxu0
        %v5752 = vadd.f32 0.0, %v5751
        %v5753 = vpop.f32.mrf.mxu0
        %5754 = vmatprep.mubr.f32.mxu0 0.0
        %5755 = vmatmul.mubr.f32.gmra.mxu0 %v5658
        %v5756 = vpop.f32.mrf.mxu0
        %v5757 = vadd.f32 0.0, %v5756
        %v5758 = vpop.f32.mrf.mxu0
        %5759 = vmatprep.mubr.f32.mxu0 0.0
        %5760 = vmatmul.mubr.f32.gmra.mxu0 %v5659
        %v5761 = vpop.f32.mrf.mxu0
        %v5762 = vadd.f32 0.0, %v5761
        %v5763 = vpop.f32.mrf.mxu0
        %5764 = vmatprep.mubr.f32.mxu0 0.0
        %5765 = vmatmul.mubr.f32.gmra.mxu0 %v5660
        %v5766 = vpop.f32.mrf.mxu0
        %v5767 = vadd.f32 0.0, %v5766
        %v5768 = vpop.f32.mrf.mxu0
        %5769 = vmatprep.mubr.f32.mxu0 0.0
        %5770 = vmatmul.mubr.f32.gmra.mxu0 %v5661
        %v5771 = vpop.f32.mrf.mxu0
        %v5772 = vadd.f32 0.0, %v5771
        %v5773 = vpop.f32.mrf.mxu0
        %5774 = vmatprep.mubr.f32.mxu0 0.0
        %5775 = vmatmul.mubr.f32.gmra.mxu0 %v5662
        %v5776 = vpop.f32.mrf.mxu0
        %v5777 = vadd.f32 0.0, %v5776
        %v5778 = vpop.f32.mrf.mxu0
        %5779 = vmatprep.mubr.f32.mxu0 0.0
        %5780 = vmatmul.mubr.f32.gmra.mxu0 %v5663
        %v5781 = vpop.f32.mrf.mxu0
        %v5782 = vadd.f32 0.0, %v5781
        %v5783 = vpop.f32.mrf.mxu0
        %5784 = vmatprep.mubr.f32.mxu0 0.0
        %5785 = vmatmul.mubr.f32.gmra.mxu0 %v5664
        %v5786 = vpop.f32.mrf.mxu0
        %v5787 = vadd.f32 0.0, %v5786
        %v5788 = vpop.f32.mrf.mxu0
        %5789 = vmatprep.mubr.f32.mxu0 0.0
        %5790 = vmatmul.mubr.f32.gmra.mxu0 %v5665
        %v5791 = vpop.f32.mrf.mxu0
        %v5792 = vadd.f32 0.0, %v5791
        %v5793 = vpop.f32.mrf.mxu0
        %5794 = vmatprep.mubr.f32.mxu0 0.0
        %5795 = vmatmul.mubr.f32.gmra.mxu0 %v5666
        %v5796 = vpop.f32.mrf.mxu0
        %v5797 = vadd.f32 0.0, %v5796
        %v5798 = vpop.f32.mrf.mxu0
        %5799 = vmatprep.mubr.f32.mxu0 0.0
        %5800 = vmatmul.mubr.f32.gmra.mxu0 %v5667
        %v5801 = vpop.f32.mrf.mxu0
        %v5802 = vadd.f32 0.0, %v5801
        %v5803 = vpop.f32.mrf.mxu0
        %5804 = vmatprep.mubr.f32.mxu0 0.0
        %5805 = vmatmul.mubr.f32.gmra.mxu0 %v5668
        %v5806 = vpop.f32.mrf.mxu0
        %v5807 = vadd.f32 0.0, %v5806
        %v5808 = vpop.f32.mrf.mxu0
        %5809 = vmatprep.mubr.f32.mxu0 0.0
        %5810 = vmatmul.mubr.f32.gmra.mxu0 %v5669
        %v5811 = vpop.f32.mrf.mxu0
        %v5812 = vadd.f32 0.0, %v5811
        %v5813 = vpop.f32.mrf.mxu0
        %5814 = vdwg.mxu0
        %v5815 = vmul.f32 %v5638, %v2697
        %v5816 = vmul.f32 %v5639, %v2699
        %v5817 = vmul.f32 %v5640, %v2701
        %v5818 = vmul.f32 %v5641, %v2703
        %v5819 = vmul.f32 %v5642, %v2705
        %v5820 = vmul.f32 %v5643, %v2707
        %v5821 = vmul.f32 %v5644, %v2709
        %v5822 = vmul.f32 %v5645, %v2711
        %v5823 = vmul.f32 %v5646, %v2713
        %v5824 = vmul.f32 %v5647, %v2715
        %v5825 = vmul.f32 %v5648, %v2717
        %v5826 = vmul.f32 %v5649, %v2719
        %v5827 = vmul.f32 %v5650, %v2721
        %v5828 = vmul.f32 %v5651, %v2723
        %v5829 = vmul.f32 %v5652, %v2725
        %v5830 = vmul.f32 %v5653, %v2727
        %v5831 = vmul.f32 %v5815, 2.516419e-22
        %v5832 = vmul.f32 %v5816, 2.516419e-22
        %v5833 = vmul.f32 %v5817, 2.516419e-22
        %v5834 = vmul.f32 %v5818, 2.516419e-22
        %v5835 = vmul.f32 %v5819, 2.516419e-22
        %v5836 = vmul.f32 %v5820, 2.516419e-22
        %v5837 = vmul.f32 %v5821, 2.516419e-22
        %v5838 = vmul.f32 %v5822, 2.516419e-22
        %v5839 = vmul.f32 %v5823, 2.516419e-22
        %v5840 = vmul.f32 %v5824, 2.516419e-22
        %v5841 = vmul.f32 %v5825, 2.516419e-22
        %v5842 = vmul.f32 %v5826, 2.516419e-22
        %v5843 = vmul.f32 %v5827, 2.516419e-22
        %v5844 = vmul.f32 %v5828, 2.516419e-22
        %v5845 = vmul.f32 %v5829, 2.516419e-22
        %v5846 = vmul.f32 %v5830, 2.516419e-22
        %v5847 = vmul.f32 %v5831, %v2632
        %v5848 = vmul.f32 %v5832, %v2633
        %v5849 = vmul.f32 %v5833, %v2634
        %v5850 = vmul.f32 %v5834, %v2635
        %v5851 = vmul.f32 %v5835, %v2636
        %v5852 = vmul.f32 %v5836, %v2637
        %v5853 = vmul.f32 %v5837, %v2638
        %v5854 = vmul.f32 %v5838, %v2639
        %v5855 = vmul.f32 %v5839, %v2640
        %v5856 = vmul.f32 %v5840, %v2641
        %v5857 = vmul.f32 %v5841, %v2642
        %v5858 = vmul.f32 %v5842, %v2643
        %v5859 = vmul.f32 %v5843, %v2644
        %v5860 = vmul.f32 %v5844, %v2645
        %v5861 = vmul.f32 %v5845, %v2646
        %v5862 = vmul.f32 %v5846, %v2647
        %5863 = vmatprep.subr.mxu0 0.0
        %5864 = vmatpush1.msra.mxu0 %v2663
        %5865 = vmatprep.subr.mxu0 0.0
        %5866 = vmatpush1.msra.mxu0 %v2662
        %5867 = vmatprep.subr.mxu0 0.0
        %5868 = vmatpush1.msra.mxu0 %v2661
        %5869 = vmatprep.subr.mxu0 0.0
        %5870 = vmatpush1.msra.mxu0 %v2660
        %5871 = vmatprep.subr.mxu0 0.0
        %5872 = vmatpush1.msra.mxu0 %v2659
        %5873 = vmatprep.subr.mxu0 0.0
        %5874 = vmatpush1.msra.mxu0 %v2658
        %5875 = vmatprep.subr.mxu0 0.0
        %5876 = vmatpush1.msra.mxu0 %v2657
        %5877 = vmatprep.subr.mxu0 0.0
        %5878 = vmatpush1.msra.mxu0 %v2656
        %5879 = vmatprep.subr.mxu0 0.0
        %5880 = vmatpush1.msra.mxu0 %v2655
        %5881 = vmatprep.subr.mxu0 0.0
        %5882 = vmatpush1.msra.mxu0 %v2654
        %5883 = vmatprep.subr.mxu0 0.0
        %5884 = vmatpush1.msra.mxu0 %v2653
        %5885 = vmatprep.subr.mxu0 0.0
        %5886 = vmatpush1.msra.mxu0 %v2652
        %5887 = vmatprep.subr.mxu0 0.0
        %5888 = vmatpush1.msra.mxu0 %v2651
        %5889 = vmatprep.subr.mxu0 0.0
        %5890 = vmatpush1.msra.mxu0 %v2650
        %5891 = vmatprep.subr.mxu0 0.0
        %5892 = vmatpush1.msra.mxu0 %v2649
        %5893 = vmatprep.subr.mxu0 0.0
        %5894 = vmatpush1.msra.mxu0 %v2648
        %5895 = vmatprep.subr.mxu0 0.0
        %5896 = vmatpush2.msra.mxu0 0.0
        %5897 = vmatprep.subr.mxu0 0.0
        %5898 = vmatpush2.msra.mxu0 0.0
        %5899 = vmatprep.subr.mxu0 0.0
        %5900 = vmatpush2.msra.mxu0 0.0
        %5901 = vmatprep.subr.mxu0 0.0
        %5902 = vmatpush2.msra.mxu0 0.0
        %5903 = vmatprep.subr.mxu0 0.0
        %5904 = vmatpush2.msra.mxu0 0.0
        %5905 = vmatprep.subr.mxu0 0.0
        %5906 = vmatpush2.msra.mxu0 0.0
        %5907 = vmatprep.subr.mxu0 0.0
        %5908 = vmatpush2.msra.mxu0 0.0
        %5909 = vmatprep.subr.mxu0 0.0
        %5910 = vmatpush2.msra.mxu0 0.0
        %5911 = vmatprep.subr.mxu0 0.0
        %5912 = vmatpush2.msra.mxu0 0.0
        %5913 = vmatprep.subr.mxu0 0.0
        %5914 = vmatpush2.msra.mxu0 0.0
        %5915 = vmatprep.subr.mxu0 0.0
        %5916 = vmatpush2.msra.mxu0 0.0
        %5917 = vmatprep.subr.mxu0 0.0
        %5918 = vmatpush2.msra.mxu0 0.0
        %5919 = vmatprep.subr.mxu0 0.0
        %5920 = vmatpush2.msra.mxu0 0.0
        %5921 = vmatprep.subr.mxu0 0.0
        %5922 = vmatpush2.msra.mxu0 0.0
        %5923 = vmatprep.subr.mxu0 0.0
        %5924 = vmatpush2.msra.mxu0 0.0
        %5925 = vmatprep.subr.mxu0 0.0
        %5926 = vmatpush2.msra.mxu0 0.0
        %5927 = vmatprep.mubr.f32.mxu0 0.0
        %5928 = vmatmul.mubr.f32.gmra.mxu0 %v5847
        %v5929 = vpop.f32.mrf.mxu0
        %v5930 = vadd.f32 0.0, %v5929
        %v5931 = vpop.f32.mrf.mxu0
        %5932 = vmatprep.mubr.f32.mxu0 0.0
        %5933 = vmatmul.mubr.f32.gmra.mxu0 %v5848
        %v5934 = vpop.f32.mrf.mxu0
        %v5935 = vadd.f32 0.0, %v5934
        %v5936 = vpop.f32.mrf.mxu0
        %5937 = vmatprep.mubr.f32.mxu0 0.0
        %5938 = vmatmul.mubr.f32.gmra.mxu0 %v5849
        %v5939 = vpop.f32.mrf.mxu0
        %v5940 = vadd.f32 0.0, %v5939
        %v5941 = vpop.f32.mrf.mxu0
        %5942 = vmatprep.mubr.f32.mxu0 0.0
        %5943 = vmatmul.mubr.f32.gmra.mxu0 %v5850
        %v5944 = vpop.f32.mrf.mxu0
        %v5945 = vadd.f32 0.0, %v5944
        %v5946 = vpop.f32.mrf.mxu0
        %5947 = vmatprep.mubr.f32.mxu0 0.0
        %5948 = vmatmul.mubr.f32.gmra.mxu0 %v5851
        %v5949 = vpop.f32.mrf.mxu0
        %v5950 = vadd.f32 0.0, %v5949
        %v5951 = vpop.f32.mrf.mxu0
        %5952 = vmatprep.mubr.f32.mxu0 0.0
        %5953 = vmatmul.mubr.f32.gmra.mxu0 %v5852
        %v5954 = vpop.f32.mrf.mxu0
        %v5955 = vadd.f32 0.0, %v5954
        %v5956 = vpop.f32.mrf.mxu0
        %5957 = vmatprep.mubr.f32.mxu0 0.0
        %5958 = vmatmul.mubr.f32.gmra.mxu0 %v5853
        %v5959 = vpop.f32.mrf.mxu0
        %v5960 = vadd.f32 0.0, %v5959
        %v5961 = vpop.f32.mrf.mxu0
        %5962 = vmatprep.mubr.f32.mxu0 0.0
        %5963 = vmatmul.mubr.f32.gmra.mxu0 %v5854
        %v5964 = vpop.f32.mrf.mxu0
        %v5965 = vadd.f32 0.0, %v5964
        %v5966 = vpop.f32.mrf.mxu0
        %5967 = vmatprep.mubr.f32.mxu0 0.0
        %5968 = vmatmul.mubr.f32.gmra.mxu0 %v5855
        %v5969 = vpop.f32.mrf.mxu0
        %v5970 = vadd.f32 0.0, %v5969
        %v5971 = vpop.f32.mrf.mxu0
        %5972 = vmatprep.mubr.f32.mxu0 0.0
        %5973 = vmatmul.mubr.f32.gmra.mxu0 %v5856
        %v5974 = vpop.f32.mrf.mxu0
        %v5975 = vadd.f32 0.0, %v5974
        %v5976 = vpop.f32.mrf.mxu0
        %5977 = vmatprep.mubr.f32.mxu0 0.0
        %5978 = vmatmul.mubr.f32.gmra.mxu0 %v5857
        %v5979 = vpop.f32.mrf.mxu0
        %v5980 = vadd.f32 0.0, %v5979
        %v5981 = vpop.f32.mrf.mxu0
        %5982 = vmatprep.mubr.f32.mxu0 0.0
        %5983 = vmatmul.mubr.f32.gmra.mxu0 %v5858
        %v5984 = vpop.f32.mrf.mxu0
        %v5985 = vadd.f32 0.0, %v5984
        %v5986 = vpop.f32.mrf.mxu0
        %5987 = vmatprep.mubr.f32.mxu0 0.0
        %5988 = vmatmul.mubr.f32.gmra.mxu0 %v5859
        %v5989 = vpop.f32.mrf.mxu0
        %v5990 = vadd.f32 0.0, %v5989
        %v5991 = vpop.f32.mrf.mxu0
        %5992 = vmatprep.mubr.f32.mxu0 0.0
        %5993 = vmatmul.mubr.f32.gmra.mxu0 %v5860
        %v5994 = vpop.f32.mrf.mxu0
        %v5995 = vadd.f32 0.0, %v5994
        %v5996 = vpop.f32.mrf.mxu0
        %5997 = vmatprep.mubr.f32.mxu0 0.0
        %5998 = vmatmul.mubr.f32.gmra.mxu0 %v5861
        %v5999 = vpop.f32.mrf.mxu0
        %v6000 = vadd.f32 0.0, %v5999
        %v6001 = vpop.f32.mrf.mxu0
        %6002 = vmatprep.mubr.f32.mxu0 0.0
        %6003 = vmatmul.mubr.f32.gmra.mxu0 %v5862
        %v6004 = vpop.f32.mrf.mxu0
        %v6005 = vadd.f32 0.0, %v6004
        %v6006 = vpop.f32.mrf.mxu0
        %6007 = vdwg.mxu0
        %6024 = vrot.lane.b32.xlu0 %v3084, 5
        %v6025 = vpop.permute.xlu0 %6024
        %6026 = vrot.lane.b32.xlu0 %v3089, 5
        %v6027 = vpop.permute.xlu0 %6026
        %6028 = vrot.lane.b32.xlu0 %v3094, 5
        %v6029 = vpop.permute.xlu0 %6028
        %6030 = vrot.lane.b32.xlu0 %v3099, 5
        %v6031 = vpop.permute.xlu0 %6030
        %6032 = vrot.lane.b32.xlu0 %v3104, 5
        %v6033 = vpop.permute.xlu0 %6032
        %6034 = vrot.lane.b32.xlu0 %v3109, 5
        %v6035 = vpop.permute.xlu0 %6034
        %6036 = vrot.lane.b32.xlu0 %v3114, 5
        %v6037 = vpop.permute.xlu0 %6036
        %6038 = vrot.lane.b32.xlu0 %v3119, 5
        %v6039 = vpop.permute.xlu0 %6038
        %6040 = vrot.lane.b32.xlu0 %v3124, 5
        %v6041 = vpop.permute.xlu0 %6040
        %6042 = vrot.lane.b32.xlu0 %v3129, 5
        %v6043 = vpop.permute.xlu0 %6042
        %6044 = vrot.lane.b32.xlu0 %v3134, 5
        %v6045 = vpop.permute.xlu0 %6044
        %6046 = vrot.lane.b32.xlu0 %v3139, 5
        %v6047 = vpop.permute.xlu0 %6046
        %6048 = vrot.lane.b32.xlu0 %v3144, 5
        %v6049 = vpop.permute.xlu0 %6048
        %6050 = vrot.lane.b32.xlu0 %v3149, 5
        %v6051 = vpop.permute.xlu0 %6050
        %6052 = vrot.lane.b32.xlu0 %v3154, 5
        %v6053 = vpop.permute.xlu0 %6052
        %6054 = vrot.lane.b32.xlu0 %v3159, 5
        %v6055 = vpop.permute.xlu0 %6054
        %6088 = vrot.lane.b32.xlu0 %v3277, 10
        %v6089 = vpop.permute.xlu0 %6088
        %6090 = vrot.lane.b32.xlu0 %v3282, 10
        %v6091 = vpop.permute.xlu0 %6090
        %6092 = vrot.lane.b32.xlu0 %v3287, 10
        %v6093 = vpop.permute.xlu0 %6092
        %6094 = vrot.lane.b32.xlu0 %v3292, 10
        %v6095 = vpop.permute.xlu0 %6094
        %6096 = vrot.lane.b32.xlu0 %v3297, 10
        %v6097 = vpop.permute.xlu0 %6096
        %6098 = vrot.lane.b32.xlu0 %v3302, 10
        %v6099 = vpop.permute.xlu0 %6098
        %6100 = vrot.lane.b32.xlu0 %v3307, 10
        %v6101 = vpop.permute.xlu0 %6100
        %6102 = vrot.lane.b32.xlu0 %v3312, 10
        %v6103 = vpop.permute.xlu0 %6102
        %6104 = vrot.lane.b32.xlu0 %v3317, 10
        %v6105 = vpop.permute.xlu0 %6104
        %6106 = vrot.lane.b32.xlu0 %v3322, 10
        %v6107 = vpop.permute.xlu0 %6106
        %6108 = vrot.lane.b32.xlu0 %v3327, 10
        %v6109 = vpop.permute.xlu0 %6108
        %6110 = vrot.lane.b32.xlu0 %v3332, 10
        %v6111 = vpop.permute.xlu0 %6110
        %6112 = vrot.lane.b32.xlu0 %v3337, 10
        %v6113 = vpop.permute.xlu0 %6112
        %6114 = vrot.lane.b32.xlu0 %v3342, 10
        %v6115 = vpop.permute.xlu0 %6114
        %6116 = vrot.lane.b32.xlu0 %v3347, 10
        %v6117 = vpop.permute.xlu0 %6116
        %6118 = vrot.lane.b32.xlu0 %v3352, 10
        %v6119 = vpop.permute.xlu0 %6118
        %6152 = vrot.lane.b32.xlu0 %v3470, 15
        %v6153 = vpop.permute.xlu0 %6152
        %6154 = vrot.lane.b32.xlu0 %v3475, 15
        %v6155 = vpop.permute.xlu0 %6154
        %6156 = vrot.lane.b32.xlu0 %v3480, 15
        %v6157 = vpop.permute.xlu0 %6156
        %6158 = vrot.lane.b32.xlu0 %v3485, 15
        %v6159 = vpop.permute.xlu0 %6158
        %6160 = vrot.lane.b32.xlu0 %v3490, 15
        %v6161 = vpop.permute.xlu0 %6160
        %6162 = vrot.lane.b32.xlu0 %v3495, 15
        %v6163 = vpop.permute.xlu0 %6162
        %6164 = vrot.lane.b32.xlu0 %v3500, 15
        %v6165 = vpop.permute.xlu0 %6164
        %6166 = vrot.lane.b32.xlu0 %v3505, 15
        %v6167 = vpop.permute.xlu0 %6166
        %6168 = vrot.lane.b32.xlu0 %v3510, 15
        %v6169 = vpop.permute.xlu0 %6168
        %6170 = vrot.lane.b32.xlu0 %v3515, 15
        %v6171 = vpop.permute.xlu0 %6170
        %6172 = vrot.lane.b32.xlu0 %v3520, 15
        %v6173 = vpop.permute.xlu0 %6172
        %6174 = vrot.lane.b32.xlu0 %v3525, 15
        %v6175 = vpop.permute.xlu0 %6174
        %6176 = vrot.lane.b32.xlu0 %v3530, 15
        %v6177 = vpop.permute.xlu0 %6176
        %6178 = vrot.lane.b32.xlu0 %v3535, 15
        %v6179 = vpop.permute.xlu0 %6178
        %6180 = vrot.lane.b32.xlu0 %v3540, 15
        %v6181 = vpop.permute.xlu0 %6180
        %6182 = vrot.lane.b32.xlu0 %v3545, 15
        %v6183 = vpop.permute.xlu0 %6182
        %6216 = vrot.lane.b32.xlu0 %v3711, 20
        %v6217 = vpop.permute.xlu0 %6216
        %6218 = vrot.lane.b32.xlu0 %v3716, 20
        %v6219 = vpop.permute.xlu0 %6218
        %6220 = vrot.lane.b32.xlu0 %v3721, 20
        %v6221 = vpop.permute.xlu0 %6220
        %6222 = vrot.lane.b32.xlu0 %v3726, 20
        %v6223 = vpop.permute.xlu0 %6222
        %6224 = vrot.lane.b32.xlu0 %v3731, 20
        %v6225 = vpop.permute.xlu0 %6224
        %6226 = vrot.lane.b32.xlu0 %v3736, 20
        %v6227 = vpop.permute.xlu0 %6226
        %6228 = vrot.lane.b32.xlu0 %v3741, 20
        %v6229 = vpop.permute.xlu0 %6228
        %6230 = vrot.lane.b32.xlu0 %v3746, 20
        %v6231 = vpop.permute.xlu0 %6230
        %6232 = vrot.lane.b32.xlu0 %v3751, 20
        %v6233 = vpop.permute.xlu0 %6232
        %6234 = vrot.lane.b32.xlu0 %v3756, 20
        %v6235 = vpop.permute.xlu0 %6234
        %6236 = vrot.lane.b32.xlu0 %v3761, 20
        %v6237 = vpop.permute.xlu0 %6236
        %6238 = vrot.lane.b32.xlu0 %v3766, 20
        %v6239 = vpop.permute.xlu0 %6238
        %6240 = vrot.lane.b32.xlu0 %v3771, 20
        %v6241 = vpop.permute.xlu0 %6240
        %6242 = vrot.lane.b32.xlu0 %v3776, 20
        %v6243 = vpop.permute.xlu0 %6242
        %6244 = vrot.lane.b32.xlu0 %v3781, 20
        %v6245 = vpop.permute.xlu0 %6244
        %6246 = vrot.lane.b32.xlu0 %v3786, 20
        %v6247 = vpop.permute.xlu0 %6246
        %6280 = vrot.lane.b32.xlu0 %v3904, 25
        %v6281 = vpop.permute.xlu0 %6280
        %6282 = vrot.lane.b32.xlu0 %v3909, 25
        %v6283 = vpop.permute.xlu0 %6282
        %6284 = vrot.lane.b32.xlu0 %v3914, 25
        %v6285 = vpop.permute.xlu0 %6284
        %6286 = vrot.lane.b32.xlu0 %v3919, 25
        %v6287 = vpop.permute.xlu0 %6286
        %6288 = vrot.lane.b32.xlu0 %v3924, 25
        %v6289 = vpop.permute.xlu0 %6288
        %6290 = vrot.lane.b32.xlu0 %v3929, 25
        %v6291 = vpop.permute.xlu0 %6290
        %6292 = vrot.lane.b32.xlu0 %v3934, 25
        %v6293 = vpop.permute.xlu0 %6292
        %6294 = vrot.lane.b32.xlu0 %v3939, 25
        %v6295 = vpop.permute.xlu0 %6294
        %6296 = vrot.lane.b32.xlu0 %v3944, 25
        %v6297 = vpop.permute.xlu0 %6296
        %6298 = vrot.lane.b32.xlu0 %v3949, 25
        %v6299 = vpop.permute.xlu0 %6298
        %6300 = vrot.lane.b32.xlu0 %v3954, 25
        %v6301 = vpop.permute.xlu0 %6300
        %6302 = vrot.lane.b32.xlu0 %v3959, 25
        %v6303 = vpop.permute.xlu0 %6302
        %6304 = vrot.lane.b32.xlu0 %v3964, 25
        %v6305 = vpop.permute.xlu0 %6304
        %6306 = vrot.lane.b32.xlu0 %v3969, 25
        %v6307 = vpop.permute.xlu0 %6306
        %6308 = vrot.lane.b32.xlu0 %v3974, 25
        %v6309 = vpop.permute.xlu0 %6308
        %6310 = vrot.lane.b32.xlu0 %v3979, 25
        %v6311 = vpop.permute.xlu0 %6310
        %6344 = vrot.lane.b32.xlu0 %v4097, 30
        %v6345 = vpop.permute.xlu0 %6344
        %6346 = vrot.lane.b32.xlu0 %v4102, 30
        %v6347 = vpop.permute.xlu0 %6346
        %6348 = vrot.lane.b32.xlu0 %v4107, 30
        %v6349 = vpop.permute.xlu0 %6348
        %6350 = vrot.lane.b32.xlu0 %v4112, 30
        %v6351 = vpop.permute.xlu0 %6350
        %6352 = vrot.lane.b32.xlu0 %v4117, 30
        %v6353 = vpop.permute.xlu0 %6352
        %6354 = vrot.lane.b32.xlu0 %v4122, 30
        %v6355 = vpop.permute.xlu0 %6354
        %6356 = vrot.lane.b32.xlu0 %v4127, 30
        %v6357 = vpop.permute.xlu0 %6356
        %6358 = vrot.lane.b32.xlu0 %v4132, 30
        %v6359 = vpop.permute.xlu0 %6358
        %6360 = vrot.lane.b32.xlu0 %v4137, 30
        %v6361 = vpop.permute.xlu0 %6360
        %6362 = vrot.lane.b32.xlu0 %v4142, 30
        %v6363 = vpop.permute.xlu0 %6362
        %6364 = vrot.lane.b32.xlu0 %v4147, 30
        %v6365 = vpop.permute.xlu0 %6364
        %6366 = vrot.lane.b32.xlu0 %v4152, 30
        %v6367 = vpop.permute.xlu0 %6366
        %6368 = vrot.lane.b32.xlu0 %v4157, 30
        %v6369 = vpop.permute.xlu0 %6368
        %6370 = vrot.lane.b32.xlu0 %v4162, 30
        %v6371 = vpop.permute.xlu0 %6370
        %6372 = vrot.lane.b32.xlu0 %v4167, 30
        %v6373 = vpop.permute.xlu0 %6372
        %6374 = vrot.lane.b32.xlu0 %v4172, 30
        %v6375 = vpop.permute.xlu0 %6374
        %6408 = vrot.lane.b32.xlu0 %v4290, 35
        %v6409 = vpop.permute.xlu0 %6408
        %6410 = vrot.lane.b32.xlu0 %v4295, 35
        %v6411 = vpop.permute.xlu0 %6410
        %6412 = vrot.lane.b32.xlu0 %v4300, 35
        %v6413 = vpop.permute.xlu0 %6412
        %6414 = vrot.lane.b32.xlu0 %v4305, 35
        %v6415 = vpop.permute.xlu0 %6414
        %6416 = vrot.lane.b32.xlu0 %v4310, 35
        %v6417 = vpop.permute.xlu0 %6416
        %6418 = vrot.lane.b32.xlu0 %v4315, 35
        %v6419 = vpop.permute.xlu0 %6418
        %6420 = vrot.lane.b32.xlu0 %v4320, 35
        %v6421 = vpop.permute.xlu0 %6420
        %6422 = vrot.lane.b32.xlu0 %v4325, 35
        %v6423 = vpop.permute.xlu0 %6422
        %6424 = vrot.lane.b32.xlu0 %v4330, 35
        %v6425 = vpop.permute.xlu0 %6424
        %6426 = vrot.lane.b32.xlu0 %v4335, 35
        %v6427 = vpop.permute.xlu0 %6426
        %6428 = vrot.lane.b32.xlu0 %v4340, 35
        %v6429 = vpop.permute.xlu0 %6428
        %6430 = vrot.lane.b32.xlu0 %v4345, 35
        %v6431 = vpop.permute.xlu0 %6430
        %6432 = vrot.lane.b32.xlu0 %v4350, 35
        %v6433 = vpop.permute.xlu0 %6432
        %6434 = vrot.lane.b32.xlu0 %v4355, 35
        %v6435 = vpop.permute.xlu0 %6434
        %6436 = vrot.lane.b32.xlu0 %v4360, 35
        %v6437 = vpop.permute.xlu0 %6436
        %6438 = vrot.lane.b32.xlu0 %v4365, 35
        %v6439 = vpop.permute.xlu0 %6438
        %6472 = vrot.lane.b32.xlu0 %v4531, 40
        %v6473 = vpop.permute.xlu0 %6472
        %6474 = vrot.lane.b32.xlu0 %v4536, 40
        %v6475 = vpop.permute.xlu0 %6474
        %6476 = vrot.lane.b32.xlu0 %v4541, 40
        %v6477 = vpop.permute.xlu0 %6476
        %6478 = vrot.lane.b32.xlu0 %v4546, 40
        %v6479 = vpop.permute.xlu0 %6478
        %6480 = vrot.lane.b32.xlu0 %v4551, 40
        %v6481 = vpop.permute.xlu0 %6480
        %6482 = vrot.lane.b32.xlu0 %v4556, 40
        %v6483 = vpop.permute.xlu0 %6482
        %6484 = vrot.lane.b32.xlu0 %v4561, 40
        %v6485 = vpop.permute.xlu0 %6484
        %6486 = vrot.lane.b32.xlu0 %v4566, 40
        %v6487 = vpop.permute.xlu0 %6486
        %6488 = vrot.lane.b32.xlu0 %v4571, 40
        %v6489 = vpop.permute.xlu0 %6488
        %6490 = vrot.lane.b32.xlu0 %v4576, 40
        %v6491 = vpop.permute.xlu0 %6490
        %6492 = vrot.lane.b32.xlu0 %v4581, 40
        %v6493 = vpop.permute.xlu0 %6492
        %6494 = vrot.lane.b32.xlu0 %v4586, 40
        %v6495 = vpop.permute.xlu0 %6494
        %6496 = vrot.lane.b32.xlu0 %v4591, 40
        %v6497 = vpop.permute.xlu0 %6496
        %6498 = vrot.lane.b32.xlu0 %v4596, 40
        %v6499 = vpop.permute.xlu0 %6498
        %6500 = vrot.lane.b32.xlu0 %v4601, 40
        %v6501 = vpop.permute.xlu0 %6500
        %6502 = vrot.lane.b32.xlu0 %v4606, 40
        %v6503 = vpop.permute.xlu0 %6502
        %6536 = vrot.lane.b32.xlu0 %v4724, 45
        %v6537 = vpop.permute.xlu0 %6536
        %6538 = vrot.lane.b32.xlu0 %v4729, 45
        %v6539 = vpop.permute.xlu0 %6538
        %6540 = vrot.lane.b32.xlu0 %v4734, 45
        %v6541 = vpop.permute.xlu0 %6540
        %6542 = vrot.lane.b32.xlu0 %v4739, 45
        %v6543 = vpop.permute.xlu0 %6542
        %6544 = vrot.lane.b32.xlu0 %v4744, 45
        %v6545 = vpop.permute.xlu0 %6544
        %6546 = vrot.lane.b32.xlu0 %v4749, 45
        %v6547 = vpop.permute.xlu0 %6546
        %6548 = vrot.lane.b32.xlu0 %v4754, 45
        %v6549 = vpop.permute.xlu0 %6548
        %6550 = vrot.lane.b32.xlu0 %v4759, 45
        %v6551 = vpop.permute.xlu0 %6550
        %6552 = vrot.lane.b32.xlu0 %v4764, 45
        %v6553 = vpop.permute.xlu0 %6552
        %6554 = vrot.lane.b32.xlu0 %v4769, 45
        %v6555 = vpop.permute.xlu0 %6554
        %6556 = vrot.lane.b32.xlu0 %v4774, 45
        %v6557 = vpop.permute.xlu0 %6556
        %6558 = vrot.lane.b32.xlu0 %v4779, 45
        %v6559 = vpop.permute.xlu0 %6558
        %6560 = vrot.lane.b32.xlu0 %v4784, 45
        %v6561 = vpop.permute.xlu0 %6560
        %6562 = vrot.lane.b32.xlu0 %v4789, 45
        %v6563 = vpop.permute.xlu0 %6562
        %6564 = vrot.lane.b32.xlu0 %v4794, 45
        %v6565 = vpop.permute.xlu0 %6564
        %6566 = vrot.lane.b32.xlu0 %v4799, 45
        %v6567 = vpop.permute.xlu0 %6566
        %6600 = vrot.lane.b32.xlu0 %v4917, 50
        %v6601 = vpop.permute.xlu0 %6600
        %6602 = vrot.lane.b32.xlu0 %v4922, 50
        %v6603 = vpop.permute.xlu0 %6602
        %6604 = vrot.lane.b32.xlu0 %v4927, 50
        %v6605 = vpop.permute.xlu0 %6604
        %6606 = vrot.lane.b32.xlu0 %v4932, 50
        %v6607 = vpop.permute.xlu0 %6606
        %6608 = vrot.lane.b32.xlu0 %v4937, 50
        %v6609 = vpop.permute.xlu0 %6608
        %6610 = vrot.lane.b32.xlu0 %v4942, 50
        %v6611 = vpop.permute.xlu0 %6610
        %6612 = vrot.lane.b32.xlu0 %v4947, 50
        %v6613 = vpop.permute.xlu0 %6612
        %6614 = vrot.lane.b32.xlu0 %v4952, 50
        %v6615 = vpop.permute.xlu0 %6614
        %6616 = vrot.lane.b32.xlu0 %v4957, 50
        %v6617 = vpop.permute.xlu0 %6616
        %6618 = vrot.lane.b32.xlu0 %v4962, 50
        %v6619 = vpop.permute.xlu0 %6618
        %6620 = vrot.lane.b32.xlu0 %v4967, 50
        %v6621 = vpop.permute.xlu0 %6620
        %6622 = vrot.lane.b32.xlu0 %v4972, 50
        %v6623 = vpop.permute.xlu0 %6622
        %6624 = vrot.lane.b32.xlu0 %v4977, 50
        %v6625 = vpop.permute.xlu0 %6624
        %6626 = vrot.lane.b32.xlu0 %v4982, 50
        %v6627 = vpop.permute.xlu0 %6626
        %6628 = vrot.lane.b32.xlu0 %v4987, 50
        %v6629 = vpop.permute.xlu0 %6628
        %6630 = vrot.lane.b32.xlu0 %v4992, 50
        %v6631 = vpop.permute.xlu0 %6630
        %6664 = vrot.lane.b32.xlu0 %v5110, 55
        %v6665 = vpop.permute.xlu0 %6664
        %6666 = vrot.lane.b32.xlu0 %v5115, 55
        %v6667 = vpop.permute.xlu0 %6666
        %6668 = vrot.lane.b32.xlu0 %v5120, 55
        %v6669 = vpop.permute.xlu0 %6668
        %6670 = vrot.lane.b32.xlu0 %v5125, 55
        %v6671 = vpop.permute.xlu0 %6670
        %6672 = vrot.lane.b32.xlu0 %v5130, 55
        %v6673 = vpop.permute.xlu0 %6672
        %6674 = vrot.lane.b32.xlu0 %v5135, 55
        %v6675 = vpop.permute.xlu0 %6674
        %6676 = vrot.lane.b32.xlu0 %v5140, 55
        %v6677 = vpop.permute.xlu0 %6676
        %6678 = vrot.lane.b32.xlu0 %v5145, 55
        %v6679 = vpop.permute.xlu0 %6678
        %6680 = vrot.lane.b32.xlu0 %v5150, 55
        %v6681 = vpop.permute.xlu0 %6680
        %6682 = vrot.lane.b32.xlu0 %v5155, 55
        %v6683 = vpop.permute.xlu0 %6682
        %6684 = vrot.lane.b32.xlu0 %v5160, 55
        %v6685 = vpop.permute.xlu0 %6684
        %6686 = vrot.lane.b32.xlu0 %v5165, 55
        %v6687 = vpop.permute.xlu0 %6686
        %6688 = vrot.lane.b32.xlu0 %v5170, 55
        %v6689 = vpop.permute.xlu0 %6688
        %6690 = vrot.lane.b32.xlu0 %v5175, 55
        %v6691 = vpop.permute.xlu0 %6690
        %6692 = vrot.lane.b32.xlu0 %v5180, 55
        %v6693 = vpop.permute.xlu0 %6692
        %6694 = vrot.lane.b32.xlu0 %v5185, 55
        %v6695 = vpop.permute.xlu0 %6694
        %6728 = vrot.lane.b32.xlu0 %v5351, 60
        %v6729 = vpop.permute.xlu0 %6728
        %6730 = vrot.lane.b32.xlu0 %v5356, 60
        %v6731 = vpop.permute.xlu0 %6730
        %6732 = vrot.lane.b32.xlu0 %v5361, 60
        %v6733 = vpop.permute.xlu0 %6732
        %6734 = vrot.lane.b32.xlu0 %v5366, 60
        %v6735 = vpop.permute.xlu0 %6734
        %6736 = vrot.lane.b32.xlu0 %v5371, 60
        %v6737 = vpop.permute.xlu0 %6736
        %6738 = vrot.lane.b32.xlu0 %v5376, 60
        %v6739 = vpop.permute.xlu0 %6738
        %6740 = vrot.lane.b32.xlu0 %v5381, 60
        %v6741 = vpop.permute.xlu0 %6740
        %6742 = vrot.lane.b32.xlu0 %v5386, 60
        %v6743 = vpop.permute.xlu0 %6742
        %6744 = vrot.lane.b32.xlu0 %v5391, 60
        %v6745 = vpop.permute.xlu0 %6744
        %6746 = vrot.lane.b32.xlu0 %v5396, 60
        %v6747 = vpop.permute.xlu0 %6746
        %6748 = vrot.lane.b32.xlu0 %v5401, 60
        %v6749 = vpop.permute.xlu0 %6748
        %6750 = vrot.lane.b32.xlu0 %v5406, 60
        %v6751 = vpop.permute.xlu0 %6750
        %6752 = vrot.lane.b32.xlu0 %v5411, 60
        %v6753 = vpop.permute.xlu0 %6752
        %6754 = vrot.lane.b32.xlu0 %v5416, 60
        %v6755 = vpop.permute.xlu0 %6754
        %6756 = vrot.lane.b32.xlu0 %v5421, 60
        %v6757 = vpop.permute.xlu0 %6756
        %6758 = vrot.lane.b32.xlu0 %v5426, 60
        %v6759 = vpop.permute.xlu0 %6758
        %6792 = vrot.lane.b32.xlu0 %v5544, 65
        %v6793 = vpop.permute.xlu0 %6792
        %6794 = vrot.lane.b32.xlu0 %v5549, 65
        %v6795 = vpop.permute.xlu0 %6794
        %6796 = vrot.lane.b32.xlu0 %v5554, 65
        %v6797 = vpop.permute.xlu0 %6796
        %6798 = vrot.lane.b32.xlu0 %v5559, 65
        %v6799 = vpop.permute.xlu0 %6798
        %6800 = vrot.lane.b32.xlu0 %v5564, 65
        %v6801 = vpop.permute.xlu0 %6800
        %6802 = vrot.lane.b32.xlu0 %v5569, 65
        %v6803 = vpop.permute.xlu0 %6802
        %6804 = vrot.lane.b32.xlu0 %v5574, 65
        %v6805 = vpop.permute.xlu0 %6804
        %6806 = vrot.lane.b32.xlu0 %v5579, 65
        %v6807 = vpop.permute.xlu0 %6806
        %6808 = vrot.lane.b32.xlu0 %v5584, 65
        %v6809 = vpop.permute.xlu0 %6808
        %6810 = vrot.lane.b32.xlu0 %v5589, 65
        %v6811 = vpop.permute.xlu0 %6810
        %6812 = vrot.lane.b32.xlu0 %v5594, 65
        %v6813 = vpop.permute.xlu0 %6812
        %6814 = vrot.lane.b32.xlu0 %v5599, 65
        %v6815 = vpop.permute.xlu0 %6814
        %6816 = vrot.lane.b32.xlu0 %v5604, 65
        %v6817 = vpop.permute.xlu0 %6816
        %6818 = vrot.lane.b32.xlu0 %v5609, 65
        %v6819 = vpop.permute.xlu0 %6818
        %6820 = vrot.lane.b32.xlu0 %v5614, 65
        %v6821 = vpop.permute.xlu0 %6820
        %6822 = vrot.lane.b32.xlu0 %v5619, 65
        %v6823 = vpop.permute.xlu0 %6822
        %6856 = vrot.lane.b32.xlu0 %v5737, 70
        %v6857 = vpop.permute.xlu0 %6856
        %6858 = vrot.lane.b32.xlu0 %v5742, 70
        %v6859 = vpop.permute.xlu0 %6858
        %6860 = vrot.lane.b32.xlu0 %v5747, 70
        %v6861 = vpop.permute.xlu0 %6860
        %6862 = vrot.lane.b32.xlu0 %v5752, 70
        %v6863 = vpop.permute.xlu0 %6862
        %6864 = vrot.lane.b32.xlu0 %v5757, 70
        %v6865 = vpop.permute.xlu0 %6864
        %6866 = vrot.lane.b32.xlu0 %v5762, 70
        %v6867 = vpop.permute.xlu0 %6866
        %6868 = vrot.lane.b32.xlu0 %v5767, 70
        %v6869 = vpop.permute.xlu0 %6868
        %6870 = vrot.lane.b32.xlu0 %v5772, 70
        %v6871 = vpop.permute.xlu0 %6870
        %6872 = vrot.lane.b32.xlu0 %v5777, 70
        %v6873 = vpop.permute.xlu0 %6872
        %6874 = vrot.lane.b32.xlu0 %v5782, 70
        %v6875 = vpop.permute.xlu0 %6874
        %6876 = vrot.lane.b32.xlu0 %v5787, 70
        %v6877 = vpop.permute.xlu0 %6876
        %6878 = vrot.lane.b32.xlu0 %v5792, 70
        %v6879 = vpop.permute.xlu0 %6878
        %6880 = vrot.lane.b32.xlu0 %v5797, 70
        %v6881 = vpop.permute.xlu0 %6880
        %6882 = vrot.lane.b32.xlu0 %v5802, 70
        %v6883 = vpop.permute.xlu0 %6882
        %6884 = vrot.lane.b32.xlu0 %v5807, 70
        %v6885 = vpop.permute.xlu0 %6884
        %6886 = vrot.lane.b32.xlu0 %v5812, 70
        %v6887 = vpop.permute.xlu0 %6886
        %6920 = vrot.lane.b32.xlu0 %v5930, 75
        %v6921 = vpop.permute.xlu0 %6920
        %6922 = vrot.lane.b32.xlu0 %v5935, 75
        %v6923 = vpop.permute.xlu0 %6922
        %6924 = vrot.lane.b32.xlu0 %v5940, 75
        %v6925 = vpop.permute.xlu0 %6924
        %6926 = vrot.lane.b32.xlu0 %v5945, 75
        %v6927 = vpop.permute.xlu0 %6926
        %6928 = vrot.lane.b32.xlu0 %v5950, 75
        %v6929 = vpop.permute.xlu0 %6928
        %6930 = vrot.lane.b32.xlu0 %v5955, 75
        %v6931 = vpop.permute.xlu0 %6930
        %6932 = vrot.lane.b32.xlu0 %v5960, 75
        %v6933 = vpop.permute.xlu0 %6932
        %6934 = vrot.lane.b32.xlu0 %v5965, 75
        %v6935 = vpop.permute.xlu0 %6934
        %6936 = vrot.lane.b32.xlu0 %v5970, 75
        %v6937 = vpop.permute.xlu0 %6936
        %6938 = vrot.lane.b32.xlu0 %v5975, 75
        %v6939 = vpop.permute.xlu0 %6938
        %6940 = vrot.lane.b32.xlu0 %v5980, 75
        %v6941 = vpop.permute.xlu0 %6940
        %6942 = vrot.lane.b32.xlu0 %v5985, 75
        %v6943 = vpop.permute.xlu0 %6942
        %6944 = vrot.lane.b32.xlu0 %v5990, 75
        %v6945 = vpop.permute.xlu0 %6944
        %6946 = vrot.lane.b32.xlu0 %v5995, 75
        %v6947 = vpop.permute.xlu0 %6946
        %6948 = vrot.lane.b32.xlu0 %v6000, 75
        %v6949 = vpop.permute.xlu0 %6948
        %6950 = vrot.lane.b32.xlu0 %v6005, 75
        %v6951 = vpop.permute.xlu0 %6950
        %vm6968 = vcmask 39936
        %v6969 = vsel %vm6968, %v2891, %v6025
        %v6970 = vsel %vm6968, %v2896, %v6027
        %v6971 = vsel %vm6968, %v2901, %v6029
        %v6972 = vsel %vm6968, %v2906, %v6031
        %v6973 = vsel %vm6968, %v2911, %v6033
        %v6974 = vsel %vm6968, %v2916, %v6035
        %v6975 = vsel %vm6968, %v2921, %v6037
        %v6976 = vsel %vm6968, %v2926, %v6039
        %v6977 = vsel %vm6968, %v2931, %v6041
        %v6978 = vsel %vm6968, %v2936, %v6043
        %v6979 = vsel %vm6968, %v2941, %v6045
        %v6980 = vsel %vm6968, %v2946, %v6047
        %v6981 = vsel %vm6968, %v2951, %v6049
        %v6982 = vsel %vm6968, %v2956, %v6051
        %v6983 = vsel %vm6968, %v2961, %v6053
        %v6984 = vsel %vm6968, %v2966, %v6055
        %vm6985 = vcmask 80896
        %v6986 = vsel %vm6985, %v6969, %v6089
        %v6987 = vsel %vm6985, %v6970, %v6091
        %v6988 = vsel %vm6985, %v6971, %v6093
        %v6989 = vsel %vm6985, %v6972, %v6095
        %v6990 = vsel %vm6985, %v6973, %v6097
        %v6991 = vsel %vm6985, %v6974, %v6099
        %v6992 = vsel %vm6985, %v6975, %v6101
        %v6993 = vsel %vm6985, %v6976, %v6103
        %v6994 = vsel %vm6985, %v6977, %v6105
        %v6995 = vsel %vm6985, %v6978, %v6107
        %v6996 = vsel %vm6985, %v6979, %v6109
        %v6997 = vsel %vm6985, %v6980, %v6111
        %v6998 = vsel %vm6985, %v6981, %v6113
        %v6999 = vsel %vm6985, %v6982, %v6115
        %v7000 = vsel %vm6985, %v6983, %v6117
        %v7001 = vsel %vm6985, %v6984, %v6119
        %vm7002 = vcmask 121856
        %v7003 = vsel %vm7002, %v6986, %v6153
        %v7004 = vsel %vm7002, %v6987, %v6155
        %v7005 = vsel %vm7002, %v6988, %v6157
        %v7006 = vsel %vm7002, %v6989, %v6159
        %v7007 = vsel %vm7002, %v6990, %v6161
        %v7008 = vsel %vm7002, %v6991, %v6163
        %v7009 = vsel %vm7002, %v6992, %v6165
        %v7010 = vsel %vm7002, %v6993, %v6167
        %v7011 = vsel %vm7002, %v6994, %v6169
        %v7012 = vsel %vm7002, %v6995, %v6171
        %v7013 = vsel %vm7002, %v6996, %v6173
        %v7014 = vsel %vm7002, %v6997, %v6175
        %v7015 = vsel %vm7002, %v6998, %v6177
        %v7016 = vsel %vm7002, %v6999, %v6179
        %v7017 = vsel %vm7002, %v7000, %v6181
        %v7018 = vsel %vm7002, %v7001, %v6183
        %vm7019 = vcmask 162816
        %v7020 = vsel %vm7019, %v7003, %v6217
        %v7021 = vsel %vm7019, %v7004, %v6219
        %v7022 = vsel %vm7019, %v7005, %v6221
        %v7023 = vsel %vm7019, %v7006, %v6223
        %v7024 = vsel %vm7019, %v7007, %v6225
        %v7025 = vsel %vm7019, %v7008, %v6227
        %v7026 = vsel %vm7019, %v7009, %v6229
        %v7027 = vsel %vm7019, %v7010, %v6231
        %v7028 = vsel %vm7019, %v7011, %v6233
        %v7029 = vsel %vm7019, %v7012, %v6235
        %v7030 = vsel %vm7019, %v7013, %v6237
        %v7031 = vsel %vm7019, %v7014, %v6239
        %v7032 = vsel %vm7019, %v7015, %v6241
        %v7033 = vsel %vm7019, %v7016, %v6243
        %v7034 = vsel %vm7019, %v7017, %v6245
        %v7035 = vsel %vm7019, %v7018, %v6247
        %vm7036 = vcmask 203776
        %v7037 = vsel %vm7036, %v7020, %v6281
        %v7038 = vsel %vm7036, %v7021, %v6283
        %v7039 = vsel %vm7036, %v7022, %v6285
        %v7040 = vsel %vm7036, %v7023, %v6287
        %v7041 = vsel %vm7036, %v7024, %v6289
        %v7042 = vsel %vm7036, %v7025, %v6291
        %v7043 = vsel %vm7036, %v7026, %v6293
        %v7044 = vsel %vm7036, %v7027, %v6295
        %v7045 = vsel %vm7036, %v7028, %v6297
        %v7046 = vsel %vm7036, %v7029, %v6299
        %v7047 = vsel %vm7036, %v7030, %v6301
        %v7048 = vsel %vm7036, %v7031, %v6303
        %v7049 = vsel %vm7036, %v7032, %v6305
        %v7050 = vsel %vm7036, %v7033, %v6307
        %v7051 = vsel %vm7036, %v7034, %v6309
        %v7052 = vsel %vm7036, %v7035, %v6311
        %vm7053 = vcmask 244736
        %v7054 = vsel %vm7053, %v7037, %v6345
        %v7055 = vsel %vm7053, %v7038, %v6347
        %v7056 = vsel %vm7053, %v7039, %v6349
        %v7057 = vsel %vm7053, %v7040, %v6351
        %v7058 = vsel %vm7053, %v7041, %v6353
        %v7059 = vsel %vm7053, %v7042, %v6355
        %v7060 = vsel %vm7053, %v7043, %v6357
        %v7061 = vsel %vm7053, %v7044, %v6359
        %v7062 = vsel %vm7053, %v7045, %v6361
        %v7063 = vsel %vm7053, %v7046, %v6363
        %v7064 = vsel %vm7053, %v7047, %v6365
        %v7065 = vsel %vm7053, %v7048, %v6367
        %v7066 = vsel %vm7053, %v7049, %v6369
        %v7067 = vsel %vm7053, %v7050, %v6371
        %v7068 = vsel %vm7053, %v7051, %v6373
        %v7069 = vsel %vm7053, %v7052, %v6375
        %vm7070 = vcmask 285696
        %v7071 = vsel %vm7070, %v7054, %v6409
        %v7072 = vsel %vm7070, %v7055, %v6411
        %v7073 = vsel %vm7070, %v7056, %v6413
        %v7074 = vsel %vm7070, %v7057, %v6415
        %v7075 = vsel %vm7070, %v7058, %v6417
        %v7076 = vsel %vm7070, %v7059, %v6419
        %v7077 = vsel %vm7070, %v7060, %v6421
        %v7078 = vsel %vm7070, %v7061, %v6423
        %v7079 = vsel %vm7070, %v7062, %v6425
        %v7080 = vsel %vm7070, %v7063, %v6427
        %v7081 = vsel %vm7070, %v7064, %v6429
        %v7082 = vsel %vm7070, %v7065, %v6431
        %v7083 = vsel %vm7070, %v7066, %v6433
        %v7084 = vsel %vm7070, %v7067, %v6435
        %v7085 = vsel %vm7070, %v7068, %v6437
        %v7086 = vsel %vm7070, %v7069, %v6439
        %vm7087 = vcmask 326656
        %v7088 = vsel %vm7087, %v7071, %v6473
        %v7089 = vsel %vm7087, %v7072, %v6475
        %v7090 = vsel %vm7087, %v7073, %v6477
        %v7091 = vsel %vm7087, %v7074, %v6479
        %v7092 = vsel %vm7087, %v7075, %v6481
        %v7093 = vsel %vm7087, %v7076, %v6483
        %v7094 = vsel %vm7087, %v7077, %v6485
        %v7095 = vsel %vm7087, %v7078, %v6487
        %v7096 = vsel %vm7087, %v7079, %v6489
        %v7097 = vsel %vm7087, %v7080, %v6491
        %v7098 = vsel %vm7087, %v7081, %v6493
        %v7099 = vsel %vm7087, %v7082, %v6495
        %v7100 = vsel %vm7087, %v7083, %v6497
        %v7101 = vsel %vm7087, %v7084, %v6499
        %v7102 = vsel %vm7087, %v7085, %v6501
        %v7103 = vsel %vm7087, %v7086, %v6503
        %vm7104 = vcmask 367616
        %v7105 = vsel %vm7104, %v7088, %v6537
        %v7106 = vsel %vm7104, %v7089, %v6539
        %v7107 = vsel %vm7104, %v7090, %v6541
        %v7108 = vsel %vm7104, %v7091, %v6543
        %v7109 = vsel %vm7104, %v7092, %v6545
        %v7110 = vsel %vm7104, %v7093, %v6547
        %v7111 = vsel %vm7104, %v7094, %v6549
        %v7112 = vsel %vm7104, %v7095, %v6551
        %v7113 = vsel %vm7104, %v7096, %v6553
        %v7114 = vsel %vm7104, %v7097, %v6555
        %v7115 = vsel %vm7104, %v7098, %v6557
        %v7116 = vsel %vm7104, %v7099, %v6559
        %v7117 = vsel %vm7104, %v7100, %v6561
        %v7118 = vsel %vm7104, %v7101, %v6563
        %v7119 = vsel %vm7104, %v7102, %v6565
        %v7120 = vsel %vm7104, %v7103, %v6567
        %vm7121 = vcmask 408576
        %v7122 = vsel %vm7121, %v7105, %v6601
        %v7123 = vsel %vm7121, %v7106, %v6603
        %v7124 = vsel %vm7121, %v7107, %v6605
        %v7125 = vsel %vm7121, %v7108, %v6607
        %v7126 = vsel %vm7121, %v7109, %v6609
        %v7127 = vsel %vm7121, %v7110, %v6611
        %v7128 = vsel %vm7121, %v7111, %v6613
        %v7129 = vsel %vm7121, %v7112, %v6615
        %v7130 = vsel %vm7121, %v7113, %v6617
        %v7131 = vsel %vm7121, %v7114, %v6619
        %v7132 = vsel %vm7121, %v7115, %v6621
        %v7133 = vsel %vm7121, %v7116, %v6623
        %v7134 = vsel %vm7121, %v7117, %v6625
        %v7135 = vsel %vm7121, %v7118, %v6627
        %v7136 = vsel %vm7121, %v7119, %v6629
        %v7137 = vsel %vm7121, %v7120, %v6631
        %vm7138 = vcmask 449536
        %v7139 = vsel %vm7138, %v7122, %v6665
        %v7140 = vsel %vm7138, %v7123, %v6667
        %v7141 = vsel %vm7138, %v7124, %v6669
        %v7142 = vsel %vm7138, %v7125, %v6671
        %v7143 = vsel %vm7138, %v7126, %v6673
        %v7144 = vsel %vm7138, %v7127, %v6675
        %v7145 = vsel %vm7138, %v7128, %v6677
        %v7146 = vsel %vm7138, %v7129, %v6679
        %v7147 = vsel %vm7138, %v7130, %v6681
        %v7148 = vsel %vm7138, %v7131, %v6683
        %v7149 = vsel %vm7138, %v7132, %v6685
        %v7150 = vsel %vm7138, %v7133, %v6687
        %v7151 = vsel %vm7138, %v7134, %v6689
        %v7152 = vsel %vm7138, %v7135, %v6691
        %v7153 = vsel %vm7138, %v7136, %v6693
        %v7154 = vsel %vm7138, %v7137, %v6695
        %vm7155 = vcmask 490496
        %v7156 = vsel %vm7155, %v7139, %v6729
        %v7157 = vsel %vm7155, %v7140, %v6731
        %v7158 = vsel %vm7155, %v7141, %v6733
        %v7159 = vsel %vm7155, %v7142, %v6735
        %v7160 = vsel %vm7155, %v7143, %v6737
        %v7161 = vsel %vm7155, %v7144, %v6739
        %v7162 = vsel %vm7155, %v7145, %v6741
        %v7163 = vsel %vm7155, %v7146, %v6743
        %v7164 = vsel %vm7155, %v7147, %v6745
        %v7165 = vsel %vm7155, %v7148, %v6747
        %v7166 = vsel %vm7155, %v7149, %v6749
        %v7167 = vsel %vm7155, %v7150, %v6751
        %v7168 = vsel %vm7155, %v7151, %v6753
        %v7169 = vsel %vm7155, %v7152, %v6755
        %v7170 = vsel %vm7155, %v7153, %v6757
        %v7171 = vsel %vm7155, %v7154, %v6759
        %vm7172 = vcmask 531456
        %v7173 = vsel %vm7172, %v7156, %v6793
        %v7174 = vsel %vm7172, %v7157, %v6795
        %v7175 = vsel %vm7172, %v7158, %v6797
        %v7176 = vsel %vm7172, %v7159, %v6799
        %v7177 = vsel %vm7172, %v7160, %v6801
        %v7178 = vsel %vm7172, %v7161, %v6803
        %v7179 = vsel %vm7172, %v7162, %v6805
        %v7180 = vsel %vm7172, %v7163, %v6807
        %v7181 = vsel %vm7172, %v7164, %v6809
        %v7182 = vsel %vm7172, %v7165, %v6811
        %v7183 = vsel %vm7172, %v7166, %v6813
        %v7184 = vsel %vm7172, %v7167, %v6815
        %v7185 = vsel %vm7172, %v7168, %v6817
        %v7186 = vsel %vm7172, %v7169, %v6819
        %v7187 = vsel %vm7172, %v7170, %v6821
        %v7188 = vsel %vm7172, %v7171, %v6823
        %vm7189 = vcmask 572416
        %v7190 = vsel %vm7189, %v7173, %v6857
        %v7191 = vsel %vm7189, %v7174, %v6859
        %v7192 = vsel %vm7189, %v7175, %v6861
        %v7193 = vsel %vm7189, %v7176, %v6863
        %v7194 = vsel %vm7189, %v7177, %v6865
        %v7195 = vsel %vm7189, %v7178, %v6867
        %v7196 = vsel %vm7189, %v7179, %v6869
        %v7197 = vsel %vm7189, %v7180, %v6871
        %v7198 = vsel %vm7189, %v7181, %v6873
        %v7199 = vsel %vm7189, %v7182, %v6875
        %v7200 = vsel %vm7189, %v7183, %v6877
        %v7201 = vsel %vm7189, %v7184, %v6879
        %v7202 = vsel %vm7189, %v7185, %v6881
        %v7203 = vsel %vm7189, %v7186, %v6883
        %v7204 = vsel %vm7189, %v7187, %v6885
        %v7205 = vsel %vm7189, %v7188, %v6887
        %vm7206 = vcmask 613376
        %v7207 = vsel %vm7206, %v7190, %v6921
        %v7208 = vsel %vm7206, %v7191, %v6923
        %v7209 = vsel %vm7206, %v7192, %v6925
        %v7210 = vsel %vm7206, %v7193, %v6927
        %v7211 = vsel %vm7206, %v7194, %v6929
        %v7212 = vsel %vm7206, %v7195, %v6931
        %v7213 = vsel %vm7206, %v7196, %v6933
        %v7214 = vsel %vm7206, %v7197, %v6935
        %v7215 = vsel %vm7206, %v7198, %v6937
        %v7216 = vsel %vm7206, %v7199, %v6939
        %v7217 = vsel %vm7206, %v7200, %v6941
        %v7218 = vsel %vm7206, %v7201, %v6943
        %v7219 = vsel %vm7206, %v7202, %v6945
        %v7220 = vsel %vm7206, %v7203, %v6947
        %v7221 = vsel %vm7206, %v7204, %v6949
        %v7222 = vsel %vm7206, %v7205, %v6951
        %vm7223 = vcmask 654336
        %v7224 = vsel %vm7223, %v7207, 0.0
        %v7225 = vsel %vm7223, %v7208, 0.0
        %v7226 = vsel %vm7223, %v7209, 0.0
        %v7227 = vsel %vm7223, %v7210, 0.0
        %v7228 = vsel %vm7223, %v7211, 0.0
        %v7229 = vsel %vm7223, %v7212, 0.0
        %v7230 = vsel %vm7223, %v7213, 0.0
        %v7231 = vsel %vm7223, %v7214, 0.0
        %v7232 = vsel %vm7223, %v7215, 0.0
        %v7233 = vsel %vm7223, %v7216, 0.0
        %v7234 = vsel %vm7223, %v7217, 0.0
        %v7235 = vsel %vm7223, %v7218, 0.0
        %v7236 = vsel %vm7223, %v7219, 0.0
        %v7237 = vsel %vm7223, %v7220, 0.0
        %v7238 = vsel %vm7223, %v7221, 0.0
        %v7239 = vsel %vm7223, %v7222, 0.0
        %v7240 = vld [vmem:[#allocation2] sm:$0xff]
        %v7241 = vld [vmem:[#allocation2 + $0x8] sm:$0xff]
        %v7242 = vld [vmem:[#allocation2 + $0x10] sm:$0xff]
        %v7243 = vld [vmem:[#allocation2 + $0x18] sm:$0xff]
        %v7244 = vld [vmem:[#allocation2 + $0x20] sm:$0xff]
        %v7245 = vld [vmem:[#allocation2 + $0x28] sm:$0xff]
        %v7246 = vld [vmem:[#allocation2 + $0x30] sm:$0xff]
        %v7247 = vld [vmem:[#allocation2 + $0x38] sm:$0xff]
        %v7248 = vld [vmem:[#allocation2 + $0x40] sm:$0xff]
        %v7249 = vld [vmem:[#allocation2 + $0x48] sm:$0xff]
        %v7250 = vld [vmem:[#allocation2 + $0x50] sm:$0xff]
        %v7251 = vld [vmem:[#allocation2 + $0x58] sm:$0xff]
        %v7252 = vld [vmem:[#allocation2 + $0x60] sm:$0xff]
        %v7253 = vld [vmem:[#allocation2 + $0x68] sm:$0xff]
        %v7254 = vld [vmem:[#allocation2 + $0x70] sm:$0xff]
        %v7255 = vld [vmem:[#allocation2 + $0x78] sm:$0xff]
        %v7256 = vadd.f32 %v7240, %v7224
        %v7257 = vadd.f32 %v7241, %v7225
        %v7258 = vadd.f32 %v7242, %v7226
        %v7259 = vadd.f32 %v7243, %v7227
        %v7260 = vadd.f32 %v7244, %v7228
        %v7261 = vadd.f32 %v7245, %v7229
        %v7262 = vadd.f32 %v7246, %v7230
        %v7263 = vadd.f32 %v7247, %v7231
        %v7264 = vadd.f32 %v7248, %v7232
        %v7265 = vadd.f32 %v7249, %v7233
        %v7266 = vadd.f32 %v7250, %v7234
        %v7267 = vadd.f32 %v7251, %v7235
        %v7268 = vadd.f32 %v7252, %v7236
        %v7269 = vadd.f32 %v7253, %v7237
        %v7270 = vadd.f32 %v7254, %v7238
        %v7271 = vadd.f32 %v7255, %v7239
        %7272 = vst [vmem:[#allocation2] sm:$0xff] %v7256
        %7273 = vst [vmem:[#allocation2 + $0x8] sm:$0xff] %v7257
        %7274 = vst [vmem:[#allocation2 + $0x10] sm:$0xff] %v7258
        %7275 = vst [vmem:[#allocation2 + $0x18] sm:$0xff] %v7259
        %7276 = vst [vmem:[#allocation2 + $0x20] sm:$0xff] %v7260
        %7277 = vst [vmem:[#allocation2 + $0x28] sm:$0xff] %v7261
        %7278 = vst [vmem:[#allocation2 + $0x30] sm:$0xff] %v7262
        %7279 = vst [vmem:[#allocation2 + $0x38] sm:$0xff] %v7263
        %7280 = vst [vmem:[#allocation2 + $0x40] sm:$0xff] %v7264
        %7281 = vst [vmem:[#allocation2 + $0x48] sm:$0xff] %v7265
        %7282 = vst [vmem:[#allocation2 + $0x50] sm:$0xff] %v7266
        %7283 = vst [vmem:[#allocation2 + $0x58] sm:$0xff] %v7267
        %7284 = vst [vmem:[#allocation2 + $0x60] sm:$0xff] %v7268
        %7285 = vst [vmem:[#allocation2 + $0x68] sm:$0xff] %v7269
        %7286 = vst [vmem:[#allocation2 + $0x70] sm:$0xff] %v7270
        %7287 = vst [vmem:[#allocation2 + $0x78] sm:$0xff] %v7271
        // Predicated region
        $region41: #{tpu_custom_call.1} parent=35 // pred_check
          %p7288 = pneg %p306
        $region42: #{tpu_custom_call.1} parent=35 // pred_check_branch
          %7290 = sbr.rel (%p7288) target = $region44
        $region43: #{tpu_custom_call.1} parent=35 // pred_region
          %v7291 = vld [vmem:[#allocation2] sm:$0xff]
          %v7292 = vld [vmem:[#allocation2 + $0x8] sm:$0xff]
          %v7293 = vld [vmem:[#allocation2 + $0x10] sm:$0xff]
          %v7294 = vld [vmem:[#allocation2 + $0x18] sm:$0xff]
          %v7295 = vld [vmem:[#allocation2 + $0x20] sm:$0xff]
          %v7296 = vld [vmem:[#allocation2 + $0x28] sm:$0xff]
          %v7297 = vld [vmem:[#allocation2 + $0x30] sm:$0xff]
          %v7298 = vld [vmem:[#allocation2 + $0x38] sm:$0xff]
          %v7299 = vld [vmem:[#allocation2 + $0x40] sm:$0xff]
          %v7300 = vld [vmem:[#allocation2 + $0x48] sm:$0xff]
          %v7301 = vld [vmem:[#allocation2 + $0x50] sm:$0xff]
          %v7302 = vld [vmem:[#allocation2 + $0x58] sm:$0xff]
          %v7303 = vld [vmem:[#allocation2 + $0x60] sm:$0xff]
          %v7304 = vld [vmem:[#allocation2 + $0x68] sm:$0xff]
          %v7305 = vld [vmem:[#allocation2 + $0x70] sm:$0xff]
          %v7306 = vld [vmem:[#allocation2 + $0x78] sm:$0xff]
          %v7307 = vpack.c.bf16 %v7292, %v7291
          %v7308 = vpack.c.bf16 %v7294, %v7293
          %v7309 = vpack.c.bf16 %v7296, %v7295
          %v7310 = vpack.c.bf16 %v7298, %v7297
          %v7311 = vpack.c.bf16 %v7300, %v7299
          %v7312 = vpack.c.bf16 %v7302, %v7301
          %v7313 = vpack.c.bf16 %v7304, %v7303
          %v7314 = vpack.c.bf16 %v7306, %v7305
          %v7323 = vunpack.c.l.b16 %v7307
          %v7324 = vunpack.c.h.b16 %v7307
          %v7325 = vunpack.c.l.b16 %v7308
          %v7326 = vunpack.c.h.b16 %v7308
          %v7327 = vunpack.c.l.b16 %v7309
          %v7328 = vunpack.c.h.b16 %v7309
          %v7329 = vunpack.c.l.b16 %v7310
          %v7330 = vunpack.c.h.b16 %v7310
          %v7331 = vunpack.c.l.b16 %v7311
          %v7332 = vunpack.c.h.b16 %v7311
          %v7333 = vunpack.c.l.b16 %v7312
          %v7334 = vunpack.c.h.b16 %v7312
          %v7335 = vunpack.c.l.b16 %v7313
          %v7336 = vunpack.c.h.b16 %v7313
          %v7337 = vunpack.c.l.b16 %v7314
          %v7338 = vunpack.c.h.b16 %v7314
          %v7339 = vpack.c.b16 %v7323, %v7323
          %v7340 = vpack.c.b16 %v7324, %v7324
          %v7341 = vpack.c.b16 %v7325, %v7325
          %v7342 = vpack.c.b16 %v7326, %v7326
          %v7343 = vpack.c.b16 %v7327, %v7327
          %v7344 = vpack.c.b16 %v7328, %v7328
          %v7345 = vpack.c.b16 %v7329, %v7329
          %v7346 = vpack.c.b16 %v7330, %v7330
          %v7347 = vpack.c.b16 %v7331, %v7331
          %v7348 = vpack.c.b16 %v7332, %v7332
          %v7349 = vpack.c.b16 %v7333, %v7333
          %v7350 = vpack.c.b16 %v7334, %v7334
          %v7351 = vpack.c.b16 %v7335, %v7335
          %v7352 = vpack.c.b16 %v7336, %v7336
          %v7353 = vpack.c.b16 %v7337, %v7337
          %v7354 = vpack.c.b16 %v7338, %v7338
          %7371 = vst [vmem:[%s275] sm:$0xf] %v7339
          %7372 = vst [vmem:[%s275 + $0x4] sm:$0xf] %v7340
          %7373 = vst [vmem:[%s275 + $0x8] sm:$0xf] %v7341
          %7374 = vst [vmem:[%s275 + $0xc] sm:$0xf] %v7342
          %7375 = vst [vmem:[%s275 + $0x10] sm:$0xf] %v7343
          %7376 = vst [vmem:[%s275 + $0x14] sm:$0xf] %v7344
          %7377 = vst [vmem:[%s275 + $0x18] sm:$0xf] %v7345
          %7378 = vst [vmem:[%s275 + $0x1c] sm:$0xf] %v7346
          %7379 = vst [vmem:[%s275 + $0x20] sm:$0xf] %v7347
          %7380 = vst [vmem:[%s275 + $0x24] sm:$0xf] %v7348
          %7381 = vst [vmem:[%s275 + $0x28] sm:$0xf] %v7349
          %7382 = vst [vmem:[%s275 + $0x2c] sm:$0xf] %v7350
          %7383 = vst [vmem:[%s275 + $0x30] sm:$0xf] %v7351
          %7384 = vst [vmem:[%s275 + $0x34] sm:$0xf] %v7352
          %7385 = vst [vmem:[%s275 + $0x38] sm:$0xf] %v7353
          %7386 = vst [vmem:[%s275 + $0x3c] sm:$0xf] %v7354
        $region44: #{tpu_custom_call.1} parent=35 // pred_fallthru
          _
        %s7387 = sand.u32 %s155, 1
        %s7388 = scalar_lea.sflag [#allocation4], %s7387
        %s7389 = sand.u32 %s155, 1
        %s7390 = smul.addr %s7389, 64
        %s7391 = scalar_lea.vmem [#allocation3], %s7390
        // Predicated region
        $region45: #{tpu_custom_call.1} parent=35 // pred_check
          %p7392 = pneg %p165
        $region46: #{tpu_custom_call.1} parent=35 // pred_check_branch
          %7394 = sbr.rel (%p7392) target = $region48
        $region47: #{tpu_custom_call.1} parent=35 // pred_region
          %s7395 = smul.u32 16, %s24
          %s7397 = ssub.s32 1024, 1024
          %7398 = vsyncadd %s7388, %s7397
          %s7399 = smul.addr %s23, 16
          %s7400 = sadd.s32 %s7395, %s7399
          %s7401 = smul.addr %s7400, 64
          %s7402 = scalar_lea.hbm %s4, %s7401
          %s7403 = sshll.u32 %s7391, 4
          %s7404 = int_to_ptr.vmem [resolvable:$true] %s7403
          %7409 = dma.vmem_to_hbm [thread:$0]  %s7404, 1024, %s7402, %s7388, 64, 64, 4
        $region48: #{tpu_custom_call.1} parent=35 // pred_fallthru
          _
      $region36: #{tpu_custom_call.1} parent=5 // pred_fallthru
        _
      %p7410 = scmp.le.s32.totalorder 2, %s13
      // Predicated region
      $region49: #{tpu_custom_call.1} parent=5 // pred_check
        %p7411 = pneg %p7410
      $region50: #{tpu_custom_call.1} parent=5 // pred_check_branch
        %7413 = sbr.rel (%p7411) target = $region52
      $region51: #{tpu_custom_call.1} parent=5 // pred_region
        %s7414 = ssub.s32 %s13, 2
        // Predicated region
        $region53: #{tpu_custom_call.1} parent=51 // pred_check
          %p7415 = pneg %p171
        $region54: #{tpu_custom_call.1} parent=51 // pred_check_branch
          %7417 = sbr.rel (%p7415) target = $region56
        $region55: #{tpu_custom_call.1} parent=51 // pred_region
          %s7418 = sand.u32 %s156, 1
          %s7419 = scalar_lea.sflag [#allocation4], %s7418
          %s7420 = sand.u32 %s156, 1
          %s7421 = smul.addr %s7420, 64
          %s7422 = scalar_lea.vmem [#allocation3], %s7421
          %7423 = dma.done %s7419, 1024
        $region56: #{tpu_custom_call.1} parent=51 // pred_fallthru
          _
      $region52: #{tpu_custom_call.1} parent=5 // pred_fallthru
        _
    $region6: #{tpu_custom_call.1} parent=1 // loop_footer
      %s17 = sadd.s32 1, %s13
    $region7: #{tpu_custom_call.1} parent=1 // loop_footer_branch
      %12 = sbr.rel target = $region3
    $region8: #{tpu_custom_call.1} parent=1 // loop_exit
      _
    %7424 = vsyncpa [#allocation4], 1
    %s7425 = scalar_lea.sflag [#allocation4], 1
    %7426 = vsyncpa %s7425, 1

</llo_original>
